<compile_context>
chip_gen: v7x
topology: tpu7x:2x2x1
jax: 0.10.0
libtpu: 0.0.40
codegen_flags: <defaults>
</compile_context>

<pallas_src>
import jax
import jax.numpy as jnp
from jax import lax
from jax.experimental import pallas as pl
from jax.experimental.pallas import tpu as pltpu


def _round_up(x, m):
    return (x + m - 1) // m * m


# ----------------------------------------------------------------------------
# In-kernel helpers: static circular shifts (wrapped rows/lanes are don't-care;
# they only ever feed positions that are masked by zero weights or sliced off).
# ----------------------------------------------------------------------------
def _shift_rows(x, k):
    """result[r, :] = x[r + k, :] (tail rows wrap; wrapped rows are garbage)."""
    if k == 0:
        return x
    return jnp.concatenate([x[k:, :], x[:k, :]], axis=0)


def _shift_lanes(x, k):
    """result[:, l] = x[:, l + k] (tail lanes wrap; wrapped lanes are garbage)."""
    if k == 0:
        return x
    return jnp.concatenate([x[:, k:], x[:, :k]], axis=1)


# ----------------------------------------------------------------------------
# The fused LeNet forward kernel (one batch tile of TB images per grid step).
#
# Row space: r = b*32 + h  (b = image within tile, h = input row).
#   conv1 output (h=oh<=27) lives at rows b*32+oh, lanes ow*6+co        (168 lanes)
#   pooled conv1            at rows b*32+2i,      lanes 12j+ci
#   conv2 output            at rows b*32+2*oh2,   lanes 16*ow2+co       (160 lanes)
#   pooled conv2            at rows b*32+4*i2,    lanes 32*j2+co
# All other rows/lanes hold finite garbage that is multiplied by zero weights.
# ----------------------------------------------------------------------------
def lenet_fused_kernel(x_ref, wb1_ref, b1_ref, wb2_ref, b2_ref, sel_ref,
                       wf1_ref, bf1_ref, wf2_ref, bf2_ref, wf3_ref, bf3_ref,
                       o_ref):
    f32 = jnp.float32
    x = x_ref[...]                                              # [TB*32, 96] bf16

    # ---- conv1 (5x5, 3->6): 5 row-shifted banded matmuls -------------------
    acc = jnp.dot(x, wb1_ref[0], preferred_element_type=f32)    # [TB*32, 168]
    for kh in range(1, 5):
        acc = acc + jnp.dot(_shift_rows(x, kh), wb1_ref[kh],
                            preferred_element_type=f32)
    a = jnp.maximum(acc + b1_ref[...], 0.0)
    # 2x2 max-pool: adjacent rows (h), adjacent ow groups (6 lanes apart).
    a = jnp.maximum(a, _shift_rows(a, 1))
    a = jnp.maximum(a, _shift_lanes(a, 6))
    a = a.astype(jnp.bfloat16)

    # ---- conv2 (5x5, 6->16): pooled rows are 2 apart -> row shift 2*kh ------
    acc = jnp.dot(a, wb2_ref[0], preferred_element_type=f32)    # [TB*32, 160]
    for kh in range(1, 5):
        acc = acc + jnp.dot(_shift_rows(a, 2 * kh), wb2_ref[kh],
                            preferred_element_type=f32)
    a = jnp.maximum(acc + b2_ref[...], 0.0)
    # 2x2 max-pool: conv2 rows are 2 apart, ow2 groups are 16 lanes apart.
    a = jnp.maximum(a, _shift_rows(a, 2))
    a = jnp.maximum(a, _shift_lanes(a, 16))
    a = a.astype(jnp.bfloat16)

    # ---- flatten + fc1: pick the 5 valid rows per image via selection matmuls
    # and contract with the permuted fc1 weight slice for that pooled row i2.
    h = None
    for i2 in range(5):
        rows = jnp.dot(sel_ref[i2], a,
                       preferred_element_type=f32).astype(jnp.bfloat16)  # [TB,160]
        t = jnp.dot(rows, wf1_ref[i2], preferred_element_type=f32)       # [TB,128]
        h = t if h is None else h + t
    h = jnp.maximum(h + bf1_ref[...], 0.0).astype(jnp.bfloat16)

    # ---- fc2 + ReLU, fc3 ----------------------------------------------------
    h = jnp.maximum(jnp.dot(h, wf2_ref[...], preferred_element_type=f32)
                    + bf2_ref[...], 0.0).astype(jnp.bfloat16)
    o_ref[...] = jnp.dot(h, wf3_ref[...], preferred_element_type=f32) + bf3_ref[...]


# ----------------------------------------------------------------------------
# Host-side weight re-packing (tiny, pure data movement).
# ----------------------------------------------------------------------------
def _conv1_banded(w, b):
    """torch conv1 w [6,3,5,5] -> 5 banded mats [96,168]; rows w*3+ci, cols ow*6+co."""
    wt = jnp.transpose(w, (2, 3, 1, 0))                         # [kh, kw, ci, co]
    kw = jnp.arange(32)[:, None] - jnp.arange(28)[None, :]      # [w, ow]
    mask = ((kw >= 0) & (kw <= 4)).astype(wt.dtype)
    band = wt[:, jnp.clip(kw, 0, 4), :, :] * mask[None, :, :, None, None]
    band = jnp.transpose(band, (0, 1, 3, 2, 4)).reshape(5, 96, 168)
    bias = jnp.tile(b, 28).reshape(1, 168)
    return band.astype(jnp.bfloat16), bias.astype(jnp.float32)


def _conv2_banded(w, b):
    """torch conv2 w [16,6,5,5] -> 5 banded mats [168,160]; rows j*12+ci, cols ow2*16+co."""
    wt = jnp.transpose(w, (2, 3, 1, 0))                         # [kh, kw, ci, co]
    kw = jnp.arange(14)[:, None] - jnp.arange(10)[None, :]      # [j, ow2]
    mask = ((kw >= 0) & (kw <= 4)).astype(wt.dtype)
    band = wt[:, jnp.clip(kw, 0, 4), :, :] * mask[None, :, :, None, None]
    band = jnp.transpose(band, (0, 1, 3, 2, 4))                 # [kh, j, ci, ow2, co]
    band = jnp.pad(band, ((0, 0), (0, 0), (0, 6), (0, 0), (0, 0)))   # ci 6 -> 12
    band = band.reshape(5, 168, 160)
    bias = jnp.tile(b, 10).reshape(1, 160)
    return band.astype(jnp.bfloat16), bias.astype(jnp.float32)


def _fc_weights(params):
    """fc1 columns permuted from torch's NCHW flatten (k = co*25+i2*5+j2) to the
    kernel's (i2-slice, lane 32*j2+co) layout; all widths padded to 128 lanes."""
    w1 = params["fc1_w"].reshape(120, 16, 5, 5)                 # [n, co, i2, j2]
    w1 = jnp.transpose(w1, (2, 3, 1, 0))                        # [i2, j2, co, n]
    w1 = jnp.pad(w1, ((0, 0), (0, 0), (0, 16), (0, 8)))         # co 16->32, n 120->128
    wf1 = w1.reshape(5, 160, 128).astype(jnp.bfloat16)
    bf1 = jnp.pad(params["fc1_b"], (0, 8)).reshape(1, 128).astype(jnp.float32)
    wf2 = jnp.pad(params["fc2_w"].T, ((0, 8), (0, 44))).astype(jnp.bfloat16)    # [128,128]
    bf2 = jnp.pad(params["fc2_b"], (0, 44)).reshape(1, 128).astype(jnp.float32)
    wf3 = jnp.pad(params["fc3_w"].T, ((0, 44), (0, 118))).astype(jnp.bfloat16)  # [128,128]
    bf3 = jnp.pad(params["fc3_b"], (0, 118)).reshape(1, 128).astype(jnp.float32)
    return wf1, bf1, wf2, bf2, wf3, bf3


def _selection_matrices(tb):
    """sel[i2, b, b*32 + 4*i2] = 1: picks the pooled-conv2 row (image b, row i2)."""
    rows = jnp.arange(tb)[None, :] * 32 + 4 * jnp.arange(5)[:, None]   # [5, tb]
    return jax.nn.one_hot(rows, tb * 32, dtype=jnp.bfloat16)           # [5, tb, tb*32]


# ----------------------------------------------------------------------------
# Forward pass (matches torch Net.forward semantics, bf16 compute / f32 accumulate)
# ----------------------------------------------------------------------------
def net_forward(params, x, *, batch_tile=None):
    # x: [B, 3, 32, 32] float32 (NCHW at the module boundary, like torch).
    b = x.shape[0]
    if batch_tile is None:
        b8 = _round_up(b, 8)
        tb = min(32, max(8, _round_up(b8 // 4, 8)))   # aim for >=2-4 grid blocks
    else:
        tb = _round_up(batch_tile, 8)
    b_pad = _round_up(b, tb)
    grid = b_pad // tb

    # NCHW -> rows (b, h) x lanes (w*3 + c), bf16.  Only transpose of the raw input.
    xh = jnp.transpose(x, (0, 2, 3, 1)).reshape(b, 32, 96)
    if b_pad != b:
        xh = jnp.pad(xh, ((0, b_pad - b), (0, 0), (0, 0)))
    x2d = xh.reshape(b_pad * 32, 96).astype(jnp.bfloat16)

    wb1, bb1 = _conv1_banded(params["conv1_w"], params["conv1_b"])
    wb2, bb2 = _conv2_banded(params["conv2_w"], params["conv2_b"])
    wf1, bf1, wf2, bf2, wf3, bf3 = _fc_weights(params)
    sel = _selection_matrices(tb)

    flops_step = (5 * 2 * (tb * 32) * 96 * 168          # conv1 banded
                  + 5 * 2 * (tb * 32) * 168 * 160        # conv2 banded
                  + 5 * 2 * tb * (tb * 32) * 160         # row selection
                  + 5 * 2 * tb * 160 * 128               # fc1
                  + 2 * 2 * tb * 128 * 128)              # fc2 + fc3
    weight_bytes = 2 * (5 * 96 * 168 + 5 * 168 * 160 + 5 * tb * tb * 32
                        + 5 * 160 * 128 + 2 * 128 * 128) + 4 * (168 + 160 + 3 * 128)
    cost = pl.CostEstimate(
        flops=grid * flops_step,
        transcendentals=0,
        bytes_accessed=grid * (2 * tb * 32 * 96 + 4 * tb * 128) + weight_bytes,
    )

    out = pl.pallas_call(
        lenet_fused_kernel,
        grid=(grid,),
        in_specs=[
            pl.BlockSpec((tb * 32, 96), lambda i: (i, 0)),          # image slab
            pl.BlockSpec((5, 96, 168), lambda i: (0, 0, 0)),        # conv1 banded w
            pl.BlockSpec((1, 168), lambda i: (0, 0)),               # conv1 bias lanes
            pl.BlockSpec((5, 168, 160), lambda i: (0, 0, 0)),       # conv2 banded w
            pl.BlockSpec((1, 160), lambda i: (0, 0)),               # conv2 bias lanes
            pl.BlockSpec((5, tb, tb * 32), lambda i: (0, 0, 0)),    # row-selection mats
            pl.BlockSpec((5, 160, 128), lambda i: (0, 0, 0)),       # fc1 (permuted)
            pl.BlockSpec((1, 128), lambda i: (0, 0)),
            pl.BlockSpec((128, 128), lambda i: (0, 0)),             # fc2
            pl.BlockSpec((1, 128), lambda i: (0, 0)),
            pl.BlockSpec((128, 128), lambda i: (0, 0)),             # fc3
            pl.BlockSpec((1, 128), lambda i: (0, 0)),
        ],
        out_specs=pl.BlockSpec((tb, 128), lambda i: (i, 0)),
        out_shape=jax.ShapeDtypeStruct((b_pad, 128), jnp.float32),
        compiler_params=pltpu.CompilerParams(
            dimension_semantics=("parallel",),
            vmem_limit_bytes=32 * 1024 * 1024,
        ),
        cost_estimate=cost,
    )(x2d, wb1, bb1, wb2, bb2, sel, wf1, bf1, wf2, bf2, wf3, bf3)
    return out[:b, :10]


# ----------------------------------------------------------------------------
# Pure-JAX f32 reference (torch Net.forward semantics) for the built-in check.
# ----------------------------------------------------------------------------
def net_forward_reference(params, x):
    y = lax.conv_general_dilated(x, params["conv1_w"], (1, 1), "VALID",
                                 dimension_numbers=("NCHW", "OIHW", "NCHW"))
    y = jax.nn.relu(y + params["conv1_b"][None, :, None, None])
    y = lax.reduce_window(y, -jnp.inf, lax.max, (1, 1, 2, 2), (1, 1, 2, 2), "VALID")
    y = lax.conv_general_dilated(y, params["conv2_w"], (1, 1), "VALID",
                                 dimension_numbers=("NCHW", "OIHW", "NCHW"))
    y = jax.nn.relu(y + params["conv2_b"][None, :, None, None])
    y = lax.reduce_window(y, -jnp.inf, lax.max, (1, 1, 2, 2), (1, 1, 2, 2), "VALID")
    y = y.reshape(y.shape[0], -1)                                # NCHW flatten -> 400
    y = jax.nn.relu(y @ params["fc1_w"].T + params["fc1_b"])
    y = jax.nn.relu(y @ params["fc2_w"].T + params["fc2_b"])
    return y @ params["fc3_w"].T + params["fc3_b"]


# ----------------------------------------------------------------------------
# Parameter init (deterministic, torch-default-like uniform)
# ----------------------------------------------------------------------------
def _uniform(key, shape, fan_in):
    bound = 1.0 / jnp.sqrt(jnp.float32(fan_in))
    return jax.random.uniform(key, shape, jnp.float32, -bound, bound)


def init_params(key):
    ks = jax.random.split(key, 10)
    return {
        "conv1_w": _uniform(ks[0], (6, 3, 5, 5), 3 * 5 * 5),
        "conv1_b": _uniform(ks[1], (6,), 3 * 5 * 5),
        "conv2_w": _uniform(ks[2], (16, 6, 5, 5), 6 * 5 * 5),
        "conv2_b": _uniform(ks[3], (16,), 6 * 5 * 5),
        "fc1_w": _uniform(ks[4], (120, 400), 400),
        "fc1_b": _uniform(ks[5], (120,), 400),
        "fc2_w": _uniform(ks[6], (84, 120), 120),
        "fc2_b": _uniform(ks[7], (84,), 120),
        "fc3_w": _uniform(ks[8], (10, 84), 84),
        "fc3_b": _uniform(ks[9], (10,), 84),
    }


if __name__ == "__main__":
    key = jax.random.PRNGKey(0)
    k_x, k_p = jax.random.split(key)
    x = jax.random.normal(k_x, (2, 3, 32, 32), jnp.float32)      # CIFAR-sized, batch=2
    params = init_params(k_p)

    fwd = jax.jit(net_forward)
    out = fwd(params, x)
    jax.block_until_ready(out)
    assert out.shape == (2, 10) and out.dtype == jnp.float32

    # bf16 activations/weights (f32 accumulation) vs f32 XLA reference: ~1e-2 rel tol.
    ref = jax.jit(net_forward_reference)(params, x)
    jax.block_until_ready(ref)
    err = float(jnp.max(jnp.abs(out - ref)))
    scale = float(jnp.max(jnp.abs(ref))) + 1e-6
    assert err <= 5e-2 * scale + 5e-2, (err, scale)
    print("KERNEL_OK")
</pallas_src>

<mosaic_0001>
module attributes {stable_mosaic.version = 11 : i64} {
  func.func @lenet_fused_kernel(%arg0: i32, %arg1: memref<256x96xbf16, #tpu.memory_space<vmem>>, %arg2: memref<5x96x168xbf16, #tpu.memory_space<vmem>>, %arg3: memref<1x168xf32, #tpu.memory_space<vmem>>, %arg4: memref<5x168x160xbf16, #tpu.memory_space<vmem>>, %arg5: memref<1x160xf32, #tpu.memory_space<vmem>>, %arg6: memref<5x8x256xbf16, #tpu.memory_space<vmem>>, %arg7: memref<5x160x128xbf16, #tpu.memory_space<vmem>>, %arg8: memref<1x128xf32, #tpu.memory_space<vmem>>, %arg9: memref<128x128xbf16, #tpu.memory_space<vmem>>, %arg10: memref<1x128xf32, #tpu.memory_space<vmem>>, %arg11: memref<128x128xbf16, #tpu.memory_space<vmem>>, %arg12: memref<1x128xf32, #tpu.memory_space<vmem>>, %arg13: memref<8x128xf32, #tpu.memory_space<vmem>>) attributes {dimension_semantics = [#tpu.dimension_semantics<parallel>], iteration_bounds = array<i64: 1>, scalar_prefetch = 0 : i64, scratch_operands = 0 : i64, tpu.core_type = #tpu.core_type<tc>, window_params = [{transform_indices = @transform_0, window_bounds = array<i64: 256, 96>}, {pipeline_mode = #tpu.pipeline_mode<synchronous>, transform_indices = @transform_1, window_bounds = array<i64: 5, 96, 168>}, {pipeline_mode = #tpu.pipeline_mode<synchronous>, transform_indices = @transform_2, window_bounds = array<i64: 1, 168>}, {pipeline_mode = #tpu.pipeline_mode<synchronous>, transform_indices = @transform_3, window_bounds = array<i64: 5, 168, 160>}, {pipeline_mode = #tpu.pipeline_mode<synchronous>, transform_indices = @transform_4, window_bounds = array<i64: 1, 160>}, {pipeline_mode = #tpu.pipeline_mode<synchronous>, transform_indices = @transform_5, window_bounds = array<i64: 5, 8, 256>}, {pipeline_mode = #tpu.pipeline_mode<synchronous>, transform_indices = @transform_6, window_bounds = array<i64: 5, 160, 128>}, {pipeline_mode = #tpu.pipeline_mode<synchronous>, transform_indices = @transform_7, window_bounds = array<i64: 1, 128>}, {pipeline_mode = #tpu.pipeline_mode<synchronous>, transform_indices = @transform_8, window_bounds = array<i64: 128, 128>}, {pipeline_mode = #tpu.pipeline_mode<synchronous>, transform_indices = @transform_9, window_bounds = array<i64: 1, 128>}, {pipeline_mode = #tpu.pipeline_mode<synchronous>, transform_indices = @transform_10, window_bounds = array<i64: 128, 128>}, {pipeline_mode = #tpu.pipeline_mode<synchronous>, transform_indices = @transform_11, window_bounds = array<i64: 1, 128>}, {transform_indices = @transform_12, window_bounds = array<i64: 8, 128>}]} {
    %c0 = arith.constant 0 : index
    %c0_0 = arith.constant 0 : index
    %0 = vector.load %arg1[%c0, %c0_0] : memref<256x96xbf16, #tpu.memory_space<vmem>>, vector<256x96xbf16>
    %c0_1 = arith.constant 0 : index
    %c0_2 = arith.constant 0 : index
    %c0_3 = arith.constant 0 : index
    %1 = vector.load %arg2[%c0_1, %c0_2, %c0_3] : memref<5x96x168xbf16, #tpu.memory_space<vmem>>, vector<1x96x168xbf16>
    %2 = vector.shape_cast %1 : vector<1x96x168xbf16> to vector<96x168xbf16>
    %cst = arith.constant dense<0.000000e+00> : vector<256x168xf32>
    %3 = tpu.matmul %0, %2, %cst {dimension_numbers = #tpu.dot_dimension_numbers<[1], [0], [0], [1], [0, 0, 1, 1], [], []>} : vector<256x96xbf16>, vector<96x168xbf16>, vector<256x168xf32> -> vector<256x168xf32>
    %4 = vector.extract_strided_slice %0 {offsets = [1, 0], sizes = [255, 96], strides = [1, 1]} : vector<256x96xbf16> to vector<255x96xbf16>
    %5 = vector.extract_strided_slice %0 {offsets = [0, 0], sizes = [1, 96], strides = [1, 1]} : vector<256x96xbf16> to vector<1x96xbf16>
    %6 = tpu.concatenate %4, %5 in 0 : vector<255x96xbf16>, vector<1x96xbf16> -> vector<256x96xbf16>
    %c1 = arith.constant 1 : index
    %c0_4 = arith.constant 0 : index
    %c0_5 = arith.constant 0 : index
    %7 = vector.load %arg2[%c1, %c0_4, %c0_5] : memref<5x96x168xbf16, #tpu.memory_space<vmem>>, vector<1x96x168xbf16>
    %8 = vector.shape_cast %7 : vector<1x96x168xbf16> to vector<96x168xbf16>
    %cst_6 = arith.constant dense<0.000000e+00> : vector<256x168xf32>
    %9 = tpu.matmul %6, %8, %cst_6 {dimension_numbers = #tpu.dot_dimension_numbers<[1], [0], [0], [1], [0, 0, 1, 1], [], []>} : vector<256x96xbf16>, vector<96x168xbf16>, vector<256x168xf32> -> vector<256x168xf32>
    %10 = arith.addf %3, %9 : vector<256x168xf32>
    %11 = vector.extract_strided_slice %0 {offsets = [2, 0], sizes = [254, 96], strides = [1, 1]} : vector<256x96xbf16> to vector<254x96xbf16>
    %12 = vector.extract_strided_slice %0 {offsets = [0, 0], sizes = [2, 96], strides = [1, 1]} : vector<256x96xbf16> to vector<2x96xbf16>
    %13 = tpu.concatenate %11, %12 in 0 : vector<254x96xbf16>, vector<2x96xbf16> -> vector<256x96xbf16>
    %c2 = arith.constant 2 : index
    %c0_7 = arith.constant 0 : index
    %c0_8 = arith.constant 0 : index
    %14 = vector.load %arg2[%c2, %c0_7, %c0_8] : memref<5x96x168xbf16, #tpu.memory_space<vmem>>, vector<1x96x168xbf16>
    %15 = vector.shape_cast %14 : vector<1x96x168xbf16> to vector<96x168xbf16>
    %cst_9 = arith.constant dense<0.000000e+00> : vector<256x168xf32>
    %16 = tpu.matmul %13, %15, %cst_9 {dimension_numbers = #tpu.dot_dimension_numbers<[1], [0], [0], [1], [0, 0, 1, 1], [], []>} : vector<256x96xbf16>, vector<96x168xbf16>, vector<256x168xf32> -> vector<256x168xf32>
    %17 = arith.addf %10, %16 : vector<256x168xf32>
    %18 = vector.extract_strided_slice %0 {offsets = [3, 0], sizes = [253, 96], strides = [1, 1]} : vector<256x96xbf16> to vector<253x96xbf16>
    %19 = vector.extract_strided_slice %0 {offsets = [0, 0], sizes = [3, 96], strides = [1, 1]} : vector<256x96xbf16> to vector<3x96xbf16>
    %20 = tpu.concatenate %18, %19 in 0 : vector<253x96xbf16>, vector<3x96xbf16> -> vector<256x96xbf16>
    %c3 = arith.constant 3 : index
    %c0_10 = arith.constant 0 : index
    %c0_11 = arith.constant 0 : index
    %21 = vector.load %arg2[%c3, %c0_10, %c0_11] : memref<5x96x168xbf16, #tpu.memory_space<vmem>>, vector<1x96x168xbf16>
    %22 = vector.shape_cast %21 : vector<1x96x168xbf16> to vector<96x168xbf16>
    %cst_12 = arith.constant dense<0.000000e+00> : vector<256x168xf32>
    %23 = tpu.matmul %20, %22, %cst_12 {dimension_numbers = #tpu.dot_dimension_numbers<[1], [0], [0], [1], [0, 0, 1, 1], [], []>} : vector<256x96xbf16>, vector<96x168xbf16>, vector<256x168xf32> -> vector<256x168xf32>
    %24 = arith.addf %17, %23 : vector<256x168xf32>
    %25 = vector.extract_strided_slice %0 {offsets = [4, 0], sizes = [252, 96], strides = [1, 1]} : vector<256x96xbf16> to vector<252x96xbf16>
    %26 = vector.extract_strided_slice %0 {offsets = [0, 0], sizes = [4, 96], strides = [1, 1]} : vector<256x96xbf16> to vector<4x96xbf16>
    %27 = tpu.concatenate %25, %26 in 0 : vector<252x96xbf16>, vector<4x96xbf16> -> vector<256x96xbf16>
    %c4 = arith.constant 4 : index
    %c0_13 = arith.constant 0 : index
    %c0_14 = arith.constant 0 : index
    %28 = vector.load %arg2[%c4, %c0_13, %c0_14] : memref<5x96x168xbf16, #tpu.memory_space<vmem>>, vector<1x96x168xbf16>
    %29 = vector.shape_cast %28 : vector<1x96x168xbf16> to vector<96x168xbf16>
    %cst_15 = arith.constant dense<0.000000e+00> : vector<256x168xf32>
    %30 = tpu.matmul %27, %29, %cst_15 {dimension_numbers = #tpu.dot_dimension_numbers<[1], [0], [0], [1], [0, 0, 1, 1], [], []>} : vector<256x96xbf16>, vector<96x168xbf16>, vector<256x168xf32> -> vector<256x168xf32>
    %31 = arith.addf %24, %30 : vector<256x168xf32>
    %c0_16 = arith.constant 0 : index
    %c0_17 = arith.constant 0 : index
    %32 = vector.load %arg3[%c0_16, %c0_17] : memref<1x168xf32, #tpu.memory_space<vmem>>, vector<1x168xf32>
    %33 = vector.broadcast %32 : vector<1x168xf32> to vector<256x168xf32>
    %34 = arith.addf %31, %33 : vector<256x168xf32>
    %cst_18 = arith.constant 0.000000e+00 : f32
    %35 = vector.broadcast %cst_18 : f32 to vector<256x168xf32>
    %36 = arith.maximumf %34, %35 : vector<256x168xf32>
    %37 = vector.extract_strided_slice %36 {offsets = [1, 0], sizes = [255, 168], strides = [1, 1]} : vector<256x168xf32> to vector<255x168xf32>
    %38 = vector.extract_strided_slice %36 {offsets = [0, 0], sizes = [1, 168], strides = [1, 1]} : vector<256x168xf32> to vector<1x168xf32>
    %39 = tpu.concatenate %37, %38 in 0 : vector<255x168xf32>, vector<1x168xf32> -> vector<256x168xf32>
    %40 = arith.maximumf %36, %39 : vector<256x168xf32>
    %41 = vector.extract_strided_slice %40 {offsets = [0, 6], sizes = [256, 162], strides = [1, 1]} : vector<256x168xf32> to vector<256x162xf32>
    %42 = vector.extract_strided_slice %40 {offsets = [0, 0], sizes = [256, 6], strides = [1, 1]} : vector<256x168xf32> to vector<256x6xf32>
    %43 = tpu.concatenate %41, %42 in 1 : vector<256x162xf32>, vector<256x6xf32> -> vector<256x168xf32>
    %44 = arith.maximumf %40, %43 : vector<256x168xf32>
    %45 = arith.truncf %44 : vector<256x168xf32> to vector<256x168xbf16>
    %c0_19 = arith.constant 0 : index
    %c0_20 = arith.constant 0 : index
    %c0_21 = arith.constant 0 : index
    %46 = vector.load %arg4[%c0_19, %c0_20, %c0_21] : memref<5x168x160xbf16, #tpu.memory_space<vmem>>, vector<1x168x160xbf16>
    %47 = vector.shape_cast %46 : vector<1x168x160xbf16> to vector<168x160xbf16>
    %cst_22 = arith.constant dense<0.000000e+00> : vector<256x160xf32>
    %48 = tpu.matmul %45, %47, %cst_22 {dimension_numbers = #tpu.dot_dimension_numbers<[1], [0], [0], [1], [0, 0, 1, 1], [], []>} : vector<256x168xbf16>, vector<168x160xbf16>, vector<256x160xf32> -> vector<256x160xf32>
    %49 = vector.extract_strided_slice %45 {offsets = [2, 0], sizes = [254, 168], strides = [1, 1]} : vector<256x168xbf16> to vector<254x168xbf16>
    %50 = vector.extract_strided_slice %45 {offsets = [0, 0], sizes = [2, 168], strides = [1, 1]} : vector<256x168xbf16> to vector<2x168xbf16>
    %51 = tpu.concatenate %49, %50 in 0 : vector<254x168xbf16>, vector<2x168xbf16> -> vector<256x168xbf16>
    %c1_23 = arith.constant 1 : index
    %c0_24 = arith.constant 0 : index
    %c0_25 = arith.constant 0 : index
    %52 = vector.load %arg4[%c1_23, %c0_24, %c0_25] : memref<5x168x160xbf16, #tpu.memory_space<vmem>>, vector<1x168x160xbf16>
    %53 = vector.shape_cast %52 : vector<1x168x160xbf16> to vector<168x160xbf16>
    %cst_26 = arith.constant dense<0.000000e+00> : vector<256x160xf32>
    %54 = tpu.matmul %51, %53, %cst_26 {dimension_numbers = #tpu.dot_dimension_numbers<[1], [0], [0], [1], [0, 0, 1, 1], [], []>} : vector<256x168xbf16>, vector<168x160xbf16>, vector<256x160xf32> -> vector<256x160xf32>
    %55 = arith.addf %48, %54 : vector<256x160xf32>
    %56 = vector.extract_strided_slice %45 {offsets = [4, 0], sizes = [252, 168], strides = [1, 1]} : vector<256x168xbf16> to vector<252x168xbf16>
    %57 = vector.extract_strided_slice %45 {offsets = [0, 0], sizes = [4, 168], strides = [1, 1]} : vector<256x168xbf16> to vector<4x168xbf16>
    %58 = tpu.concatenate %56, %57 in 0 : vector<252x168xbf16>, vector<4x168xbf16> -> vector<256x168xbf16>
    %c2_27 = arith.constant 2 : index
    %c0_28 = arith.constant 0 : index
    %c0_29 = arith.constant 0 : index
    %59 = vector.load %arg4[%c2_27, %c0_28, %c0_29] : memref<5x168x160xbf16, #tpu.memory_space<vmem>>, vector<1x168x160xbf16>
    %60 = vector.shape_cast %59 : vector<1x168x160xbf16> to vector<168x160xbf16>
    %cst_30 = arith.constant dense<0.000000e+00> : vector<256x160xf32>
    %61 = tpu.matmul %58, %60, %cst_30 {dimension_numbers = #tpu.dot_dimension_numbers<[1], [0], [0], [1], [0, 0, 1, 1], [], []>} : vector<256x168xbf16>, vector<168x160xbf16>, vector<256x160xf32> -> vector<256x160xf32>
    %62 = arith.addf %55, %61 : vector<256x160xf32>
    %63 = vector.extract_strided_slice %45 {offsets = [6, 0], sizes = [250, 168], strides = [1, 1]} : vector<256x168xbf16> to vector<250x168xbf16>
    %64 = vector.extract_strided_slice %45 {offsets = [0, 0], sizes = [6, 168], strides = [1, 1]} : vector<256x168xbf16> to vector<6x168xbf16>
    %65 = tpu.concatenate %63, %64 in 0 : vector<250x168xbf16>, vector<6x168xbf16> -> vector<256x168xbf16>
    %c3_31 = arith.constant 3 : index
    %c0_32 = arith.constant 0 : index
    %c0_33 = arith.constant 0 : index
    %66 = vector.load %arg4[%c3_31, %c0_32, %c0_33] : memref<5x168x160xbf16, #tpu.memory_space<vmem>>, vector<1x168x160xbf16>
    %67 = vector.shape_cast %66 : vector<1x168x160xbf16> to vector<168x160xbf16>
    %cst_34 = arith.constant dense<0.000000e+00> : vector<256x160xf32>
    %68 = tpu.matmul %65, %67, %cst_34 {dimension_numbers = #tpu.dot_dimension_numbers<[1], [0], [0], [1], [0, 0, 1, 1], [], []>} : vector<256x168xbf16>, vector<168x160xbf16>, vector<256x160xf32> -> vector<256x160xf32>
    %69 = arith.addf %62, %68 : vector<256x160xf32>
    %70 = vector.extract_strided_slice %45 {offsets = [8, 0], sizes = [248, 168], strides = [1, 1]} : vector<256x168xbf16> to vector<248x168xbf16>
    %71 = vector.extract_strided_slice %45 {offsets = [0, 0], sizes = [8, 168], strides = [1, 1]} : vector<256x168xbf16> to vector<8x168xbf16>
    %72 = tpu.concatenate %70, %71 in 0 : vector<248x168xbf16>, vector<8x168xbf16> -> vector<256x168xbf16>
    %c4_35 = arith.constant 4 : index
    %c0_36 = arith.constant 0 : index
    %c0_37 = arith.constant 0 : index
    %73 = vector.load %arg4[%c4_35, %c0_36, %c0_37] : memref<5x168x160xbf16, #tpu.memory_space<vmem>>, vector<1x168x160xbf16>
    %74 = vector.shape_cast %73 : vector<1x168x160xbf16> to vector<168x160xbf16>
    %cst_38 = arith.constant dense<0.000000e+00> : vector<256x160xf32>
    %75 = tpu.matmul %72, %74, %cst_38 {dimension_numbers = #tpu.dot_dimension_numbers<[1], [0], [0], [1], [0, 0, 1, 1], [], []>} : vector<256x168xbf16>, vector<168x160xbf16>, vector<256x160xf32> -> vector<256x160xf32>
    %76 = arith.addf %69, %75 : vector<256x160xf32>
    %c0_39 = arith.constant 0 : index
    %c0_40 = arith.constant 0 : index
    %77 = vector.load %arg5[%c0_39, %c0_40] : memref<1x160xf32, #tpu.memory_space<vmem>>, vector<1x160xf32>
    %78 = vector.broadcast %77 : vector<1x160xf32> to vector<256x160xf32>
    %79 = arith.addf %76, %78 : vector<256x160xf32>
    %cst_41 = arith.constant 0.000000e+00 : f32
    %80 = vector.broadcast %cst_41 : f32 to vector<256x160xf32>
    %81 = arith.maximumf %79, %80 : vector<256x160xf32>
    %82 = vector.extract_strided_slice %81 {offsets = [2, 0], sizes = [254, 160], strides = [1, 1]} : vector<256x160xf32> to vector<254x160xf32>
    %83 = vector.extract_strided_slice %81 {offsets = [0, 0], sizes = [2, 160], strides = [1, 1]} : vector<256x160xf32> to vector<2x160xf32>
    %84 = tpu.concatenate %82, %83 in 0 : vector<254x160xf32>, vector<2x160xf32> -> vector<256x160xf32>
    %85 = arith.maximumf %81, %84 : vector<256x160xf32>
    %86 = vector.extract_strided_slice %85 {offsets = [0, 16], sizes = [256, 144], strides = [1, 1]} : vector<256x160xf32> to vector<256x144xf32>
    %87 = vector.extract_strided_slice %85 {offsets = [0, 0], sizes = [256, 16], strides = [1, 1]} : vector<256x160xf32> to vector<256x16xf32>
    %88 = tpu.concatenate %86, %87 in 1 : vector<256x144xf32>, vector<256x16xf32> -> vector<256x160xf32>
    %89 = arith.maximumf %85, %88 : vector<256x160xf32>
    %90 = arith.truncf %89 : vector<256x160xf32> to vector<256x160xbf16>
    %c0_42 = arith.constant 0 : index
    %c0_43 = arith.constant 0 : index
    %c0_44 = arith.constant 0 : index
    %91 = vector.load %arg6[%c0_42, %c0_43, %c0_44] : memref<5x8x256xbf16, #tpu.memory_space<vmem>>, vector<1x8x256xbf16>
    %92 = vector.shape_cast %91 : vector<1x8x256xbf16> to vector<8x256xbf16>
    %cst_45 = arith.constant dense<0.000000e+00> : vector<8x160xf32>
    %93 = tpu.matmul %92, %90, %cst_45 {dimension_numbers = #tpu.dot_dimension_numbers<[1], [0], [0], [1], [0, 0, 1, 1], [], []>} : vector<8x256xbf16>, vector<256x160xbf16>, vector<8x160xf32> -> vector<8x160xf32>
    %94 = arith.truncf %93 : vector<8x160xf32> to vector<8x160xbf16>
    %c0_46 = arith.constant 0 : index
    %c0_47 = arith.constant 0 : index
    %c0_48 = arith.constant 0 : index
    %95 = vector.load %arg7[%c0_46, %c0_47, %c0_48] : memref<5x160x128xbf16, #tpu.memory_space<vmem>>, vector<1x160x128xbf16>
    %96 = vector.shape_cast %95 : vector<1x160x128xbf16> to vector<160x128xbf16>
    %cst_49 = arith.constant dense<0.000000e+00> : vector<8x128xf32>
    %97 = tpu.matmul %94, %96, %cst_49 {dimension_numbers = #tpu.dot_dimension_numbers<[1], [0], [0], [1], [0, 0, 1, 1], [], []>} : vector<8x160xbf16>, vector<160x128xbf16>, vector<8x128xf32> -> vector<8x128xf32>
    %c1_50 = arith.constant 1 : index
    %c0_51 = arith.constant 0 : index
    %c0_52 = arith.constant 0 : index
    %98 = vector.load %arg6[%c1_50, %c0_51, %c0_52] : memref<5x8x256xbf16, #tpu.memory_space<vmem>>, vector<1x8x256xbf16>
    %99 = vector.shape_cast %98 : vector<1x8x256xbf16> to vector<8x256xbf16>
    %cst_53 = arith.constant dense<0.000000e+00> : vector<8x160xf32>
    %100 = tpu.matmul %99, %90, %cst_53 {dimension_numbers = #tpu.dot_dimension_numbers<[1], [0], [0], [1], [0, 0, 1, 1], [], []>} : vector<8x256xbf16>, vector<256x160xbf16>, vector<8x160xf32> -> vector<8x160xf32>
    %101 = arith.truncf %100 : vector<8x160xf32> to vector<8x160xbf16>
    %c1_54 = arith.constant 1 : index
    %c0_55 = arith.constant 0 : index
    %c0_56 = arith.constant 0 : index
    %102 = vector.load %arg7[%c1_54, %c0_55, %c0_56] : memref<5x160x128xbf16, #tpu.memory_space<vmem>>, vector<1x160x128xbf16>
    %103 = vector.shape_cast %102 : vector<1x160x128xbf16> to vector<160x128xbf16>
    %cst_57 = arith.constant dense<0.000000e+00> : vector<8x128xf32>
    %104 = tpu.matmul %101, %103, %cst_57 {dimension_numbers = #tpu.dot_dimension_numbers<[1], [0], [0], [1], [0, 0, 1, 1], [], []>} : vector<8x160xbf16>, vector<160x128xbf16>, vector<8x128xf32> -> vector<8x128xf32>
    %105 = arith.addf %97, %104 : vector<8x128xf32>
    %c2_58 = arith.constant 2 : index
    %c0_59 = arith.constant 0 : index
    %c0_60 = arith.constant 0 : index
    %106 = vector.load %arg6[%c2_58, %c0_59, %c0_60] : memref<5x8x256xbf16, #tpu.memory_space<vmem>>, vector<1x8x256xbf16>
    %107 = vector.shape_cast %106 : vector<1x8x256xbf16> to vector<8x256xbf16>
    %cst_61 = arith.constant dense<0.000000e+00> : vector<8x160xf32>
    %108 = tpu.matmul %107, %90, %cst_61 {dimension_numbers = #tpu.dot_dimension_numbers<[1], [0], [0], [1], [0, 0, 1, 1], [], []>} : vector<8x256xbf16>, vector<256x160xbf16>, vector<8x160xf32> -> vector<8x160xf32>
    %109 = arith.truncf %108 : vector<8x160xf32> to vector<8x160xbf16>
    %c2_62 = arith.constant 2 : index
    %c0_63 = arith.constant 0 : index
    %c0_64 = arith.constant 0 : index
    %110 = vector.load %arg7[%c2_62, %c0_63, %c0_64] : memref<5x160x128xbf16, #tpu.memory_space<vmem>>, vector<1x160x128xbf16>
    %111 = vector.shape_cast %110 : vector<1x160x128xbf16> to vector<160x128xbf16>
    %cst_65 = arith.constant dense<0.000000e+00> : vector<8x128xf32>
    %112 = tpu.matmul %109, %111, %cst_65 {dimension_numbers = #tpu.dot_dimension_numbers<[1], [0], [0], [1], [0, 0, 1, 1], [], []>} : vector<8x160xbf16>, vector<160x128xbf16>, vector<8x128xf32> -> vector<8x128xf32>
    %113 = arith.addf %105, %112 : vector<8x128xf32>
    %c3_66 = arith.constant 3 : index
    %c0_67 = arith.constant 0 : index
    %c0_68 = arith.constant 0 : index
    %114 = vector.load %arg6[%c3_66, %c0_67, %c0_68] : memref<5x8x256xbf16, #tpu.memory_space<vmem>>, vector<1x8x256xbf16>
    %115 = vector.shape_cast %114 : vector<1x8x256xbf16> to vector<8x256xbf16>
    %cst_69 = arith.constant dense<0.000000e+00> : vector<8x160xf32>
    %116 = tpu.matmul %115, %90, %cst_69 {dimension_numbers = #tpu.dot_dimension_numbers<[1], [0], [0], [1], [0, 0, 1, 1], [], []>} : vector<8x256xbf16>, vector<256x160xbf16>, vector<8x160xf32> -> vector<8x160xf32>
    %117 = arith.truncf %116 : vector<8x160xf32> to vector<8x160xbf16>
    %c3_70 = arith.constant 3 : index
    %c0_71 = arith.constant 0 : index
    %c0_72 = arith.constant 0 : index
    %118 = vector.load %arg7[%c3_70, %c0_71, %c0_72] : memref<5x160x128xbf16, #tpu.memory_space<vmem>>, vector<1x160x128xbf16>
    %119 = vector.shape_cast %118 : vector<1x160x128xbf16> to vector<160x128xbf16>
    %cst_73 = arith.constant dense<0.000000e+00> : vector<8x128xf32>
    %120 = tpu.matmul %117, %119, %cst_73 {dimension_numbers = #tpu.dot_dimension_numbers<[1], [0], [0], [1], [0, 0, 1, 1], [], []>} : vector<8x160xbf16>, vector<160x128xbf16>, vector<8x128xf32> -> vector<8x128xf32>
    %121 = arith.addf %113, %120 : vector<8x128xf32>
    %c4_74 = arith.constant 4 : index
    %c0_75 = arith.constant 0 : index
    %c0_76 = arith.constant 0 : index
    %122 = vector.load %arg6[%c4_74, %c0_75, %c0_76] : memref<5x8x256xbf16, #tpu.memory_space<vmem>>, vector<1x8x256xbf16>
    %123 = vector.shape_cast %122 : vector<1x8x256xbf16> to vector<8x256xbf16>
    %cst_77 = arith.constant dense<0.000000e+00> : vector<8x160xf32>
    %124 = tpu.matmul %123, %90, %cst_77 {dimension_numbers = #tpu.dot_dimension_numbers<[1], [0], [0], [1], [0, 0, 1, 1], [], []>} : vector<8x256xbf16>, vector<256x160xbf16>, vector<8x160xf32> -> vector<8x160xf32>
    %125 = arith.truncf %124 : vector<8x160xf32> to vector<8x160xbf16>
    %c4_78 = arith.constant 4 : index
    %c0_79 = arith.constant 0 : index
    %c0_80 = arith.constant 0 : index
    %126 = vector.load %arg7[%c4_78, %c0_79, %c0_80] : memref<5x160x128xbf16, #tpu.memory_space<vmem>>, vector<1x160x128xbf16>
    %127 = vector.shape_cast %126 : vector<1x160x128xbf16> to vector<160x128xbf16>
    %cst_81 = arith.constant dense<0.000000e+00> : vector<8x128xf32>
    %128 = tpu.matmul %125, %127, %cst_81 {dimension_numbers = #tpu.dot_dimension_numbers<[1], [0], [0], [1], [0, 0, 1, 1], [], []>} : vector<8x160xbf16>, vector<160x128xbf16>, vector<8x128xf32> -> vector<8x128xf32>
    %129 = arith.addf %121, %128 : vector<8x128xf32>
    %c0_82 = arith.constant 0 : index
    %c0_83 = arith.constant 0 : index
    %130 = vector.load %arg8[%c0_82, %c0_83] : memref<1x128xf32, #tpu.memory_space<vmem>>, vector<1x128xf32>
    %131 = vector.broadcast %130 : vector<1x128xf32> to vector<8x128xf32>
    %132 = arith.addf %129, %131 : vector<8x128xf32>
    %cst_84 = arith.constant 0.000000e+00 : f32
    %133 = vector.broadcast %cst_84 : f32 to vector<8x128xf32>
    %134 = arith.maximumf %132, %133 : vector<8x128xf32>
    %135 = arith.truncf %134 : vector<8x128xf32> to vector<8x128xbf16>
    %c0_85 = arith.constant 0 : index
    %c0_86 = arith.constant 0 : index
    %136 = vector.load %arg9[%c0_85, %c0_86] : memref<128x128xbf16, #tpu.memory_space<vmem>>, vector<128x128xbf16>
    %cst_87 = arith.constant dense<0.000000e+00> : vector<8x128xf32>
    %137 = tpu.matmul %135, %136, %cst_87 {dimension_numbers = #tpu.dot_dimension_numbers<[1], [0], [0], [1], [0, 0, 1, 1], [], []>} : vector<8x128xbf16>, vector<128x128xbf16>, vector<8x128xf32> -> vector<8x128xf32>
    %c0_88 = arith.constant 0 : index
    %c0_89 = arith.constant 0 : index
    %138 = vector.load %arg10[%c0_88, %c0_89] : memref<1x128xf32, #tpu.memory_space<vmem>>, vector<1x128xf32>
    %139 = vector.broadcast %138 : vector<1x128xf32> to vector<8x128xf32>
    %140 = arith.addf %137, %139 : vector<8x128xf32>
    %cst_90 = arith.constant 0.000000e+00 : f32
    %141 = vector.broadcast %cst_90 : f32 to vector<8x128xf32>
    %142 = arith.maximumf %140, %141 : vector<8x128xf32>
    %143 = arith.truncf %142 : vector<8x128xf32> to vector<8x128xbf16>
    %c0_91 = arith.constant 0 : index
    %c0_92 = arith.constant 0 : index
    %144 = vector.load %arg11[%c0_91, %c0_92] : memref<128x128xbf16, #tpu.memory_space<vmem>>, vector<128x128xbf16>
    %cst_93 = arith.constant dense<0.000000e+00> : vector<8x128xf32>
    %145 = tpu.matmul %143, %144, %cst_93 {dimension_numbers = #tpu.dot_dimension_numbers<[1], [0], [0], [1], [0, 0, 1, 1], [], []>} : vector<8x128xbf16>, vector<128x128xbf16>, vector<8x128xf32> -> vector<8x128xf32>
    %c0_94 = arith.constant 0 : index
    %c0_95 = arith.constant 0 : index
    %146 = vector.load %arg12[%c0_94, %c0_95] : memref<1x128xf32, #tpu.memory_space<vmem>>, vector<1x128xf32>
    %147 = vector.broadcast %146 : vector<1x128xf32> to vector<8x128xf32>
    %148 = arith.addf %145, %147 : vector<8x128xf32>
    %c0_96 = arith.constant 0 : index
    %c0_97 = arith.constant 0 : index
    %149 = vector.load %arg13[%c0_96, %c0_97] : memref<8x128xf32, #tpu.memory_space<vmem>>, vector<8x128xf32>
    tpu.vector_store %arg13[%c0_96, %c0_97], %148 {strides = array<i32>} : memref<8x128xf32, #tpu.memory_space<vmem>>, vector<8x128xf32>,
    return
  }
  func.func @transform_0(%arg0: i32) -> (i32, i32) {
    %c0_i32 = arith.constant 0 : i32
    %c0_i32_0 = arith.constant 0 : i32
    return %arg0, %c0_i32 : i32, i32
  }
  func.func @transform_1(%arg0: i32) -> (i32, i32, i32) {
    %c0_i32 = arith.constant 0 : i32
    %c0_i32_0 = arith.constant 0 : i32
    %c0_i32_1 = arith.constant 0 : i32
    %c0_i32_2 = arith.constant 0 : i32
    return %c0_i32, %c0_i32_0, %c0_i32_1 : i32, i32, i32
  }
  func.func @transform_2(%arg0: i32) -> (i32, i32) {
    %c0_i32 = arith.constant 0 : i32
    %c0_i32_0 = arith.constant 0 : i32
    %c0_i32_1 = arith.constant 0 : i32
    return %c0_i32, %c0_i32_0 : i32, i32
  }
  func.func @transform_3(%arg0: i32) -> (i32, i32, i32) {
    %c0_i32 = arith.constant 0 : i32
    %c0_i32_0 = arith.constant 0 : i32
    %c0_i32_1 = arith.constant 0 : i32
    %c0_i32_2 = arith.constant 0 : i32
    return %c0_i32, %c0_i32_0, %c0_i32_1 : i32, i32, i32
  }
  func.func @transform_4(%arg0: i32) -> (i32, i32) {
    %c0_i32 = arith.constant 0 : i32
    %c0_i32_0 = arith.constant 0 : i32
    %c0_i32_1 = arith.constant 0 : i32
    return %c0_i32, %c0_i32_0 : i32, i32
  }
  func.func @transform_5(%arg0: i32) -> (i32, i32, i32) {
    %c0_i32 = arith.constant 0 : i32
    %c0_i32_0 = arith.constant 0 : i32
    %c0_i32_1 = arith.constant 0 : i32
    %c0_i32_2 = arith.constant 0 : i32
    return %c0_i32, %c0_i32_0, %c0_i32_1 : i32, i32, i32
  }
  func.func @transform_6(%arg0: i32) -> (i32, i32, i32) {
    %c0_i32 = arith.constant 0 : i32
    %c0_i32_0 = arith.constant 0 : i32
    %c0_i32_1 = arith.constant 0 : i32
    %c0_i32_2 = arith.constant 0 : i32
    return %c0_i32, %c0_i32_0, %c0_i32_1 : i32, i32, i32
  }
  func.func @transform_7(%arg0: i32) -> (i32, i32) {
    %c0_i32 = arith.constant 0 : i32
    %c0_i32_0 = arith.constant 0 : i32
    %c0_i32_1 = arith.constant 0 : i32
    return %c0_i32, %c0_i32_0 : i32, i32
  }
  func.func @transform_8(%arg0: i32) -> (i32, i32) {
    %c0_i32 = arith.constant 0 : i32
    %c0_i32_0 = arith.constant 0 : i32
    %c0_i32_1 = arith.constant 0 : i32
    return %c0_i32, %c0_i32_0 : i32, i32
  }
  func.func @transform_9(%arg0: i32) -> (i32, i32) {
    %c0_i32 = arith.constant 0 : i32
    %c0_i32_0 = arith.constant 0 : i32
    %c0_i32_1 = arith.constant 0 : i32
    return %c0_i32, %c0_i32_0 : i32, i32
  }
  func.func @transform_10(%arg0: i32) -> (i32, i32) {
    %c0_i32 = arith.constant 0 : i32
    %c0_i32_0 = arith.constant 0 : i32
    %c0_i32_1 = arith.constant 0 : i32
    return %c0_i32, %c0_i32_0 : i32, i32
  }
  func.func @transform_11(%arg0: i32) -> (i32, i32) {
    %c0_i32 = arith.constant 0 : i32
    %c0_i32_0 = arith.constant 0 : i32
    %c0_i32_1 = arith.constant 0 : i32
    return %c0_i32, %c0_i32_0 : i32, i32
  }
  func.func @transform_12(%arg0: i32) -> (i32, i32) {
    %c0_i32 = arith.constant 0 : i32
    %c0_i32_0 = arith.constant 0 : i32
    return %arg0, %c0_i32 : i32, i32
  }
}

</mosaic_0001>

<llo_original>
// kernel: tile.13
$region0: #{tile.13}
  #allocation0 [shape = 's32[1]{0}', space=sflag, size = 0x4, scoped, tag = 'scoped memory for tile.13']
  %s0 = inlined_call_operand.vmem [shape: f32[6], index: 0, kind: input, shape index: {}]
  %s1 = inlined_call_operand.vmem [shape: f32[28,6], index: 1, kind: output, shape index: {}]
  // Predicated region
  $region2: #{tile.13} parent=0 // pred_check
    _
  $region3: #{tile.13} parent=0 // pred_check_branch
    %3 = sbr.rel (0) target = $region5
  $region4: #{tile.13} parent=0 // pred_region
    _
  $region5: #{tile.13} parent=0 // pred_fallthru
    _
  %v4 = vld [vmem:[%s0] ss:$0 sm:$0xff]
  %5 = vst [vmem:[%s1] sm:$0xff] %v4
  %s6 = scalar_lea.vmem %s1, 8
  %7 = vst [vmem:[%s6] sm:$0xff] %v4
  %s8 = scalar_lea.vmem %s1, 16
  %9 = vst [vmem:[%s8] sm:$0xff] %v4
  %s10 = scalar_lea.vmem %s1, 24
  %11 = vst [vmem:[%s10] sm:$0xff] %v4

// kernel: tile.14
$region0: #{tile.14}
  %s0 = inlined_call_operand.vmem [shape: f32[28,6], index: 0, kind: input, shape index: {}]
  %s1 = inlined_call_operand.vmem [shape: f32[1,168], index: 1, kind: output, shape index: {}]
  $region1: #{tile.14} parent=0
    #allocation0 [shape = 'u8[8192]{0}', space=vmem, size = 0x2000, scoped, tag = 'scoped mem for output reshape']
    %v2 = vld [vmem:[%s0] sm:$0x1]
    %vm3 = vcmask 48128
    %4 = vst.msk [vmem:[#allocation0] sm:$0x1] %vm3, %v2
    %s5 = scalar_lea.vmem %s0, 21
    %v6 = vld [vmem:[%s5] sm:$0x1]
    %s7 = scalar_lea.vmem %s0, 21
    %v8 = vld [vmem:[%s7] sm:$0x1]
    %vm9 = vcmask 15360
    %v10 = vsel %vm9, %v8, %v6
    %11 = vrot.lane.b32.xlu0 %v10, 126
    %v12 = vpop.permute.xlu0 %11
    %vm13 = vcmask 31744
    %s14 = scalar_lea.vmem [#allocation0], 8
    %15 = vst.msk [vmem:[%s14] sm:$0x1] %vm13, %v12
    %vm16 = vcmask 1048560
    %17 = vst.msk [vmem:[#allocation0] sm:$0x1] %vm16, %v12
    %s18 = scalar_lea.vmem %s0, 20
    %v19 = vld [vmem:[%s18] sm:$0x1]
    %20 = vrot.lane.b32.xlu0 %v19, 120
    %v21 = vpop.permute.xlu0 %20
    %vm22 = vcmask 1032128
    %23 = vst.msk [vmem:[#allocation0] sm:$0x1] %vm22, %v21
    %s24 = scalar_lea.vmem %s0, 19
    %v25 = vld [vmem:[%s24] sm:$0x1]
    %26 = vrot.lane.b32.xlu0 %v25, 114
    %v27 = vpop.permute.xlu0 %26
    %vm28 = vcmask 982928
    %29 = vst.msk [vmem:[#allocation0] sm:$0x1] %vm28, %v27
    %s30 = scalar_lea.vmem %s0, 18
    %v31 = vld [vmem:[%s30] sm:$0x1]
    %32 = vrot.lane.b32.xlu0 %v31, 108
    %v33 = vpop.permute.xlu0 %32
    %vm34 = vcmask 933728
    %35 = vst.msk [vmem:[#allocation0] sm:$0x1] %vm34, %v33
    %s36 = scalar_lea.vmem %s0, 17
    %v37 = vld [vmem:[%s36] sm:$0x1]
    %38 = vrot.lane.b32.xlu0 %v37, 102
    %v39 = vpop.permute.xlu0 %38
    %vm40 = vcmask 884528
    %41 = vst.msk [vmem:[#allocation0] sm:$0x1] %vm40, %v39
    %s42 = scalar_lea.vmem %s0, 16
    %v43 = vld [vmem:[%s42] sm:$0x1]
    %44 = vrot.lane.b32.xlu0 %v43, 96
    %v45 = vpop.permute.xlu0 %44
    %vm46 = vcmask 835328
    %47 = vst.msk [vmem:[#allocation0] sm:$0x1] %vm46, %v45
    %s48 = scalar_lea.vmem %s0, 15
    %v49 = vld [vmem:[%s48] sm:$0x1]
    %50 = vrot.lane.b32.xlu0 %v49, 90
    %v51 = vpop.permute.xlu0 %50
    %vm52 = vcmask 786128
    %53 = vst.msk [vmem:[#allocation0] sm:$0x1] %vm52, %v51
    %s54 = scalar_lea.vmem %s0, 14
    %v55 = vld [vmem:[%s54] sm:$0x1]
    %56 = vrot.lane.b32.xlu0 %v55, 84
    %v57 = vpop.permute.xlu0 %56
    %vm58 = vcmask 736928
    %59 = vst.msk [vmem:[#allocation0] sm:$0x1] %vm58, %v57
    %s60 = scalar_lea.vmem %s0, 13
    %v61 = vld [vmem:[%s60] sm:$0x1]
    %62 = vrot.lane.b32.xlu0 %v61, 78
    %v63 = vpop.permute.xlu0 %62
    %vm64 = vcmask 687728
    %65 = vst.msk [vmem:[#allocation0] sm:$0x1] %vm64, %v63
    %s66 = scalar_lea.vmem %s0, 12
    %v67 = vld [vmem:[%s66] sm:$0x1]
    %68 = vrot.lane.b32.xlu0 %v67, 72
    %v69 = vpop.permute.xlu0 %68
    %vm70 = vcmask 638528
    %71 = vst.msk [vmem:[#allocation0] sm:$0x1] %vm70, %v69
    %s72 = scalar_lea.vmem %s0, 11
    %v73 = vld [vmem:[%s72] sm:$0x1]
    %74 = vrot.lane.b32.xlu0 %v73, 66
    %v75 = vpop.permute.xlu0 %74
    %vm76 = vcmask 589328
    %77 = vst.msk [vmem:[#allocation0] sm:$0x1] %vm76, %v75
    %s78 = scalar_lea.vmem %s0, 10
    %v79 = vld [vmem:[%s78] sm:$0x1]
    %80 = vrot.lane.b32.xlu0 %v79, 60
    %v81 = vpop.permute.xlu0 %80
    %vm82 = vcmask 540128
    %83 = vst.msk [vmem:[#allocation0] sm:$0x1] %vm82, %v81
    %s84 = scalar_lea.vmem %s0, 9
    %v85 = vld [vmem:[%s84] sm:$0x1]
    %86 = vrot.lane.b32.xlu0 %v85, 54
    %v87 = vpop.permute.xlu0 %86
    %vm88 = vcmask 490928
    %89 = vst.msk [vmem:[#allocation0] sm:$0x1] %vm88, %v87
    %s90 = scalar_lea.vmem %s0, 8
    %v91 = vld [vmem:[%s90] sm:$0x1]
    %92 = vrot.lane.b32.xlu0 %v91, 48
    %v93 = vpop.permute.xlu0 %92
    %vm94 = vcmask 441728
    %95 = vst.msk [vmem:[#allocation0] sm:$0x1] %vm94, %v93
    %s96 = scalar_lea.vmem %s0, 7
    %v97 = vld [vmem:[%s96] sm:$0x1]
    %98 = vrot.lane.b32.xlu0 %v97, 42
    %v99 = vpop.permute.xlu0 %98
    %vm100 = vcmask 392528
    %101 = vst.msk [vmem:[#allocation0] sm:$0x1] %vm100, %v99
    %s102 = scalar_lea.vmem %s0, 6
    %v103 = vld [vmem:[%s102] sm:$0x1]
    %104 = vrot.lane.b32.xlu0 %v103, 36
    %v105 = vpop.permute.xlu0 %104
    %vm106 = vcmask 343328
    %107 = vst.msk [vmem:[#allocation0] sm:$0x1] %vm106, %v105
    %s108 = scalar_lea.vmem %s0, 27
    %v109 = vld [vmem:[%s108] sm:$0x1]
    %110 = vrot.lane.b32.xlu0 %v109, 34
    %v111 = vpop.permute.xlu0 %110
    %vm112 = vcmask 326928
    %s113 = scalar_lea.vmem [#allocation0], 8
    %114 = vst.msk [vmem:[%s113] sm:$0x1] %vm112, %v111
    %s115 = scalar_lea.vmem %s0, 5
    %v116 = vld [vmem:[%s115] sm:$0x1]
    %117 = vrot.lane.b32.xlu0 %v116, 30
    %v118 = vpop.permute.xlu0 %117
    %vm119 = vcmask 294128
    %120 = vst.msk [vmem:[#allocation0] sm:$0x1] %vm119, %v118
    %s121 = scalar_lea.vmem %s0, 26
    %v122 = vld [vmem:[%s121] sm:$0x1]
    %123 = vrot.lane.b32.xlu0 %v122, 28
    %v124 = vpop.permute.xlu0 %123
    %vm125 = vcmask 277728
    %s126 = scalar_lea.vmem [#allocation0], 8
    %127 = vst.msk [vmem:[%s126] sm:$0x1] %vm125, %v124
    %s128 = scalar_lea.vmem %s0, 4
    %v129 = vld [vmem:[%s128] sm:$0x1]
    %130 = vrot.lane.b32.xlu0 %v129, 24
    %v131 = vpop.permute.xlu0 %130
    %vm132 = vcmask 244928
    %133 = vst.msk [vmem:[#allocation0] sm:$0x1] %vm132, %v131
    %s134 = scalar_lea.vmem %s0, 25
    %v135 = vld [vmem:[%s134] sm:$0x1]
    %136 = vrot.lane.b32.xlu0 %v135, 22
    %v137 = vpop.permute.xlu0 %136
    %vm138 = vcmask 228528
    %s139 = scalar_lea.vmem [#allocation0], 8
    %140 = vst.msk [vmem:[%s139] sm:$0x1] %vm138, %v137
    %s141 = scalar_lea.vmem %s0, 3
    %v142 = vld [vmem:[%s141] sm:$0x1]
    %143 = vrot.lane.b32.xlu0 %v142, 18
    %v144 = vpop.permute.xlu0 %143
    %vm145 = vcmask 195728
    %146 = vst.msk [vmem:[#allocation0] sm:$0x1] %vm145, %v144
    %s147 = scalar_lea.vmem %s0, 24
    %v148 = vld [vmem:[%s147] sm:$0x1]
    %149 = vrot.lane.b32.xlu0 %v148, 16
    %v150 = vpop.permute.xlu0 %149
    %vm151 = vcmask 179328
    %s152 = scalar_lea.vmem [#allocation0], 8
    %153 = vst.msk [vmem:[%s152] sm:$0x1] %vm151, %v150
    %s154 = scalar_lea.vmem %s0, 2
    %v155 = vld [vmem:[%s154] sm:$0x1]
    %156 = vrot.lane.b32.xlu0 %v155, 12
    %v157 = vpop.permute.xlu0 %156
    %vm158 = vcmask 146528
    %159 = vst.msk [vmem:[#allocation0] sm:$0x1] %vm158, %v157
    %s160 = scalar_lea.vmem %s0, 23
    %v161 = vld [vmem:[%s160] sm:$0x1]
    %162 = vrot.lane.b32.xlu0 %v161, 10
    %v163 = vpop.permute.xlu0 %162
    %vm164 = vcmask 130128
    %s165 = scalar_lea.vmem [#allocation0], 8
    %166 = vst.msk [vmem:[%s165] sm:$0x1] %vm164, %v163
    %s167 = scalar_lea.vmem %s0, 1
    %v168 = vld [vmem:[%s167] sm:$0x1]
    %169 = vrot.lane.b32.xlu0 %v168, 6
    %v170 = vpop.permute.xlu0 %169
    %vm171 = vcmask 97328
    %172 = vst.msk [vmem:[#allocation0] sm:$0x1] %vm171, %v170
    %s173 = scalar_lea.vmem %s0, 22
    %v174 = vld [vmem:[%s173] sm:$0x1]
    %175 = vrot.lane.b32.xlu0 %v174, 4
    %v176 = vpop.permute.xlu0 %175
    %vm177 = vcmask 80928
    %s178 = scalar_lea.vmem [#allocation0], 8
    %179 = vst.msk [vmem:[%s178] sm:$0x1] %vm177, %v176
    %s181 = sshllo.u32 0, 1
    %v183 = vld [vmem:[#allocation0] sm:%s181]
    %s184 = sshllo.u32 0, 1
    %185 = vst [vmem:[%s1] sm:%s184] %v183
    %s186 = scalar_lea.vmem [#allocation0], 8
    %v187 = vld [vmem:[%s186] sm:%s181]
    %s188 = sshllo.u32 0, 1
    %s189 = scalar_lea.vmem %s1, 1
    %190 = vst [vmem:[%s189] sm:%s188] %v187

// kernel: tile.18
$region0: #{tile.18}
  #allocation0 [shape = 's32[1]{0}', space=sflag, size = 0x4, scoped, tag = 'scoped memory for tile.18']
  %s0 = inlined_call_operand.vmem [shape: f32[16], index: 0, kind: input, shape index: {}]
  %s1 = inlined_call_operand.vmem [shape: f32[10,16], index: 1, kind: output, shape index: {}]
  // Predicated region
  $region2: #{tile.18} parent=0 // pred_check
    _
  $region3: #{tile.18} parent=0 // pred_check_branch
    %3 = sbr.rel (0) target = $region5
  $region4: #{tile.18} parent=0 // pred_region
    _
  $region5: #{tile.18} parent=0 // pred_fallthru
    _
  %v4 = vld [vmem:[%s0] ss:$0 sm:$0xff]
  %5 = vst [vmem:[%s1] sm:$0xff] %v4
  %s6 = scalar_lea.vmem %s1, 8
  %7 = vst [vmem:[%s6] sm:$0xff] %v4

// kernel: tile.19
$region0: #{tile.19}
  %s0 = inlined_call_operand.vmem [shape: f32[10,16], index: 0, kind: input, shape index: {}]
  %s1 = inlined_call_operand.vmem [shape: f32[1,160], index: 1, kind: output, shape index: {}]
  $region1: #{tile.19} parent=0
    #allocation0 [shape = 'u8[8192]{0}', space=vmem, size = 0x2000, scoped, tag = 'scoped mem for output reshape']
    %s2 = smov 3
    %v3 = vld [vmem:[%s0] ss:$8 sm:%s2]
    %vm4 = vcmask 130048
    %5 = vst.msk [vmem:[#allocation0] ss:$8 sm:$0x3] %vm4, %v3
    %s6 = scalar_lea.vmem %s0, 7
    %v7 = vld [vmem:[%s6] sm:$0x1]
    %8 = vrot.lane.b32.xlu0 %v7, 112
    %v9 = vpop.permute.xlu0 %8
    %vm10 = vcmask 1048448
    %11 = vst.msk [vmem:[#allocation0] sm:$0x1] %vm10, %v9
    %s12 = scalar_lea.vmem %s0, 6
    %v13 = vld [vmem:[%s12] sm:$0x1]
    %14 = vrot.lane.b32.xlu0 %v13, 96
    %v15 = vpop.permute.xlu0 %14
    %vm16 = vcmask 917248
    %17 = vst.msk [vmem:[#allocation0] sm:$0x1] %vm16, %v15
    %s18 = scalar_lea.vmem %s0, 5
    %v19 = vld [vmem:[%s18] sm:$0x1]
    %20 = vrot.lane.b32.xlu0 %v19, 80
    %v21 = vpop.permute.xlu0 %20
    %vm22 = vcmask 786048
    %23 = vst.msk [vmem:[#allocation0] sm:$0x1] %vm22, %v21
    %s24 = scalar_lea.vmem %s0, 4
    %v25 = vld [vmem:[%s24] sm:$0x1]
    %26 = vrot.lane.b32.xlu0 %v25, 64
    %v27 = vpop.permute.xlu0 %26
    %vm28 = vcmask 654848
    %29 = vst.msk [vmem:[#allocation0] sm:$0x1] %vm28, %v27
    %s30 = scalar_lea.vmem %s0, 3
    %v31 = vld [vmem:[%s30] sm:$0x1]
    %32 = vrot.lane.b32.xlu0 %v31, 48
    %v33 = vpop.permute.xlu0 %32
    %vm34 = vcmask 523648
    %35 = vst.msk [vmem:[#allocation0] sm:$0x1] %vm34, %v33
    %s36 = scalar_lea.vmem %s0, 2
    %v37 = vld [vmem:[%s36] sm:$0x1]
    %38 = vrot.lane.b32.xlu0 %v37, 32
    %v39 = vpop.permute.xlu0 %38
    %vm40 = vcmask 392448
    %41 = vst.msk [vmem:[#allocation0] sm:$0x1] %vm40, %v39
    %s42 = scalar_lea.vmem %s0, 1
    %s43 = smov 3
    %v44 = vld [vmem:[%s42] ss:$8 sm:%s43]
    %45 = vrot.lane.b32.xlu0 %v44, 16
    %v46 = vpop.permute.xlu0 %45
    %vm47 = vcmask 261248
    %48 = vst.msk [vmem:[#allocation0] ss:$8 sm:$0x3] %vm47, %v46
    %s50 = sshllo.u32 0, 1
    %v52 = vld [vmem:[#allocation0] sm:%s50]
    %s53 = sshllo.u32 0, 1
    %54 = vst [vmem:[%s1] sm:%s53] %v52
    %s55 = scalar_lea.vmem [#allocation0], 8
    %v56 = vld [vmem:[%s55] sm:%s50]
    %s57 = sshllo.u32 0, 1
    %s58 = scalar_lea.vmem %s1, 1
    %59 = vst [vmem:[%s58] sm:%s57] %v56

// kernel: net_forward.1
$region0: #{net_forward.1}
  #allocation0 [shape = 'u32[]', space=smem, size = 0x4, offset = 0x4, fixed_abs, tag = 'smem constant byte address 0x4 - core index']
  #allocation1 [shape = 'u32[144,128]{1,0:T(1,128)}', space=vmem, size = 0x12000, scoped, tag = 'internal scratch']
  %s0 = inlined_call_operand.vmem [shape: bf16[256,96], index: 0, kind: input, shape index: {}]
  %s1 = inlined_call_operand.vmem [shape: bf16[5,96,168], index: 1, kind: input, shape index: {}]
  %s2 = inlined_call_operand.vmem [shape: f32[1,168], index: 2, kind: input, shape index: {}]
  %s3 = inlined_call_operand.vmem [shape: bf16[5,168,160], index: 3, kind: input, shape index: {}]
  %s4 = inlined_call_operand.vmem [shape: f32[1,160], index: 4, kind: input, shape index: {}]
  %s5 = inlined_call_operand.vmem [shape: bf16[5,8,256], index: 5, kind: input, shape index: {}]
  %s6 = inlined_call_operand.vmem [shape: bf16[5,160,128], index: 6, kind: input, shape index: {}]
  %s7 = inlined_call_operand.vmem [shape: f32[1,128], index: 7, kind: input, shape index: {}]
  %s8 = inlined_call_operand.vmem [shape: bf16[128,128], index: 8, kind: input, shape index: {}]
  %s9 = inlined_call_operand.vmem [shape: f32[1,128], index: 9, kind: input, shape index: {}]
  %s10 = inlined_call_operand.vmem [shape: bf16[128,128], index: 10, kind: input, shape index: {}]
  %s11 = inlined_call_operand.vmem [shape: f32[1,128], index: 11, kind: input, shape index: {}]
  %s12 = inlined_call_operand.vmem [shape: f32[8,128], index: 12, kind: output, shape index: {}]
  %s13 = sld [smem:[#allocation0]]
  $region58: #{net_forward.1} parent=0
    _
  %s15 = ssub.s32 1, %s13
  %s16 = scalar_select 0, %s15, %s13
  // Predicated region
  $region2: #{net_forward.1} parent=0 // pred_check
    _
  $region3: #{net_forward.1} parent=0 // pred_check_branch
    %18 = sbr.rel (0) target = $region5
  $region4: #{net_forward.1} parent=0 // pred_region
    _
  $region5: #{net_forward.1} parent=0 // pred_fallthru
    _
  // Predicated region
  $region6: #{net_forward.1} parent=0 // pred_check
    _
  $region7: #{net_forward.1} parent=0 // pred_check_branch
    %20 = sbr.rel (0) target = $region9
  $region8: #{net_forward.1} parent=0 // pred_region
    _
  $region9: #{net_forward.1} parent=0 // pred_fallthru
    _
  // Predicated region
  $region10: #{net_forward.1} parent=0 // pred_check
    _
  $region11: #{net_forward.1} parent=0 // pred_check_branch
    %22 = sbr.rel (0) target = $region13
  $region12: #{net_forward.1} parent=0 // pred_region
    _
  $region13: #{net_forward.1} parent=0 // pred_fallthru
    _
  // Predicated region
  $region14: #{net_forward.1} parent=0 // pred_check
    _
  $region15: #{net_forward.1} parent=0 // pred_check_branch
    %24 = sbr.rel (0) target = $region17
  $region16: #{net_forward.1} parent=0 // pred_region
    _
  $region17: #{net_forward.1} parent=0 // pred_fallthru
    _
  // Predicated region
  $region18: #{net_forward.1} parent=0 // pred_check
    _
  $region19: #{net_forward.1} parent=0 // pred_check_branch
    %26 = sbr.rel (0) target = $region21
  $region20: #{net_forward.1} parent=0 // pred_region
    _
  $region21: #{net_forward.1} parent=0 // pred_fallthru
    _
  // Predicated region
  $region22: #{net_forward.1} parent=0 // pred_check
    _
  $region23: #{net_forward.1} parent=0 // pred_check_branch
    %28 = sbr.rel (0) target = $region25
  $region24: #{net_forward.1} parent=0 // pred_region
    _
  $region25: #{net_forward.1} parent=0 // pred_fallthru
    _
  // Predicated region
  $region26: #{net_forward.1} parent=0 // pred_check
    _
  $region27: #{net_forward.1} parent=0 // pred_check_branch
    %30 = sbr.rel (0) target = $region29
  $region28: #{net_forward.1} parent=0 // pred_region
    _
  $region29: #{net_forward.1} parent=0 // pred_fallthru
    _
  // Predicated region
  $region30: #{net_forward.1} parent=0 // pred_check
    _
  $region31: #{net_forward.1} parent=0 // pred_check_branch
    %32 = sbr.rel (0) target = $region33
  $region32: #{net_forward.1} parent=0 // pred_region
    _
  $region33: #{net_forward.1} parent=0 // pred_fallthru
    _
  // Predicated region
  $region34: #{net_forward.1} parent=0 // pred_check
    _
  $region35: #{net_forward.1} parent=0 // pred_check_branch
    %34 = sbr.rel (0) target = $region37
  $region36: #{net_forward.1} parent=0 // pred_region
    _
  $region37: #{net_forward.1} parent=0 // pred_fallthru
    _
  // Predicated region
  $region38: #{net_forward.1} parent=0 // pred_check
    _
  $region39: #{net_forward.1} parent=0 // pred_check_branch
    %36 = sbr.rel (0) target = $region41
  $region40: #{net_forward.1} parent=0 // pred_region
    _
  $region41: #{net_forward.1} parent=0 // pred_fallthru
    _
  // Predicated region
  $region42: #{net_forward.1} parent=0 // pred_check
    _
  $region43: #{net_forward.1} parent=0 // pred_check_branch
    %38 = sbr.rel (0) target = $region45
  $region44: #{net_forward.1} parent=0 // pred_region
    _
  $region45: #{net_forward.1} parent=0 // pred_fallthru
    _
  // Predicated region
  $region46: #{net_forward.1} parent=0 // pred_check
    _
  $region47: #{net_forward.1} parent=0 // pred_check_branch
    %40 = sbr.rel (0) target = $region49
  $region48: #{net_forward.1} parent=0 // pred_region
    _
  $region49: #{net_forward.1} parent=0 // pred_fallthru
    _
  %v42 = vld [vmem:[%s0] sm:$0xf]
  %v43 = vld [vmem:[%s0 + $0x4] sm:$0xf]
  %v44 = vld [vmem:[%s0 + $0x8] sm:$0xf]
  %v45 = vld [vmem:[%s0 + $0xc] sm:$0xf]
  %v46 = vld [vmem:[%s0 + $0x10] sm:$0xf]
  %v47 = vld [vmem:[%s0 + $0x14] sm:$0xf]
  %v48 = vld [vmem:[%s0 + $0x18] sm:$0xf]
  %v49 = vld [vmem:[%s0 + $0x1c] sm:$0xf]
  %v50 = vld [vmem:[%s0 + $0x20] sm:$0xf]
  %v51 = vld [vmem:[%s0 + $0x24] sm:$0xf]
  %v52 = vld [vmem:[%s0 + $0x28] sm:$0xf]
  %v53 = vld [vmem:[%s0 + $0x2c] sm:$0xf]
  %v54 = vld [vmem:[%s0 + $0x30] sm:$0xf]
  %v55 = vld [vmem:[%s0 + $0x34] sm:$0xf]
  %v56 = vld [vmem:[%s0 + $0x38] sm:$0xf]
  %v57 = vld [vmem:[%s0 + $0x3c] sm:$0xf]
  %v58 = vld [vmem:[%s0 + $0x40] sm:$0xf]
  %v59 = vld [vmem:[%s0 + $0x44] sm:$0xf]
  %v60 = vld [vmem:[%s0 + $0x48] sm:$0xf]
  %v61 = vld [vmem:[%s0 + $0x4c] sm:$0xf]
  %v62 = vld [vmem:[%s0 + $0x50] sm:$0xf]
  %v63 = vld [vmem:[%s0 + $0x54] sm:$0xf]
  %v64 = vld [vmem:[%s0 + $0x58] sm:$0xf]
  %v65 = vld [vmem:[%s0 + $0x5c] sm:$0xf]
  %v66 = vld [vmem:[%s0 + $0x60] sm:$0xf]
  %v67 = vld [vmem:[%s0 + $0x64] sm:$0xf]
  %v68 = vld [vmem:[%s0 + $0x68] sm:$0xf]
  %v69 = vld [vmem:[%s0 + $0x6c] sm:$0xf]
  %v70 = vld [vmem:[%s0 + $0x70] sm:$0xf]
  %v71 = vld [vmem:[%s0 + $0x74] sm:$0xf]
  %v72 = vld [vmem:[%s0 + $0x78] sm:$0xf]
  %v73 = vld [vmem:[%s0 + $0x7c] sm:$0xf]
  %v74 = vld [vmem:[%s1] sm:$0xff]
  %v75 = vld [vmem:[%s1 + $0x8] sm:$0xff]
  %v76 = vld [vmem:[%s1 + $0x10] sm:$0xff]
  %v77 = vld [vmem:[%s1 + $0x18] sm:$0xff]
  %v78 = vld [vmem:[%s1 + $0x20] sm:$0xff]
  %v79 = vld [vmem:[%s1 + $0x28] sm:$0xff]
  %v80 = vld [vmem:[%s1 + $0x30] sm:$0xff]
  %v81 = vld [vmem:[%s1 + $0x38] sm:$0xff]
  %v82 = vld [vmem:[%s1 + $0x40] sm:$0xff]
  %v83 = vld [vmem:[%s1 + $0x48] sm:$0xff]
  %v84 = vld [vmem:[%s1 + $0x50] sm:$0xff]
  %v85 = vld [vmem:[%s1 + $0x58] sm:$0xff]
  %v118 = vunpack.c.l.b16 %v42
  %v119 = vunpack.c.l.b16 %v43
  %v120 = vunpack.c.l.b16 %v44
  %v121 = vunpack.c.l.b16 %v45
  %v122 = vunpack.c.l.b16 %v46
  %v123 = vunpack.c.l.b16 %v47
  %v124 = vunpack.c.l.b16 %v48
  %v125 = vunpack.c.l.b16 %v49
  %v126 = vunpack.c.l.b16 %v50
  %v127 = vunpack.c.l.b16 %v51
  %v128 = vunpack.c.l.b16 %v52
  %v129 = vunpack.c.l.b16 %v53
  %v130 = vunpack.c.l.b16 %v54
  %v131 = vunpack.c.l.b16 %v55
  %v132 = vunpack.c.l.b16 %v56
  %v133 = vunpack.c.l.b16 %v57
  %v134 = vunpack.c.l.b16 %v58
  %v135 = vunpack.c.l.b16 %v59
  %v136 = vunpack.c.l.b16 %v60
  %v137 = vunpack.c.l.b16 %v61
  %v138 = vunpack.c.l.b16 %v62
  %v139 = vunpack.c.l.b16 %v63
  %v140 = vunpack.c.l.b16 %v64
  %v141 = vunpack.c.l.b16 %v65
  %v142 = vunpack.c.l.b16 %v66
  %v143 = vunpack.c.l.b16 %v67
  %v144 = vunpack.c.l.b16 %v68
  %v145 = vunpack.c.l.b16 %v69
  %v146 = vunpack.c.l.b16 %v70
  %v147 = vunpack.c.l.b16 %v71
  %v148 = vunpack.c.l.b16 %v72
  %v149 = vunpack.c.l.b16 %v73
  %v150 = vpack.c.b16 %v119, %v118
  %v151 = vpack.c.b16 %v121, %v120
  %v152 = vpack.c.b16 %v123, %v122
  %v153 = vpack.c.b16 %v125, %v124
  %v154 = vpack.c.b16 %v127, %v126
  %v155 = vpack.c.b16 %v129, %v128
  %v156 = vpack.c.b16 %v131, %v130
  %v157 = vpack.c.b16 %v133, %v132
  %v158 = vpack.c.b16 %v135, %v134
  %v159 = vpack.c.b16 %v137, %v136
  %v160 = vpack.c.b16 %v139, %v138
  %v161 = vpack.c.b16 %v141, %v140
  %v162 = vpack.c.b16 %v143, %v142
  %v163 = vpack.c.b16 %v145, %v144
  %v164 = vpack.c.b16 %v147, %v146
  %v165 = vpack.c.b16 %v149, %v148
  %vm166 = vsmask.f32 7424
  %v168 = vshrl.u32 %v150, 16
  %v170 = vshll.u32 %v150, 16
  %v172 = vrot.slane %v170, 1
  %v173 = vor.u32 %v168, %v172
  %v175 = vshll.u32 %v151, 16
  %v177 = vrot.slane %v175, 1
  %v178 = vsel %vm166, %v173, %v177
  %v179 = vshrl.u32 %v151, 16
  %v181 = vor.u32 %v179, %v177
  %v183 = vshll.u32 %v152, 16
  %v185 = vrot.slane %v183, 1
  %v186 = vsel %vm166, %v181, %v185
  %v187 = vshrl.u32 %v152, 16
  %v189 = vor.u32 %v187, %v185
  %v191 = vshll.u32 %v153, 16
  %v193 = vrot.slane %v191, 1
  %v194 = vsel %vm166, %v189, %v193
  %v195 = vshrl.u32 %v153, 16
  %v197 = vor.u32 %v195, %v193
  %v199 = vshll.u32 %v154, 16
  %v201 = vrot.slane %v199, 1
  %v202 = vsel %vm166, %v197, %v201
  %v203 = vshrl.u32 %v154, 16
  %v205 = vor.u32 %v203, %v201
  %v207 = vshll.u32 %v155, 16
  %v209 = vrot.slane %v207, 1
  %v210 = vsel %vm166, %v205, %v209
  %v211 = vshrl.u32 %v155, 16
  %v213 = vor.u32 %v211, %v209
  %v215 = vshll.u32 %v156, 16
  %v217 = vrot.slane %v215, 1
  %v218 = vsel %vm166, %v213, %v217
  %v219 = vshrl.u32 %v156, 16
  %v221 = vor.u32 %v219, %v217
  %v223 = vshll.u32 %v157, 16
  %v225 = vrot.slane %v223, 1
  %v226 = vsel %vm166, %v221, %v225
  %v227 = vshrl.u32 %v157, 16
  %v229 = vor.u32 %v227, %v225
  %v231 = vshll.u32 %v158, 16
  %v233 = vrot.slane %v231, 1
  %v234 = vsel %vm166, %v229, %v233
  %v235 = vshrl.u32 %v158, 16
  %v237 = vor.u32 %v235, %v233
  %v239 = vshll.u32 %v159, 16
  %v241 = vrot.slane %v239, 1
  %v242 = vsel %vm166, %v237, %v241
  %v243 = vshrl.u32 %v159, 16
  %v245 = vor.u32 %v243, %v241
  %v247 = vshll.u32 %v160, 16
  %v249 = vrot.slane %v247, 1
  %v250 = vsel %vm166, %v245, %v249
  %v251 = vshrl.u32 %v160, 16
  %v253 = vor.u32 %v251, %v249
  %v255 = vshll.u32 %v161, 16
  %v257 = vrot.slane %v255, 1
  %v258 = vsel %vm166, %v253, %v257
  %v259 = vshrl.u32 %v161, 16
  %v261 = vor.u32 %v259, %v257
  %v263 = vshll.u32 %v162, 16
  %v265 = vrot.slane %v263, 1
  %v266 = vsel %vm166, %v261, %v265
  %v267 = vshrl.u32 %v162, 16
  %v269 = vor.u32 %v267, %v265
  %v271 = vshll.u32 %v163, 16
  %v273 = vrot.slane %v271, 1
  %v274 = vsel %vm166, %v269, %v273
  %v275 = vshrl.u32 %v163, 16
  %v277 = vor.u32 %v275, %v273
  %v279 = vshll.u32 %v164, 16
  %v281 = vrot.slane %v279, 1
  %v282 = vsel %vm166, %v277, %v281
  %v283 = vshrl.u32 %v164, 16
  %v285 = vor.u32 %v283, %v281
  %v287 = vshll.u32 %v165, 16
  %v289 = vrot.slane %v287, 1
  %v290 = vsel %vm166, %v285, %v289
  %v291 = vshrl.u32 %v165, 16
  %v293 = vor.u32 %v291, %v289
  %v295 = vpack.c.b16 %v118, %v118
  %v297 = vshll.u32 %v295, 16
  %v299 = vrot.slane %v297, 1
  %vm301 = vcmask 1047552
  %vm302 = vmand %vm301, %vm166
  %v303 = vsel %vm302, %v293, %v299
  %s304 = scalar_lea.vmem %s1, 96
  %v305 = vld [vmem:[%s304] sm:$0xff]
  %v306 = vld [vmem:[%s304 + $0x8] sm:$0xff]
  %v307 = vld [vmem:[%s304 + $0x10] sm:$0xff]
  %v308 = vld [vmem:[%s304 + $0x18] sm:$0xff]
  %v309 = vld [vmem:[%s304 + $0x20] sm:$0xff]
  %v310 = vld [vmem:[%s304 + $0x28] sm:$0xff]
  %v311 = vld [vmem:[%s304 + $0x30] sm:$0xff]
  %v312 = vld [vmem:[%s304 + $0x38] sm:$0xff]
  %v313 = vld [vmem:[%s304 + $0x40] sm:$0xff]
  %v314 = vld [vmem:[%s304 + $0x48] sm:$0xff]
  %v315 = vld [vmem:[%s304 + $0x50] sm:$0xff]
  %v316 = vld [vmem:[%s304 + $0x58] sm:$0xff]
  %v329 = vunpack.c.l.b16 %v305
  %v330 = vunpack.c.h.b16 %v305
  %v331 = vunpack.c.l.b16 %v306
  %v332 = vunpack.c.h.b16 %v306
  %v333 = vunpack.c.l.b16 %v307
  %v334 = vunpack.c.h.b16 %v307
  %v335 = vunpack.c.l.b16 %v308
  %v336 = vunpack.c.h.b16 %v308
  %v337 = vunpack.c.l.b16 %v309
  %v338 = vunpack.c.h.b16 %v309
  %v339 = vunpack.c.l.b16 %v310
  %v340 = vunpack.c.h.b16 %v310
  %v341 = vunpack.c.l.b16 %v311
  %v342 = vunpack.c.h.b16 %v311
  %v343 = vunpack.c.l.b16 %v312
  %v344 = vunpack.c.h.b16 %v312
  %v345 = vunpack.c.l.b16 %v313
  %v346 = vunpack.c.h.b16 %v313
  %v347 = vunpack.c.l.b16 %v314
  %v348 = vunpack.c.h.b16 %v314
  %v349 = vunpack.c.l.b16 %v315
  %v350 = vunpack.c.h.b16 %v315
  %v351 = vunpack.c.l.b16 %v316
  %v352 = vunpack.c.h.b16 %v316
  %v353 = vpack.c.b16 %v331, %v329
  %v354 = vpack.c.b16 %v332, %v330
  %v355 = vpack.c.b16 %v335, %v333
  %v356 = vpack.c.b16 %v336, %v334
  %v357 = vpack.c.b16 %v339, %v337
  %v358 = vpack.c.b16 %v340, %v338
  %v359 = vpack.c.b16 %v343, %v341
  %v360 = vpack.c.b16 %v344, %v342
  %v361 = vpack.c.b16 %v347, %v345
  %v362 = vpack.c.b16 %v348, %v346
  %v363 = vpack.c.b16 %v351, %v349
  %v364 = vpack.c.b16 %v352, %v350
  %vm377 = vcmask 785408
  %v379 = vsel %vm377, %v178, 0
  %v382 = vsel %vm377, %v186, 0
  %v385 = vsel %vm377, %v194, 0
  %v388 = vsel %vm377, %v202, 0
  %v391 = vsel %vm377, %v210, 0
  %v394 = vsel %vm377, %v218, 0
  %v397 = vsel %vm377, %v226, 0
  %v400 = vsel %vm377, %v234, 0
  %v403 = vsel %vm377, %v242, 0
  %v406 = vsel %vm377, %v250, 0
  %v409 = vsel %vm377, %v258, 0
  %v412 = vsel %vm377, %v266, 0
  %v415 = vsel %vm377, %v274, 0
  %v418 = vsel %vm377, %v282, 0
  %v421 = vsel %vm377, %v290, 0
  %v424 = vsel %vm377, %v303, 0
  %426 = vmatprep.subr.bf16.mxu0 %v354
  %427 = vmatpush1.bf16.msra.mxu0 %v353
  %428 = vmatprep.subr.bf16.mxu0 %v356
  %429 = vmatpush1.bf16.msra.mxu0 %v355
  %430 = vmatprep.subr.bf16.mxu0 %v358
  %431 = vmatpush1.bf16.msra.mxu0 %v357
  %432 = vmatprep.subr.bf16.mxu0 %v360
  %433 = vmatpush1.bf16.msra.mxu0 %v359
  %434 = vmatprep.subr.bf16.mxu0 %v362
  %435 = vmatpush1.bf16.msra.mxu0 %v361
  %436 = vmatprep.subr.bf16.mxu0 %v364
  %437 = vmatpush1.bf16.msra.mxu0 %v363
  %438 = vmatprep.subr.bf16.mxu0 0
  %439 = vmatpush1.bf16.msra.mxu0 0
  %440 = vmatprep.subr.bf16.mxu0 0
  %441 = vmatpush1.bf16.msra.mxu0 0
  %442 = vmatprep.subr.bf16.mxu0 0
  %443 = vmatpush1.bf16.msra.mxu0 0
  %444 = vmatprep.subr.bf16.mxu0 0
  %445 = vmatpush1.bf16.msra.mxu0 0
  %446 = vmatprep.subr.bf16.mxu0 0
  %447 = vmatpush1.bf16.msra.mxu0 0
  %448 = vmatprep.subr.bf16.mxu0 0
  %449 = vmatpush1.bf16.msra.mxu0 0
  %450 = vmatprep.subr.bf16.mxu0 0
  %451 = vmatpush1.bf16.msra.mxu0 0
  %452 = vmatprep.subr.bf16.mxu0 0
  %453 = vmatpush1.bf16.msra.mxu0 0
  %454 = vmatprep.subr.bf16.mxu0 0
  %455 = vmatpush1.bf16.msra.mxu0 0
  %456 = vmatprep.subr.bf16.mxu0 0
  %457 = vmatpush1.bf16.msra.mxu0 0
  %458 = vmatprep.mubr.bf16.mxu0 0
  %459 = vmatmul.mubr.bf16.gmra.mrb[0].mxu0 %v379
  %v460 = vpop.f32.mrb[0].mxu0
  %v461 = vadd.f32 0.0, %v460
  %v462 = vpop.f32.mrb[0].mxu0
  %v463 = vadd.f32 0.0, %v462
  %v464 = vpop.f32.mrb[0].mxu0
  %v465 = vadd.f32 0.0, %v464
  %v466 = vpop.f32.mrb[0].mxu0
  %v467 = vadd.f32 0.0, %v466
  %468 = vmatprep.mubr.bf16.mxu0 0
  %469 = vmatmul.mubr.bf16.gmra.mrb[0].mxu0 %v382
  %v470 = vpop.f32.mrb[0].mxu0
  %v471 = vadd.f32 0.0, %v470
  %v472 = vpop.f32.mrb[0].mxu0
  %v473 = vadd.f32 0.0, %v472
  %v474 = vpop.f32.mrb[0].mxu0
  %v475 = vadd.f32 0.0, %v474
  %v476 = vpop.f32.mrb[0].mxu0
  %v477 = vadd.f32 0.0, %v476
  %478 = vmatprep.mubr.bf16.mxu0 0
  %479 = vmatmul.mubr.bf16.gmra.mrb[0].mxu0 %v385
  %v480 = vpop.f32.mrb[0].mxu0
  %v481 = vadd.f32 0.0, %v480
  %v482 = vpop.f32.mrb[0].mxu0
  %v483 = vadd.f32 0.0, %v482
  %v484 = vpop.f32.mrb[0].mxu0
  %v485 = vadd.f32 0.0, %v484
  %v486 = vpop.f32.mrb[0].mxu0
  %v487 = vadd.f32 0.0, %v486
  %488 = vmatprep.mubr.bf16.mxu0 0
  %489 = vmatmul.mubr.bf16.gmra.mrb[0].mxu0 %v388
  %v490 = vpop.f32.mrb[0].mxu0
  %v491 = vadd.f32 0.0, %v490
  %v492 = vpop.f32.mrb[0].mxu0
  %v493 = vadd.f32 0.0, %v492
  %v494 = vpop.f32.mrb[0].mxu0
  %v495 = vadd.f32 0.0, %v494
  %v496 = vpop.f32.mrb[0].mxu0
  %v497 = vadd.f32 0.0, %v496
  %498 = vmatprep.mubr.bf16.mxu0 0
  %499 = vmatmul.mubr.bf16.gmra.mrb[0].mxu0 %v391
  %v500 = vpop.f32.mrb[0].mxu0
  %v501 = vadd.f32 0.0, %v500
  %v502 = vpop.f32.mrb[0].mxu0
  %v503 = vadd.f32 0.0, %v502
  %v504 = vpop.f32.mrb[0].mxu0
  %v505 = vadd.f32 0.0, %v504
  %v506 = vpop.f32.mrb[0].mxu0
  %v507 = vadd.f32 0.0, %v506
  %508 = vmatprep.mubr.bf16.mxu0 0
  %509 = vmatmul.mubr.bf16.gmra.mrb[0].mxu0 %v394
  %v510 = vpop.f32.mrb[0].mxu0
  %v511 = vadd.f32 0.0, %v510
  %v512 = vpop.f32.mrb[0].mxu0
  %v513 = vadd.f32 0.0, %v512
  %v514 = vpop.f32.mrb[0].mxu0
  %v515 = vadd.f32 0.0, %v514
  %v516 = vpop.f32.mrb[0].mxu0
  %v517 = vadd.f32 0.0, %v516
  %518 = vmatprep.mubr.bf16.mxu0 0
  %519 = vmatmul.mubr.bf16.gmra.mrb[0].mxu0 %v397
  %v520 = vpop.f32.mrb[0].mxu0
  %v521 = vadd.f32 0.0, %v520
  %v522 = vpop.f32.mrb[0].mxu0
  %v523 = vadd.f32 0.0, %v522
  %v524 = vpop.f32.mrb[0].mxu0
  %v525 = vadd.f32 0.0, %v524
  %v526 = vpop.f32.mrb[0].mxu0
  %v527 = vadd.f32 0.0, %v526
  %528 = vmatprep.mubr.bf16.mxu0 0
  %529 = vmatmul.mubr.bf16.gmra.mrb[0].mxu0 %v400
  %v530 = vpop.f32.mrb[0].mxu0
  %v531 = vadd.f32 0.0, %v530
  %v532 = vpop.f32.mrb[0].mxu0
  %v533 = vadd.f32 0.0, %v532
  %v534 = vpop.f32.mrb[0].mxu0
  %v535 = vadd.f32 0.0, %v534
  %v536 = vpop.f32.mrb[0].mxu0
  %v537 = vadd.f32 0.0, %v536
  %538 = vmatprep.mubr.bf16.mxu0 0
  %539 = vmatmul.mubr.bf16.gmra.mrb[0].mxu0 %v403
  %v540 = vpop.f32.mrb[0].mxu0
  %v541 = vadd.f32 0.0, %v540
  %v542 = vpop.f32.mrb[0].mxu0
  %v543 = vadd.f32 0.0, %v542
  %v544 = vpop.f32.mrb[0].mxu0
  %v545 = vadd.f32 0.0, %v544
  %v546 = vpop.f32.mrb[0].mxu0
  %v547 = vadd.f32 0.0, %v546
  %548 = vmatprep.mubr.bf16.mxu0 0
  %549 = vmatmul.mubr.bf16.gmra.mrb[0].mxu0 %v406
  %v550 = vpop.f32.mrb[0].mxu0
  %v551 = vadd.f32 0.0, %v550
  %v552 = vpop.f32.mrb[0].mxu0
  %v553 = vadd.f32 0.0, %v552
  %v554 = vpop.f32.mrb[0].mxu0
  %v555 = vadd.f32 0.0, %v554
  %v556 = vpop.f32.mrb[0].mxu0
  %v557 = vadd.f32 0.0, %v556
  %558 = vmatprep.mubr.bf16.mxu0 0
  %559 = vmatmul.mubr.bf16.gmra.mrb[0].mxu0 %v409
  %v560 = vpop.f32.mrb[0].mxu0
  %v561 = vadd.f32 0.0, %v560
  %v562 = vpop.f32.mrb[0].mxu0
  %v563 = vadd.f32 0.0, %v562
  %v564 = vpop.f32.mrb[0].mxu0
  %v565 = vadd.f32 0.0, %v564
  %v566 = vpop.f32.mrb[0].mxu0
  %v567 = vadd.f32 0.0, %v566
  %568 = vmatprep.mubr.bf16.mxu0 0
  %569 = vmatmul.mubr.bf16.gmra.mrb[0].mxu0 %v412
  %v570 = vpop.f32.mrb[0].mxu0
  %v571 = vadd.f32 0.0, %v570
  %v572 = vpop.f32.mrb[0].mxu0
  %v573 = vadd.f32 0.0, %v572
  %v574 = vpop.f32.mrb[0].mxu0
  %v575 = vadd.f32 0.0, %v574
  %v576 = vpop.f32.mrb[0].mxu0
  %v577 = vadd.f32 0.0, %v576
  %578 = vmatprep.mubr.bf16.mxu0 0
  %579 = vmatmul.mubr.bf16.gmra.mrb[0].mxu0 %v415
  %v580 = vpop.f32.mrb[0].mxu0
  %v581 = vadd.f32 0.0, %v580
  %v582 = vpop.f32.mrb[0].mxu0
  %v583 = vadd.f32 0.0, %v582
  %v584 = vpop.f32.mrb[0].mxu0
  %v585 = vadd.f32 0.0, %v584
  %v586 = vpop.f32.mrb[0].mxu0
  %v587 = vadd.f32 0.0, %v586
  %588 = vmatprep.mubr.bf16.mxu0 0
  %589 = vmatmul.mubr.bf16.gmra.mrb[0].mxu0 %v418
  %v590 = vpop.f32.mrb[0].mxu0
  %v591 = vadd.f32 0.0, %v590
  %v592 = vpop.f32.mrb[0].mxu0
  %v593 = vadd.f32 0.0, %v592
  %v594 = vpop.f32.mrb[0].mxu0
  %v595 = vadd.f32 0.0, %v594
  %v596 = vpop.f32.mrb[0].mxu0
  %v597 = vadd.f32 0.0, %v596
  %598 = vmatprep.mubr.bf16.mxu0 0
  %599 = vmatmul.mubr.bf16.gmra.mrb[0].mxu0 %v421
  %v600 = vpop.f32.mrb[0].mxu0
  %v601 = vadd.f32 0.0, %v600
  %v602 = vpop.f32.mrb[0].mxu0
  %v603 = vadd.f32 0.0, %v602
  %v604 = vpop.f32.mrb[0].mxu0
  %v605 = vadd.f32 0.0, %v604
  %v606 = vpop.f32.mrb[0].mxu0
  %v607 = vadd.f32 0.0, %v606
  %608 = vmatprep.mubr.bf16.mxu0 0
  %609 = vmatmul.mubr.bf16.gmra.mrb[0].mxu0 %v424
  %v610 = vpop.f32.mrb[0].mxu0
  %v611 = vadd.f32 0.0, %v610
  %v612 = vpop.f32.mrb[0].mxu0
  %v613 = vadd.f32 0.0, %v612
  %v614 = vpop.f32.mrb[0].mxu0
  %v615 = vadd.f32 0.0, %v614
  %v616 = vpop.f32.mrb[0].mxu0
  %v617 = vadd.f32 0.0, %v616
  %618 = vdwg.mxu0
  %v631 = vunpack.c.l.b16 %v74
  %v632 = vunpack.c.h.b16 %v74
  %v633 = vunpack.c.l.b16 %v75
  %v634 = vunpack.c.h.b16 %v75
  %v635 = vunpack.c.l.b16 %v76
  %v636 = vunpack.c.h.b16 %v76
  %v637 = vunpack.c.l.b16 %v77
  %v638 = vunpack.c.h.b16 %v77
  %v639 = vunpack.c.l.b16 %v78
  %v640 = vunpack.c.h.b16 %v78
  %v641 = vunpack.c.l.b16 %v79
  %v642 = vunpack.c.h.b16 %v79
  %v643 = vunpack.c.l.b16 %v80
  %v644 = vunpack.c.h.b16 %v80
  %v645 = vunpack.c.l.b16 %v81
  %v646 = vunpack.c.h.b16 %v81
  %v647 = vunpack.c.l.b16 %v82
  %v648 = vunpack.c.h.b16 %v82
  %v649 = vunpack.c.l.b16 %v83
  %v650 = vunpack.c.h.b16 %v83
  %v651 = vunpack.c.l.b16 %v84
  %v652 = vunpack.c.h.b16 %v84
  %v653 = vunpack.c.l.b16 %v85
  %v654 = vunpack.c.h.b16 %v85
  %v655 = vpack.c.b16 %v633, %v631
  %v656 = vpack.c.b16 %v634, %v632
  %v657 = vpack.c.b16 %v637, %v635
  %v658 = vpack.c.b16 %v638, %v636
  %v659 = vpack.c.b16 %v641, %v639
  %v660 = vpack.c.b16 %v642, %v640
  %v661 = vpack.c.b16 %v645, %v643
  %v662 = vpack.c.b16 %v646, %v644
  %v663 = vpack.c.b16 %v649, %v647
  %v664 = vpack.c.b16 %v650, %v648
  %v665 = vpack.c.b16 %v653, %v651
  %v666 = vpack.c.b16 %v654, %v652
  %v679 = vsel %vm377, %v150, 0
  %v681 = vsel %vm377, %v151, 0
  %v683 = vsel %vm377, %v152, 0
  %v685 = vsel %vm377, %v153, 0
  %v687 = vsel %vm377, %v154, 0
  %v689 = vsel %vm377, %v155, 0
  %v691 = vsel %vm377, %v156, 0
  %v693 = vsel %vm377, %v157, 0
  %v695 = vsel %vm377, %v158, 0
  %v697 = vsel %vm377, %v159, 0
  %v699 = vsel %vm377, %v160, 0
  %v701 = vsel %vm377, %v161, 0
  %v703 = vsel %vm377, %v162, 0
  %v705 = vsel %vm377, %v163, 0
  %v707 = vsel %vm377, %v164, 0
  %v709 = vsel %vm377, %v165, 0
  %711 = vmatprep.subr.bf16.mxu0 %v656
  %712 = vmatpush1.bf16.msra.mxu0 %v655
  %713 = vmatprep.subr.bf16.mxu0 %v658
  %714 = vmatpush1.bf16.msra.mxu0 %v657
  %715 = vmatprep.subr.bf16.mxu0 %v660
  %716 = vmatpush1.bf16.msra.mxu0 %v659
  %717 = vmatprep.subr.bf16.mxu0 %v662
  %718 = vmatpush1.bf16.msra.mxu0 %v661
  %719 = vmatprep.subr.bf16.mxu0 %v664
  %720 = vmatpush1.bf16.msra.mxu0 %v663
  %721 = vmatprep.subr.bf16.mxu0 %v666
  %722 = vmatpush1.bf16.msra.mxu0 %v665
  %723 = vmatprep.subr.bf16.mxu0 0
  %724 = vmatpush1.bf16.msra.mxu0 0
  %725 = vmatprep.subr.bf16.mxu0 0
  %726 = vmatpush1.bf16.msra.mxu0 0
  %727 = vmatprep.subr.bf16.mxu0 0
  %728 = vmatpush1.bf16.msra.mxu0 0
  %729 = vmatprep.subr.bf16.mxu0 0
  %730 = vmatpush1.bf16.msra.mxu0 0
  %731 = vmatprep.subr.bf16.mxu0 0
  %732 = vmatpush1.bf16.msra.mxu0 0
  %733 = vmatprep.subr.bf16.mxu0 0
  %734 = vmatpush1.bf16.msra.mxu0 0
  %735 = vmatprep.subr.bf16.mxu0 0
  %736 = vmatpush1.bf16.msra.mxu0 0
  %737 = vmatprep.subr.bf16.mxu0 0
  %738 = vmatpush1.bf16.msra.mxu0 0
  %739 = vmatprep.subr.bf16.mxu0 0
  %740 = vmatpush1.bf16.msra.mxu0 0
  %741 = vmatprep.subr.bf16.mxu0 0
  %742 = vmatpush1.bf16.msra.mxu0 0
  %743 = vmatprep.mubr.bf16.mxu0 0
  %744 = vmatmul.mubr.bf16.gmra.mrb[0].mxu0 %v679
  %v745 = vpop.f32.mrb[0].mxu0
  %v746 = vadd.f32 %v461, %v745
  %v747 = vpop.f32.mrb[0].mxu0
  %v748 = vadd.f32 %v463, %v747
  %v749 = vpop.f32.mrb[0].mxu0
  %v750 = vadd.f32 %v465, %v749
  %v751 = vpop.f32.mrb[0].mxu0
  %v752 = vadd.f32 %v467, %v751
  %753 = vmatprep.mubr.bf16.mxu0 0
  %754 = vmatmul.mubr.bf16.gmra.mrb[0].mxu0 %v681
  %v755 = vpop.f32.mrb[0].mxu0
  %v756 = vadd.f32 %v471, %v755
  %v757 = vpop.f32.mrb[0].mxu0
  %v758 = vadd.f32 %v473, %v757
  %v759 = vpop.f32.mrb[0].mxu0
  %v760 = vadd.f32 %v475, %v759
  %v761 = vpop.f32.mrb[0].mxu0
  %v762 = vadd.f32 %v477, %v761
  %763 = vmatprep.mubr.bf16.mxu0 0
  %764 = vmatmul.mubr.bf16.gmra.mrb[0].mxu0 %v683
  %v765 = vpop.f32.mrb[0].mxu0
  %v766 = vadd.f32 %v481, %v765
  %v767 = vpop.f32.mrb[0].mxu0
  %v768 = vadd.f32 %v483, %v767
  %v769 = vpop.f32.mrb[0].mxu0
  %v770 = vadd.f32 %v485, %v769
  %v771 = vpop.f32.mrb[0].mxu0
  %v772 = vadd.f32 %v487, %v771
  %773 = vmatprep.mubr.bf16.mxu0 0
  %774 = vmatmul.mubr.bf16.gmra.mrb[0].mxu0 %v685
  %v775 = vpop.f32.mrb[0].mxu0
  %v776 = vadd.f32 %v491, %v775
  %v777 = vpop.f32.mrb[0].mxu0
  %v778 = vadd.f32 %v493, %v777
  %v779 = vpop.f32.mrb[0].mxu0
  %v780 = vadd.f32 %v495, %v779
  %v781 = vpop.f32.mrb[0].mxu0
  %v782 = vadd.f32 %v497, %v781
  %783 = vmatprep.mubr.bf16.mxu0 0
  %784 = vmatmul.mubr.bf16.gmra.mrb[0].mxu0 %v687
  %v785 = vpop.f32.mrb[0].mxu0
  %v786 = vadd.f32 %v501, %v785
  %v787 = vpop.f32.mrb[0].mxu0
  %v788 = vadd.f32 %v503, %v787
  %v789 = vpop.f32.mrb[0].mxu0
  %v790 = vadd.f32 %v505, %v789
  %v791 = vpop.f32.mrb[0].mxu0
  %v792 = vadd.f32 %v507, %v791
  %793 = vmatprep.mubr.bf16.mxu0 0
  %794 = vmatmul.mubr.bf16.gmra.mrb[0].mxu0 %v689
  %v795 = vpop.f32.mrb[0].mxu0
  %v796 = vadd.f32 %v511, %v795
  %v797 = vpop.f32.mrb[0].mxu0
  %v798 = vadd.f32 %v513, %v797
  %v799 = vpop.f32.mrb[0].mxu0
  %v800 = vadd.f32 %v515, %v799
  %v801 = vpop.f32.mrb[0].mxu0
  %v802 = vadd.f32 %v517, %v801
  %803 = vmatprep.mubr.bf16.mxu0 0
  %804 = vmatmul.mubr.bf16.gmra.mrb[0].mxu0 %v691
  %v805 = vpop.f32.mrb[0].mxu0
  %v806 = vadd.f32 %v521, %v805
  %v807 = vpop.f32.mrb[0].mxu0
  %v808 = vadd.f32 %v523, %v807
  %v809 = vpop.f32.mrb[0].mxu0
  %v810 = vadd.f32 %v525, %v809
  %v811 = vpop.f32.mrb[0].mxu0
  %v812 = vadd.f32 %v527, %v811
  %813 = vmatprep.mubr.bf16.mxu0 0
  %814 = vmatmul.mubr.bf16.gmra.mrb[0].mxu0 %v693
  %v815 = vpop.f32.mrb[0].mxu0
  %v816 = vadd.f32 %v531, %v815
  %v817 = vpop.f32.mrb[0].mxu0
  %v818 = vadd.f32 %v533, %v817
  %v819 = vpop.f32.mrb[0].mxu0
  %v820 = vadd.f32 %v535, %v819
  %v821 = vpop.f32.mrb[0].mxu0
  %v822 = vadd.f32 %v537, %v821
  %823 = vmatprep.mubr.bf16.mxu0 0
  %824 = vmatmul.mubr.bf16.gmra.mrb[0].mxu0 %v695
  %v825 = vpop.f32.mrb[0].mxu0
  %v826 = vadd.f32 %v541, %v825
  %v827 = vpop.f32.mrb[0].mxu0
  %v828 = vadd.f32 %v543, %v827
  %v829 = vpop.f32.mrb[0].mxu0
  %v830 = vadd.f32 %v545, %v829
  %v831 = vpop.f32.mrb[0].mxu0
  %v832 = vadd.f32 %v547, %v831
  %833 = vmatprep.mubr.bf16.mxu0 0
  %834 = vmatmul.mubr.bf16.gmra.mrb[0].mxu0 %v697
  %v835 = vpop.f32.mrb[0].mxu0
  %v836 = vadd.f32 %v551, %v835
  %v837 = vpop.f32.mrb[0].mxu0
  %v838 = vadd.f32 %v553, %v837
  %v839 = vpop.f32.mrb[0].mxu0
  %v840 = vadd.f32 %v555, %v839
  %v841 = vpop.f32.mrb[0].mxu0
  %v842 = vadd.f32 %v557, %v841
  %843 = vmatprep.mubr.bf16.mxu0 0
  %844 = vmatmul.mubr.bf16.gmra.mrb[0].mxu0 %v699
  %v845 = vpop.f32.mrb[0].mxu0
  %v846 = vadd.f32 %v561, %v845
  %v847 = vpop.f32.mrb[0].mxu0
  %v848 = vadd.f32 %v563, %v847
  %v849 = vpop.f32.mrb[0].mxu0
  %v850 = vadd.f32 %v565, %v849
  %v851 = vpop.f32.mrb[0].mxu0
  %v852 = vadd.f32 %v567, %v851
  %853 = vmatprep.mubr.bf16.mxu0 0
  %854 = vmatmul.mubr.bf16.gmra.mrb[0].mxu0 %v701
  %v855 = vpop.f32.mrb[0].mxu0
  %v856 = vadd.f32 %v571, %v855
  %v857 = vpop.f32.mrb[0].mxu0
  %v858 = vadd.f32 %v573, %v857
  %v859 = vpop.f32.mrb[0].mxu0
  %v860 = vadd.f32 %v575, %v859
  %v861 = vpop.f32.mrb[0].mxu0
  %v862 = vadd.f32 %v577, %v861
  %863 = vmatprep.mubr.bf16.mxu0 0
  %864 = vmatmul.mubr.bf16.gmra.mrb[0].mxu0 %v703
  %v865 = vpop.f32.mrb[0].mxu0
  %v866 = vadd.f32 %v581, %v865
  %v867 = vpop.f32.mrb[0].mxu0
  %v868 = vadd.f32 %v583, %v867
  %v869 = vpop.f32.mrb[0].mxu0
  %v870 = vadd.f32 %v585, %v869
  %v871 = vpop.f32.mrb[0].mxu0
  %v872 = vadd.f32 %v587, %v871
  %873 = vmatprep.mubr.bf16.mxu0 0
  %874 = vmatmul.mubr.bf16.gmra.mrb[0].mxu0 %v705
  %v875 = vpop.f32.mrb[0].mxu0
  %v876 = vadd.f32 %v591, %v875
  %v877 = vpop.f32.mrb[0].mxu0
  %v878 = vadd.f32 %v593, %v877
  %v879 = vpop.f32.mrb[0].mxu0
  %v880 = vadd.f32 %v595, %v879
  %v881 = vpop.f32.mrb[0].mxu0
  %v882 = vadd.f32 %v597, %v881
  %883 = vmatprep.mubr.bf16.mxu0 0
  %884 = vmatmul.mubr.bf16.gmra.mrb[0].mxu0 %v707
  %v885 = vpop.f32.mrb[0].mxu0
  %v886 = vadd.f32 %v601, %v885
  %v887 = vpop.f32.mrb[0].mxu0
  %v888 = vadd.f32 %v603, %v887
  %v889 = vpop.f32.mrb[0].mxu0
  %v890 = vadd.f32 %v605, %v889
  %v891 = vpop.f32.mrb[0].mxu0
  %v892 = vadd.f32 %v607, %v891
  %893 = vmatprep.mubr.bf16.mxu0 0
  %894 = vmatmul.mubr.bf16.gmra.mrb[0].mxu0 %v709
  %v895 = vpop.f32.mrb[0].mxu0
  %v896 = vadd.f32 %v611, %v895
  %v897 = vpop.f32.mrb[0].mxu0
  %v898 = vadd.f32 %v613, %v897
  %v899 = vpop.f32.mrb[0].mxu0
  %v900 = vadd.f32 %v615, %v899
  %v901 = vpop.f32.mrb[0].mxu0
  %v902 = vadd.f32 %v617, %v901
  %903 = vdwg.mxu0
  %vm904 = vcmask 1046528
  %v905 = vrot.slane %v150, 1
  %v906 = vrot.slane %v151, 1
  %v907 = vsel %vm904, %v905, %v906
  %v908 = vrot.slane %v152, 1
  %v909 = vsel %vm904, %v906, %v908
  %v910 = vrot.slane %v153, 1
  %v911 = vsel %vm904, %v908, %v910
  %v912 = vrot.slane %v154, 1
  %v913 = vsel %vm904, %v910, %v912
  %v914 = vrot.slane %v155, 1
  %v915 = vsel %vm904, %v912, %v914
  %v916 = vrot.slane %v156, 1
  %v917 = vsel %vm904, %v914, %v916
  %v918 = vrot.slane %v157, 1
  %v919 = vsel %vm904, %v916, %v918
  %v920 = vrot.slane %v158, 1
  %v921 = vsel %vm904, %v918, %v920
  %v922 = vrot.slane %v159, 1
  %v923 = vsel %vm904, %v920, %v922
  %v924 = vrot.slane %v160, 1
  %v925 = vsel %vm904, %v922, %v924
  %v926 = vrot.slane %v161, 1
  %v927 = vsel %vm904, %v924, %v926
  %v928 = vrot.slane %v162, 1
  %v929 = vsel %vm904, %v926, %v928
  %v930 = vrot.slane %v163, 1
  %v931 = vsel %vm904, %v928, %v930
  %v932 = vrot.slane %v164, 1
  %v933 = vsel %vm904, %v930, %v932
  %v934 = vrot.slane %v165, 1
  %v935 = vsel %vm904, %v932, %v934
  %v936 = vrot.slane %v295, 1
  %vm937 = vcmask 1046528
  %v940 = vsel %vm937, %v934, %v936
  %s941 = scalar_lea.vmem %s1, 192
  %v942 = vld [vmem:[%s941] sm:$0xff]
  %v943 = vld [vmem:[%s941 + $0x8] sm:$0xff]
  %v944 = vld [vmem:[%s941 + $0x10] sm:$0xff]
  %v945 = vld [vmem:[%s941 + $0x18] sm:$0xff]
  %v946 = vld [vmem:[%s941 + $0x20] sm:$0xff]
  %v947 = vld [vmem:[%s941 + $0x28] sm:$0xff]
  %v948 = vld [vmem:[%s941 + $0x30] sm:$0xff]
  %v949 = vld [vmem:[%s941 + $0x38] sm:$0xff]
  %v950 = vld [vmem:[%s941 + $0x40] sm:$0xff]
  %v951 = vld [vmem:[%s941 + $0x48] sm:$0xff]
  %v952 = vld [vmem:[%s941 + $0x50] sm:$0xff]
  %v953 = vld [vmem:[%s941 + $0x58] sm:$0xff]
  %v966 = vunpack.c.l.b16 %v942
  %v967 = vunpack.c.h.b16 %v942
  %v968 = vunpack.c.l.b16 %v943
  %v969 = vunpack.c.h.b16 %v943
  %v970 = vunpack.c.l.b16 %v944
  %v971 = vunpack.c.h.b16 %v944
  %v972 = vunpack.c.l.b16 %v945
  %v973 = vunpack.c.h.b16 %v945
  %v974 = vunpack.c.l.b16 %v946
  %v975 = vunpack.c.h.b16 %v946
  %v976 = vunpack.c.l.b16 %v947
  %v977 = vunpack.c.h.b16 %v947
  %v978 = vunpack.c.l.b16 %v948
  %v979 = vunpack.c.h.b16 %v948
  %v980 = vunpack.c.l.b16 %v949
  %v981 = vunpack.c.h.b16 %v949
  %v982 = vunpack.c.l.b16 %v950
  %v983 = vunpack.c.h.b16 %v950
  %v984 = vunpack.c.l.b16 %v951
  %v985 = vunpack.c.h.b16 %v951
  %v986 = vunpack.c.l.b16 %v952
  %v987 = vunpack.c.h.b16 %v952
  %v988 = vunpack.c.l.b16 %v953
  %v989 = vunpack.c.h.b16 %v953
  %v990 = vpack.c.b16 %v968, %v966
  %v991 = vpack.c.b16 %v969, %v967
  %v992 = vpack.c.b16 %v972, %v970
  %v993 = vpack.c.b16 %v973, %v971
  %v994 = vpack.c.b16 %v976, %v974
  %v995 = vpack.c.b16 %v977, %v975
  %v996 = vpack.c.b16 %v980, %v978
  %v997 = vpack.c.b16 %v981, %v979
  %v998 = vpack.c.b16 %v984, %v982
  %v999 = vpack.c.b16 %v985, %v983
  %v1000 = vpack.c.b16 %v988, %v986
  %v1001 = vpack.c.b16 %v989, %v987
  %v1015 = vsel %vm377, %v907, 0
  %v1018 = vsel %vm377, %v909, 0
  %v1021 = vsel %vm377, %v911, 0
  %v1024 = vsel %vm377, %v913, 0
  %v1027 = vsel %vm377, %v915, 0
  %v1030 = vsel %vm377, %v917, 0
  %v1033 = vsel %vm377, %v919, 0
  %v1036 = vsel %vm377, %v921, 0
  %v1039 = vsel %vm377, %v923, 0
  %v1042 = vsel %vm377, %v925, 0
  %v1045 = vsel %vm377, %v927, 0
  %v1048 = vsel %vm377, %v929, 0
  %v1051 = vsel %vm377, %v931, 0
  %v1054 = vsel %vm377, %v933, 0
  %v1057 = vsel %vm377, %v935, 0
  %v1059 = vsel %vm377, %v940, 0
  %1061 = vmatprep.subr.bf16.mxu0 %v991
  %1062 = vmatpush1.bf16.msra.mxu0 %v990
  %1063 = vmatprep.subr.bf16.mxu0 %v993
  %1064 = vmatpush1.bf16.msra.mxu0 %v992
  %1065 = vmatprep.subr.bf16.mxu0 %v995
  %1066 = vmatpush1.bf16.msra.mxu0 %v994
  %1067 = vmatprep.subr.bf16.mxu0 %v997
  %1068 = vmatpush1.bf16.msra.mxu0 %v996
  %1069 = vmatprep.subr.bf16.mxu0 %v999
  %1070 = vmatpush1.bf16.msra.mxu0 %v998
  %1071 = vmatprep.subr.bf16.mxu0 %v1001
  %1072 = vmatpush1.bf16.msra.mxu0 %v1000
  %1073 = vmatprep.subr.bf16.mxu0 0
  %1074 = vmatpush1.bf16.msra.mxu0 0
  %1075 = vmatprep.subr.bf16.mxu0 0
  %1076 = vmatpush1.bf16.msra.mxu0 0
  %1077 = vmatprep.subr.bf16.mxu0 0
  %1078 = vmatpush1.bf16.msra.mxu0 0
  %1079 = vmatprep.subr.bf16.mxu0 0
  %1080 = vmatpush1.bf16.msra.mxu0 0
  %1081 = vmatprep.subr.bf16.mxu0 0
  %1082 = vmatpush1.bf16.msra.mxu0 0
  %1083 = vmatprep.subr.bf16.mxu0 0
  %1084 = vmatpush1.bf16.msra.mxu0 0
  %1085 = vmatprep.subr.bf16.mxu0 0
  %1086 = vmatpush1.bf16.msra.mxu0 0
  %1087 = vmatprep.subr.bf16.mxu0 0
  %1088 = vmatpush1.bf16.msra.mxu0 0
  %1089 = vmatprep.subr.bf16.mxu0 0
  %1090 = vmatpush1.bf16.msra.mxu0 0
  %1091 = vmatprep.subr.bf16.mxu0 0
  %1092 = vmatpush1.bf16.msra.mxu0 0
  %1093 = vmatprep.mubr.bf16.mxu0 0
  %1094 = vmatmul.mubr.bf16.gmra.mrb[0].mxu0 %v1015
  %v1095 = vpop.f32.mrb[0].mxu0
  %v1096 = vadd.f32 0.0, %v1095
  %v1097 = vpop.f32.mrb[0].mxu0
  %v1098 = vadd.f32 0.0, %v1097
  %v1099 = vpop.f32.mrb[0].mxu0
  %v1100 = vadd.f32 0.0, %v1099
  %v1101 = vpop.f32.mrb[0].mxu0
  %v1102 = vadd.f32 0.0, %v1101
  %1103 = vmatprep.mubr.bf16.mxu0 0
  %1104 = vmatmul.mubr.bf16.gmra.mrb[0].mxu0 %v1018
  %v1105 = vpop.f32.mrb[0].mxu0
  %v1106 = vadd.f32 0.0, %v1105
  %v1107 = vpop.f32.mrb[0].mxu0
  %v1108 = vadd.f32 0.0, %v1107
  %v1109 = vpop.f32.mrb[0].mxu0
  %v1110 = vadd.f32 0.0, %v1109
  %v1111 = vpop.f32.mrb[0].mxu0
  %v1112 = vadd.f32 0.0, %v1111
  %1113 = vmatprep.mubr.bf16.mxu0 0
  %1114 = vmatmul.mubr.bf16.gmra.mrb[0].mxu0 %v1021
  %v1115 = vpop.f32.mrb[0].mxu0
  %v1116 = vadd.f32 0.0, %v1115
  %v1117 = vpop.f32.mrb[0].mxu0
  %v1118 = vadd.f32 0.0, %v1117
  %v1119 = vpop.f32.mrb[0].mxu0
  %v1120 = vadd.f32 0.0, %v1119
  %v1121 = vpop.f32.mrb[0].mxu0
  %v1122 = vadd.f32 0.0, %v1121
  %1123 = vmatprep.mubr.bf16.mxu0 0
  %1124 = vmatmul.mubr.bf16.gmra.mrb[0].mxu0 %v1024
  %v1125 = vpop.f32.mrb[0].mxu0
  %v1126 = vadd.f32 0.0, %v1125
  %v1127 = vpop.f32.mrb[0].mxu0
  %v1128 = vadd.f32 0.0, %v1127
  %v1129 = vpop.f32.mrb[0].mxu0
  %v1130 = vadd.f32 0.0, %v1129
  %v1131 = vpop.f32.mrb[0].mxu0
  %v1132 = vadd.f32 0.0, %v1131
  %1133 = vmatprep.mubr.bf16.mxu0 0
  %1134 = vmatmul.mubr.bf16.gmra.mrb[0].mxu0 %v1027
  %v1135 = vpop.f32.mrb[0].mxu0
  %v1136 = vadd.f32 0.0, %v1135
  %v1137 = vpop.f32.mrb[0].mxu0
  %v1138 = vadd.f32 0.0, %v1137
  %v1139 = vpop.f32.mrb[0].mxu0
  %v1140 = vadd.f32 0.0, %v1139
  %v1141 = vpop.f32.mrb[0].mxu0
  %v1142 = vadd.f32 0.0, %v1141
  %1143 = vmatprep.mubr.bf16.mxu0 0
  %1144 = vmatmul.mubr.bf16.gmra.mrb[0].mxu0 %v1030
  %v1145 = vpop.f32.mrb[0].mxu0
  %v1146 = vadd.f32 0.0, %v1145
  %v1147 = vpop.f32.mrb[0].mxu0
  %v1148 = vadd.f32 0.0, %v1147
  %v1149 = vpop.f32.mrb[0].mxu0
  %v1150 = vadd.f32 0.0, %v1149
  %v1151 = vpop.f32.mrb[0].mxu0
  %v1152 = vadd.f32 0.0, %v1151
  %1153 = vmatprep.mubr.bf16.mxu0 0
  %1154 = vmatmul.mubr.bf16.gmra.mrb[0].mxu0 %v1033
  %v1155 = vpop.f32.mrb[0].mxu0
  %v1156 = vadd.f32 0.0, %v1155
  %v1157 = vpop.f32.mrb[0].mxu0
  %v1158 = vadd.f32 0.0, %v1157
  %v1159 = vpop.f32.mrb[0].mxu0
  %v1160 = vadd.f32 0.0, %v1159
  %v1161 = vpop.f32.mrb[0].mxu0
  %v1162 = vadd.f32 0.0, %v1161
  %1163 = vmatprep.mubr.bf16.mxu0 0
  %1164 = vmatmul.mubr.bf16.gmra.mrb[0].mxu0 %v1036
  %v1165 = vpop.f32.mrb[0].mxu0
  %v1166 = vadd.f32 0.0, %v1165
  %v1167 = vpop.f32.mrb[0].mxu0
  %v1168 = vadd.f32 0.0, %v1167
  %v1169 = vpop.f32.mrb[0].mxu0
  %v1170 = vadd.f32 0.0, %v1169
  %v1171 = vpop.f32.mrb[0].mxu0
  %v1172 = vadd.f32 0.0, %v1171
  %1173 = vmatprep.mubr.bf16.mxu0 0
  %1174 = vmatmul.mubr.bf16.gmra.mrb[0].mxu0 %v1039
  %v1175 = vpop.f32.mrb[0].mxu0
  %v1176 = vadd.f32 0.0, %v1175
  %v1177 = vpop.f32.mrb[0].mxu0
  %v1178 = vadd.f32 0.0, %v1177
  %v1179 = vpop.f32.mrb[0].mxu0
  %v1180 = vadd.f32 0.0, %v1179
  %v1181 = vpop.f32.mrb[0].mxu0
  %v1182 = vadd.f32 0.0, %v1181
  %1183 = vmatprep.mubr.bf16.mxu0 0
  %1184 = vmatmul.mubr.bf16.gmra.mrb[0].mxu0 %v1042
  %v1185 = vpop.f32.mrb[0].mxu0
  %v1186 = vadd.f32 0.0, %v1185
  %v1187 = vpop.f32.mrb[0].mxu0
  %v1188 = vadd.f32 0.0, %v1187
  %v1189 = vpop.f32.mrb[0].mxu0
  %v1190 = vadd.f32 0.0, %v1189
  %v1191 = vpop.f32.mrb[0].mxu0
  %v1192 = vadd.f32 0.0, %v1191
  %1193 = vmatprep.mubr.bf16.mxu0 0
  %1194 = vmatmul.mubr.bf16.gmra.mrb[0].mxu0 %v1045
  %v1195 = vpop.f32.mrb[0].mxu0
  %v1196 = vadd.f32 0.0, %v1195
  %v1197 = vpop.f32.mrb[0].mxu0
  %v1198 = vadd.f32 0.0, %v1197
  %v1199 = vpop.f32.mrb[0].mxu0
  %v1200 = vadd.f32 0.0, %v1199
  %v1201 = vpop.f32.mrb[0].mxu0
  %v1202 = vadd.f32 0.0, %v1201
  %1203 = vmatprep.mubr.bf16.mxu0 0
  %1204 = vmatmul.mubr.bf16.gmra.mrb[0].mxu0 %v1048
  %v1205 = vpop.f32.mrb[0].mxu0
  %v1206 = vadd.f32 0.0, %v1205
  %v1207 = vpop.f32.mrb[0].mxu0
  %v1208 = vadd.f32 0.0, %v1207
  %v1209 = vpop.f32.mrb[0].mxu0
  %v1210 = vadd.f32 0.0, %v1209
  %v1211 = vpop.f32.mrb[0].mxu0
  %v1212 = vadd.f32 0.0, %v1211
  %1213 = vmatprep.mubr.bf16.mxu0 0
  %1214 = vmatmul.mubr.bf16.gmra.mrb[0].mxu0 %v1051
  %v1215 = vpop.f32.mrb[0].mxu0
  %v1216 = vadd.f32 0.0, %v1215
  %v1217 = vpop.f32.mrb[0].mxu0
  %v1218 = vadd.f32 0.0, %v1217
  %v1219 = vpop.f32.mrb[0].mxu0
  %v1220 = vadd.f32 0.0, %v1219
  %v1221 = vpop.f32.mrb[0].mxu0
  %v1222 = vadd.f32 0.0, %v1221
  %1223 = vmatprep.mubr.bf16.mxu0 0
  %1224 = vmatmul.mubr.bf16.gmra.mrb[0].mxu0 %v1054
  %v1225 = vpop.f32.mrb[0].mxu0
  %v1226 = vadd.f32 0.0, %v1225
  %v1227 = vpop.f32.mrb[0].mxu0
  %v1228 = vadd.f32 0.0, %v1227
  %v1229 = vpop.f32.mrb[0].mxu0
  %v1230 = vadd.f32 0.0, %v1229
  %v1231 = vpop.f32.mrb[0].mxu0
  %v1232 = vadd.f32 0.0, %v1231
  %1233 = vmatprep.mubr.bf16.mxu0 0
  %1234 = vmatmul.mubr.bf16.gmra.mrb[0].mxu0 %v1057
  %v1235 = vpop.f32.mrb[0].mxu0
  %v1236 = vadd.f32 0.0, %v1235
  %v1237 = vpop.f32.mrb[0].mxu0
  %v1238 = vadd.f32 0.0, %v1237
  %v1239 = vpop.f32.mrb[0].mxu0
  %v1240 = vadd.f32 0.0, %v1239
  %v1241 = vpop.f32.mrb[0].mxu0
  %v1242 = vadd.f32 0.0, %v1241
  %1243 = vmatprep.mubr.bf16.mxu0 0
  %1244 = vmatmul.mubr.bf16.gmra.mrb[0].mxu0 %v1059
  %v1245 = vpop.f32.mrb[0].mxu0
  %v1246 = vadd.f32 0.0, %v1245
  %v1247 = vpop.f32.mrb[0].mxu0
  %v1248 = vadd.f32 0.0, %v1247
  %v1249 = vpop.f32.mrb[0].mxu0
  %v1250 = vadd.f32 0.0, %v1249
  %v1251 = vpop.f32.mrb[0].mxu0
  %v1252 = vadd.f32 0.0, %v1251
  %1253 = vdwg.mxu0
  %v1254 = vadd.f32 %v746, %v1096
  %v1255 = vadd.f32 %v748, %v1098
  %v1256 = vadd.f32 %v750, %v1100
  %v1257 = vadd.f32 %v752, %v1102
  %v1258 = vadd.f32 %v756, %v1106
  %v1259 = vadd.f32 %v758, %v1108
  %v1260 = vadd.f32 %v760, %v1110
  %v1261 = vadd.f32 %v762, %v1112
  %v1262 = vadd.f32 %v766, %v1116
  %v1263 = vadd.f32 %v768, %v1118
  %v1264 = vadd.f32 %v770, %v1120
  %v1265 = vadd.f32 %v772, %v1122
  %v1266 = vadd.f32 %v776, %v1126
  %v1267 = vadd.f32 %v778, %v1128
  %v1268 = vadd.f32 %v780, %v1130
  %v1269 = vadd.f32 %v782, %v1132
  %v1270 = vadd.f32 %v786, %v1136
  %v1271 = vadd.f32 %v788, %v1138
  %v1272 = vadd.f32 %v790, %v1140
  %v1273 = vadd.f32 %v792, %v1142
  %v1274 = vadd.f32 %v796, %v1146
  %v1275 = vadd.f32 %v798, %v1148
  %v1276 = vadd.f32 %v800, %v1150
  %v1277 = vadd.f32 %v802, %v1152
  %v1278 = vadd.f32 %v806, %v1156
  %v1279 = vadd.f32 %v808, %v1158
  %v1280 = vadd.f32 %v810, %v1160
  %v1281 = vadd.f32 %v812, %v1162
  %v1282 = vadd.f32 %v816, %v1166
  %v1283 = vadd.f32 %v818, %v1168
  %v1284 = vadd.f32 %v820, %v1170
  %v1285 = vadd.f32 %v822, %v1172
  %v1286 = vadd.f32 %v826, %v1176
  %v1287 = vadd.f32 %v828, %v1178
  %v1288 = vadd.f32 %v830, %v1180
  %v1289 = vadd.f32 %v832, %v1182
  %v1290 = vadd.f32 %v836, %v1186
  %v1291 = vadd.f32 %v838, %v1188
  %v1292 = vadd.f32 %v840, %v1190
  %v1293 = vadd.f32 %v842, %v1192
  %v1294 = vadd.f32 %v846, %v1196
  %v1295 = vadd.f32 %v848, %v1198
  %v1296 = vadd.f32 %v850, %v1200
  %v1297 = vadd.f32 %v852, %v1202
  %v1298 = vadd.f32 %v856, %v1206
  %v1299 = vadd.f32 %v858, %v1208
  %v1300 = vadd.f32 %v860, %v1210
  %v1301 = vadd.f32 %v862, %v1212
  %v1302 = vadd.f32 %v866, %v1216
  %v1303 = vadd.f32 %v868, %v1218
  %v1304 = vadd.f32 %v870, %v1220
  %v1305 = vadd.f32 %v872, %v1222
  %v1306 = vadd.f32 %v876, %v1226
  %v1307 = vadd.f32 %v878, %v1228
  %v1308 = vadd.f32 %v880, %v1230
  %v1309 = vadd.f32 %v882, %v1232
  %v1310 = vadd.f32 %v886, %v1236
  %v1311 = vadd.f32 %v888, %v1238
  %v1312 = vadd.f32 %v890, %v1240
  %v1313 = vadd.f32 %v892, %v1242
  %v1314 = vadd.f32 %v896, %v1246
  %v1315 = vadd.f32 %v898, %v1248
  %v1316 = vadd.f32 %v900, %v1250
  %v1317 = vadd.f32 %v902, %v1252
  %vm1318 = vsmask.f32 6400
  %v1319 = vrot.slane %v168, 1
  %v1320 = vrot.slane %v170, 2
  %v1321 = vor.u32 %v1319, %v1320
  %v1322 = vrot.slane %v179, 1
  %v1323 = vrot.slane %v175, 2
  %v1324 = vor.u32 %v1322, %v1323
  %v1325 = vsel %vm1318, %v1321, %v1324
  %v1326 = vrot.slane %v187, 1
  %v1327 = vrot.slane %v183, 2
  %v1328 = vor.u32 %v1326, %v1327
  %v1329 = vsel %vm1318, %v1324, %v1328
  %v1330 = vrot.slane %v195, 1
  %v1331 = vrot.slane %v191, 2
  %v1332 = vor.u32 %v1330, %v1331
  %v1333 = vsel %vm1318, %v1328, %v1332
  %v1334 = vrot.slane %v203, 1
  %v1335 = vrot.slane %v199, 2
  %v1336 = vor.u32 %v1334, %v1335
  %v1337 = vsel %vm1318, %v1332, %v1336
  %v1338 = vrot.slane %v211, 1
  %v1339 = vrot.slane %v207, 2
  %v1340 = vor.u32 %v1338, %v1339
  %v1341 = vsel %vm1318, %v1336, %v1340
  %v1342 = vrot.slane %v219, 1
  %v1343 = vrot.slane %v215, 2
  %v1344 = vor.u32 %v1342, %v1343
  %v1345 = vsel %vm1318, %v1340, %v1344
  %v1346 = vrot.slane %v227, 1
  %v1347 = vrot.slane %v223, 2
  %v1348 = vor.u32 %v1346, %v1347
  %v1349 = vsel %vm1318, %v1344, %v1348
  %v1350 = vrot.slane %v235, 1
  %v1351 = vrot.slane %v231, 2
  %v1352 = vor.u32 %v1350, %v1351
  %v1353 = vsel %vm1318, %v1348, %v1352
  %v1354 = vrot.slane %v243, 1
  %v1355 = vrot.slane %v239, 2
  %v1356 = vor.u32 %v1354, %v1355
  %v1357 = vsel %vm1318, %v1352, %v1356
  %v1358 = vrot.slane %v251, 1
  %v1359 = vrot.slane %v247, 2
  %v1360 = vor.u32 %v1358, %v1359
  %v1361 = vsel %vm1318, %v1356, %v1360
  %v1362 = vrot.slane %v259, 1
  %v1363 = vrot.slane %v255, 2
  %v1364 = vor.u32 %v1362, %v1363
  %v1365 = vsel %vm1318, %v1360, %v1364
  %v1366 = vrot.slane %v267, 1
  %v1367 = vrot.slane %v263, 2
  %v1368 = vor.u32 %v1366, %v1367
  %v1369 = vsel %vm1318, %v1364, %v1368
  %v1370 = vrot.slane %v275, 1
  %v1371 = vrot.slane %v271, 2
  %v1372 = vor.u32 %v1370, %v1371
  %v1373 = vsel %vm1318, %v1368, %v1372
  %v1374 = vrot.slane %v283, 1
  %v1375 = vrot.slane %v279, 2
  %v1376 = vor.u32 %v1374, %v1375
  %v1377 = vsel %vm1318, %v1372, %v1376
  %v1378 = vrot.slane %v291, 1
  %v1379 = vrot.slane %v287, 2
  %v1380 = vor.u32 %v1378, %v1379
  %v1381 = vsel %vm1318, %v1376, %v1380
  %v1383 = vshrl.u32 %v295, 16
  %v1385 = vrot.slane %v1383, 1
  %v1386 = vrot.slane %v297, 2
  %v1387 = vor.u32 %v1385, %v1386
  %vm1389 = vmand %vm904, %vm1318
  %v1390 = vsel %vm1389, %v1380, %v1387
  %s1391 = scalar_lea.vmem %s1, 288
  %v1392 = vld [vmem:[%s1391] sm:$0xff]
  %v1393 = vld [vmem:[%s1391 + $0x8] sm:$0xff]
  %v1394 = vld [vmem:[%s1391 + $0x10] sm:$0xff]
  %v1395 = vld [vmem:[%s1391 + $0x18] sm:$0xff]
  %v1396 = vld [vmem:[%s1391 + $0x20] sm:$0xff]
  %v1397 = vld [vmem:[%s1391 + $0x28] sm:$0xff]
  %v1398 = vld [vmem:[%s1391 + $0x30] sm:$0xff]
  %v1399 = vld [vmem:[%s1391 + $0x38] sm:$0xff]
  %v1400 = vld [vmem:[%s1391 + $0x40] sm:$0xff]
  %v1401 = vld [vmem:[%s1391 + $0x48] sm:$0xff]
  %v1402 = vld [vmem:[%s1391 + $0x50] sm:$0xff]
  %v1403 = vld [vmem:[%s1391 + $0x58] sm:$0xff]
  %v1416 = vunpack.c.l.b16 %v1392
  %v1417 = vunpack.c.h.b16 %v1392
  %v1418 = vunpack.c.l.b16 %v1393
  %v1419 = vunpack.c.h.b16 %v1393
  %v1420 = vunpack.c.l.b16 %v1394
  %v1421 = vunpack.c.h.b16 %v1394
  %v1422 = vunpack.c.l.b16 %v1395
  %v1423 = vunpack.c.h.b16 %v1395
  %v1424 = vunpack.c.l.b16 %v1396
  %v1425 = vunpack.c.h.b16 %v1396
  %v1426 = vunpack.c.l.b16 %v1397
  %v1427 = vunpack.c.h.b16 %v1397
  %v1428 = vunpack.c.l.b16 %v1398
  %v1429 = vunpack.c.h.b16 %v1398
  %v1430 = vunpack.c.l.b16 %v1399
  %v1431 = vunpack.c.h.b16 %v1399
  %v1432 = vunpack.c.l.b16 %v1400
  %v1433 = vunpack.c.h.b16 %v1400
  %v1434 = vunpack.c.l.b16 %v1401
  %v1435 = vunpack.c.h.b16 %v1401
  %v1436 = vunpack.c.l.b16 %v1402
  %v1437 = vunpack.c.h.b16 %v1402
  %v1438 = vunpack.c.l.b16 %v1403
  %v1439 = vunpack.c.h.b16 %v1403
  %v1440 = vpack.c.b16 %v1418, %v1416
  %v1441 = vpack.c.b16 %v1419, %v1417
  %v1442 = vpack.c.b16 %v1422, %v1420
  %v1443 = vpack.c.b16 %v1423, %v1421
  %v1444 = vpack.c.b16 %v1426, %v1424
  %v1445 = vpack.c.b16 %v1427, %v1425
  %v1446 = vpack.c.b16 %v1430, %v1428
  %v1447 = vpack.c.b16 %v1431, %v1429
  %v1448 = vpack.c.b16 %v1434, %v1432
  %v1449 = vpack.c.b16 %v1435, %v1433
  %v1450 = vpack.c.b16 %v1438, %v1436
  %v1451 = vpack.c.b16 %v1439, %v1437
  %v1465 = vsel %vm377, %v1325, 0
  %v1468 = vsel %vm377, %v1329, 0
  %v1471 = vsel %vm377, %v1333, 0
  %v1474 = vsel %vm377, %v1337, 0
  %v1477 = vsel %vm377, %v1341, 0
  %v1480 = vsel %vm377, %v1345, 0
  %v1483 = vsel %vm377, %v1349, 0
  %v1486 = vsel %vm377, %v1353, 0
  %v1489 = vsel %vm377, %v1357, 0
  %v1492 = vsel %vm377, %v1361, 0
  %v1495 = vsel %vm377, %v1365, 0
  %v1498 = vsel %vm377, %v1369, 0
  %v1501 = vsel %vm377, %v1373, 0
  %v1504 = vsel %vm377, %v1377, 0
  %v1507 = vsel %vm377, %v1381, 0
  %v1510 = vsel %vm377, %v1390, 0
  %1512 = vmatprep.subr.bf16.mxu0 %v1441
  %1513 = vmatpush1.bf16.msra.mxu0 %v1440
  %1514 = vmatprep.subr.bf16.mxu0 %v1443
  %1515 = vmatpush1.bf16.msra.mxu0 %v1442
  %1516 = vmatprep.subr.bf16.mxu0 %v1445
  %1517 = vmatpush1.bf16.msra.mxu0 %v1444
  %1518 = vmatprep.subr.bf16.mxu0 %v1447
  %1519 = vmatpush1.bf16.msra.mxu0 %v1446
  %1520 = vmatprep.subr.bf16.mxu0 %v1449
  %1521 = vmatpush1.bf16.msra.mxu0 %v1448
  %1522 = vmatprep.subr.bf16.mxu0 %v1451
  %1523 = vmatpush1.bf16.msra.mxu0 %v1450
  %1524 = vmatprep.subr.bf16.mxu0 0
  %1525 = vmatpush1.bf16.msra.mxu0 0
  %1526 = vmatprep.subr.bf16.mxu0 0
  %1527 = vmatpush1.bf16.msra.mxu0 0
  %1528 = vmatprep.subr.bf16.mxu0 0
  %1529 = vmatpush1.bf16.msra.mxu0 0
  %1530 = vmatprep.subr.bf16.mxu0 0
  %1531 = vmatpush1.bf16.msra.mxu0 0
  %1532 = vmatprep.subr.bf16.mxu0 0
  %1533 = vmatpush1.bf16.msra.mxu0 0
  %1534 = vmatprep.subr.bf16.mxu0 0
  %1535 = vmatpush1.bf16.msra.mxu0 0
  %1536 = vmatprep.subr.bf16.mxu0 0
  %1537 = vmatpush1.bf16.msra.mxu0 0
  %1538 = vmatprep.subr.bf16.mxu0 0
  %1539 = vmatpush1.bf16.msra.mxu0 0
  %1540 = vmatprep.subr.bf16.mxu0 0
  %1541 = vmatpush1.bf16.msra.mxu0 0
  %1542 = vmatprep.subr.bf16.mxu0 0
  %1543 = vmatpush1.bf16.msra.mxu0 0
  %1544 = vmatprep.mubr.bf16.mxu0 0
  %1545 = vmatmul.mubr.bf16.gmra.mrb[0].mxu0 %v1465
  %v1546 = vpop.f32.mrb[0].mxu0
  %v1547 = vadd.f32 0.0, %v1546
  %v1548 = vpop.f32.mrb[0].mxu0
  %v1549 = vadd.f32 0.0, %v1548
  %v1550 = vpop.f32.mrb[0].mxu0
  %v1551 = vadd.f32 0.0, %v1550
  %v1552 = vpop.f32.mrb[0].mxu0
  %v1553 = vadd.f32 0.0, %v1552
  %1554 = vmatprep.mubr.bf16.mxu0 0
  %1555 = vmatmul.mubr.bf16.gmra.mrb[0].mxu0 %v1468
  %v1556 = vpop.f32.mrb[0].mxu0
  %v1557 = vadd.f32 0.0, %v1556
  %v1558 = vpop.f32.mrb[0].mxu0
  %v1559 = vadd.f32 0.0, %v1558
  %v1560 = vpop.f32.mrb[0].mxu0
  %v1561 = vadd.f32 0.0, %v1560
  %v1562 = vpop.f32.mrb[0].mxu0
  %v1563 = vadd.f32 0.0, %v1562
  %1564 = vmatprep.mubr.bf16.mxu0 0
  %1565 = vmatmul.mubr.bf16.gmra.mrb[0].mxu0 %v1471
  %v1566 = vpop.f32.mrb[0].mxu0
  %v1567 = vadd.f32 0.0, %v1566
  %v1568 = vpop.f32.mrb[0].mxu0
  %v1569 = vadd.f32 0.0, %v1568
  %v1570 = vpop.f32.mrb[0].mxu0
  %v1571 = vadd.f32 0.0, %v1570
  %v1572 = vpop.f32.mrb[0].mxu0
  %v1573 = vadd.f32 0.0, %v1572
  %1574 = vmatprep.mubr.bf16.mxu0 0
  %1575 = vmatmul.mubr.bf16.gmra.mrb[0].mxu0 %v1474
  %v1576 = vpop.f32.mrb[0].mxu0
  %v1577 = vadd.f32 0.0, %v1576
  %v1578 = vpop.f32.mrb[0].mxu0
  %v1579 = vadd.f32 0.0, %v1578
  %v1580 = vpop.f32.mrb[0].mxu0
  %v1581 = vadd.f32 0.0, %v1580
  %v1582 = vpop.f32.mrb[0].mxu0
  %v1583 = vadd.f32 0.0, %v1582
  %1584 = vmatprep.mubr.bf16.mxu0 0
  %1585 = vmatmul.mubr.bf16.gmra.mrb[0].mxu0 %v1477
  %v1586 = vpop.f32.mrb[0].mxu0
  %v1587 = vadd.f32 0.0, %v1586
  %v1588 = vpop.f32.mrb[0].mxu0
  %v1589 = vadd.f32 0.0, %v1588
  %v1590 = vpop.f32.mrb[0].mxu0
  %v1591 = vadd.f32 0.0, %v1590
  %v1592 = vpop.f32.mrb[0].mxu0
  %v1593 = vadd.f32 0.0, %v1592
  %1594 = vmatprep.mubr.bf16.mxu0 0
  %1595 = vmatmul.mubr.bf16.gmra.mrb[0].mxu0 %v1480
  %v1596 = vpop.f32.mrb[0].mxu0
  %v1597 = vadd.f32 0.0, %v1596
  %v1598 = vpop.f32.mrb[0].mxu0
  %v1599 = vadd.f32 0.0, %v1598
  %v1600 = vpop.f32.mrb[0].mxu0
  %v1601 = vadd.f32 0.0, %v1600
  %v1602 = vpop.f32.mrb[0].mxu0
  %v1603 = vadd.f32 0.0, %v1602
  %1604 = vmatprep.mubr.bf16.mxu0 0
  %1605 = vmatmul.mubr.bf16.gmra.mrb[0].mxu0 %v1483
  %v1606 = vpop.f32.mrb[0].mxu0
  %v1607 = vadd.f32 0.0, %v1606
  %v1608 = vpop.f32.mrb[0].mxu0
  %v1609 = vadd.f32 0.0, %v1608
  %v1610 = vpop.f32.mrb[0].mxu0
  %v1611 = vadd.f32 0.0, %v1610
  %v1612 = vpop.f32.mrb[0].mxu0
  %v1613 = vadd.f32 0.0, %v1612
  %1614 = vmatprep.mubr.bf16.mxu0 0
  %1615 = vmatmul.mubr.bf16.gmra.mrb[0].mxu0 %v1486
  %v1616 = vpop.f32.mrb[0].mxu0
  %v1617 = vadd.f32 0.0, %v1616
  %v1618 = vpop.f32.mrb[0].mxu0
  %v1619 = vadd.f32 0.0, %v1618
  %v1620 = vpop.f32.mrb[0].mxu0
  %v1621 = vadd.f32 0.0, %v1620
  %v1622 = vpop.f32.mrb[0].mxu0
  %v1623 = vadd.f32 0.0, %v1622
  %1624 = vmatprep.mubr.bf16.mxu0 0
  %1625 = vmatmul.mubr.bf16.gmra.mrb[0].mxu0 %v1489
  %v1626 = vpop.f32.mrb[0].mxu0
  %v1627 = vadd.f32 0.0, %v1626
  %v1628 = vpop.f32.mrb[0].mxu0
  %v1629 = vadd.f32 0.0, %v1628
  %v1630 = vpop.f32.mrb[0].mxu0
  %v1631 = vadd.f32 0.0, %v1630
  %v1632 = vpop.f32.mrb[0].mxu0
  %v1633 = vadd.f32 0.0, %v1632
  %1634 = vmatprep.mubr.bf16.mxu0 0
  %1635 = vmatmul.mubr.bf16.gmra.mrb[0].mxu0 %v1492
  %v1636 = vpop.f32.mrb[0].mxu0
  %v1637 = vadd.f32 0.0, %v1636
  %v1638 = vpop.f32.mrb[0].mxu0
  %v1639 = vadd.f32 0.0, %v1638
  %v1640 = vpop.f32.mrb[0].mxu0
  %v1641 = vadd.f32 0.0, %v1640
  %v1642 = vpop.f32.mrb[0].mxu0
  %v1643 = vadd.f32 0.0, %v1642
  %1644 = vmatprep.mubr.bf16.mxu0 0
  %1645 = vmatmul.mubr.bf16.gmra.mrb[0].mxu0 %v1495
  %v1646 = vpop.f32.mrb[0].mxu0
  %v1647 = vadd.f32 0.0, %v1646
  %v1648 = vpop.f32.mrb[0].mxu0
  %v1649 = vadd.f32 0.0, %v1648
  %v1650 = vpop.f32.mrb[0].mxu0
  %v1651 = vadd.f32 0.0, %v1650
  %v1652 = vpop.f32.mrb[0].mxu0
  %v1653 = vadd.f32 0.0, %v1652
  %1654 = vmatprep.mubr.bf16.mxu0 0
  %1655 = vmatmul.mubr.bf16.gmra.mrb[0].mxu0 %v1498
  %v1656 = vpop.f32.mrb[0].mxu0
  %v1657 = vadd.f32 0.0, %v1656
  %v1658 = vpop.f32.mrb[0].mxu0
  %v1659 = vadd.f32 0.0, %v1658
  %v1660 = vpop.f32.mrb[0].mxu0
  %v1661 = vadd.f32 0.0, %v1660
  %v1662 = vpop.f32.mrb[0].mxu0
  %v1663 = vadd.f32 0.0, %v1662
  %1664 = vmatprep.mubr.bf16.mxu0 0
  %1665 = vmatmul.mubr.bf16.gmra.mrb[0].mxu0 %v1501
  %v1666 = vpop.f32.mrb[0].mxu0
  %v1667 = vadd.f32 0.0, %v1666
  %v1668 = vpop.f32.mrb[0].mxu0
  %v1669 = vadd.f32 0.0, %v1668
  %v1670 = vpop.f32.mrb[0].mxu0
  %v1671 = vadd.f32 0.0, %v1670
  %v1672 = vpop.f32.mrb[0].mxu0
  %v1673 = vadd.f32 0.0, %v1672
  %1674 = vmatprep.mubr.bf16.mxu0 0
  %1675 = vmatmul.mubr.bf16.gmra.mrb[0].mxu0 %v1504
  %v1676 = vpop.f32.mrb[0].mxu0
  %v1677 = vadd.f32 0.0, %v1676
  %v1678 = vpop.f32.mrb[0].mxu0
  %v1679 = vadd.f32 0.0, %v1678
  %v1680 = vpop.f32.mrb[0].mxu0
  %v1681 = vadd.f32 0.0, %v1680
  %v1682 = vpop.f32.mrb[0].mxu0
  %v1683 = vadd.f32 0.0, %v1682
  %1684 = vmatprep.mubr.bf16.mxu0 0
  %1685 = vmatmul.mubr.bf16.gmra.mrb[0].mxu0 %v1507
  %v1686 = vpop.f32.mrb[0].mxu0
  %v1687 = vadd.f32 0.0, %v1686
  %v1688 = vpop.f32.mrb[0].mxu0
  %v1689 = vadd.f32 0.0, %v1688
  %v1690 = vpop.f32.mrb[0].mxu0
  %v1691 = vadd.f32 0.0, %v1690
  %v1692 = vpop.f32.mrb[0].mxu0
  %v1693 = vadd.f32 0.0, %v1692
  %1694 = vmatprep.mubr.bf16.mxu0 0
  %1695 = vmatmul.mubr.bf16.gmra.mrb[0].mxu0 %v1510
  %v1696 = vpop.f32.mrb[0].mxu0
  %v1697 = vadd.f32 0.0, %v1696
  %v1698 = vpop.f32.mrb[0].mxu0
  %v1699 = vadd.f32 0.0, %v1698
  %v1700 = vpop.f32.mrb[0].mxu0
  %v1701 = vadd.f32 0.0, %v1700
  %v1702 = vpop.f32.mrb[0].mxu0
  %v1703 = vadd.f32 0.0, %v1702
  %1704 = vdwg.mxu0
  %v1705 = vadd.f32 %v1254, %v1547
  %v1706 = vadd.f32 %v1255, %v1549
  %v1707 = vadd.f32 %v1256, %v1551
  %v1708 = vadd.f32 %v1257, %v1553
  %v1709 = vadd.f32 %v1258, %v1557
  %v1710 = vadd.f32 %v1259, %v1559
  %v1711 = vadd.f32 %v1260, %v1561
  %v1712 = vadd.f32 %v1261, %v1563
  %v1713 = vadd.f32 %v1262, %v1567
  %v1714 = vadd.f32 %v1263, %v1569
  %v1715 = vadd.f32 %v1264, %v1571
  %v1716 = vadd.f32 %v1265, %v1573
  %v1717 = vadd.f32 %v1266, %v1577
  %v1718 = vadd.f32 %v1267, %v1579
  %v1719 = vadd.f32 %v1268, %v1581
  %v1720 = vadd.f32 %v1269, %v1583
  %v1721 = vadd.f32 %v1270, %v1587
  %v1722 = vadd.f32 %v1271, %v1589
  %v1723 = vadd.f32 %v1272, %v1591
  %v1724 = vadd.f32 %v1273, %v1593
  %v1725 = vadd.f32 %v1274, %v1597
  %v1726 = vadd.f32 %v1275, %v1599
  %v1727 = vadd.f32 %v1276, %v1601
  %v1728 = vadd.f32 %v1277, %v1603
  %v1729 = vadd.f32 %v1278, %v1607
  %v1730 = vadd.f32 %v1279, %v1609
  %v1731 = vadd.f32 %v1280, %v1611
  %v1732 = vadd.f32 %v1281, %v1613
  %v1733 = vadd.f32 %v1282, %v1617
  %v1734 = vadd.f32 %v1283, %v1619
  %v1735 = vadd.f32 %v1284, %v1621
  %v1736 = vadd.f32 %v1285, %v1623
  %v1737 = vadd.f32 %v1286, %v1627
  %v1738 = vadd.f32 %v1287, %v1629
  %v1739 = vadd.f32 %v1288, %v1631
  %v1740 = vadd.f32 %v1289, %v1633
  %v1741 = vadd.f32 %v1290, %v1637
  %v1742 = vadd.f32 %v1291, %v1639
  %v1743 = vadd.f32 %v1292, %v1641
  %v1744 = vadd.f32 %v1293, %v1643
  %v1745 = vadd.f32 %v1294, %v1647
  %v1746 = vadd.f32 %v1295, %v1649
  %v1747 = vadd.f32 %v1296, %v1651
  %v1748 = vadd.f32 %v1297, %v1653
  %v1749 = vadd.f32 %v1298, %v1657
  %v1750 = vadd.f32 %v1299, %v1659
  %v1751 = vadd.f32 %v1300, %v1661
  %v1752 = vadd.f32 %v1301, %v1663
  %v1753 = vadd.f32 %v1302, %v1667
  %v1754 = vadd.f32 %v1303, %v1669
  %v1755 = vadd.f32 %v1304, %v1671
  %v1756 = vadd.f32 %v1305, %v1673
  %v1757 = vadd.f32 %v1306, %v1677
  %v1758 = vadd.f32 %v1307, %v1679
  %v1759 = vadd.f32 %v1308, %v1681
  %v1760 = vadd.f32 %v1309, %v1683
  %v1761 = vadd.f32 %v1310, %v1687
  %v1762 = vadd.f32 %v1311, %v1689
  %v1763 = vadd.f32 %v1312, %v1691
  %v1764 = vadd.f32 %v1313, %v1693
  %v1765 = vadd.f32 %v1314, %v1697
  %v1766 = vadd.f32 %v1315, %v1699
  %v1767 = vadd.f32 %v1316, %v1701
  %v1768 = vadd.f32 %v1317, %v1703
  %vm1769 = vcmask 1045504
  %v1770 = vrot.slane %v150, 2
  %v1771 = vrot.slane %v151, 2
  %v1772 = vsel %vm1769, %v1770, %v1771
  %v1773 = vrot.slane %v152, 2
  %v1774 = vsel %vm1769, %v1771, %v1773
  %v1775 = vrot.slane %v153, 2
  %v1776 = vsel %vm1769, %v1773, %v1775
  %v1777 = vrot.slane %v154, 2
  %v1778 = vsel %vm1769, %v1775, %v1777
  %v1779 = vrot.slane %v155, 2
  %v1780 = vsel %vm1769, %v1777, %v1779
  %v1781 = vrot.slane %v156, 2
  %v1782 = vsel %vm1769, %v1779, %v1781
  %v1783 = vrot.slane %v157, 2
  %v1784 = vsel %vm1769, %v1781, %v1783
  %v1785 = vrot.slane %v158, 2
  %v1786 = vsel %vm1769, %v1783, %v1785
  %v1787 = vrot.slane %v159, 2
  %v1788 = vsel %vm1769, %v1785, %v1787
  %v1789 = vrot.slane %v160, 2
  %v1790 = vsel %vm1769, %v1787, %v1789
  %v1791 = vrot.slane %v161, 2
  %v1792 = vsel %vm1769, %v1789, %v1791
  %v1793 = vrot.slane %v162, 2
  %v1794 = vsel %vm1769, %v1791, %v1793
  %v1795 = vrot.slane %v163, 2
  %v1796 = vsel %vm1769, %v1793, %v1795
  %v1797 = vrot.slane %v164, 2
  %v1798 = vsel %vm1769, %v1795, %v1797
  %v1799 = vrot.slane %v165, 2
  %v1800 = vsel %vm1769, %v1797, %v1799
  %v1801 = vrot.slane %v295, 2
  %vm1802 = vcmask 1045504
  %v1805 = vsel %vm1802, %v1799, %v1801
  %s1806 = scalar_lea.vmem %s1, 384
  %v1807 = vld [vmem:[%s1806] sm:$0xff]
  %v1808 = vld [vmem:[%s1806 + $0x8] sm:$0xff]
  %v1809 = vld [vmem:[%s1806 + $0x10] sm:$0xff]
  %v1810 = vld [vmem:[%s1806 + $0x18] sm:$0xff]
  %v1811 = vld [vmem:[%s1806 + $0x20] sm:$0xff]
  %v1812 = vld [vmem:[%s1806 + $0x28] sm:$0xff]
  %v1813 = vld [vmem:[%s1806 + $0x30] sm:$0xff]
  %v1814 = vld [vmem:[%s1806 + $0x38] sm:$0xff]
  %v1815 = vld [vmem:[%s1806 + $0x40] sm:$0xff]
  %v1816 = vld [vmem:[%s1806 + $0x48] sm:$0xff]
  %v1817 = vld [vmem:[%s1806 + $0x50] sm:$0xff]
  %v1818 = vld [vmem:[%s1806 + $0x58] sm:$0xff]
  %v1831 = vunpack.c.l.b16 %v1807
  %v1832 = vunpack.c.h.b16 %v1807
  %v1833 = vunpack.c.l.b16 %v1808
  %v1834 = vunpack.c.h.b16 %v1808
  %v1835 = vunpack.c.l.b16 %v1809
  %v1836 = vunpack.c.h.b16 %v1809
  %v1837 = vunpack.c.l.b16 %v1810
  %v1838 = vunpack.c.h.b16 %v1810
  %v1839 = vunpack.c.l.b16 %v1811
  %v1840 = vunpack.c.h.b16 %v1811
  %v1841 = vunpack.c.l.b16 %v1812
  %v1842 = vunpack.c.h.b16 %v1812
  %v1843 = vunpack.c.l.b16 %v1813
  %v1844 = vunpack.c.h.b16 %v1813
  %v1845 = vunpack.c.l.b16 %v1814
  %v1846 = vunpack.c.h.b16 %v1814
  %v1847 = vunpack.c.l.b16 %v1815
  %v1848 = vunpack.c.h.b16 %v1815
  %v1849 = vunpack.c.l.b16 %v1816
  %v1850 = vunpack.c.h.b16 %v1816
  %v1851 = vunpack.c.l.b16 %v1817
  %v1852 = vunpack.c.h.b16 %v1817
  %v1853 = vunpack.c.l.b16 %v1818
  %v1854 = vunpack.c.h.b16 %v1818
  %v1855 = vpack.c.b16 %v1833, %v1831
  %v1856 = vpack.c.b16 %v1834, %v1832
  %v1857 = vpack.c.b16 %v1837, %v1835
  %v1858 = vpack.c.b16 %v1838, %v1836
  %v1859 = vpack.c.b16 %v1841, %v1839
  %v1860 = vpack.c.b16 %v1842, %v1840
  %v1861 = vpack.c.b16 %v1845, %v1843
  %v1862 = vpack.c.b16 %v1846, %v1844
  %v1863 = vpack.c.b16 %v1849, %v1847
  %v1864 = vpack.c.b16 %v1850, %v1848
  %v1865 = vpack.c.b16 %v1853, %v1851
  %v1866 = vpack.c.b16 %v1854, %v1852
  %v1880 = vsel %vm377, %v1772, 0
  %v1883 = vsel %vm377, %v1774, 0
  %v1886 = vsel %vm377, %v1776, 0
  %v1889 = vsel %vm377, %v1778, 0
  %v1892 = vsel %vm377, %v1780, 0
  %v1895 = vsel %vm377, %v1782, 0
  %v1898 = vsel %vm377, %v1784, 0
  %v1901 = vsel %vm377, %v1786, 0
  %v1904 = vsel %vm377, %v1788, 0
  %v1907 = vsel %vm377, %v1790, 0
  %v1910 = vsel %vm377, %v1792, 0
  %v1913 = vsel %vm377, %v1794, 0
  %v1916 = vsel %vm377, %v1796, 0
  %v1919 = vsel %vm377, %v1798, 0
  %v1922 = vsel %vm377, %v1800, 0
  %v1924 = vsel %vm377, %v1805, 0
  %1926 = vmatprep.subr.bf16.mxu0 %v1856
  %1927 = vmatpush1.bf16.msra.mxu0 %v1855
  %1928 = vmatprep.subr.bf16.mxu0 %v1858
  %1929 = vmatpush1.bf16.msra.mxu0 %v1857
  %1930 = vmatprep.subr.bf16.mxu0 %v1860
  %1931 = vmatpush1.bf16.msra.mxu0 %v1859
  %1932 = vmatprep.subr.bf16.mxu0 %v1862
  %1933 = vmatpush1.bf16.msra.mxu0 %v1861
  %1934 = vmatprep.subr.bf16.mxu0 %v1864
  %1935 = vmatpush1.bf16.msra.mxu0 %v1863
  %1936 = vmatprep.subr.bf16.mxu0 %v1866
  %1937 = vmatpush1.bf16.msra.mxu0 %v1865
  %1938 = vmatprep.subr.bf16.mxu0 0
  %1939 = vmatpush1.bf16.msra.mxu0 0
  %1940 = vmatprep.subr.bf16.mxu0 0
  %1941 = vmatpush1.bf16.msra.mxu0 0
  %1942 = vmatprep.subr.bf16.mxu0 0
  %1943 = vmatpush1.bf16.msra.mxu0 0
  %1944 = vmatprep.subr.bf16.mxu0 0
  %1945 = vmatpush1.bf16.msra.mxu0 0
  %1946 = vmatprep.subr.bf16.mxu0 0
  %1947 = vmatpush1.bf16.msra.mxu0 0
  %1948 = vmatprep.subr.bf16.mxu0 0
  %1949 = vmatpush1.bf16.msra.mxu0 0
  %1950 = vmatprep.subr.bf16.mxu0 0
  %1951 = vmatpush1.bf16.msra.mxu0 0
  %1952 = vmatprep.subr.bf16.mxu0 0
  %1953 = vmatpush1.bf16.msra.mxu0 0
  %1954 = vmatprep.subr.bf16.mxu0 0
  %1955 = vmatpush1.bf16.msra.mxu0 0
  %1956 = vmatprep.subr.bf16.mxu0 0
  %1957 = vmatpush1.bf16.msra.mxu0 0
  %1958 = vmatprep.mubr.bf16.mxu0 0
  %1959 = vmatmul.mubr.bf16.gmra.mrb[0].mxu0 %v1880
  %v1960 = vpop.f32.mrb[0].mxu0
  %v1961 = vadd.f32 0.0, %v1960
  %v1962 = vpop.f32.mrb[0].mxu0
  %v1963 = vadd.f32 0.0, %v1962
  %v1964 = vpop.f32.mrb[0].mxu0
  %v1965 = vadd.f32 0.0, %v1964
  %v1966 = vpop.f32.mrb[0].mxu0
  %v1967 = vadd.f32 0.0, %v1966
  %1968 = vmatprep.mubr.bf16.mxu0 0
  %1969 = vmatmul.mubr.bf16.gmra.mrb[0].mxu0 %v1883
  %v1970 = vpop.f32.mrb[0].mxu0
  %v1971 = vadd.f32 0.0, %v1970
  %v1972 = vpop.f32.mrb[0].mxu0
  %v1973 = vadd.f32 0.0, %v1972
  %v1974 = vpop.f32.mrb[0].mxu0
  %v1975 = vadd.f32 0.0, %v1974
  %v1976 = vpop.f32.mrb[0].mxu0
  %v1977 = vadd.f32 0.0, %v1976
  %1978 = vmatprep.mubr.bf16.mxu0 0
  %1979 = vmatmul.mubr.bf16.gmra.mrb[0].mxu0 %v1886
  %v1980 = vpop.f32.mrb[0].mxu0
  %v1981 = vadd.f32 0.0, %v1980
  %v1982 = vpop.f32.mrb[0].mxu0
  %v1983 = vadd.f32 0.0, %v1982
  %v1984 = vpop.f32.mrb[0].mxu0
  %v1985 = vadd.f32 0.0, %v1984
  %v1986 = vpop.f32.mrb[0].mxu0
  %v1987 = vadd.f32 0.0, %v1986
  %1988 = vmatprep.mubr.bf16.mxu0 0
  %1989 = vmatmul.mubr.bf16.gmra.mrb[0].mxu0 %v1889
  %v1990 = vpop.f32.mrb[0].mxu0
  %v1991 = vadd.f32 0.0, %v1990
  %v1992 = vpop.f32.mrb[0].mxu0
  %v1993 = vadd.f32 0.0, %v1992
  %v1994 = vpop.f32.mrb[0].mxu0
  %v1995 = vadd.f32 0.0, %v1994
  %v1996 = vpop.f32.mrb[0].mxu0
  %v1997 = vadd.f32 0.0, %v1996
  %1998 = vmatprep.mubr.bf16.mxu0 0
  %1999 = vmatmul.mubr.bf16.gmra.mrb[0].mxu0 %v1892
  %v2000 = vpop.f32.mrb[0].mxu0
  %v2001 = vadd.f32 0.0, %v2000
  %v2002 = vpop.f32.mrb[0].mxu0
  %v2003 = vadd.f32 0.0, %v2002
  %v2004 = vpop.f32.mrb[0].mxu0
  %v2005 = vadd.f32 0.0, %v2004
  %v2006 = vpop.f32.mrb[0].mxu0
  %v2007 = vadd.f32 0.0, %v2006
  %2008 = vmatprep.mubr.bf16.mxu0 0
  %2009 = vmatmul.mubr.bf16.gmra.mrb[0].mxu0 %v1895
  %v2010 = vpop.f32.mrb[0].mxu0
  %v2011 = vadd.f32 0.0, %v2010
  %v2012 = vpop.f32.mrb[0].mxu0
  %v2013 = vadd.f32 0.0, %v2012
  %v2014 = vpop.f32.mrb[0].mxu0
  %v2015 = vadd.f32 0.0, %v2014
  %v2016 = vpop.f32.mrb[0].mxu0
  %v2017 = vadd.f32 0.0, %v2016
  %2018 = vmatprep.mubr.bf16.mxu0 0
  %2019 = vmatmul.mubr.bf16.gmra.mrb[0].mxu0 %v1898
  %v2020 = vpop.f32.mrb[0].mxu0
  %v2021 = vadd.f32 0.0, %v2020
  %v2022 = vpop.f32.mrb[0].mxu0
  %v2023 = vadd.f32 0.0, %v2022
  %v2024 = vpop.f32.mrb[0].mxu0
  %v2025 = vadd.f32 0.0, %v2024
  %v2026 = vpop.f32.mrb[0].mxu0
  %v2027 = vadd.f32 0.0, %v2026
  %2028 = vmatprep.mubr.bf16.mxu0 0
  %2029 = vmatmul.mubr.bf16.gmra.mrb[0].mxu0 %v1901
  %v2030 = vpop.f32.mrb[0].mxu0
  %v2031 = vadd.f32 0.0, %v2030
  %v2032 = vpop.f32.mrb[0].mxu0
  %v2033 = vadd.f32 0.0, %v2032
  %v2034 = vpop.f32.mrb[0].mxu0
  %v2035 = vadd.f32 0.0, %v2034
  %v2036 = vpop.f32.mrb[0].mxu0
  %v2037 = vadd.f32 0.0, %v2036
  %2038 = vmatprep.mubr.bf16.mxu0 0
  %2039 = vmatmul.mubr.bf16.gmra.mrb[0].mxu0 %v1904
  %v2040 = vpop.f32.mrb[0].mxu0
  %v2041 = vadd.f32 0.0, %v2040
  %v2042 = vpop.f32.mrb[0].mxu0
  %v2043 = vadd.f32 0.0, %v2042
  %v2044 = vpop.f32.mrb[0].mxu0
  %v2045 = vadd.f32 0.0, %v2044
  %v2046 = vpop.f32.mrb[0].mxu0
  %v2047 = vadd.f32 0.0, %v2046
  %2048 = vmatprep.mubr.bf16.mxu0 0
  %2049 = vmatmul.mubr.bf16.gmra.mrb[0].mxu0 %v1907
  %v2050 = vpop.f32.mrb[0].mxu0
  %v2051 = vadd.f32 0.0, %v2050
  %v2052 = vpop.f32.mrb[0].mxu0
  %v2053 = vadd.f32 0.0, %v2052
  %v2054 = vpop.f32.mrb[0].mxu0
  %v2055 = vadd.f32 0.0, %v2054
  %v2056 = vpop.f32.mrb[0].mxu0
  %v2057 = vadd.f32 0.0, %v2056
  %2058 = vmatprep.mubr.bf16.mxu0 0
  %2059 = vmatmul.mubr.bf16.gmra.mrb[0].mxu0 %v1910
  %v2060 = vpop.f32.mrb[0].mxu0
  %v2061 = vadd.f32 0.0, %v2060
  %v2062 = vpop.f32.mrb[0].mxu0
  %v2063 = vadd.f32 0.0, %v2062
  %v2064 = vpop.f32.mrb[0].mxu0
  %v2065 = vadd.f32 0.0, %v2064
  %v2066 = vpop.f32.mrb[0].mxu0
  %v2067 = vadd.f32 0.0, %v2066
  %2068 = vmatprep.mubr.bf16.mxu0 0
  %2069 = vmatmul.mubr.bf16.gmra.mrb[0].mxu0 %v1913
  %v2070 = vpop.f32.mrb[0].mxu0
  %v2071 = vadd.f32 0.0, %v2070
  %v2072 = vpop.f32.mrb[0].mxu0
  %v2073 = vadd.f32 0.0, %v2072
  %v2074 = vpop.f32.mrb[0].mxu0
  %v2075 = vadd.f32 0.0, %v2074
  %v2076 = vpop.f32.mrb[0].mxu0
  %v2077 = vadd.f32 0.0, %v2076
  %2078 = vmatprep.mubr.bf16.mxu0 0
  %2079 = vmatmul.mubr.bf16.gmra.mrb[0].mxu0 %v1916
  %v2080 = vpop.f32.mrb[0].mxu0
  %v2081 = vadd.f32 0.0, %v2080
  %v2082 = vpop.f32.mrb[0].mxu0
  %v2083 = vadd.f32 0.0, %v2082
  %v2084 = vpop.f32.mrb[0].mxu0
  %v2085 = vadd.f32 0.0, %v2084
  %v2086 = vpop.f32.mrb[0].mxu0
  %v2087 = vadd.f32 0.0, %v2086
  %2088 = vmatprep.mubr.bf16.mxu0 0
  %2089 = vmatmul.mubr.bf16.gmra.mrb[0].mxu0 %v1919
  %v2090 = vpop.f32.mrb[0].mxu0
  %v2091 = vadd.f32 0.0, %v2090
  %v2092 = vpop.f32.mrb[0].mxu0
  %v2093 = vadd.f32 0.0, %v2092
  %v2094 = vpop.f32.mrb[0].mxu0
  %v2095 = vadd.f32 0.0, %v2094
  %v2096 = vpop.f32.mrb[0].mxu0
  %v2097 = vadd.f32 0.0, %v2096
  %2098 = vmatprep.mubr.bf16.mxu0 0
  %2099 = vmatmul.mubr.bf16.gmra.mrb[0].mxu0 %v1922
  %v2100 = vpop.f32.mrb[0].mxu0
  %v2101 = vadd.f32 0.0, %v2100
  %v2102 = vpop.f32.mrb[0].mxu0
  %v2103 = vadd.f32 0.0, %v2102
  %v2104 = vpop.f32.mrb[0].mxu0
  %v2105 = vadd.f32 0.0, %v2104
  %v2106 = vpop.f32.mrb[0].mxu0
  %v2107 = vadd.f32 0.0, %v2106
  %2108 = vmatprep.mubr.bf16.mxu0 0
  %2109 = vmatmul.mubr.bf16.gmra.mrb[0].mxu0 %v1924
  %v2110 = vpop.f32.mrb[0].mxu0
  %v2111 = vadd.f32 0.0, %v2110
  %v2112 = vpop.f32.mrb[0].mxu0
  %v2113 = vadd.f32 0.0, %v2112
  %v2114 = vpop.f32.mrb[0].mxu0
  %v2115 = vadd.f32 0.0, %v2114
  %v2116 = vpop.f32.mrb[0].mxu0
  %v2117 = vadd.f32 0.0, %v2116
  %2118 = vdwg.mxu0
  %v2119 = vadd.f32 %v1705, %v1961
  %v2120 = vadd.f32 %v1706, %v1963
  %v2121 = vadd.f32 %v1707, %v1965
  %v2122 = vadd.f32 %v1708, %v1967
  %v2123 = vadd.f32 %v1709, %v1971
  %v2124 = vadd.f32 %v1710, %v1973
  %v2125 = vadd.f32 %v1711, %v1975
  %v2126 = vadd.f32 %v1712, %v1977
  %v2127 = vadd.f32 %v1713, %v1981
  %v2128 = vadd.f32 %v1714, %v1983
  %v2129 = vadd.f32 %v1715, %v1985
  %v2130 = vadd.f32 %v1716, %v1987
  %v2131 = vadd.f32 %v1717, %v1991
  %v2132 = vadd.f32 %v1718, %v1993
  %v2133 = vadd.f32 %v1719, %v1995
  %v2134 = vadd.f32 %v1720, %v1997
  %v2135 = vadd.f32 %v1721, %v2001
  %v2136 = vadd.f32 %v1722, %v2003
  %v2137 = vadd.f32 %v1723, %v2005
  %v2138 = vadd.f32 %v1724, %v2007
  %v2139 = vadd.f32 %v1725, %v2011
  %v2140 = vadd.f32 %v1726, %v2013
  %v2141 = vadd.f32 %v1727, %v2015
  %v2142 = vadd.f32 %v1728, %v2017
  %v2143 = vadd.f32 %v1729, %v2021
  %v2144 = vadd.f32 %v1730, %v2023
  %v2145 = vadd.f32 %v1731, %v2025
  %v2146 = vadd.f32 %v1732, %v2027
  %v2147 = vadd.f32 %v1733, %v2031
  %v2148 = vadd.f32 %v1734, %v2033
  %v2149 = vadd.f32 %v1735, %v2035
  %v2150 = vadd.f32 %v1736, %v2037
  %v2151 = vadd.f32 %v1737, %v2041
  %v2152 = vadd.f32 %v1738, %v2043
  %v2153 = vadd.f32 %v1739, %v2045
  %v2154 = vadd.f32 %v1740, %v2047
  %v2155 = vadd.f32 %v1741, %v2051
  %v2156 = vadd.f32 %v1742, %v2053
  %v2157 = vadd.f32 %v1743, %v2055
  %v2158 = vadd.f32 %v1744, %v2057
  %v2159 = vadd.f32 %v1745, %v2061
  %v2160 = vadd.f32 %v1746, %v2063
  %v2161 = vadd.f32 %v1747, %v2065
  %v2162 = vadd.f32 %v1748, %v2067
  %v2163 = vadd.f32 %v1749, %v2071
  %v2164 = vadd.f32 %v1750, %v2073
  %v2165 = vadd.f32 %v1751, %v2075
  %v2166 = vadd.f32 %v1752, %v2077
  %v2167 = vadd.f32 %v1753, %v2081
  %v2168 = vadd.f32 %v1754, %v2083
  %v2169 = vadd.f32 %v1755, %v2085
  %v2170 = vadd.f32 %v1756, %v2087
  %v2171 = vadd.f32 %v1757, %v2091
  %v2172 = vadd.f32 %v1758, %v2093
  %v2173 = vadd.f32 %v1759, %v2095
  %v2174 = vadd.f32 %v1760, %v2097
  %v2175 = vadd.f32 %v1761, %v2101
  %v2176 = vadd.f32 %v1762, %v2103
  %v2177 = vadd.f32 %v1763, %v2105
  %v2178 = vadd.f32 %v1764, %v2107
  %v2179 = vadd.f32 %v1765, %v2111
  %v2180 = vadd.f32 %v1766, %v2113
  %v2181 = vadd.f32 %v1767, %v2115
  %v2182 = vadd.f32 %v1768, %v2117
  %v2183 = vld [vmem:[%s2] sm:$0x3]
  %v2185 = vlaneseq
  %v2186 = vshrl.u32 %v2185, 7
  %v2187 = vsub.s32 0, %v2186
  %v2188 = vrot.slane %v2183, %v2187
  %v2189 = vlaneseq
  %v2190 = vshrl.u32 %v2189, 7
  %v2191 = vsub.s32 1, %v2190
  %v2192 = vrot.slane %v2183, %v2191
  %v2195 = vadd.f32 %v2119, %v2188
  %v2196 = vadd.f32 %v2120, %v2192
  %v2197 = vadd.f32 %v2121, %v2188
  %v2198 = vadd.f32 %v2122, %v2192
  %v2199 = vadd.f32 %v2123, %v2188
  %v2200 = vadd.f32 %v2124, %v2192
  %v2201 = vadd.f32 %v2125, %v2188
  %v2202 = vadd.f32 %v2126, %v2192
  %v2203 = vadd.f32 %v2127, %v2188
  %v2204 = vadd.f32 %v2128, %v2192
  %v2205 = vadd.f32 %v2129, %v2188
  %v2206 = vadd.f32 %v2130, %v2192
  %v2207 = vadd.f32 %v2131, %v2188
  %v2208 = vadd.f32 %v2132, %v2192
  %v2209 = vadd.f32 %v2133, %v2188
  %v2210 = vadd.f32 %v2134, %v2192
  %v2211 = vadd.f32 %v2135, %v2188
  %v2212 = vadd.f32 %v2136, %v2192
  %v2213 = vadd.f32 %v2137, %v2188
  %v2214 = vadd.f32 %v2138, %v2192
  %v2215 = vadd.f32 %v2139, %v2188
  %v2216 = vadd.f32 %v2140, %v2192
  %v2217 = vadd.f32 %v2141, %v2188
  %v2218 = vadd.f32 %v2142, %v2192
  %v2219 = vadd.f32 %v2143, %v2188
  %v2220 = vadd.f32 %v2144, %v2192
  %v2221 = vadd.f32 %v2145, %v2188
  %v2222 = vadd.f32 %v2146, %v2192
  %v2223 = vadd.f32 %v2147, %v2188
  %v2224 = vadd.f32 %v2148, %v2192
  %v2225 = vadd.f32 %v2149, %v2188
  %v2226 = vadd.f32 %v2150, %v2192
  %v2227 = vadd.f32 %v2151, %v2188
  %v2228 = vadd.f32 %v2152, %v2192
  %v2229 = vadd.f32 %v2153, %v2188
  %v2230 = vadd.f32 %v2154, %v2192
  %v2231 = vadd.f32 %v2155, %v2188
  %v2232 = vadd.f32 %v2156, %v2192
  %v2233 = vadd.f32 %v2157, %v2188
  %v2234 = vadd.f32 %v2158, %v2192
  %v2235 = vadd.f32 %v2159, %v2188
  %v2236 = vadd.f32 %v2160, %v2192
  %v2237 = vadd.f32 %v2161, %v2188
  %v2238 = vadd.f32 %v2162, %v2192
  %v2239 = vadd.f32 %v2163, %v2188
  %v2240 = vadd.f32 %v2164, %v2192
  %v2241 = vadd.f32 %v2165, %v2188
  %v2242 = vadd.f32 %v2166, %v2192
  %v2243 = vadd.f32 %v2167, %v2188
  %v2244 = vadd.f32 %v2168, %v2192
  %v2245 = vadd.f32 %v2169, %v2188
  %v2246 = vadd.f32 %v2170, %v2192
  %v2247 = vadd.f32 %v2171, %v2188
  %v2248 = vadd.f32 %v2172, %v2192
  %v2249 = vadd.f32 %v2173, %v2188
  %v2250 = vadd.f32 %v2174, %v2192
  %v2251 = vadd.f32 %v2175, %v2188
  %v2252 = vadd.f32 %v2176, %v2192
  %v2253 = vadd.f32 %v2177, %v2188
  %v2254 = vadd.f32 %v2178, %v2192
  %v2255 = vadd.f32 %v2179, %v2188
  %v2256 = vadd.f32 %v2180, %v2192
  %v2257 = vadd.f32 %v2181, %v2188
  %v2258 = vadd.f32 %v2182, %v2192
  %v2259 = vmax.f32 %v2195, 0.0
  %v2260 = vmax.f32 %v2196, 0.0
  %v2261 = vmax.f32 %v2197, 0.0
  %v2262 = vmax.f32 %v2198, 0.0
  %v2263 = vmax.f32 %v2199, 0.0
  %v2264 = vmax.f32 %v2200, 0.0
  %v2265 = vmax.f32 %v2201, 0.0
  %v2266 = vmax.f32 %v2202, 0.0
  %v2267 = vmax.f32 %v2203, 0.0
  %v2268 = vmax.f32 %v2204, 0.0
  %v2269 = vmax.f32 %v2205, 0.0
  %v2270 = vmax.f32 %v2206, 0.0
  %v2271 = vmax.f32 %v2207, 0.0
  %v2272 = vmax.f32 %v2208, 0.0
  %v2273 = vmax.f32 %v2209, 0.0
  %v2274 = vmax.f32 %v2210, 0.0
  %v2275 = vmax.f32 %v2211, 0.0
  %v2276 = vmax.f32 %v2212, 0.0
  %v2277 = vmax.f32 %v2213, 0.0
  %v2278 = vmax.f32 %v2214, 0.0
  %v2279 = vmax.f32 %v2215, 0.0
  %v2280 = vmax.f32 %v2216, 0.0
  %v2281 = vmax.f32 %v2217, 0.0
  %v2282 = vmax.f32 %v2218, 0.0
  %v2283 = vmax.f32 %v2219, 0.0
  %v2284 = vmax.f32 %v2220, 0.0
  %v2285 = vmax.f32 %v2221, 0.0
  %v2286 = vmax.f32 %v2222, 0.0
  %v2287 = vmax.f32 %v2223, 0.0
  %v2288 = vmax.f32 %v2224, 0.0
  %v2289 = vmax.f32 %v2225, 0.0
  %v2290 = vmax.f32 %v2226, 0.0
  %v2291 = vmax.f32 %v2227, 0.0
  %v2292 = vmax.f32 %v2228, 0.0
  %v2293 = vmax.f32 %v2229, 0.0
  %v2294 = vmax.f32 %v2230, 0.0
  %v2295 = vmax.f32 %v2231, 0.0
  %v2296 = vmax.f32 %v2232, 0.0
  %v2297 = vmax.f32 %v2233, 0.0
  %v2298 = vmax.f32 %v2234, 0.0
  %v2299 = vmax.f32 %v2235, 0.0
  %v2300 = vmax.f32 %v2236, 0.0
  %v2301 = vmax.f32 %v2237, 0.0
  %v2302 = vmax.f32 %v2238, 0.0
  %v2303 = vmax.f32 %v2239, 0.0
  %v2304 = vmax.f32 %v2240, 0.0
  %v2305 = vmax.f32 %v2241, 0.0
  %v2306 = vmax.f32 %v2242, 0.0
  %v2307 = vmax.f32 %v2243, 0.0
  %v2308 = vmax.f32 %v2244, 0.0
  %v2309 = vmax.f32 %v2245, 0.0
  %v2310 = vmax.f32 %v2246, 0.0
  %v2311 = vmax.f32 %v2247, 0.0
  %v2312 = vmax.f32 %v2248, 0.0
  %v2313 = vmax.f32 %v2249, 0.0
  %v2314 = vmax.f32 %v2250, 0.0
  %v2315 = vmax.f32 %v2251, 0.0
  %v2316 = vmax.f32 %v2252, 0.0
  %v2317 = vmax.f32 %v2253, 0.0
  %v2318 = vmax.f32 %v2254, 0.0
  %v2319 = vmax.f32 %v2255, 0.0
  %v2320 = vmax.f32 %v2256, 0.0
  %v2321 = vmax.f32 %v2257, 0.0
  %v2322 = vmax.f32 %v2258, 0.0
  %v2387 = vrot.slane %v2259, 1
  %v2388 = vrot.slane %v2261, 1
  %v2389 = vsel %vm937, %v2387, %v2388
  %v2390 = vrot.slane %v2260, 1
  %v2391 = vrot.slane %v2262, 1
  %v2392 = vsel %vm937, %v2390, %v2391
  %v2393 = vrot.slane %v2263, 1
  %v2394 = vsel %vm937, %v2388, %v2393
  %v2395 = vrot.slane %v2264, 1
  %v2396 = vsel %vm937, %v2391, %v2395
  %v2397 = vrot.slane %v2265, 1
  %v2398 = vsel %vm937, %v2393, %v2397
  %v2399 = vrot.slane %v2266, 1
  %v2400 = vsel %vm937, %v2395, %v2399
  %v2401 = vrot.slane %v2267, 1
  %v2402 = vsel %vm937, %v2397, %v2401
  %v2403 = vrot.slane %v2268, 1
  %v2404 = vsel %vm937, %v2399, %v2403
  %v2405 = vrot.slane %v2269, 1
  %v2406 = vsel %vm937, %v2401, %v2405
  %v2407 = vrot.slane %v2270, 1
  %v2408 = vsel %vm937, %v2403, %v2407
  %v2409 = vrot.slane %v2271, 1
  %v2410 = vsel %vm937, %v2405, %v2409
  %v2411 = vrot.slane %v2272, 1
  %v2412 = vsel %vm937, %v2407, %v2411
  %v2413 = vrot.slane %v2273, 1
  %v2414 = vsel %vm937, %v2409, %v2413
  %v2415 = vrot.slane %v2274, 1
  %v2416 = vsel %vm937, %v2411, %v2415
  %v2417 = vrot.slane %v2275, 1
  %v2418 = vsel %vm937, %v2413, %v2417
  %v2419 = vrot.slane %v2276, 1
  %v2420 = vsel %vm937, %v2415, %v2419
  %v2421 = vrot.slane %v2277, 1
  %v2422 = vsel %vm937, %v2417, %v2421
  %v2423 = vrot.slane %v2278, 1
  %v2424 = vsel %vm937, %v2419, %v2423
  %v2425 = vrot.slane %v2279, 1
  %v2426 = vsel %vm937, %v2421, %v2425
  %v2427 = vrot.slane %v2280, 1
  %v2428 = vsel %vm937, %v2423, %v2427
  %v2429 = vrot.slane %v2281, 1
  %v2430 = vsel %vm937, %v2425, %v2429
  %v2431 = vrot.slane %v2282, 1
  %v2432 = vsel %vm937, %v2427, %v2431
  %v2433 = vrot.slane %v2283, 1
  %v2434 = vsel %vm937, %v2429, %v2433
  %v2435 = vrot.slane %v2284, 1
  %v2436 = vsel %vm937, %v2431, %v2435
  %v2437 = vrot.slane %v2285, 1
  %v2438 = vsel %vm937, %v2433, %v2437
  %v2439 = vrot.slane %v2286, 1
  %v2440 = vsel %vm937, %v2435, %v2439
  %v2441 = vrot.slane %v2287, 1
  %v2442 = vsel %vm937, %v2437, %v2441
  %v2443 = vrot.slane %v2288, 1
  %v2444 = vsel %vm937, %v2439, %v2443
  %v2445 = vrot.slane %v2289, 1
  %v2446 = vsel %vm937, %v2441, %v2445
  %v2447 = vrot.slane %v2290, 1
  %v2448 = vsel %vm937, %v2443, %v2447
  %v2449 = vrot.slane %v2291, 1
  %v2450 = vsel %vm937, %v2445, %v2449
  %v2451 = vrot.slane %v2292, 1
  %v2452 = vsel %vm937, %v2447, %v2451
  %v2453 = vrot.slane %v2293, 1
  %v2454 = vsel %vm937, %v2449, %v2453
  %v2455 = vrot.slane %v2294, 1
  %v2456 = vsel %vm937, %v2451, %v2455
  %v2457 = vrot.slane %v2295, 1
  %v2458 = vsel %vm937, %v2453, %v2457
  %v2459 = vrot.slane %v2296, 1
  %v2460 = vsel %vm937, %v2455, %v2459
  %v2461 = vrot.slane %v2297, 1
  %v2462 = vsel %vm937, %v2457, %v2461
  %v2463 = vrot.slane %v2298, 1
  %v2464 = vsel %vm937, %v2459, %v2463
  %v2465 = vrot.slane %v2299, 1
  %v2466 = vsel %vm937, %v2461, %v2465
  %v2467 = vrot.slane %v2300, 1
  %v2468 = vsel %vm937, %v2463, %v2467
  %v2469 = vrot.slane %v2301, 1
  %v2470 = vsel %vm937, %v2465, %v2469
  %v2471 = vrot.slane %v2302, 1
  %v2472 = vsel %vm937, %v2467, %v2471
  %v2473 = vrot.slane %v2303, 1
  %v2474 = vsel %vm937, %v2469, %v2473
  %v2475 = vrot.slane %v2304, 1
  %v2476 = vsel %vm937, %v2471, %v2475
  %v2477 = vrot.slane %v2305, 1
  %v2478 = vsel %vm937, %v2473, %v2477
  %v2479 = vrot.slane %v2306, 1
  %v2480 = vsel %vm937, %v2475, %v2479
  %v2481 = vrot.slane %v2307, 1
  %v2482 = vsel %vm937, %v2477, %v2481
  %v2483 = vrot.slane %v2308, 1
  %v2484 = vsel %vm937, %v2479, %v2483
  %v2485 = vrot.slane %v2309, 1
  %v2486 = vsel %vm937, %v2481, %v2485
  %v2487 = vrot.slane %v2310, 1
  %v2488 = vsel %vm937, %v2483, %v2487
  %v2489 = vrot.slane %v2311, 1
  %v2490 = vsel %vm937, %v2485, %v2489
  %v2491 = vrot.slane %v2312, 1
  %v2492 = vsel %vm937, %v2487, %v2491
  %v2493 = vrot.slane %v2313, 1
  %v2494 = vsel %vm937, %v2489, %v2493
  %v2495 = vrot.slane %v2314, 1
  %v2496 = vsel %vm937, %v2491, %v2495
  %v2497 = vrot.slane %v2315, 1
  %v2498 = vsel %vm937, %v2493, %v2497
  %v2499 = vrot.slane %v2316, 1
  %v2500 = vsel %vm937, %v2495, %v2499
  %v2501 = vrot.slane %v2317, 1
  %v2502 = vsel %vm937, %v2497, %v2501
  %v2503 = vrot.slane %v2318, 1
  %v2504 = vsel %vm937, %v2499, %v2503
  %v2505 = vrot.slane %v2319, 1
  %v2506 = vsel %vm937, %v2501, %v2505
  %v2507 = vrot.slane %v2320, 1
  %v2508 = vsel %vm937, %v2503, %v2507
  %v2509 = vrot.slane %v2321, 1
  %v2510 = vsel %vm937, %v2505, %v2509
  %v2511 = vrot.slane %v2322, 1
  %v2512 = vsel %vm937, %v2507, %v2511
  %v2579 = vsel %vm937, %v2509, %v2387
  %v2580 = vsel %vm937, %v2511, %v2390
  %v2581 = vmax.f32 %v2259, %v2389
  %v2582 = vmax.f32 %v2260, %v2392
  %v2583 = vmax.f32 %v2261, %v2394
  %v2584 = vmax.f32 %v2262, %v2396
  %v2585 = vmax.f32 %v2263, %v2398
  %v2586 = vmax.f32 %v2264, %v2400
  %v2587 = vmax.f32 %v2265, %v2402
  %v2588 = vmax.f32 %v2266, %v2404
  %v2589 = vmax.f32 %v2267, %v2406
  %v2590 = vmax.f32 %v2268, %v2408
  %v2591 = vmax.f32 %v2269, %v2410
  %v2592 = vmax.f32 %v2270, %v2412
  %v2593 = vmax.f32 %v2271, %v2414
  %v2594 = vmax.f32 %v2272, %v2416
  %v2595 = vmax.f32 %v2273, %v2418
  %v2596 = vmax.f32 %v2274, %v2420
  %v2597 = vmax.f32 %v2275, %v2422
  %v2598 = vmax.f32 %v2276, %v2424
  %v2599 = vmax.f32 %v2277, %v2426
  %v2600 = vmax.f32 %v2278, %v2428
  %v2601 = vmax.f32 %v2279, %v2430
  %v2602 = vmax.f32 %v2280, %v2432
  %v2603 = vmax.f32 %v2281, %v2434
  %v2604 = vmax.f32 %v2282, %v2436
  %v2605 = vmax.f32 %v2283, %v2438
  %v2606 = vmax.f32 %v2284, %v2440
  %v2607 = vmax.f32 %v2285, %v2442
  %v2608 = vmax.f32 %v2286, %v2444
  %v2609 = vmax.f32 %v2287, %v2446
  %v2610 = vmax.f32 %v2288, %v2448
  %v2611 = vmax.f32 %v2289, %v2450
  %v2612 = vmax.f32 %v2290, %v2452
  %v2613 = vmax.f32 %v2291, %v2454
  %v2614 = vmax.f32 %v2292, %v2456
  %v2615 = vmax.f32 %v2293, %v2458
  %v2616 = vmax.f32 %v2294, %v2460
  %v2617 = vmax.f32 %v2295, %v2462
  %v2618 = vmax.f32 %v2296, %v2464
  %v2619 = vmax.f32 %v2297, %v2466
  %v2620 = vmax.f32 %v2298, %v2468
  %v2621 = vmax.f32 %v2299, %v2470
  %v2622 = vmax.f32 %v2300, %v2472
  %v2623 = vmax.f32 %v2301, %v2474
  %v2624 = vmax.f32 %v2302, %v2476
  %v2625 = vmax.f32 %v2303, %v2478
  %v2626 = vmax.f32 %v2304, %v2480
  %v2627 = vmax.f32 %v2305, %v2482
  %v2628 = vmax.f32 %v2306, %v2484
  %v2629 = vmax.f32 %v2307, %v2486
  %v2630 = vmax.f32 %v2308, %v2488
  %v2631 = vmax.f32 %v2309, %v2490
  %v2632 = vmax.f32 %v2310, %v2492
  %v2633 = vmax.f32 %v2311, %v2494
  %v2634 = vmax.f32 %v2312, %v2496
  %v2635 = vmax.f32 %v2313, %v2498
  %v2636 = vmax.f32 %v2314, %v2500
  %v2637 = vmax.f32 %v2315, %v2502
  %v2638 = vmax.f32 %v2316, %v2504
  %v2639 = vmax.f32 %v2317, %v2506
  %v2640 = vmax.f32 %v2318, %v2508
  %v2641 = vmax.f32 %v2319, %v2510
  %v2642 = vmax.f32 %v2320, %v2512
  %v2643 = vmax.f32 %v2321, %v2579
  %v2644 = vmax.f32 %v2322, %v2580
  %2709 = vrot.lane.b32.xlu0 %v2581, 122
  %v2710 = vpop.permute.xlu0 %2709
  %2711 = vrot.lane.b32.xlu0 %v2582, 122
  %v2712 = vpop.permute.xlu0 %2711
  %2713 = vrot.lane.b32.xlu0 %v2583, 122
  %v2714 = vpop.permute.xlu0 %2713
  %2715 = vrot.lane.b32.xlu0 %v2584, 122
  %v2716 = vpop.permute.xlu0 %2715
  %2717 = vrot.lane.b32.xlu0 %v2585, 122
  %v2718 = vpop.permute.xlu0 %2717
  %2719 = vrot.lane.b32.xlu0 %v2586, 122
  %v2720 = vpop.permute.xlu0 %2719
  %2721 = vrot.lane.b32.xlu0 %v2587, 122
  %v2722 = vpop.permute.xlu0 %2721
  %2723 = vrot.lane.b32.xlu0 %v2588, 122
  %v2724 = vpop.permute.xlu0 %2723
  %2725 = vrot.lane.b32.xlu0 %v2589, 122
  %v2726 = vpop.permute.xlu0 %2725
  %2727 = vrot.lane.b32.xlu0 %v2590, 122
  %v2728 = vpop.permute.xlu0 %2727
  %2729 = vrot.lane.b32.xlu0 %v2591, 122
  %v2730 = vpop.permute.xlu0 %2729
  %2731 = vrot.lane.b32.xlu0 %v2592, 122
  %v2732 = vpop.permute.xlu0 %2731
  %2733 = vrot.lane.b32.xlu0 %v2593, 122
  %v2734 = vpop.permute.xlu0 %2733
  %2735 = vrot.lane.b32.xlu0 %v2594, 122
  %v2736 = vpop.permute.xlu0 %2735
  %2737 = vrot.lane.b32.xlu0 %v2595, 122
  %v2738 = vpop.permute.xlu0 %2737
  %2739 = vrot.lane.b32.xlu0 %v2596, 122
  %v2740 = vpop.permute.xlu0 %2739
  %2741 = vrot.lane.b32.xlu0 %v2597, 122
  %v2742 = vpop.permute.xlu0 %2741
  %2743 = vrot.lane.b32.xlu0 %v2598, 122
  %v2744 = vpop.permute.xlu0 %2743
  %2745 = vrot.lane.b32.xlu0 %v2599, 122
  %v2746 = vpop.permute.xlu0 %2745
  %2747 = vrot.lane.b32.xlu0 %v2600, 122
  %v2748 = vpop.permute.xlu0 %2747
  %2749 = vrot.lane.b32.xlu0 %v2601, 122
  %v2750 = vpop.permute.xlu0 %2749
  %2751 = vrot.lane.b32.xlu0 %v2602, 122
  %v2752 = vpop.permute.xlu0 %2751
  %2753 = vrot.lane.b32.xlu0 %v2603, 122
  %v2754 = vpop.permute.xlu0 %2753
  %2755 = vrot.lane.b32.xlu0 %v2604, 122
  %v2756 = vpop.permute.xlu0 %2755
  %2757 = vrot.lane.b32.xlu0 %v2605, 122
  %v2758 = vpop.permute.xlu0 %2757
  %2759 = vrot.lane.b32.xlu0 %v2606, 122
  %v2760 = vpop.permute.xlu0 %2759
  %2761 = vrot.lane.b32.xlu0 %v2607, 122
  %v2762 = vpop.permute.xlu0 %2761
  %2763 = vrot.lane.b32.xlu0 %v2608, 122
  %v2764 = vpop.permute.xlu0 %2763
  %2765 = vrot.lane.b32.xlu0 %v2609, 122
  %v2766 = vpop.permute.xlu0 %2765
  %2767 = vrot.lane.b32.xlu0 %v2610, 122
  %v2768 = vpop.permute.xlu0 %2767
  %2769 = vrot.lane.b32.xlu0 %v2611, 122
  %v2770 = vpop.permute.xlu0 %2769
  %2771 = vrot.lane.b32.xlu0 %v2612, 122
  %v2772 = vpop.permute.xlu0 %2771
  %2773 = vrot.lane.b32.xlu0 %v2613, 122
  %v2774 = vpop.permute.xlu0 %2773
  %2775 = vrot.lane.b32.xlu0 %v2614, 122
  %v2776 = vpop.permute.xlu0 %2775
  %2777 = vrot.lane.b32.xlu0 %v2615, 122
  %v2778 = vpop.permute.xlu0 %2777
  %2779 = vrot.lane.b32.xlu0 %v2616, 122
  %v2780 = vpop.permute.xlu0 %2779
  %2781 = vrot.lane.b32.xlu0 %v2617, 122
  %v2782 = vpop.permute.xlu0 %2781
  %2783 = vrot.lane.b32.xlu0 %v2618, 122
  %v2784 = vpop.permute.xlu0 %2783
  %2785 = vrot.lane.b32.xlu0 %v2619, 122
  %v2786 = vpop.permute.xlu0 %2785
  %2787 = vrot.lane.b32.xlu0 %v2620, 122
  %v2788 = vpop.permute.xlu0 %2787
  %2789 = vrot.lane.b32.xlu0 %v2621, 122
  %v2790 = vpop.permute.xlu0 %2789
  %2791 = vrot.lane.b32.xlu0 %v2622, 122
  %v2792 = vpop.permute.xlu0 %2791
  %2793 = vrot.lane.b32.xlu0 %v2623, 122
  %v2794 = vpop.permute.xlu0 %2793
  %2795 = vrot.lane.b32.xlu0 %v2624, 122
  %v2796 = vpop.permute.xlu0 %2795
  %2797 = vrot.lane.b32.xlu0 %v2625, 122
  %v2798 = vpop.permute.xlu0 %2797
  %2799 = vrot.lane.b32.xlu0 %v2626, 122
  %v2800 = vpop.permute.xlu0 %2799
  %2801 = vrot.lane.b32.xlu0 %v2627, 122
  %v2802 = vpop.permute.xlu0 %2801
  %2803 = vrot.lane.b32.xlu0 %v2628, 122
  %v2804 = vpop.permute.xlu0 %2803
  %2805 = vrot.lane.b32.xlu0 %v2629, 122
  %v2806 = vpop.permute.xlu0 %2805
  %2807 = vrot.lane.b32.xlu0 %v2630, 122
  %v2808 = vpop.permute.xlu0 %2807
  %2809 = vrot.lane.b32.xlu0 %v2631, 122
  %v2810 = vpop.permute.xlu0 %2809
  %2811 = vrot.lane.b32.xlu0 %v2632, 122
  %v2812 = vpop.permute.xlu0 %2811
  %2813 = vrot.lane.b32.xlu0 %v2633, 122
  %v2814 = vpop.permute.xlu0 %2813
  %2815 = vrot.lane.b32.xlu0 %v2634, 122
  %v2816 = vpop.permute.xlu0 %2815
  %2817 = vrot.lane.b32.xlu0 %v2635, 122
  %v2818 = vpop.permute.xlu0 %2817
  %2819 = vrot.lane.b32.xlu0 %v2636, 122
  %v2820 = vpop.permute.xlu0 %2819
  %2821 = vrot.lane.b32.xlu0 %v2637, 122
  %v2822 = vpop.permute.xlu0 %2821
  %2823 = vrot.lane.b32.xlu0 %v2638, 122
  %v2824 = vpop.permute.xlu0 %2823
  %2825 = vrot.lane.b32.xlu0 %v2639, 122
  %v2826 = vpop.permute.xlu0 %2825
  %2827 = vrot.lane.b32.xlu0 %v2640, 122
  %v2828 = vpop.permute.xlu0 %2827
  %2829 = vrot.lane.b32.xlu0 %v2641, 122
  %v2830 = vpop.permute.xlu0 %2829
  %2831 = vrot.lane.b32.xlu0 %v2642, 122
  %v2832 = vpop.permute.xlu0 %2831
  %2833 = vrot.lane.b32.xlu0 %v2643, 122
  %v2834 = vpop.permute.xlu0 %2833
  %2835 = vrot.lane.b32.xlu0 %v2644, 122
  %v2836 = vpop.permute.xlu0 %2835
  %vm2837 = vcmask 998400
  %v2838 = vsel %vm2837, %v2710, %v2712
  %v2839 = vsel %vm2837, %v2714, %v2716
  %v2840 = vsel %vm2837, %v2718, %v2720
  %v2841 = vsel %vm2837, %v2722, %v2724
  %v2842 = vsel %vm2837, %v2726, %v2728
  %v2843 = vsel %vm2837, %v2730, %v2732
  %v2844 = vsel %vm2837, %v2734, %v2736
  %v2845 = vsel %vm2837, %v2738, %v2740
  %v2846 = vsel %vm2837, %v2742, %v2744
  %v2847 = vsel %vm2837, %v2746, %v2748
  %v2848 = vsel %vm2837, %v2750, %v2752
  %v2849 = vsel %vm2837, %v2754, %v2756
  %v2850 = vsel %vm2837, %v2758, %v2760
  %v2851 = vsel %vm2837, %v2762, %v2764
  %v2852 = vsel %vm2837, %v2766, %v2768
  %v2853 = vsel %vm2837, %v2770, %v2772
  %v2854 = vsel %vm2837, %v2774, %v2776
  %v2855 = vsel %vm2837, %v2778, %v2780
  %v2856 = vsel %vm2837, %v2782, %v2784
  %v2857 = vsel %vm2837, %v2786, %v2788
  %v2858 = vsel %vm2837, %v2790, %v2792
  %v2859 = vsel %vm2837, %v2794, %v2796
  %v2860 = vsel %vm2837, %v2798, %v2800
  %v2861 = vsel %vm2837, %v2802, %v2804
  %v2862 = vsel %vm2837, %v2806, %v2808
  %v2863 = vsel %vm2837, %v2810, %v2812
  %v2864 = vsel %vm2837, %v2814, %v2816
  %v2865 = vsel %vm2837, %v2818, %v2820
  %v2866 = vsel %vm2837, %v2822, %v2824
  %v2867 = vsel %vm2837, %v2826, %v2828
  %v2868 = vsel %vm2837, %v2830, %v2832
  %v2869 = vsel %vm2837, %v2834, %v2836
  %2934 = vrot.lane.b32.xlu0 %v2581, 34
  %v2935 = vpop.permute.xlu0 %2934
  %2936 = vrot.lane.b32.xlu0 %v2583, 34
  %v2937 = vpop.permute.xlu0 %2936
  %2938 = vrot.lane.b32.xlu0 %v2585, 34
  %v2939 = vpop.permute.xlu0 %2938
  %2940 = vrot.lane.b32.xlu0 %v2587, 34
  %v2941 = vpop.permute.xlu0 %2940
  %2942 = vrot.lane.b32.xlu0 %v2589, 34
  %v2943 = vpop.permute.xlu0 %2942
  %2944 = vrot.lane.b32.xlu0 %v2591, 34
  %v2945 = vpop.permute.xlu0 %2944
  %2946 = vrot.lane.b32.xlu0 %v2593, 34
  %v2947 = vpop.permute.xlu0 %2946
  %2948 = vrot.lane.b32.xlu0 %v2595, 34
  %v2949 = vpop.permute.xlu0 %2948
  %2950 = vrot.lane.b32.xlu0 %v2597, 34
  %v2951 = vpop.permute.xlu0 %2950
  %2952 = vrot.lane.b32.xlu0 %v2599, 34
  %v2953 = vpop.permute.xlu0 %2952
  %2954 = vrot.lane.b32.xlu0 %v2601, 34
  %v2955 = vpop.permute.xlu0 %2954
  %2956 = vrot.lane.b32.xlu0 %v2603, 34
  %v2957 = vpop.permute.xlu0 %2956
  %2958 = vrot.lane.b32.xlu0 %v2605, 34
  %v2959 = vpop.permute.xlu0 %2958
  %2960 = vrot.lane.b32.xlu0 %v2607, 34
  %v2961 = vpop.permute.xlu0 %2960
  %2962 = vrot.lane.b32.xlu0 %v2609, 34
  %v2963 = vpop.permute.xlu0 %2962
  %2964 = vrot.lane.b32.xlu0 %v2611, 34
  %v2965 = vpop.permute.xlu0 %2964
  %2966 = vrot.lane.b32.xlu0 %v2613, 34
  %v2967 = vpop.permute.xlu0 %2966
  %2968 = vrot.lane.b32.xlu0 %v2615, 34
  %v2969 = vpop.permute.xlu0 %2968
  %2970 = vrot.lane.b32.xlu0 %v2617, 34
  %v2971 = vpop.permute.xlu0 %2970
  %2972 = vrot.lane.b32.xlu0 %v2619, 34
  %v2973 = vpop.permute.xlu0 %2972
  %2974 = vrot.lane.b32.xlu0 %v2621, 34
  %v2975 = vpop.permute.xlu0 %2974
  %2976 = vrot.lane.b32.xlu0 %v2623, 34
  %v2977 = vpop.permute.xlu0 %2976
  %2978 = vrot.lane.b32.xlu0 %v2625, 34
  %v2979 = vpop.permute.xlu0 %2978
  %2980 = vrot.lane.b32.xlu0 %v2627, 34
  %v2981 = vpop.permute.xlu0 %2980
  %2982 = vrot.lane.b32.xlu0 %v2629, 34
  %v2983 = vpop.permute.xlu0 %2982
  %2984 = vrot.lane.b32.xlu0 %v2631, 34
  %v2985 = vpop.permute.xlu0 %2984
  %2986 = vrot.lane.b32.xlu0 %v2633, 34
  %v2987 = vpop.permute.xlu0 %2986
  %2988 = vrot.lane.b32.xlu0 %v2635, 34
  %v2989 = vpop.permute.xlu0 %2988
  %2990 = vrot.lane.b32.xlu0 %v2637, 34
  %v2991 = vpop.permute.xlu0 %2990
  %2992 = vrot.lane.b32.xlu0 %v2639, 34
  %v2993 = vpop.permute.xlu0 %2992
  %2994 = vrot.lane.b32.xlu0 %v2641, 34
  %v2995 = vpop.permute.xlu0 %2994
  %2996 = vrot.lane.b32.xlu0 %v2643, 34
  %v2997 = vpop.permute.xlu0 %2996
  %vm3030 = vcmask 277504
  %v3031 = vsel %vm3030, %v2712, %v2935
  %v3032 = vsel %vm3030, %v2716, %v2937
  %v3033 = vsel %vm3030, %v2720, %v2939
  %v3034 = vsel %vm3030, %v2724, %v2941
  %v3035 = vsel %vm3030, %v2728, %v2943
  %v3036 = vsel %vm3030, %v2732, %v2945
  %v3037 = vsel %vm3030, %v2736, %v2947
  %v3038 = vsel %vm3030, %v2740, %v2949
  %v3039 = vsel %vm3030, %v2744, %v2951
  %v3040 = vsel %vm3030, %v2748, %v2953
  %v3041 = vsel %vm3030, %v2752, %v2955
  %v3042 = vsel %vm3030, %v2756, %v2957
  %v3043 = vsel %vm3030, %v2760, %v2959
  %v3044 = vsel %vm3030, %v2764, %v2961
  %v3045 = vsel %vm3030, %v2768, %v2963
  %v3046 = vsel %vm3030, %v2772, %v2965
  %v3047 = vsel %vm3030, %v2776, %v2967
  %v3048 = vsel %vm3030, %v2780, %v2969
  %v3049 = vsel %vm3030, %v2784, %v2971
  %v3050 = vsel %vm3030, %v2788, %v2973
  %v3051 = vsel %vm3030, %v2792, %v2975
  %v3052 = vsel %vm3030, %v2796, %v2977
  %v3053 = vsel %vm3030, %v2800, %v2979
  %v3054 = vsel %vm3030, %v2804, %v2981
  %v3055 = vsel %vm3030, %v2808, %v2983
  %v3056 = vsel %vm3030, %v2812, %v2985
  %v3057 = vsel %vm3030, %v2816, %v2987
  %v3058 = vsel %vm3030, %v2820, %v2989
  %v3059 = vsel %vm3030, %v2824, %v2991
  %v3060 = vsel %vm3030, %v2828, %v2993
  %v3061 = vsel %vm3030, %v2832, %v2995
  %v3062 = vsel %vm3030, %v2836, %v2997
  %v3063 = vmax.f32 %v2581, %v2838
  %v3064 = vmax.f32 %v2582, %v3031
  %v3065 = vmax.f32 %v2583, %v2839
  %v3066 = vmax.f32 %v2584, %v3032
  %v3067 = vmax.f32 %v2585, %v2840
  %v3068 = vmax.f32 %v2586, %v3033
  %v3069 = vmax.f32 %v2587, %v2841
  %v3070 = vmax.f32 %v2588, %v3034
  %v3071 = vmax.f32 %v2589, %v2842
  %v3072 = vmax.f32 %v2590, %v3035
  %v3073 = vmax.f32 %v2591, %v2843
  %v3074 = vmax.f32 %v2592, %v3036
  %v3075 = vmax.f32 %v2593, %v2844
  %v3076 = vmax.f32 %v2594, %v3037
  %v3077 = vmax.f32 %v2595, %v2845
  %v3078 = vmax.f32 %v2596, %v3038
  %v3079 = vmax.f32 %v2597, %v2846
  %v3080 = vmax.f32 %v2598, %v3039
  %v3081 = vmax.f32 %v2599, %v2847
  %v3082 = vmax.f32 %v2600, %v3040
  %v3083 = vmax.f32 %v2601, %v2848
  %v3084 = vmax.f32 %v2602, %v3041
  %v3085 = vmax.f32 %v2603, %v2849
  %v3086 = vmax.f32 %v2604, %v3042
  %v3087 = vmax.f32 %v2605, %v2850
  %v3088 = vmax.f32 %v2606, %v3043
  %v3089 = vmax.f32 %v2607, %v2851
  %v3090 = vmax.f32 %v2608, %v3044
  %v3091 = vmax.f32 %v2609, %v2852
  %v3092 = vmax.f32 %v2610, %v3045
  %v3093 = vmax.f32 %v2611, %v2853
  %v3094 = vmax.f32 %v2612, %v3046
  %v3095 = vmax.f32 %v2613, %v2854
  %v3096 = vmax.f32 %v2614, %v3047
  %v3097 = vmax.f32 %v2615, %v2855
  %v3098 = vmax.f32 %v2616, %v3048
  %v3099 = vmax.f32 %v2617, %v2856
  %v3100 = vmax.f32 %v2618, %v3049
  %v3101 = vmax.f32 %v2619, %v2857
  %v3102 = vmax.f32 %v2620, %v3050
  %v3103 = vmax.f32 %v2621, %v2858
  %v3104 = vmax.f32 %v2622, %v3051
  %v3105 = vmax.f32 %v2623, %v2859
  %v3106 = vmax.f32 %v2624, %v3052
  %v3107 = vmax.f32 %v2625, %v2860
  %v3108 = vmax.f32 %v2626, %v3053
  %v3109 = vmax.f32 %v2627, %v2861
  %v3110 = vmax.f32 %v2628, %v3054
  %v3111 = vmax.f32 %v2629, %v2862
  %v3112 = vmax.f32 %v2630, %v3055
  %v3113 = vmax.f32 %v2631, %v2863
  %v3114 = vmax.f32 %v2632, %v3056
  %v3115 = vmax.f32 %v2633, %v2864
  %v3116 = vmax.f32 %v2634, %v3057
  %v3117 = vmax.f32 %v2635, %v2865
  %v3118 = vmax.f32 %v2636, %v3058
  %v3119 = vmax.f32 %v2637, %v2866
  %v3120 = vmax.f32 %v2638, %v3059
  %v3121 = vmax.f32 %v2639, %v2867
  %v3122 = vmax.f32 %v2640, %v3060
  %v3123 = vmax.f32 %v2641, %v2868
  %v3124 = vmax.f32 %v2642, %v3061
  %v3125 = vmax.f32 %v2643, %v2869
  %v3126 = vmax.f32 %v2644, %v3062
  %v3127 = vpack.c.bf16 %v3065, %v3063
  %v3128 = vpack.c.bf16 %v3066, %v3064
  %v3129 = vpack.c.bf16 %v3069, %v3067
  %v3130 = vpack.c.bf16 %v3070, %v3068
  %v3131 = vpack.c.bf16 %v3073, %v3071
  %v3132 = vpack.c.bf16 %v3074, %v3072
  %v3133 = vpack.c.bf16 %v3077, %v3075
  %v3134 = vpack.c.bf16 %v3078, %v3076
  %v3135 = vpack.c.bf16 %v3081, %v3079
  %v3136 = vpack.c.bf16 %v3082, %v3080
  %v3137 = vpack.c.bf16 %v3085, %v3083
  %v3138 = vpack.c.bf16 %v3086, %v3084
  %v3139 = vpack.c.bf16 %v3089, %v3087
  %v3140 = vpack.c.bf16 %v3090, %v3088
  %v3141 = vpack.c.bf16 %v3093, %v3091
  %v3142 = vpack.c.bf16 %v3094, %v3092
  %v3143 = vpack.c.bf16 %v3097, %v3095
  %v3144 = vpack.c.bf16 %v3098, %v3096
  %v3145 = vpack.c.bf16 %v3101, %v3099
  %v3146 = vpack.c.bf16 %v3102, %v3100
  %v3147 = vpack.c.bf16 %v3105, %v3103
  %v3148 = vpack.c.bf16 %v3106, %v3104
  %v3149 = vpack.c.bf16 %v3109, %v3107
  %v3150 = vpack.c.bf16 %v3110, %v3108
  %v3151 = vpack.c.bf16 %v3113, %v3111
  %v3152 = vpack.c.bf16 %v3114, %v3112
  %v3153 = vpack.c.bf16 %v3117, %v3115
  %v3154 = vpack.c.bf16 %v3118, %v3116
  %v3155 = vpack.c.bf16 %v3121, %v3119
  %v3156 = vpack.c.bf16 %v3122, %v3120
  %v3157 = vpack.c.bf16 %v3125, %v3123
  %v3158 = vpack.c.bf16 %v3126, %v3124
  %v3159 = vld [vmem:[%s3] sm:$0xff]
  %v3160 = vld [vmem:[%s3 + $0x8] sm:$0xff]
  %v3161 = vld [vmem:[%s3 + $0x10] sm:$0xff]
  %v3162 = vld [vmem:[%s3 + $0x18] sm:$0xff]
  %v3163 = vld [vmem:[%s3 + $0x20] sm:$0xff]
  %v3164 = vld [vmem:[%s3 + $0x28] sm:$0xff]
  %v3165 = vld [vmem:[%s3 + $0x30] sm:$0xff]
  %v3166 = vld [vmem:[%s3 + $0x38] sm:$0xff]
  %v3167 = vld [vmem:[%s3 + $0x40] sm:$0xff]
  %v3168 = vld [vmem:[%s3 + $0x48] sm:$0xff]
  %v3169 = vld [vmem:[%s3 + $0x50] sm:$0xff]
  %v3170 = vld [vmem:[%s3 + $0x58] sm:$0xff]
  %v3171 = vld [vmem:[%s3 + $0x60] sm:$0xff]
  %v3172 = vld [vmem:[%s3 + $0x68] sm:$0xff]
  %v3173 = vld [vmem:[%s3 + $0x70] sm:$0xff]
  %v3174 = vld [vmem:[%s3 + $0x78] sm:$0xff]
  %v3175 = vld [vmem:[%s3 + $0x80] sm:$0xff]
  %v3176 = vld [vmem:[%s3 + $0x88] sm:$0xff]
  %v3177 = vld [vmem:[%s3 + $0x90] sm:$0xff]
  %v3178 = vld [vmem:[%s3 + $0x98] sm:$0xff]
  %v3179 = vld [vmem:[%s3 + $0xa0] sm:$0xff]
  %v3212 = vrot.slane %v3127, 1
  %v3213 = vrot.slane %v3129, 1
  %v3214 = vsel %vm904, %v3212, %v3213
  %v3215 = vrot.slane %v3128, 1
  %v3216 = vrot.slane %v3130, 1
  %v3217 = vsel %vm904, %v3215, %v3216
  %v3218 = vrot.slane %v3131, 1
  %v3219 = vsel %vm904, %v3213, %v3218
  %v3220 = vrot.slane %v3132, 1
  %v3221 = vsel %vm904, %v3216, %v3220
  %v3222 = vrot.slane %v3133, 1
  %v3223 = vsel %vm904, %v3218, %v3222
  %v3224 = vrot.slane %v3134, 1
  %v3225 = vsel %vm904, %v3220, %v3224
  %v3226 = vrot.slane %v3135, 1
  %v3227 = vsel %vm904, %v3222, %v3226
  %v3228 = vrot.slane %v3136, 1
  %v3229 = vsel %vm904, %v3224, %v3228
  %v3230 = vrot.slane %v3137, 1
  %v3231 = vsel %vm904, %v3226, %v3230
  %v3232 = vrot.slane %v3138, 1
  %v3233 = vsel %vm904, %v3228, %v3232
  %v3234 = vrot.slane %v3139, 1
  %v3235 = vsel %vm904, %v3230, %v3234
  %v3236 = vrot.slane %v3140, 1
  %v3237 = vsel %vm904, %v3232, %v3236
  %v3238 = vrot.slane %v3141, 1
  %v3239 = vsel %vm904, %v3234, %v3238
  %v3240 = vrot.slane %v3142, 1
  %v3241 = vsel %vm904, %v3236, %v3240
  %v3242 = vrot.slane %v3143, 1
  %v3243 = vsel %vm904, %v3238, %v3242
  %v3244 = vrot.slane %v3144, 1
  %v3245 = vsel %vm904, %v3240, %v3244
  %v3246 = vrot.slane %v3145, 1
  %v3247 = vsel %vm904, %v3242, %v3246
  %v3248 = vrot.slane %v3146, 1
  %v3249 = vsel %vm904, %v3244, %v3248
  %v3250 = vrot.slane %v3147, 1
  %v3251 = vsel %vm904, %v3246, %v3250
  %v3252 = vrot.slane %v3148, 1
  %v3253 = vsel %vm904, %v3248, %v3252
  %v3254 = vrot.slane %v3149, 1
  %v3255 = vsel %vm904, %v3250, %v3254
  %v3256 = vrot.slane %v3150, 1
  %v3257 = vsel %vm904, %v3252, %v3256
  %v3258 = vrot.slane %v3151, 1
  %v3259 = vsel %vm904, %v3254, %v3258
  %v3260 = vrot.slane %v3152, 1
  %v3261 = vsel %vm904, %v3256, %v3260
  %v3262 = vrot.slane %v3153, 1
  %v3263 = vsel %vm904, %v3258, %v3262
  %v3264 = vrot.slane %v3154, 1
  %v3265 = vsel %vm904, %v3260, %v3264
  %v3266 = vrot.slane %v3155, 1
  %v3267 = vsel %vm904, %v3262, %v3266
  %v3268 = vrot.slane %v3156, 1
  %v3269 = vsel %vm904, %v3264, %v3268
  %v3270 = vrot.slane %v3157, 1
  %v3271 = vsel %vm904, %v3266, %v3270
  %v3272 = vrot.slane %v3158, 1
  %v3273 = vsel %vm904, %v3268, %v3272
  %v3291 = vsel %vm937, %v3270, %v3212
  %v3295 = vsel %vm937, %v3272, %v3215
  %s3296 = scalar_lea.vmem %s3, 168
  %v3297 = vld [vmem:[%s3296] sm:$0xff]
  %v3298 = vld [vmem:[%s3296 + $0x8] sm:$0xff]
  %v3299 = vld [vmem:[%s3296 + $0x10] sm:$0xff]
  %v3300 = vld [vmem:[%s3296 + $0x18] sm:$0xff]
  %v3301 = vld [vmem:[%s3296 + $0x20] sm:$0xff]
  %v3302 = vld [vmem:[%s3296 + $0x28] sm:$0xff]
  %v3303 = vld [vmem:[%s3296 + $0x30] sm:$0xff]
  %v3304 = vld [vmem:[%s3296 + $0x38] sm:$0xff]
  %v3305 = vld [vmem:[%s3296 + $0x40] sm:$0xff]
  %v3306 = vld [vmem:[%s3296 + $0x48] sm:$0xff]
  %v3307 = vld [vmem:[%s3296 + $0x50] sm:$0xff]
  %v3308 = vld [vmem:[%s3296 + $0x58] sm:$0xff]
  %v3309 = vld [vmem:[%s3296 + $0x60] sm:$0xff]
  %v3310 = vld [vmem:[%s3296 + $0x68] sm:$0xff]
  %v3311 = vld [vmem:[%s3296 + $0x70] sm:$0xff]
  %v3312 = vld [vmem:[%s3296 + $0x78] sm:$0xff]
  %v3313 = vld [vmem:[%s3296 + $0x80] sm:$0xff]
  %v3314 = vld [vmem:[%s3296 + $0x88] sm:$0xff]
  %v3315 = vld [vmem:[%s3296 + $0x90] sm:$0xff]
  %v3316 = vld [vmem:[%s3296 + $0x98] sm:$0xff]
  %v3317 = vld [vmem:[%s3296 + $0xa0] sm:$0xff]
  %v3339 = vunpack.c.l.b16 %v3297
  %v3340 = vunpack.c.h.b16 %v3297
  %v3341 = vunpack.c.l.b16 %v3298
  %v3342 = vunpack.c.h.b16 %v3298
  %v3343 = vunpack.c.l.b16 %v3299
  %v3344 = vunpack.c.h.b16 %v3299
  %v3345 = vunpack.c.l.b16 %v3300
  %v3346 = vunpack.c.h.b16 %v3300
  %v3347 = vunpack.c.l.b16 %v3301
  %v3348 = vunpack.c.h.b16 %v3301
  %v3349 = vunpack.c.l.b16 %v3302
  %v3350 = vunpack.c.h.b16 %v3302
  %v3351 = vunpack.c.l.b16 %v3303
  %v3352 = vunpack.c.h.b16 %v3303
  %v3353 = vunpack.c.l.b16 %v3304
  %v3354 = vunpack.c.h.b16 %v3304
  %v3355 = vunpack.c.l.b16 %v3305
  %v3356 = vunpack.c.h.b16 %v3305
  %v3357 = vunpack.c.l.b16 %v3306
  %v3358 = vunpack.c.h.b16 %v3306
  %v3359 = vunpack.c.l.b16 %v3307
  %v3360 = vunpack.c.h.b16 %v3307
  %v3361 = vunpack.c.l.b16 %v3308
  %v3362 = vunpack.c.h.b16 %v3308
  %v3363 = vunpack.c.l.b16 %v3309
  %v3364 = vunpack.c.h.b16 %v3309
  %v3365 = vunpack.c.l.b16 %v3310
  %v3366 = vunpack.c.h.b16 %v3310
  %v3367 = vunpack.c.l.b16 %v3311
  %v3368 = vunpack.c.h.b16 %v3311
  %v3369 = vunpack.c.l.b16 %v3312
  %v3370 = vunpack.c.h.b16 %v3312
  %v3371 = vunpack.c.l.b16 %v3313
  %v3372 = vunpack.c.h.b16 %v3313
  %v3373 = vunpack.c.l.b16 %v3314
  %v3374 = vunpack.c.h.b16 %v3314
  %v3375 = vunpack.c.l.b16 %v3315
  %v3376 = vunpack.c.h.b16 %v3315
  %v3377 = vunpack.c.l.b16 %v3316
  %v3378 = vunpack.c.h.b16 %v3316
  %v3379 = vunpack.c.l.b16 %v3317
  %v3380 = vunpack.c.h.b16 %v3317
  %v3381 = vpack.c.b16 %v3341, %v3339
  %v3382 = vpack.c.b16 %v3342, %v3340
  %v3383 = vpack.c.b16 %v3345, %v3343
  %v3384 = vpack.c.b16 %v3346, %v3344
  %v3385 = vpack.c.b16 %v3349, %v3347
  %v3386 = vpack.c.b16 %v3350, %v3348
  %v3387 = vpack.c.b16 %v3353, %v3351
  %v3388 = vpack.c.b16 %v3354, %v3352
  %v3389 = vpack.c.b16 %v3357, %v3355
  %v3390 = vpack.c.b16 %v3358, %v3356
  %v3391 = vpack.c.b16 %v3361, %v3359
  %v3392 = vpack.c.b16 %v3362, %v3360
  %v3393 = vpack.c.b16 %v3365, %v3363
  %v3394 = vpack.c.b16 %v3366, %v3364
  %v3395 = vpack.c.b16 %v3369, %v3367
  %v3396 = vpack.c.b16 %v3370, %v3368
  %v3397 = vpack.c.b16 %v3373, %v3371
  %v3398 = vpack.c.b16 %v3374, %v3372
  %v3399 = vpack.c.b16 %v3377, %v3375
  %v3400 = vpack.c.b16 %v3378, %v3376
  %v3401 = vpack.c.b16 %v3379, %v3379
  %v3402 = vpack.c.b16 %v3380, %v3380
  %vm3423 = vcmask 326656
  %v3425 = vsel %vm3423, %v3217, 0
  %v3428 = vsel %vm3423, %v3221, 0
  %v3431 = vsel %vm3423, %v3225, 0
  %v3434 = vsel %vm3423, %v3229, 0
  %v3437 = vsel %vm3423, %v3233, 0
  %v3440 = vsel %vm3423, %v3237, 0
  %v3443 = vsel %vm3423, %v3241, 0
  %v3446 = vsel %vm3423, %v3245, 0
  %v3449 = vsel %vm3423, %v3249, 0
  %v3452 = vsel %vm3423, %v3253, 0
  %v3455 = vsel %vm3423, %v3257, 0
  %v3458 = vsel %vm3423, %v3261, 0
  %v3461 = vsel %vm3423, %v3265, 0
  %v3464 = vsel %vm3423, %v3269, 0
  %v3467 = vsel %vm3423, %v3273, 0
  %v3469 = vsel %vm3423, %v3295, 0
  %vm3471 = vcmask 1043456
  %v3473 = vsel %vm3471, %v3401, 0
  %v3476 = vsel %vm3471, %v3402, 0
  %3478 = vmatprep.subr.bf16.mxu0 %v3382
  %3479 = vmatpush1.bf16.msra.mxu0 %v3381
  %3480 = vmatprep.subr.bf16.mxu0 %v3384
  %3481 = vmatpush1.bf16.msra.mxu0 %v3383
  %3482 = vmatprep.subr.bf16.mxu0 %v3386
  %3483 = vmatpush1.bf16.msra.mxu0 %v3385
  %3484 = vmatprep.subr.bf16.mxu0 %v3388
  %3485 = vmatpush1.bf16.msra.mxu0 %v3387
  %3486 = vmatprep.subr.bf16.mxu0 %v3390
  %3487 = vmatpush1.bf16.msra.mxu0 %v3389
  %3488 = vmatprep.subr.bf16.mxu0 %v3392
  %3489 = vmatpush1.bf16.msra.mxu0 %v3391
  %3490 = vmatprep.subr.bf16.mxu0 %v3394
  %3491 = vmatpush1.bf16.msra.mxu0 %v3393
  %3492 = vmatprep.subr.bf16.mxu0 %v3396
  %3493 = vmatpush1.bf16.msra.mxu0 %v3395
  %3494 = vmatprep.subr.bf16.mxu0 %v3398
  %3495 = vmatpush1.bf16.msra.mxu0 %v3397
  %3496 = vmatprep.subr.bf16.mxu0 %v3400
  %3497 = vmatpush1.bf16.msra.mxu0 %v3399
  %3498 = vmatprep.subr.bf16.mxu0 %v3476
  %3499 = vmatpush1.bf16.msra.mxu0 %v3473
  %3500 = vmatprep.subr.bf16.mxu0 0
  %3501 = vmatpush1.bf16.msra.mxu0 0
  %3502 = vmatprep.subr.bf16.mxu0 0
  %3503 = vmatpush1.bf16.msra.mxu0 0
  %3504 = vmatprep.subr.bf16.mxu0 0
  %3505 = vmatpush1.bf16.msra.mxu0 0
  %3506 = vmatprep.subr.bf16.mxu0 0
  %3507 = vmatpush1.bf16.msra.mxu0 0
  %3508 = vmatprep.subr.bf16.mxu0 0
  %3509 = vmatpush1.bf16.msra.mxu0 0
  %3510 = vmatprep.mubr.bf16.mxu0 %v3425
  %3511 = vmatmul.mubr.bf16.gmra.mrb[0].mxu0 %v3214
  %v3512 = vpop.f32.mrb[0].mxu0
  %v3513 = vadd.f32 0.0, %v3512
  %v3514 = vpop.f32.mrb[0].mxu0
  %v3515 = vadd.f32 0.0, %v3514
  %v3516 = vpop.f32.mrb[0].mxu0
  %v3517 = vadd.f32 0.0, %v3516
  %v3518 = vpop.f32.mrb[0].mxu0
  %v3519 = vadd.f32 0.0, %v3518
  %3520 = vmatprep.mubr.bf16.mxu0 %v3428
  %3521 = vmatmul.mubr.bf16.gmra.mrb[0].mxu0 %v3219
  %v3522 = vpop.f32.mrb[0].mxu0
  %v3523 = vadd.f32 0.0, %v3522
  %v3524 = vpop.f32.mrb[0].mxu0
  %v3525 = vadd.f32 0.0, %v3524
  %v3526 = vpop.f32.mrb[0].mxu0
  %v3527 = vadd.f32 0.0, %v3526
  %v3528 = vpop.f32.mrb[0].mxu0
  %v3529 = vadd.f32 0.0, %v3528
  %3530 = vmatprep.mubr.bf16.mxu0 %v3431
  %3531 = vmatmul.mubr.bf16.gmra.mrb[0].mxu0 %v3223
  %v3532 = vpop.f32.mrb[0].mxu0
  %v3533 = vadd.f32 0.0, %v3532
  %v3534 = vpop.f32.mrb[0].mxu0
  %v3535 = vadd.f32 0.0, %v3534
  %v3536 = vpop.f32.mrb[0].mxu0
  %v3537 = vadd.f32 0.0, %v3536
  %v3538 = vpop.f32.mrb[0].mxu0
  %v3539 = vadd.f32 0.0, %v3538
  %3540 = vmatprep.mubr.bf16.mxu0 %v3434
  %3541 = vmatmul.mubr.bf16.gmra.mrb[0].mxu0 %v3227
  %v3542 = vpop.f32.mrb[0].mxu0
  %v3543 = vadd.f32 0.0, %v3542
  %v3544 = vpop.f32.mrb[0].mxu0
  %v3545 = vadd.f32 0.0, %v3544
  %v3546 = vpop.f32.mrb[0].mxu0
  %v3547 = vadd.f32 0.0, %v3546
  %v3548 = vpop.f32.mrb[0].mxu0
  %v3549 = vadd.f32 0.0, %v3548
  %3550 = vmatprep.mubr.bf16.mxu0 %v3437
  %3551 = vmatmul.mubr.bf16.gmra.mrb[0].mxu0 %v3231
  %v3552 = vpop.f32.mrb[0].mxu0
  %v3553 = vadd.f32 0.0, %v3552
  %v3554 = vpop.f32.mrb[0].mxu0
  %v3555 = vadd.f32 0.0, %v3554
  %v3556 = vpop.f32.mrb[0].mxu0
  %v3557 = vadd.f32 0.0, %v3556
  %v3558 = vpop.f32.mrb[0].mxu0
  %v3559 = vadd.f32 0.0, %v3558
  %3560 = vmatprep.mubr.bf16.mxu0 %v3440
  %3561 = vmatmul.mubr.bf16.gmra.mrb[0].mxu0 %v3235
  %v3562 = vpop.f32.mrb[0].mxu0
  %v3563 = vadd.f32 0.0, %v3562
  %v3564 = vpop.f32.mrb[0].mxu0
  %v3565 = vadd.f32 0.0, %v3564
  %v3566 = vpop.f32.mrb[0].mxu0
  %v3567 = vadd.f32 0.0, %v3566
  %v3568 = vpop.f32.mrb[0].mxu0
  %v3569 = vadd.f32 0.0, %v3568
  %3570 = vmatprep.mubr.bf16.mxu0 %v3443
  %3571 = vmatmul.mubr.bf16.gmra.mrb[0].mxu0 %v3239
  %v3572 = vpop.f32.mrb[0].mxu0
  %v3573 = vadd.f32 0.0, %v3572
  %v3574 = vpop.f32.mrb[0].mxu0
  %v3575 = vadd.f32 0.0, %v3574
  %v3576 = vpop.f32.mrb[0].mxu0
  %v3577 = vadd.f32 0.0, %v3576
  %v3578 = vpop.f32.mrb[0].mxu0
  %v3579 = vadd.f32 0.0, %v3578
  %3580 = vmatprep.mubr.bf16.mxu0 %v3446
  %3581 = vmatmul.mubr.bf16.gmra.mrb[0].mxu0 %v3243
  %v3582 = vpop.f32.mrb[0].mxu0
  %v3583 = vadd.f32 0.0, %v3582
  %v3584 = vpop.f32.mrb[0].mxu0
  %v3585 = vadd.f32 0.0, %v3584
  %v3586 = vpop.f32.mrb[0].mxu0
  %v3587 = vadd.f32 0.0, %v3586
  %v3588 = vpop.f32.mrb[0].mxu0
  %v3589 = vadd.f32 0.0, %v3588
  %3590 = vmatprep.mubr.bf16.mxu0 %v3449
  %3591 = vmatmul.mubr.bf16.gmra.mrb[0].mxu0 %v3247
  %v3592 = vpop.f32.mrb[0].mxu0
  %v3593 = vadd.f32 0.0, %v3592
  %v3594 = vpop.f32.mrb[0].mxu0
  %v3595 = vadd.f32 0.0, %v3594
  %v3596 = vpop.f32.mrb[0].mxu0
  %v3597 = vadd.f32 0.0, %v3596
  %v3598 = vpop.f32.mrb[0].mxu0
  %v3599 = vadd.f32 0.0, %v3598
  %3600 = vmatprep.mubr.bf16.mxu0 %v3452
  %3601 = vmatmul.mubr.bf16.gmra.mrb[0].mxu0 %v3251
  %v3602 = vpop.f32.mrb[0].mxu0
  %v3603 = vadd.f32 0.0, %v3602
  %v3604 = vpop.f32.mrb[0].mxu0
  %v3605 = vadd.f32 0.0, %v3604
  %v3606 = vpop.f32.mrb[0].mxu0
  %v3607 = vadd.f32 0.0, %v3606
  %v3608 = vpop.f32.mrb[0].mxu0
  %v3609 = vadd.f32 0.0, %v3608
  %3610 = vmatprep.mubr.bf16.mxu0 %v3455
  %3611 = vmatmul.mubr.bf16.gmra.mrb[0].mxu0 %v3255
  %v3612 = vpop.f32.mrb[0].mxu0
  %v3613 = vadd.f32 0.0, %v3612
  %v3614 = vpop.f32.mrb[0].mxu0
  %v3615 = vadd.f32 0.0, %v3614
  %v3616 = vpop.f32.mrb[0].mxu0
  %v3617 = vadd.f32 0.0, %v3616
  %v3618 = vpop.f32.mrb[0].mxu0
  %v3619 = vadd.f32 0.0, %v3618
  %3620 = vmatprep.mubr.bf16.mxu0 %v3458
  %3621 = vmatmul.mubr.bf16.gmra.mrb[0].mxu0 %v3259
  %v3622 = vpop.f32.mrb[0].mxu0
  %v3623 = vadd.f32 0.0, %v3622
  %v3624 = vpop.f32.mrb[0].mxu0
  %v3625 = vadd.f32 0.0, %v3624
  %v3626 = vpop.f32.mrb[0].mxu0
  %v3627 = vadd.f32 0.0, %v3626
  %v3628 = vpop.f32.mrb[0].mxu0
  %v3629 = vadd.f32 0.0, %v3628
  %3630 = vmatprep.mubr.bf16.mxu0 %v3461
  %3631 = vmatmul.mubr.bf16.gmra.mrb[0].mxu0 %v3263
  %v3632 = vpop.f32.mrb[0].mxu0
  %v3633 = vadd.f32 0.0, %v3632
  %v3634 = vpop.f32.mrb[0].mxu0
  %v3635 = vadd.f32 0.0, %v3634
  %v3636 = vpop.f32.mrb[0].mxu0
  %v3637 = vadd.f32 0.0, %v3636
  %v3638 = vpop.f32.mrb[0].mxu0
  %v3639 = vadd.f32 0.0, %v3638
  %3640 = vmatprep.mubr.bf16.mxu0 %v3464
  %3641 = vmatmul.mubr.bf16.gmra.mrb[0].mxu0 %v3267
  %v3642 = vpop.f32.mrb[0].mxu0
  %v3643 = vadd.f32 0.0, %v3642
  %v3644 = vpop.f32.mrb[0].mxu0
  %v3645 = vadd.f32 0.0, %v3644
  %v3646 = vpop.f32.mrb[0].mxu0
  %v3647 = vadd.f32 0.0, %v3646
  %v3648 = vpop.f32.mrb[0].mxu0
  %v3649 = vadd.f32 0.0, %v3648
  %3650 = vmatprep.mubr.bf16.mxu0 %v3467
  %3651 = vmatmul.mubr.bf16.gmra.mrb[0].mxu0 %v3271
  %v3652 = vpop.f32.mrb[0].mxu0
  %v3653 = vadd.f32 0.0, %v3652
  %v3654 = vpop.f32.mrb[0].mxu0
  %v3655 = vadd.f32 0.0, %v3654
  %v3656 = vpop.f32.mrb[0].mxu0
  %v3657 = vadd.f32 0.0, %v3656
  %v3658 = vpop.f32.mrb[0].mxu0
  %v3659 = vadd.f32 0.0, %v3658
  %3660 = vmatprep.mubr.bf16.mxu0 %v3469
  %3661 = vmatmul.mubr.bf16.gmra.mrb[0].mxu0 %v3291
  %v3662 = vpop.f32.mrb[0].mxu0
  %v3663 = vadd.f32 0.0, %v3662
  %v3664 = vpop.f32.mrb[0].mxu0
  %v3665 = vadd.f32 0.0, %v3664
  %v3666 = vpop.f32.mrb[0].mxu0
  %v3667 = vadd.f32 0.0, %v3666
  %v3668 = vpop.f32.mrb[0].mxu0
  %v3669 = vadd.f32 0.0, %v3668
  %3670 = vdwg.mxu0
  %v3692 = vunpack.c.l.b16 %v3159
  %v3693 = vunpack.c.h.b16 %v3159
  %v3694 = vunpack.c.l.b16 %v3160
  %v3695 = vunpack.c.h.b16 %v3160
  %v3696 = vunpack.c.l.b16 %v3161
  %v3697 = vunpack.c.h.b16 %v3161
  %v3698 = vunpack.c.l.b16 %v3162
  %v3699 = vunpack.c.h.b16 %v3162
  %v3700 = vunpack.c.l.b16 %v3163
  %v3701 = vunpack.c.h.b16 %v3163
  %v3702 = vunpack.c.l.b16 %v3164
  %v3703 = vunpack.c.h.b16 %v3164
  %v3704 = vunpack.c.l.b16 %v3165
  %v3705 = vunpack.c.h.b16 %v3165
  %v3706 = vunpack.c.l.b16 %v3166
  %v3707 = vunpack.c.h.b16 %v3166
  %v3708 = vunpack.c.l.b16 %v3167
  %v3709 = vunpack.c.h.b16 %v3167
  %v3710 = vunpack.c.l.b16 %v3168
  %v3711 = vunpack.c.h.b16 %v3168
  %v3712 = vunpack.c.l.b16 %v3169
  %v3713 = vunpack.c.h.b16 %v3169
  %v3714 = vunpack.c.l.b16 %v3170
  %v3715 = vunpack.c.h.b16 %v3170
  %v3716 = vunpack.c.l.b16 %v3171
  %v3717 = vunpack.c.h.b16 %v3171
  %v3718 = vunpack.c.l.b16 %v3172
  %v3719 = vunpack.c.h.b16 %v3172
  %v3720 = vunpack.c.l.b16 %v3173
  %v3721 = vunpack.c.h.b16 %v3173
  %v3722 = vunpack.c.l.b16 %v3174
  %v3723 = vunpack.c.h.b16 %v3174
  %v3724 = vunpack.c.l.b16 %v3175
  %v3725 = vunpack.c.h.b16 %v3175
  %v3726 = vunpack.c.l.b16 %v3176
  %v3727 = vunpack.c.h.b16 %v3176
  %v3728 = vunpack.c.l.b16 %v3177
  %v3729 = vunpack.c.h.b16 %v3177
  %v3730 = vunpack.c.l.b16 %v3178
  %v3731 = vunpack.c.h.b16 %v3178
  %v3732 = vunpack.c.l.b16 %v3179
  %v3733 = vunpack.c.h.b16 %v3179
  %v3734 = vpack.c.b16 %v3694, %v3692
  %v3735 = vpack.c.b16 %v3695, %v3693
  %v3736 = vpack.c.b16 %v3698, %v3696
  %v3737 = vpack.c.b16 %v3699, %v3697
  %v3738 = vpack.c.b16 %v3702, %v3700
  %v3739 = vpack.c.b16 %v3703, %v3701
  %v3740 = vpack.c.b16 %v3706, %v3704
  %v3741 = vpack.c.b16 %v3707, %v3705
  %v3742 = vpack.c.b16 %v3710, %v3708
  %v3743 = vpack.c.b16 %v3711, %v3709
  %v3744 = vpack.c.b16 %v3714, %v3712
  %v3745 = vpack.c.b16 %v3715, %v3713
  %v3746 = vpack.c.b16 %v3718, %v3716
  %v3747 = vpack.c.b16 %v3719, %v3717
  %v3748 = vpack.c.b16 %v3722, %v3720
  %v3749 = vpack.c.b16 %v3723, %v3721
  %v3750 = vpack.c.b16 %v3726, %v3724
  %v3751 = vpack.c.b16 %v3727, %v3725
  %v3752 = vpack.c.b16 %v3730, %v3728
  %v3753 = vpack.c.b16 %v3731, %v3729
  %v3754 = vpack.c.b16 %v3732, %v3732
  %v3755 = vpack.c.b16 %v3733, %v3733
  %v3777 = vsel %vm3423, %v3128, 0
  %v3780 = vsel %vm3423, %v3130, 0
  %v3783 = vsel %vm3423, %v3132, 0
  %v3786 = vsel %vm3423, %v3134, 0
  %v3789 = vsel %vm3423, %v3136, 0
  %v3792 = vsel %vm3423, %v3138, 0
  %v3795 = vsel %vm3423, %v3140, 0
  %v3798 = vsel %vm3423, %v3142, 0
  %v3801 = vsel %vm3423, %v3144, 0
  %v3804 = vsel %vm3423, %v3146, 0
  %v3807 = vsel %vm3423, %v3148, 0
  %v3810 = vsel %vm3423, %v3150, 0
  %v3813 = vsel %vm3423, %v3152, 0
  %v3816 = vsel %vm3423, %v3154, 0
  %v3819 = vsel %vm3423, %v3156, 0
  %v3822 = vsel %vm3423, %v3158, 0
  %v3825 = vsel %vm3471, %v3754, 0
  %v3828 = vsel %vm3471, %v3755, 0
  %3830 = vmatprep.subr.bf16.mxu0 %v3735
  %3831 = vmatpush1.bf16.msra.mxu0 %v3734
  %3832 = vmatprep.subr.bf16.mxu0 %v3737
  %3833 = vmatpush1.bf16.msra.mxu0 %v3736
  %3834 = vmatprep.subr.bf16.mxu0 %v3739
  %3835 = vmatpush1.bf16.msra.mxu0 %v3738
  %3836 = vmatprep.subr.bf16.mxu0 %v3741
  %3837 = vmatpush1.bf16.msra.mxu0 %v3740
  %3838 = vmatprep.subr.bf16.mxu0 %v3743
  %3839 = vmatpush1.bf16.msra.mxu0 %v3742
  %3840 = vmatprep.subr.bf16.mxu0 %v3745
  %3841 = vmatpush1.bf16.msra.mxu0 %v3744
  %3842 = vmatprep.subr.bf16.mxu0 %v3747
  %3843 = vmatpush1.bf16.msra.mxu0 %v3746
  %3844 = vmatprep.subr.bf16.mxu0 %v3749
  %3845 = vmatpush1.bf16.msra.mxu0 %v3748
  %3846 = vmatprep.subr.bf16.mxu0 %v3751
  %3847 = vmatpush1.bf16.msra.mxu0 %v3750
  %3848 = vmatprep.subr.bf16.mxu0 %v3753
  %3849 = vmatpush1.bf16.msra.mxu0 %v3752
  %3850 = vmatprep.subr.bf16.mxu0 %v3828
  %3851 = vmatpush1.bf16.msra.mxu0 %v3825
  %3852 = vmatprep.subr.bf16.mxu0 0
  %3853 = vmatpush1.bf16.msra.mxu0 0
  %3854 = vmatprep.subr.bf16.mxu0 0
  %3855 = vmatpush1.bf16.msra.mxu0 0
  %3856 = vmatprep.subr.bf16.mxu0 0
  %3857 = vmatpush1.bf16.msra.mxu0 0
  %3858 = vmatprep.subr.bf16.mxu0 0
  %3859 = vmatpush1.bf16.msra.mxu0 0
  %3860 = vmatprep.subr.bf16.mxu0 0
  %3861 = vmatpush1.bf16.msra.mxu0 0
  %3862 = vmatprep.mubr.bf16.mxu0 %v3777
  %3863 = vmatmul.mubr.bf16.gmra.mrb[0].mxu0 %v3127
  %v3864 = vpop.f32.mrb[0].mxu0
  %v3865 = vadd.f32 %v3513, %v3864
  %v3866 = vpop.f32.mrb[0].mxu0
  %v3867 = vadd.f32 %v3515, %v3866
  %v3868 = vpop.f32.mrb[0].mxu0
  %v3869 = vadd.f32 %v3517, %v3868
  %v3870 = vpop.f32.mrb[0].mxu0
  %v3871 = vadd.f32 %v3519, %v3870
  %3872 = vmatprep.mubr.bf16.mxu0 %v3780
  %3873 = vmatmul.mubr.bf16.gmra.mrb[0].mxu0 %v3129
  %v3874 = vpop.f32.mrb[0].mxu0
  %v3875 = vadd.f32 %v3523, %v3874
  %v3876 = vpop.f32.mrb[0].mxu0
  %v3877 = vadd.f32 %v3525, %v3876
  %v3878 = vpop.f32.mrb[0].mxu0
  %v3879 = vadd.f32 %v3527, %v3878
  %v3880 = vpop.f32.mrb[0].mxu0
  %v3881 = vadd.f32 %v3529, %v3880
  %3882 = vmatprep.mubr.bf16.mxu0 %v3783
  %3883 = vmatmul.mubr.bf16.gmra.mrb[0].mxu0 %v3131
  %v3884 = vpop.f32.mrb[0].mxu0
  %v3885 = vadd.f32 %v3533, %v3884
  %v3886 = vpop.f32.mrb[0].mxu0
  %v3887 = vadd.f32 %v3535, %v3886
  %v3888 = vpop.f32.mrb[0].mxu0
  %v3889 = vadd.f32 %v3537, %v3888
  %v3890 = vpop.f32.mrb[0].mxu0
  %v3891 = vadd.f32 %v3539, %v3890
  %3892 = vmatprep.mubr.bf16.mxu0 %v3786
  %3893 = vmatmul.mubr.bf16.gmra.mrb[0].mxu0 %v3133
  %v3894 = vpop.f32.mrb[0].mxu0
  %v3895 = vadd.f32 %v3543, %v3894
  %v3896 = vpop.f32.mrb[0].mxu0
  %v3897 = vadd.f32 %v3545, %v3896
  %v3898 = vpop.f32.mrb[0].mxu0
  %v3899 = vadd.f32 %v3547, %v3898
  %v3900 = vpop.f32.mrb[0].mxu0
  %v3901 = vadd.f32 %v3549, %v3900
  %3902 = vmatprep.mubr.bf16.mxu0 %v3789
  %3903 = vmatmul.mubr.bf16.gmra.mrb[0].mxu0 %v3135
  %v3904 = vpop.f32.mrb[0].mxu0
  %v3905 = vadd.f32 %v3553, %v3904
  %v3906 = vpop.f32.mrb[0].mxu0
  %v3907 = vadd.f32 %v3555, %v3906
  %v3908 = vpop.f32.mrb[0].mxu0
  %v3909 = vadd.f32 %v3557, %v3908
  %v3910 = vpop.f32.mrb[0].mxu0
  %v3911 = vadd.f32 %v3559, %v3910
  %3912 = vmatprep.mubr.bf16.mxu0 %v3792
  %3913 = vmatmul.mubr.bf16.gmra.mrb[0].mxu0 %v3137
  %v3914 = vpop.f32.mrb[0].mxu0
  %v3915 = vadd.f32 %v3563, %v3914
  %v3916 = vpop.f32.mrb[0].mxu0
  %v3917 = vadd.f32 %v3565, %v3916
  %v3918 = vpop.f32.mrb[0].mxu0
  %v3919 = vadd.f32 %v3567, %v3918
  %v3920 = vpop.f32.mrb[0].mxu0
  %v3921 = vadd.f32 %v3569, %v3920
  %3922 = vmatprep.mubr.bf16.mxu0 %v3795
  %3923 = vmatmul.mubr.bf16.gmra.mrb[0].mxu0 %v3139
  %v3924 = vpop.f32.mrb[0].mxu0
  %v3925 = vadd.f32 %v3573, %v3924
  %v3926 = vpop.f32.mrb[0].mxu0
  %v3927 = vadd.f32 %v3575, %v3926
  %v3928 = vpop.f32.mrb[0].mxu0
  %v3929 = vadd.f32 %v3577, %v3928
  %v3930 = vpop.f32.mrb[0].mxu0
  %v3931 = vadd.f32 %v3579, %v3930
  %3932 = vmatprep.mubr.bf16.mxu0 %v3798
  %3933 = vmatmul.mubr.bf16.gmra.mrb[0].mxu0 %v3141
  %v3934 = vpop.f32.mrb[0].mxu0
  %v3935 = vadd.f32 %v3583, %v3934
  %v3936 = vpop.f32.mrb[0].mxu0
  %v3937 = vadd.f32 %v3585, %v3936
  %v3938 = vpop.f32.mrb[0].mxu0
  %v3939 = vadd.f32 %v3587, %v3938
  %v3940 = vpop.f32.mrb[0].mxu0
  %v3941 = vadd.f32 %v3589, %v3940
  %3942 = vmatprep.mubr.bf16.mxu0 %v3801
  %3943 = vmatmul.mubr.bf16.gmra.mrb[0].mxu0 %v3143
  %v3944 = vpop.f32.mrb[0].mxu0
  %v3945 = vadd.f32 %v3593, %v3944
  %v3946 = vpop.f32.mrb[0].mxu0
  %v3947 = vadd.f32 %v3595, %v3946
  %v3948 = vpop.f32.mrb[0].mxu0
  %v3949 = vadd.f32 %v3597, %v3948
  %v3950 = vpop.f32.mrb[0].mxu0
  %v3951 = vadd.f32 %v3599, %v3950
  %3952 = vmatprep.mubr.bf16.mxu0 %v3804
  %3953 = vmatmul.mubr.bf16.gmra.mrb[0].mxu0 %v3145
  %v3954 = vpop.f32.mrb[0].mxu0
  %v3955 = vadd.f32 %v3603, %v3954
  %v3956 = vpop.f32.mrb[0].mxu0
  %v3957 = vadd.f32 %v3605, %v3956
  %v3958 = vpop.f32.mrb[0].mxu0
  %v3959 = vadd.f32 %v3607, %v3958
  %v3960 = vpop.f32.mrb[0].mxu0
  %v3961 = vadd.f32 %v3609, %v3960
  %3962 = vmatprep.mubr.bf16.mxu0 %v3807
  %3963 = vmatmul.mubr.bf16.gmra.mrb[0].mxu0 %v3147
  %v3964 = vpop.f32.mrb[0].mxu0
  %v3965 = vadd.f32 %v3613, %v3964
  %v3966 = vpop.f32.mrb[0].mxu0
  %v3967 = vadd.f32 %v3615, %v3966
  %v3968 = vpop.f32.mrb[0].mxu0
  %v3969 = vadd.f32 %v3617, %v3968
  %v3970 = vpop.f32.mrb[0].mxu0
  %v3971 = vadd.f32 %v3619, %v3970
  %3972 = vmatprep.mubr.bf16.mxu0 %v3810
  %3973 = vmatmul.mubr.bf16.gmra.mrb[0].mxu0 %v3149
  %v3974 = vpop.f32.mrb[0].mxu0
  %v3975 = vadd.f32 %v3623, %v3974
  %v3976 = vpop.f32.mrb[0].mxu0
  %v3977 = vadd.f32 %v3625, %v3976
  %v3978 = vpop.f32.mrb[0].mxu0
  %v3979 = vadd.f32 %v3627, %v3978
  %v3980 = vpop.f32.mrb[0].mxu0
  %v3981 = vadd.f32 %v3629, %v3980
  %3982 = vmatprep.mubr.bf16.mxu0 %v3813
  %3983 = vmatmul.mubr.bf16.gmra.mrb[0].mxu0 %v3151
  %v3984 = vpop.f32.mrb[0].mxu0
  %v3985 = vadd.f32 %v3633, %v3984
  %v3986 = vpop.f32.mrb[0].mxu0
  %v3987 = vadd.f32 %v3635, %v3986
  %v3988 = vpop.f32.mrb[0].mxu0
  %v3989 = vadd.f32 %v3637, %v3988
  %v3990 = vpop.f32.mrb[0].mxu0
  %v3991 = vadd.f32 %v3639, %v3990
  %3992 = vmatprep.mubr.bf16.mxu0 %v3816
  %3993 = vmatmul.mubr.bf16.gmra.mrb[0].mxu0 %v3153
  %v3994 = vpop.f32.mrb[0].mxu0
  %v3995 = vadd.f32 %v3643, %v3994
  %v3996 = vpop.f32.mrb[0].mxu0
  %v3997 = vadd.f32 %v3645, %v3996
  %v3998 = vpop.f32.mrb[0].mxu0
  %v3999 = vadd.f32 %v3647, %v3998
  %v4000 = vpop.f32.mrb[0].mxu0
  %v4001 = vadd.f32 %v3649, %v4000
  %4002 = vmatprep.mubr.bf16.mxu0 %v3819
  %4003 = vmatmul.mubr.bf16.gmra.mrb[0].mxu0 %v3155
  %v4004 = vpop.f32.mrb[0].mxu0
  %v4005 = vadd.f32 %v3653, %v4004
  %v4006 = vpop.f32.mrb[0].mxu0
  %v4007 = vadd.f32 %v3655, %v4006
  %v4008 = vpop.f32.mrb[0].mxu0
  %v4009 = vadd.f32 %v3657, %v4008
  %v4010 = vpop.f32.mrb[0].mxu0
  %v4011 = vadd.f32 %v3659, %v4010
  %4012 = vmatprep.mubr.bf16.mxu0 %v3822
  %4013 = vmatmul.mubr.bf16.gmra.mrb[0].mxu0 %v3157
  %v4014 = vpop.f32.mrb[0].mxu0
  %v4015 = vadd.f32 %v3663, %v4014
  %v4016 = vpop.f32.mrb[0].mxu0
  %v4017 = vadd.f32 %v3665, %v4016
  %v4018 = vpop.f32.mrb[0].mxu0
  %v4019 = vadd.f32 %v3667, %v4018
  %v4020 = vpop.f32.mrb[0].mxu0
  %v4021 = vadd.f32 %v3669, %v4020
  %4022 = vdwg.mxu0
  %v4023 = vrot.slane %v3127, 2
  %v4024 = vrot.slane %v3129, 2
  %v4025 = vsel %vm1769, %v4023, %v4024
  %v4026 = vrot.slane %v3128, 2
  %v4027 = vrot.slane %v3130, 2
  %v4028 = vsel %vm1769, %v4026, %v4027
  %v4029 = vrot.slane %v3131, 2
  %v4030 = vsel %vm1769, %v4024, %v4029
  %v4031 = vrot.slane %v3132, 2
  %v4032 = vsel %vm1769, %v4027, %v4031
  %v4033 = vrot.slane %v3133, 2
  %v4034 = vsel %vm1769, %v4029, %v4033
  %v4035 = vrot.slane %v3134, 2
  %v4036 = vsel %vm1769, %v4031, %v4035
  %v4037 = vrot.slane %v3135, 2
  %v4038 = vsel %vm1769, %v4033, %v4037
  %v4039 = vrot.slane %v3136, 2
  %v4040 = vsel %vm1769, %v4035, %v4039
  %v4041 = vrot.slane %v3137, 2
  %v4042 = vsel %vm1769, %v4037, %v4041
  %v4043 = vrot.slane %v3138, 2
  %v4044 = vsel %vm1769, %v4039, %v4043
  %v4045 = vrot.slane %v3139, 2
  %v4046 = vsel %vm1769, %v4041, %v4045
  %v4047 = vrot.slane %v3140, 2
  %v4048 = vsel %vm1769, %v4043, %v4047
  %v4049 = vrot.slane %v3141, 2
  %v4050 = vsel %vm1769, %v4045, %v4049
  %v4051 = vrot.slane %v3142, 2
  %v4052 = vsel %vm1769, %v4047, %v4051
  %v4053 = vrot.slane %v3143, 2
  %v4054 = vsel %vm1769, %v4049, %v4053
  %v4055 = vrot.slane %v3144, 2
  %v4056 = vsel %vm1769, %v4051, %v4055
  %v4057 = vrot.slane %v3145, 2
  %v4058 = vsel %vm1769, %v4053, %v4057
  %v4059 = vrot.slane %v3146, 2
  %v4060 = vsel %vm1769, %v4055, %v4059
  %v4061 = vrot.slane %v3147, 2
  %v4062 = vsel %vm1769, %v4057, %v4061
  %v4063 = vrot.slane %v3148, 2
  %v4064 = vsel %vm1769, %v4059, %v4063
  %v4065 = vrot.slane %v3149, 2
  %v4066 = vsel %vm1769, %v4061, %v4065
  %v4067 = vrot.slane %v3150, 2
  %v4068 = vsel %vm1769, %v4063, %v4067
  %v4069 = vrot.slane %v3151, 2
  %v4070 = vsel %vm1769, %v4065, %v4069
  %v4071 = vrot.slane %v3152, 2
  %v4072 = vsel %vm1769, %v4067, %v4071
  %v4073 = vrot.slane %v3153, 2
  %v4074 = vsel %vm1769, %v4069, %v4073
  %v4075 = vrot.slane %v3154, 2
  %v4076 = vsel %vm1769, %v4071, %v4075
  %v4077 = vrot.slane %v3155, 2
  %v4078 = vsel %vm1769, %v4073, %v4077
  %v4079 = vrot.slane %v3156, 2
  %v4080 = vsel %vm1769, %v4075, %v4079
  %v4081 = vrot.slane %v3157, 2
  %v4082 = vsel %vm1769, %v4077, %v4081
  %v4083 = vrot.slane %v3158, 2
  %v4084 = vsel %vm1769, %v4079, %v4083
  %v4102 = vsel %vm1802, %v4081, %v4023
  %v4106 = vsel %vm1802, %v4083, %v4026
  %s4107 = scalar_lea.vmem %s3, 336
  %v4108 = vld [vmem:[%s4107] sm:$0xff]
  %v4109 = vld [vmem:[%s4107 + $0x8] sm:$0xff]
  %v4110 = vld [vmem:[%s4107 + $0x10] sm:$0xff]
  %v4111 = vld [vmem:[%s4107 + $0x18] sm:$0xff]
  %v4112 = vld [vmem:[%s4107 + $0x20] sm:$0xff]
  %v4113 = vld [vmem:[%s4107 + $0x28] sm:$0xff]
  %v4114 = vld [vmem:[%s4107 + $0x30] sm:$0xff]
  %v4115 = vld [vmem:[%s4107 + $0x38] sm:$0xff]
  %v4116 = vld [vmem:[%s4107 + $0x40] sm:$0xff]
  %v4117 = vld [vmem:[%s4107 + $0x48] sm:$0xff]
  %v4118 = vld [vmem:[%s4107 + $0x50] sm:$0xff]
  %v4119 = vld [vmem:[%s4107 + $0x58] sm:$0xff]
  %v4120 = vld [vmem:[%s4107 + $0x60] sm:$0xff]
  %v4121 = vld [vmem:[%s4107 + $0x68] sm:$0xff]
  %v4122 = vld [vmem:[%s4107 + $0x70] sm:$0xff]
  %v4123 = vld [vmem:[%s4107 + $0x78] sm:$0xff]
  %v4124 = vld [vmem:[%s4107 + $0x80] sm:$0xff]
  %v4125 = vld [vmem:[%s4107 + $0x88] sm:$0xff]
  %v4126 = vld [vmem:[%s4107 + $0x90] sm:$0xff]
  %v4127 = vld [vmem:[%s4107 + $0x98] sm:$0xff]
  %v4128 = vld [vmem:[%s4107 + $0xa0] sm:$0xff]
  %v4150 = vunpack.c.l.b16 %v4108
  %v4151 = vunpack.c.h.b16 %v4108
  %v4152 = vunpack.c.l.b16 %v4109
  %v4153 = vunpack.c.h.b16 %v4109
  %v4154 = vunpack.c.l.b16 %v4110
  %v4155 = vunpack.c.h.b16 %v4110
  %v4156 = vunpack.c.l.b16 %v4111
  %v4157 = vunpack.c.h.b16 %v4111
  %v4158 = vunpack.c.l.b16 %v4112
  %v4159 = vunpack.c.h.b16 %v4112
  %v4160 = vunpack.c.l.b16 %v4113
  %v4161 = vunpack.c.h.b16 %v4113
  %v4162 = vunpack.c.l.b16 %v4114
  %v4163 = vunpack.c.h.b16 %v4114
  %v4164 = vunpack.c.l.b16 %v4115
  %v4165 = vunpack.c.h.b16 %v4115
  %v4166 = vunpack.c.l.b16 %v4116
  %v4167 = vunpack.c.h.b16 %v4116
  %v4168 = vunpack.c.l.b16 %v4117
  %v4169 = vunpack.c.h.b16 %v4117
  %v4170 = vunpack.c.l.b16 %v4118
  %v4171 = vunpack.c.h.b16 %v4118
  %v4172 = vunpack.c.l.b16 %v4119
  %v4173 = vunpack.c.h.b16 %v4119
  %v4174 = vunpack.c.l.b16 %v4120
  %v4175 = vunpack.c.h.b16 %v4120
  %v4176 = vunpack.c.l.b16 %v4121
  %v4177 = vunpack.c.h.b16 %v4121
  %v4178 = vunpack.c.l.b16 %v4122
  %v4179 = vunpack.c.h.b16 %v4122
  %v4180 = vunpack.c.l.b16 %v4123
  %v4181 = vunpack.c.h.b16 %v4123
  %v4182 = vunpack.c.l.b16 %v4124
  %v4183 = vunpack.c.h.b16 %v4124
  %v4184 = vunpack.c.l.b16 %v4125
  %v4185 = vunpack.c.h.b16 %v4125
  %v4186 = vunpack.c.l.b16 %v4126
  %v4187 = vunpack.c.h.b16 %v4126
  %v4188 = vunpack.c.l.b16 %v4127
  %v4189 = vunpack.c.h.b16 %v4127
  %v4190 = vunpack.c.l.b16 %v4128
  %v4191 = vunpack.c.h.b16 %v4128
  %v4192 = vpack.c.b16 %v4152, %v4150
  %v4193 = vpack.c.b16 %v4153, %v4151
  %v4194 = vpack.c.b16 %v4156, %v4154
  %v4195 = vpack.c.b16 %v4157, %v4155
  %v4196 = vpack.c.b16 %v4160, %v4158
  %v4197 = vpack.c.b16 %v4161, %v4159
  %v4198 = vpack.c.b16 %v4164, %v4162
  %v4199 = vpack.c.b16 %v4165, %v4163
  %v4200 = vpack.c.b16 %v4168, %v4166
  %v4201 = vpack.c.b16 %v4169, %v4167
  %v4202 = vpack.c.b16 %v4172, %v4170
  %v4203 = vpack.c.b16 %v4173, %v4171
  %v4204 = vpack.c.b16 %v4176, %v4174
  %v4205 = vpack.c.b16 %v4177, %v4175
  %v4206 = vpack.c.b16 %v4180, %v4178
  %v4207 = vpack.c.b16 %v4181, %v4179
  %v4208 = vpack.c.b16 %v4184, %v4182
  %v4209 = vpack.c.b16 %v4185, %v4183
  %v4210 = vpack.c.b16 %v4188, %v4186
  %v4211 = vpack.c.b16 %v4189, %v4187
  %v4212 = vpack.c.b16 %v4190, %v4190
  %v4213 = vpack.c.b16 %v4191, %v4191
  %v4235 = vsel %vm3423, %v4028, 0
  %v4238 = vsel %vm3423, %v4032, 0
  %v4241 = vsel %vm3423, %v4036, 0
  %v4244 = vsel %vm3423, %v4040, 0
  %v4247 = vsel %vm3423, %v4044, 0
  %v4250 = vsel %vm3423, %v4048, 0
  %v4253 = vsel %vm3423, %v4052, 0
  %v4256 = vsel %vm3423, %v4056, 0
  %v4259 = vsel %vm3423, %v4060, 0
  %v4262 = vsel %vm3423, %v4064, 0
  %v4265 = vsel %vm3423, %v4068, 0
  %v4268 = vsel %vm3423, %v4072, 0
  %v4271 = vsel %vm3423, %v4076, 0
  %v4274 = vsel %vm3423, %v4080, 0
  %v4277 = vsel %vm3423, %v4084, 0
  %v4279 = vsel %vm3423, %v4106, 0
  %v4282 = vsel %vm3471, %v4212, 0
  %v4285 = vsel %vm3471, %v4213, 0
  %4287 = vmatprep.subr.bf16.mxu0 %v4193
  %4288 = vmatpush1.bf16.msra.mxu0 %v4192
  %4289 = vmatprep.subr.bf16.mxu0 %v4195
  %4290 = vmatpush1.bf16.msra.mxu0 %v4194
  %4291 = vmatprep.subr.bf16.mxu0 %v4197
  %4292 = vmatpush1.bf16.msra.mxu0 %v4196
  %4293 = vmatprep.subr.bf16.mxu0 %v4199
  %4294 = vmatpush1.bf16.msra.mxu0 %v4198
  %4295 = vmatprep.subr.bf16.mxu0 %v4201
  %4296 = vmatpush1.bf16.msra.mxu0 %v4200
  %4297 = vmatprep.subr.bf16.mxu0 %v4203
  %4298 = vmatpush1.bf16.msra.mxu0 %v4202
  %4299 = vmatprep.subr.bf16.mxu0 %v4205
  %4300 = vmatpush1.bf16.msra.mxu0 %v4204
  %4301 = vmatprep.subr.bf16.mxu0 %v4207
  %4302 = vmatpush1.bf16.msra.mxu0 %v4206
  %4303 = vmatprep.subr.bf16.mxu0 %v4209
  %4304 = vmatpush1.bf16.msra.mxu0 %v4208
  %4305 = vmatprep.subr.bf16.mxu0 %v4211
  %4306 = vmatpush1.bf16.msra.mxu0 %v4210
  %4307 = vmatprep.subr.bf16.mxu0 %v4285
  %4308 = vmatpush1.bf16.msra.mxu0 %v4282
  %4309 = vmatprep.subr.bf16.mxu0 0
  %4310 = vmatpush1.bf16.msra.mxu0 0
  %4311 = vmatprep.subr.bf16.mxu0 0
  %4312 = vmatpush1.bf16.msra.mxu0 0
  %4313 = vmatprep.subr.bf16.mxu0 0
  %4314 = vmatpush1.bf16.msra.mxu0 0
  %4315 = vmatprep.subr.bf16.mxu0 0
  %4316 = vmatpush1.bf16.msra.mxu0 0
  %4317 = vmatprep.subr.bf16.mxu0 0
  %4318 = vmatpush1.bf16.msra.mxu0 0
  %4319 = vmatprep.mubr.bf16.mxu0 %v4235
  %4320 = vmatmul.mubr.bf16.gmra.mrb[0].mxu0 %v4025
  %v4321 = vpop.f32.mrb[0].mxu0
  %v4322 = vadd.f32 0.0, %v4321
  %v4323 = vpop.f32.mrb[0].mxu0
  %v4324 = vadd.f32 0.0, %v4323
  %v4325 = vpop.f32.mrb[0].mxu0
  %v4326 = vadd.f32 0.0, %v4325
  %v4327 = vpop.f32.mrb[0].mxu0
  %v4328 = vadd.f32 0.0, %v4327
  %4329 = vmatprep.mubr.bf16.mxu0 %v4238
  %4330 = vmatmul.mubr.bf16.gmra.mrb[0].mxu0 %v4030
  %v4331 = vpop.f32.mrb[0].mxu0
  %v4332 = vadd.f32 0.0, %v4331
  %v4333 = vpop.f32.mrb[0].mxu0
  %v4334 = vadd.f32 0.0, %v4333
  %v4335 = vpop.f32.mrb[0].mxu0
  %v4336 = vadd.f32 0.0, %v4335
  %v4337 = vpop.f32.mrb[0].mxu0
  %v4338 = vadd.f32 0.0, %v4337
  %4339 = vmatprep.mubr.bf16.mxu0 %v4241
  %4340 = vmatmul.mubr.bf16.gmra.mrb[0].mxu0 %v4034
  %v4341 = vpop.f32.mrb[0].mxu0
  %v4342 = vadd.f32 0.0, %v4341
  %v4343 = vpop.f32.mrb[0].mxu0
  %v4344 = vadd.f32 0.0, %v4343
  %v4345 = vpop.f32.mrb[0].mxu0
  %v4346 = vadd.f32 0.0, %v4345
  %v4347 = vpop.f32.mrb[0].mxu0
  %v4348 = vadd.f32 0.0, %v4347
  %4349 = vmatprep.mubr.bf16.mxu0 %v4244
  %4350 = vmatmul.mubr.bf16.gmra.mrb[0].mxu0 %v4038
  %v4351 = vpop.f32.mrb[0].mxu0
  %v4352 = vadd.f32 0.0, %v4351
  %v4353 = vpop.f32.mrb[0].mxu0
  %v4354 = vadd.f32 0.0, %v4353
  %v4355 = vpop.f32.mrb[0].mxu0
  %v4356 = vadd.f32 0.0, %v4355
  %v4357 = vpop.f32.mrb[0].mxu0
  %v4358 = vadd.f32 0.0, %v4357
  %4359 = vmatprep.mubr.bf16.mxu0 %v4247
  %4360 = vmatmul.mubr.bf16.gmra.mrb[0].mxu0 %v4042
  %v4361 = vpop.f32.mrb[0].mxu0
  %v4362 = vadd.f32 0.0, %v4361
  %v4363 = vpop.f32.mrb[0].mxu0
  %v4364 = vadd.f32 0.0, %v4363
  %v4365 = vpop.f32.mrb[0].mxu0
  %v4366 = vadd.f32 0.0, %v4365
  %v4367 = vpop.f32.mrb[0].mxu0
  %v4368 = vadd.f32 0.0, %v4367
  %4369 = vmatprep.mubr.bf16.mxu0 %v4250
  %4370 = vmatmul.mubr.bf16.gmra.mrb[0].mxu0 %v4046
  %v4371 = vpop.f32.mrb[0].mxu0
  %v4372 = vadd.f32 0.0, %v4371
  %v4373 = vpop.f32.mrb[0].mxu0
  %v4374 = vadd.f32 0.0, %v4373
  %v4375 = vpop.f32.mrb[0].mxu0
  %v4376 = vadd.f32 0.0, %v4375
  %v4377 = vpop.f32.mrb[0].mxu0
  %v4378 = vadd.f32 0.0, %v4377
  %4379 = vmatprep.mubr.bf16.mxu0 %v4253
  %4380 = vmatmul.mubr.bf16.gmra.mrb[0].mxu0 %v4050
  %v4381 = vpop.f32.mrb[0].mxu0
  %v4382 = vadd.f32 0.0, %v4381
  %v4383 = vpop.f32.mrb[0].mxu0
  %v4384 = vadd.f32 0.0, %v4383
  %v4385 = vpop.f32.mrb[0].mxu0
  %v4386 = vadd.f32 0.0, %v4385
  %v4387 = vpop.f32.mrb[0].mxu0
  %v4388 = vadd.f32 0.0, %v4387
  %4389 = vmatprep.mubr.bf16.mxu0 %v4256
  %4390 = vmatmul.mubr.bf16.gmra.mrb[0].mxu0 %v4054
  %v4391 = vpop.f32.mrb[0].mxu0
  %v4392 = vadd.f32 0.0, %v4391
  %v4393 = vpop.f32.mrb[0].mxu0
  %v4394 = vadd.f32 0.0, %v4393
  %v4395 = vpop.f32.mrb[0].mxu0
  %v4396 = vadd.f32 0.0, %v4395
  %v4397 = vpop.f32.mrb[0].mxu0
  %v4398 = vadd.f32 0.0, %v4397
  %4399 = vmatprep.mubr.bf16.mxu0 %v4259
  %4400 = vmatmul.mubr.bf16.gmra.mrb[0].mxu0 %v4058
  %v4401 = vpop.f32.mrb[0].mxu0
  %v4402 = vadd.f32 0.0, %v4401
  %v4403 = vpop.f32.mrb[0].mxu0
  %v4404 = vadd.f32 0.0, %v4403
  %v4405 = vpop.f32.mrb[0].mxu0
  %v4406 = vadd.f32 0.0, %v4405
  %v4407 = vpop.f32.mrb[0].mxu0
  %v4408 = vadd.f32 0.0, %v4407
  %4409 = vmatprep.mubr.bf16.mxu0 %v4262
  %4410 = vmatmul.mubr.bf16.gmra.mrb[0].mxu0 %v4062
  %v4411 = vpop.f32.mrb[0].mxu0
  %v4412 = vadd.f32 0.0, %v4411
  %v4413 = vpop.f32.mrb[0].mxu0
  %v4414 = vadd.f32 0.0, %v4413
  %v4415 = vpop.f32.mrb[0].mxu0
  %v4416 = vadd.f32 0.0, %v4415
  %v4417 = vpop.f32.mrb[0].mxu0
  %v4418 = vadd.f32 0.0, %v4417
  %4419 = vmatprep.mubr.bf16.mxu0 %v4265
  %4420 = vmatmul.mubr.bf16.gmra.mrb[0].mxu0 %v4066
  %v4421 = vpop.f32.mrb[0].mxu0
  %v4422 = vadd.f32 0.0, %v4421
  %v4423 = vpop.f32.mrb[0].mxu0
  %v4424 = vadd.f32 0.0, %v4423
  %v4425 = vpop.f32.mrb[0].mxu0
  %v4426 = vadd.f32 0.0, %v4425
  %v4427 = vpop.f32.mrb[0].mxu0
  %v4428 = vadd.f32 0.0, %v4427
  %4429 = vmatprep.mubr.bf16.mxu0 %v4268
  %4430 = vmatmul.mubr.bf16.gmra.mrb[0].mxu0 %v4070
  %v4431 = vpop.f32.mrb[0].mxu0
  %v4432 = vadd.f32 0.0, %v4431
  %v4433 = vpop.f32.mrb[0].mxu0
  %v4434 = vadd.f32 0.0, %v4433
  %v4435 = vpop.f32.mrb[0].mxu0
  %v4436 = vadd.f32 0.0, %v4435
  %v4437 = vpop.f32.mrb[0].mxu0
  %v4438 = vadd.f32 0.0, %v4437
  %4439 = vmatprep.mubr.bf16.mxu0 %v4271
  %4440 = vmatmul.mubr.bf16.gmra.mrb[0].mxu0 %v4074
  %v4441 = vpop.f32.mrb[0].mxu0
  %v4442 = vadd.f32 0.0, %v4441
  %v4443 = vpop.f32.mrb[0].mxu0
  %v4444 = vadd.f32 0.0, %v4443
  %v4445 = vpop.f32.mrb[0].mxu0
  %v4446 = vadd.f32 0.0, %v4445
  %v4447 = vpop.f32.mrb[0].mxu0
  %v4448 = vadd.f32 0.0, %v4447
  %4449 = vmatprep.mubr.bf16.mxu0 %v4274
  %4450 = vmatmul.mubr.bf16.gmra.mrb[0].mxu0 %v4078
  %v4451 = vpop.f32.mrb[0].mxu0
  %v4452 = vadd.f32 0.0, %v4451
  %v4453 = vpop.f32.mrb[0].mxu0
  %v4454 = vadd.f32 0.0, %v4453
  %v4455 = vpop.f32.mrb[0].mxu0
  %v4456 = vadd.f32 0.0, %v4455
  %v4457 = vpop.f32.mrb[0].mxu0
  %v4458 = vadd.f32 0.0, %v4457
  %4459 = vmatprep.mubr.bf16.mxu0 %v4277
  %4460 = vmatmul.mubr.bf16.gmra.mrb[0].mxu0 %v4082
  %v4461 = vpop.f32.mrb[0].mxu0
  %v4462 = vadd.f32 0.0, %v4461
  %v4463 = vpop.f32.mrb[0].mxu0
  %v4464 = vadd.f32 0.0, %v4463
  %v4465 = vpop.f32.mrb[0].mxu0
  %v4466 = vadd.f32 0.0, %v4465
  %v4467 = vpop.f32.mrb[0].mxu0
  %v4468 = vadd.f32 0.0, %v4467
  %4469 = vmatprep.mubr.bf16.mxu0 %v4279
  %4470 = vmatmul.mubr.bf16.gmra.mrb[0].mxu0 %v4102
  %v4471 = vpop.f32.mrb[0].mxu0
  %v4472 = vadd.f32 0.0, %v4471
  %v4473 = vpop.f32.mrb[0].mxu0
  %v4474 = vadd.f32 0.0, %v4473
  %v4475 = vpop.f32.mrb[0].mxu0
  %v4476 = vadd.f32 0.0, %v4475
  %v4477 = vpop.f32.mrb[0].mxu0
  %v4478 = vadd.f32 0.0, %v4477
  %4479 = vdwg.mxu0
  %v4480 = vadd.f32 %v3865, %v4322
  %v4481 = vadd.f32 %v3867, %v4324
  %v4482 = vadd.f32 %v3869, %v4326
  %v4483 = vadd.f32 %v3871, %v4328
  %v4484 = vadd.f32 %v3875, %v4332
  %v4485 = vadd.f32 %v3877, %v4334
  %v4486 = vadd.f32 %v3879, %v4336
  %v4487 = vadd.f32 %v3881, %v4338
  %v4488 = vadd.f32 %v3885, %v4342
  %v4489 = vadd.f32 %v3887, %v4344
  %v4490 = vadd.f32 %v3889, %v4346
  %v4491 = vadd.f32 %v3891, %v4348
  %v4492 = vadd.f32 %v3895, %v4352
  %v4493 = vadd.f32 %v3897, %v4354
  %v4494 = vadd.f32 %v3899, %v4356
  %v4495 = vadd.f32 %v3901, %v4358
  %v4496 = vadd.f32 %v3905, %v4362
  %v4497 = vadd.f32 %v3907, %v4364
  %v4498 = vadd.f32 %v3909, %v4366
  %v4499 = vadd.f32 %v3911, %v4368
  %v4500 = vadd.f32 %v3915, %v4372
  %v4501 = vadd.f32 %v3917, %v4374
  %v4502 = vadd.f32 %v3919, %v4376
  %v4503 = vadd.f32 %v3921, %v4378
  %v4504 = vadd.f32 %v3925, %v4382
  %v4505 = vadd.f32 %v3927, %v4384
  %v4506 = vadd.f32 %v3929, %v4386
  %v4507 = vadd.f32 %v3931, %v4388
  %v4508 = vadd.f32 %v3935, %v4392
  %v4509 = vadd.f32 %v3937, %v4394
  %v4510 = vadd.f32 %v3939, %v4396
  %v4511 = vadd.f32 %v3941, %v4398
  %v4512 = vadd.f32 %v3945, %v4402
  %v4513 = vadd.f32 %v3947, %v4404
  %v4514 = vadd.f32 %v3949, %v4406
  %v4515 = vadd.f32 %v3951, %v4408
  %v4516 = vadd.f32 %v3955, %v4412
  %v4517 = vadd.f32 %v3957, %v4414
  %v4518 = vadd.f32 %v3959, %v4416
  %v4519 = vadd.f32 %v3961, %v4418
  %v4520 = vadd.f32 %v3965, %v4422
  %v4521 = vadd.f32 %v3967, %v4424
  %v4522 = vadd.f32 %v3969, %v4426
  %v4523 = vadd.f32 %v3971, %v4428
  %v4524 = vadd.f32 %v3975, %v4432
  %v4525 = vadd.f32 %v3977, %v4434
  %v4526 = vadd.f32 %v3979, %v4436
  %v4527 = vadd.f32 %v3981, %v4438
  %v4528 = vadd.f32 %v3985, %v4442
  %v4529 = vadd.f32 %v3987, %v4444
  %v4530 = vadd.f32 %v3989, %v4446
  %v4531 = vadd.f32 %v3991, %v4448
  %v4532 = vadd.f32 %v3995, %v4452
  %v4533 = vadd.f32 %v3997, %v4454
  %v4534 = vadd.f32 %v3999, %v4456
  %v4535 = vadd.f32 %v4001, %v4458
  %v4536 = vadd.f32 %v4005, %v4462
  %v4537 = vadd.f32 %v4007, %v4464
  %v4538 = vadd.f32 %v4009, %v4466
  %v4539 = vadd.f32 %v4011, %v4468
  %v4540 = vadd.f32 %v4015, %v4472
  %v4541 = vadd.f32 %v4017, %v4474
  %v4542 = vadd.f32 %v4019, %v4476
  %v4543 = vadd.f32 %v4021, %v4478
  %vm4544 = vcmask 1044480
  %v4545 = vrot.slane %v3127, 3
  %v4546 = vrot.slane %v3129, 3
  %v4547 = vsel %vm4544, %v4545, %v4546
  %v4548 = vrot.slane %v3128, 3
  %v4549 = vrot.slane %v3130, 3
  %v4550 = vsel %vm4544, %v4548, %v4549
  %v4551 = vrot.slane %v3131, 3
  %v4552 = vsel %vm4544, %v4546, %v4551
  %v4553 = vrot.slane %v3132, 3
  %v4554 = vsel %vm4544, %v4549, %v4553
  %v4555 = vrot.slane %v3133, 3
  %v4556 = vsel %vm4544, %v4551, %v4555
  %v4557 = vrot.slane %v3134, 3
  %v4558 = vsel %vm4544, %v4553, %v4557
  %v4559 = vrot.slane %v3135, 3
  %v4560 = vsel %vm4544, %v4555, %v4559
  %v4561 = vrot.slane %v3136, 3
  %v4562 = vsel %vm4544, %v4557, %v4561
  %v4563 = vrot.slane %v3137, 3
  %v4564 = vsel %vm4544, %v4559, %v4563
  %v4565 = vrot.slane %v3138, 3
  %v4566 = vsel %vm4544, %v4561, %v4565
  %v4567 = vrot.slane %v3139, 3
  %v4568 = vsel %vm4544, %v4563, %v4567
  %v4569 = vrot.slane %v3140, 3
  %v4570 = vsel %vm4544, %v4565, %v4569
  %v4571 = vrot.slane %v3141, 3
  %v4572 = vsel %vm4544, %v4567, %v4571
  %v4573 = vrot.slane %v3142, 3
  %v4574 = vsel %vm4544, %v4569, %v4573
  %v4575 = vrot.slane %v3143, 3
  %v4576 = vsel %vm4544, %v4571, %v4575
  %v4577 = vrot.slane %v3144, 3
  %v4578 = vsel %vm4544, %v4573, %v4577
  %v4579 = vrot.slane %v3145, 3
  %v4580 = vsel %vm4544, %v4575, %v4579
  %v4581 = vrot.slane %v3146, 3
  %v4582 = vsel %vm4544, %v4577, %v4581
  %v4583 = vrot.slane %v3147, 3
  %v4584 = vsel %vm4544, %v4579, %v4583
  %v4585 = vrot.slane %v3148, 3
  %v4586 = vsel %vm4544, %v4581, %v4585
  %v4587 = vrot.slane %v3149, 3
  %v4588 = vsel %vm4544, %v4583, %v4587
  %v4589 = vrot.slane %v3150, 3
  %v4590 = vsel %vm4544, %v4585, %v4589
  %v4591 = vrot.slane %v3151, 3
  %v4592 = vsel %vm4544, %v4587, %v4591
  %v4593 = vrot.slane %v3152, 3
  %v4594 = vsel %vm4544, %v4589, %v4593
  %v4595 = vrot.slane %v3153, 3
  %v4596 = vsel %vm4544, %v4591, %v4595
  %v4597 = vrot.slane %v3154, 3
  %v4598 = vsel %vm4544, %v4593, %v4597
  %v4599 = vrot.slane %v3155, 3
  %v4600 = vsel %vm4544, %v4595, %v4599
  %v4601 = vrot.slane %v3156, 3
  %v4602 = vsel %vm4544, %v4597, %v4601
  %v4603 = vrot.slane %v3157, 3
  %v4604 = vsel %vm4544, %v4599, %v4603
  %v4605 = vrot.slane %v3158, 3
  %v4606 = vsel %vm4544, %v4601, %v4605
  %vm4622 = vcmask 1044480
  %v4625 = vsel %vm4622, %v4603, %v4545
  %v4629 = vsel %vm4622, %v4605, %v4548
  %s4630 = scalar_lea.vmem %s3, 504
  %v4631 = vld [vmem:[%s4630] sm:$0xff]
  %v4632 = vld [vmem:[%s4630 + $0x8] sm:$0xff]
  %v4633 = vld [vmem:[%s4630 + $0x10] sm:$0xff]
  %v4634 = vld [vmem:[%s4630 + $0x18] sm:$0xff]
  %v4635 = vld [vmem:[%s4630 + $0x20] sm:$0xff]
  %v4636 = vld [vmem:[%s4630 + $0x28] sm:$0xff]
  %v4637 = vld [vmem:[%s4630 + $0x30] sm:$0xff]
  %v4638 = vld [vmem:[%s4630 + $0x38] sm:$0xff]
  %v4639 = vld [vmem:[%s4630 + $0x40] sm:$0xff]
  %v4640 = vld [vmem:[%s4630 + $0x48] sm:$0xff]
  %v4641 = vld [vmem:[%s4630 + $0x50] sm:$0xff]
  %v4642 = vld [vmem:[%s4630 + $0x58] sm:$0xff]
  %v4643 = vld [vmem:[%s4630 + $0x60] sm:$0xff]
  %v4644 = vld [vmem:[%s4630 + $0x68] sm:$0xff]
  %v4645 = vld [vmem:[%s4630 + $0x70] sm:$0xff]
  %v4646 = vld [vmem:[%s4630 + $0x78] sm:$0xff]
  %v4647 = vld [vmem:[%s4630 + $0x80] sm:$0xff]
  %v4648 = vld [vmem:[%s4630 + $0x88] sm:$0xff]
  %v4649 = vld [vmem:[%s4630 + $0x90] sm:$0xff]
  %v4650 = vld [vmem:[%s4630 + $0x98] sm:$0xff]
  %v4651 = vld [vmem:[%s4630 + $0xa0] sm:$0xff]
  %v4673 = vunpack.c.l.b16 %v4631
  %v4674 = vunpack.c.h.b16 %v4631
  %v4675 = vunpack.c.l.b16 %v4632
  %v4676 = vunpack.c.h.b16 %v4632
  %v4677 = vunpack.c.l.b16 %v4633
  %v4678 = vunpack.c.h.b16 %v4633
  %v4679 = vunpack.c.l.b16 %v4634
  %v4680 = vunpack.c.h.b16 %v4634
  %v4681 = vunpack.c.l.b16 %v4635
  %v4682 = vunpack.c.h.b16 %v4635
  %v4683 = vunpack.c.l.b16 %v4636
  %v4684 = vunpack.c.h.b16 %v4636
  %v4685 = vunpack.c.l.b16 %v4637
  %v4686 = vunpack.c.h.b16 %v4637
  %v4687 = vunpack.c.l.b16 %v4638
  %v4688 = vunpack.c.h.b16 %v4638
  %v4689 = vunpack.c.l.b16 %v4639
  %v4690 = vunpack.c.h.b16 %v4639
  %v4691 = vunpack.c.l.b16 %v4640
  %v4692 = vunpack.c.h.b16 %v4640
  %v4693 = vunpack.c.l.b16 %v4641
  %v4694 = vunpack.c.h.b16 %v4641
  %v4695 = vunpack.c.l.b16 %v4642
  %v4696 = vunpack.c.h.b16 %v4642
  %v4697 = vunpack.c.l.b16 %v4643
  %v4698 = vunpack.c.h.b16 %v4643
  %v4699 = vunpack.c.l.b16 %v4644
  %v4700 = vunpack.c.h.b16 %v4644
  %v4701 = vunpack.c.l.b16 %v4645
  %v4702 = vunpack.c.h.b16 %v4645
  %v4703 = vunpack.c.l.b16 %v4646
  %v4704 = vunpack.c.h.b16 %v4646
  %v4705 = vunpack.c.l.b16 %v4647
  %v4706 = vunpack.c.h.b16 %v4647
  %v4707 = vunpack.c.l.b16 %v4648
  %v4708 = vunpack.c.h.b16 %v4648
  %v4709 = vunpack.c.l.b16 %v4649
  %v4710 = vunpack.c.h.b16 %v4649
  %v4711 = vunpack.c.l.b16 %v4650
  %v4712 = vunpack.c.h.b16 %v4650
  %v4713 = vunpack.c.l.b16 %v4651
  %v4714 = vunpack.c.h.b16 %v4651
  %v4715 = vpack.c.b16 %v4675, %v4673
  %v4716 = vpack.c.b16 %v4676, %v4674
  %v4717 = vpack.c.b16 %v4679, %v4677
  %v4718 = vpack.c.b16 %v4680, %v4678
  %v4719 = vpack.c.b16 %v4683, %v4681
  %v4720 = vpack.c.b16 %v4684, %v4682
  %v4721 = vpack.c.b16 %v4687, %v4685
  %v4722 = vpack.c.b16 %v4688, %v4686
  %v4723 = vpack.c.b16 %v4691, %v4689
  %v4724 = vpack.c.b16 %v4692, %v4690
  %v4725 = vpack.c.b16 %v4695, %v4693
  %v4726 = vpack.c.b16 %v4696, %v4694
  %v4727 = vpack.c.b16 %v4699, %v4697
  %v4728 = vpack.c.b16 %v4700, %v4698
  %v4729 = vpack.c.b16 %v4703, %v4701
  %v4730 = vpack.c.b16 %v4704, %v4702
  %v4731 = vpack.c.b16 %v4707, %v4705
  %v4732 = vpack.c.b16 %v4708, %v4706
  %v4733 = vpack.c.b16 %v4711, %v4709
  %v4734 = vpack.c.b16 %v4712, %v4710
  %v4735 = vpack.c.b16 %v4713, %v4713
  %v4736 = vpack.c.b16 %v4714, %v4714
  %v4758 = vsel %vm3423, %v4550, 0
  %v4761 = vsel %vm3423, %v4554, 0
  %v4764 = vsel %vm3423, %v4558, 0
  %v4767 = vsel %vm3423, %v4562, 0
  %v4770 = vsel %vm3423, %v4566, 0
  %v4773 = vsel %vm3423, %v4570, 0
  %v4776 = vsel %vm3423, %v4574, 0
  %v4779 = vsel %vm3423, %v4578, 0
  %v4782 = vsel %vm3423, %v4582, 0
  %v4785 = vsel %vm3423, %v4586, 0
  %v4788 = vsel %vm3423, %v4590, 0
  %v4791 = vsel %vm3423, %v4594, 0
  %v4794 = vsel %vm3423, %v4598, 0
  %v4797 = vsel %vm3423, %v4602, 0
  %v4800 = vsel %vm3423, %v4606, 0
  %v4802 = vsel %vm3423, %v4629, 0
  %v4805 = vsel %vm3471, %v4735, 0
  %v4808 = vsel %vm3471, %v4736, 0
  %4810 = vmatprep.subr.bf16.mxu0 %v4716
  %4811 = vmatpush1.bf16.msra.mxu0 %v4715
  %4812 = vmatprep.subr.bf16.mxu0 %v4718
  %4813 = vmatpush1.bf16.msra.mxu0 %v4717
  %4814 = vmatprep.subr.bf16.mxu0 %v4720
  %4815 = vmatpush1.bf16.msra.mxu0 %v4719
  %4816 = vmatprep.subr.bf16.mxu0 %v4722
  %4817 = vmatpush1.bf16.msra.mxu0 %v4721
  %4818 = vmatprep.subr.bf16.mxu0 %v4724
  %4819 = vmatpush1.bf16.msra.mxu0 %v4723
  %4820 = vmatprep.subr.bf16.mxu0 %v4726
  %4821 = vmatpush1.bf16.msra.mxu0 %v4725
  %4822 = vmatprep.subr.bf16.mxu0 %v4728
  %4823 = vmatpush1.bf16.msra.mxu0 %v4727
  %4824 = vmatprep.subr.bf16.mxu0 %v4730
  %4825 = vmatpush1.bf16.msra.mxu0 %v4729
  %4826 = vmatprep.subr.bf16.mxu0 %v4732
  %4827 = vmatpush1.bf16.msra.mxu0 %v4731
  %4828 = vmatprep.subr.bf16.mxu0 %v4734
  %4829 = vmatpush1.bf16.msra.mxu0 %v4733
  %4830 = vmatprep.subr.bf16.mxu0 %v4808
  %4831 = vmatpush1.bf16.msra.mxu0 %v4805
  %4832 = vmatprep.subr.bf16.mxu0 0
  %4833 = vmatpush1.bf16.msra.mxu0 0
  %4834 = vmatprep.subr.bf16.mxu0 0
  %4835 = vmatpush1.bf16.msra.mxu0 0
  %4836 = vmatprep.subr.bf16.mxu0 0
  %4837 = vmatpush1.bf16.msra.mxu0 0
  %4838 = vmatprep.subr.bf16.mxu0 0
  %4839 = vmatpush1.bf16.msra.mxu0 0
  %4840 = vmatprep.subr.bf16.mxu0 0
  %4841 = vmatpush1.bf16.msra.mxu0 0
  %4842 = vmatprep.mubr.bf16.mxu0 %v4758
  %4843 = vmatmul.mubr.bf16.gmra.mrb[0].mxu0 %v4547
  %v4844 = vpop.f32.mrb[0].mxu0
  %v4845 = vadd.f32 0.0, %v4844
  %v4846 = vpop.f32.mrb[0].mxu0
  %v4847 = vadd.f32 0.0, %v4846
  %v4848 = vpop.f32.mrb[0].mxu0
  %v4849 = vadd.f32 0.0, %v4848
  %v4850 = vpop.f32.mrb[0].mxu0
  %v4851 = vadd.f32 0.0, %v4850
  %4852 = vmatprep.mubr.bf16.mxu0 %v4761
  %4853 = vmatmul.mubr.bf16.gmra.mrb[0].mxu0 %v4552
  %v4854 = vpop.f32.mrb[0].mxu0
  %v4855 = vadd.f32 0.0, %v4854
  %v4856 = vpop.f32.mrb[0].mxu0
  %v4857 = vadd.f32 0.0, %v4856
  %v4858 = vpop.f32.mrb[0].mxu0
  %v4859 = vadd.f32 0.0, %v4858
  %v4860 = vpop.f32.mrb[0].mxu0
  %v4861 = vadd.f32 0.0, %v4860
  %4862 = vmatprep.mubr.bf16.mxu0 %v4764
  %4863 = vmatmul.mubr.bf16.gmra.mrb[0].mxu0 %v4556
  %v4864 = vpop.f32.mrb[0].mxu0
  %v4865 = vadd.f32 0.0, %v4864
  %v4866 = vpop.f32.mrb[0].mxu0
  %v4867 = vadd.f32 0.0, %v4866
  %v4868 = vpop.f32.mrb[0].mxu0
  %v4869 = vadd.f32 0.0, %v4868
  %v4870 = vpop.f32.mrb[0].mxu0
  %v4871 = vadd.f32 0.0, %v4870
  %4872 = vmatprep.mubr.bf16.mxu0 %v4767
  %4873 = vmatmul.mubr.bf16.gmra.mrb[0].mxu0 %v4560
  %v4874 = vpop.f32.mrb[0].mxu0
  %v4875 = vadd.f32 0.0, %v4874
  %v4876 = vpop.f32.mrb[0].mxu0
  %v4877 = vadd.f32 0.0, %v4876
  %v4878 = vpop.f32.mrb[0].mxu0
  %v4879 = vadd.f32 0.0, %v4878
  %v4880 = vpop.f32.mrb[0].mxu0
  %v4881 = vadd.f32 0.0, %v4880
  %4882 = vmatprep.mubr.bf16.mxu0 %v4770
  %4883 = vmatmul.mubr.bf16.gmra.mrb[0].mxu0 %v4564
  %v4884 = vpop.f32.mrb[0].mxu0
  %v4885 = vadd.f32 0.0, %v4884
  %v4886 = vpop.f32.mrb[0].mxu0
  %v4887 = vadd.f32 0.0, %v4886
  %v4888 = vpop.f32.mrb[0].mxu0
  %v4889 = vadd.f32 0.0, %v4888
  %v4890 = vpop.f32.mrb[0].mxu0
  %v4891 = vadd.f32 0.0, %v4890
  %4892 = vmatprep.mubr.bf16.mxu0 %v4773
  %4893 = vmatmul.mubr.bf16.gmra.mrb[0].mxu0 %v4568
  %v4894 = vpop.f32.mrb[0].mxu0
  %v4895 = vadd.f32 0.0, %v4894
  %v4896 = vpop.f32.mrb[0].mxu0
  %v4897 = vadd.f32 0.0, %v4896
  %v4898 = vpop.f32.mrb[0].mxu0
  %v4899 = vadd.f32 0.0, %v4898
  %v4900 = vpop.f32.mrb[0].mxu0
  %v4901 = vadd.f32 0.0, %v4900
  %4902 = vmatprep.mubr.bf16.mxu0 %v4776
  %4903 = vmatmul.mubr.bf16.gmra.mrb[0].mxu0 %v4572
  %v4904 = vpop.f32.mrb[0].mxu0
  %v4905 = vadd.f32 0.0, %v4904
  %v4906 = vpop.f32.mrb[0].mxu0
  %v4907 = vadd.f32 0.0, %v4906
  %v4908 = vpop.f32.mrb[0].mxu0
  %v4909 = vadd.f32 0.0, %v4908
  %v4910 = vpop.f32.mrb[0].mxu0
  %v4911 = vadd.f32 0.0, %v4910
  %4912 = vmatprep.mubr.bf16.mxu0 %v4779
  %4913 = vmatmul.mubr.bf16.gmra.mrb[0].mxu0 %v4576
  %v4914 = vpop.f32.mrb[0].mxu0
  %v4915 = vadd.f32 0.0, %v4914
  %v4916 = vpop.f32.mrb[0].mxu0
  %v4917 = vadd.f32 0.0, %v4916
  %v4918 = vpop.f32.mrb[0].mxu0
  %v4919 = vadd.f32 0.0, %v4918
  %v4920 = vpop.f32.mrb[0].mxu0
  %v4921 = vadd.f32 0.0, %v4920
  %4922 = vmatprep.mubr.bf16.mxu0 %v4782
  %4923 = vmatmul.mubr.bf16.gmra.mrb[0].mxu0 %v4580
  %v4924 = vpop.f32.mrb[0].mxu0
  %v4925 = vadd.f32 0.0, %v4924
  %v4926 = vpop.f32.mrb[0].mxu0
  %v4927 = vadd.f32 0.0, %v4926
  %v4928 = vpop.f32.mrb[0].mxu0
  %v4929 = vadd.f32 0.0, %v4928
  %v4930 = vpop.f32.mrb[0].mxu0
  %v4931 = vadd.f32 0.0, %v4930
  %4932 = vmatprep.mubr.bf16.mxu0 %v4785
  %4933 = vmatmul.mubr.bf16.gmra.mrb[0].mxu0 %v4584
  %v4934 = vpop.f32.mrb[0].mxu0
  %v4935 = vadd.f32 0.0, %v4934
  %v4936 = vpop.f32.mrb[0].mxu0
  %v4937 = vadd.f32 0.0, %v4936
  %v4938 = vpop.f32.mrb[0].mxu0
  %v4939 = vadd.f32 0.0, %v4938
  %v4940 = vpop.f32.mrb[0].mxu0
  %v4941 = vadd.f32 0.0, %v4940
  %4942 = vmatprep.mubr.bf16.mxu0 %v4788
  %4943 = vmatmul.mubr.bf16.gmra.mrb[0].mxu0 %v4588
  %v4944 = vpop.f32.mrb[0].mxu0
  %v4945 = vadd.f32 0.0, %v4944
  %v4946 = vpop.f32.mrb[0].mxu0
  %v4947 = vadd.f32 0.0, %v4946
  %v4948 = vpop.f32.mrb[0].mxu0
  %v4949 = vadd.f32 0.0, %v4948
  %v4950 = vpop.f32.mrb[0].mxu0
  %v4951 = vadd.f32 0.0, %v4950
  %4952 = vmatprep.mubr.bf16.mxu0 %v4791
  %4953 = vmatmul.mubr.bf16.gmra.mrb[0].mxu0 %v4592
  %v4954 = vpop.f32.mrb[0].mxu0
  %v4955 = vadd.f32 0.0, %v4954
  %v4956 = vpop.f32.mrb[0].mxu0
  %v4957 = vadd.f32 0.0, %v4956
  %v4958 = vpop.f32.mrb[0].mxu0
  %v4959 = vadd.f32 0.0, %v4958
  %v4960 = vpop.f32.mrb[0].mxu0
  %v4961 = vadd.f32 0.0, %v4960
  %4962 = vmatprep.mubr.bf16.mxu0 %v4794
  %4963 = vmatmul.mubr.bf16.gmra.mrb[0].mxu0 %v4596
  %v4964 = vpop.f32.mrb[0].mxu0
  %v4965 = vadd.f32 0.0, %v4964
  %v4966 = vpop.f32.mrb[0].mxu0
  %v4967 = vadd.f32 0.0, %v4966
  %v4968 = vpop.f32.mrb[0].mxu0
  %v4969 = vadd.f32 0.0, %v4968
  %v4970 = vpop.f32.mrb[0].mxu0
  %v4971 = vadd.f32 0.0, %v4970
  %4972 = vmatprep.mubr.bf16.mxu0 %v4797
  %4973 = vmatmul.mubr.bf16.gmra.mrb[0].mxu0 %v4600
  %v4974 = vpop.f32.mrb[0].mxu0
  %v4975 = vadd.f32 0.0, %v4974
  %v4976 = vpop.f32.mrb[0].mxu0
  %v4977 = vadd.f32 0.0, %v4976
  %v4978 = vpop.f32.mrb[0].mxu0
  %v4979 = vadd.f32 0.0, %v4978
  %v4980 = vpop.f32.mrb[0].mxu0
  %v4981 = vadd.f32 0.0, %v4980
  %4982 = vmatprep.mubr.bf16.mxu0 %v4800
  %4983 = vmatmul.mubr.bf16.gmra.mrb[0].mxu0 %v4604
  %v4984 = vpop.f32.mrb[0].mxu0
  %v4985 = vadd.f32 0.0, %v4984
  %v4986 = vpop.f32.mrb[0].mxu0
  %v4987 = vadd.f32 0.0, %v4986
  %v4988 = vpop.f32.mrb[0].mxu0
  %v4989 = vadd.f32 0.0, %v4988
  %v4990 = vpop.f32.mrb[0].mxu0
  %v4991 = vadd.f32 0.0, %v4990
  %4992 = vmatprep.mubr.bf16.mxu0 %v4802
  %4993 = vmatmul.mubr.bf16.gmra.mrb[0].mxu0 %v4625
  %v4994 = vpop.f32.mrb[0].mxu0
  %v4995 = vadd.f32 0.0, %v4994
  %v4996 = vpop.f32.mrb[0].mxu0
  %v4997 = vadd.f32 0.0, %v4996
  %v4998 = vpop.f32.mrb[0].mxu0
  %v4999 = vadd.f32 0.0, %v4998
  %v5000 = vpop.f32.mrb[0].mxu0
  %v5001 = vadd.f32 0.0, %v5000
  %5002 = vdwg.mxu0
  %v5003 = vadd.f32 %v4480, %v4845
  %v5004 = vadd.f32 %v4481, %v4847
  %v5005 = vadd.f32 %v4482, %v4849
  %v5006 = vadd.f32 %v4483, %v4851
  %v5007 = vadd.f32 %v4484, %v4855
  %v5008 = vadd.f32 %v4485, %v4857
  %v5009 = vadd.f32 %v4486, %v4859
  %v5010 = vadd.f32 %v4487, %v4861
  %v5011 = vadd.f32 %v4488, %v4865
  %v5012 = vadd.f32 %v4489, %v4867
  %v5013 = vadd.f32 %v4490, %v4869
  %v5014 = vadd.f32 %v4491, %v4871
  %v5015 = vadd.f32 %v4492, %v4875
  %v5016 = vadd.f32 %v4493, %v4877
  %v5017 = vadd.f32 %v4494, %v4879
  %v5018 = vadd.f32 %v4495, %v4881
  %v5019 = vadd.f32 %v4496, %v4885
  %v5020 = vadd.f32 %v4497, %v4887
  %v5021 = vadd.f32 %v4498, %v4889
  %v5022 = vadd.f32 %v4499, %v4891
  %v5023 = vadd.f32 %v4500, %v4895
  %v5024 = vadd.f32 %v4501, %v4897
  %v5025 = vadd.f32 %v4502, %v4899
  %v5026 = vadd.f32 %v4503, %v4901
  %v5027 = vadd.f32 %v4504, %v4905
  %v5028 = vadd.f32 %v4505, %v4907
  %v5029 = vadd.f32 %v4506, %v4909
  %v5030 = vadd.f32 %v4507, %v4911
  %v5031 = vadd.f32 %v4508, %v4915
  %v5032 = vadd.f32 %v4509, %v4917
  %v5033 = vadd.f32 %v4510, %v4919
  %v5034 = vadd.f32 %v4511, %v4921
  %v5035 = vadd.f32 %v4512, %v4925
  %v5036 = vadd.f32 %v4513, %v4927
  %v5037 = vadd.f32 %v4514, %v4929
  %v5038 = vadd.f32 %v4515, %v4931
  %v5039 = vadd.f32 %v4516, %v4935
  %v5040 = vadd.f32 %v4517, %v4937
  %v5041 = vadd.f32 %v4518, %v4939
  %v5042 = vadd.f32 %v4519, %v4941
  %v5043 = vadd.f32 %v4520, %v4945
  %v5044 = vadd.f32 %v4521, %v4947
  %v5045 = vadd.f32 %v4522, %v4949
  %v5046 = vadd.f32 %v4523, %v4951
  %v5047 = vadd.f32 %v4524, %v4955
  %v5048 = vadd.f32 %v4525, %v4957
  %v5049 = vadd.f32 %v4526, %v4959
  %v5050 = vadd.f32 %v4527, %v4961
  %v5051 = vadd.f32 %v4528, %v4965
  %v5052 = vadd.f32 %v4529, %v4967
  %v5053 = vadd.f32 %v4530, %v4969
  %v5054 = vadd.f32 %v4531, %v4971
  %v5055 = vadd.f32 %v4532, %v4975
  %v5056 = vadd.f32 %v4533, %v4977
  %v5057 = vadd.f32 %v4534, %v4979
  %v5058 = vadd.f32 %v4535, %v4981
  %v5059 = vadd.f32 %v4536, %v4985
  %v5060 = vadd.f32 %v4537, %v4987
  %v5061 = vadd.f32 %v4538, %v4989
  %v5062 = vadd.f32 %v4539, %v4991
  %v5063 = vadd.f32 %v4540, %v4995
  %v5064 = vadd.f32 %v4541, %v4997
  %v5065 = vadd.f32 %v4542, %v4999
  %v5066 = vadd.f32 %v4543, %v5001
  %vm5067 = vcmask 1043456
  %v5068 = vrot.slane %v3127, 4
  %v5069 = vrot.slane %v3129, 4
  %v5070 = vsel %vm5067, %v5068, %v5069
  %v5071 = vrot.slane %v3128, 4
  %v5072 = vrot.slane %v3130, 4
  %v5073 = vsel %vm5067, %v5071, %v5072
  %v5074 = vrot.slane %v3131, 4
  %v5075 = vsel %vm5067, %v5069, %v5074
  %v5076 = vrot.slane %v3132, 4
  %v5077 = vsel %vm5067, %v5072, %v5076
  %v5078 = vrot.slane %v3133, 4
  %v5079 = vsel %vm5067, %v5074, %v5078
  %v5080 = vrot.slane %v3134, 4
  %v5081 = vsel %vm5067, %v5076, %v5080
  %v5082 = vrot.slane %v3135, 4
  %v5083 = vsel %vm5067, %v5078, %v5082
  %v5084 = vrot.slane %v3136, 4
  %v5085 = vsel %vm5067, %v5080, %v5084
  %v5086 = vrot.slane %v3137, 4
  %v5087 = vsel %vm5067, %v5082, %v5086
  %v5088 = vrot.slane %v3138, 4
  %v5089 = vsel %vm5067, %v5084, %v5088
  %v5090 = vrot.slane %v3139, 4
  %v5091 = vsel %vm5067, %v5086, %v5090
  %v5092 = vrot.slane %v3140, 4
  %v5093 = vsel %vm5067, %v5088, %v5092
  %v5094 = vrot.slane %v3141, 4
  %v5095 = vsel %vm5067, %v5090, %v5094
  %v5096 = vrot.slane %v3142, 4
  %v5097 = vsel %vm5067, %v5092, %v5096
  %v5098 = vrot.slane %v3143, 4
  %v5099 = vsel %vm5067, %v5094, %v5098
  %v5100 = vrot.slane %v3144, 4
  %v5101 = vsel %vm5067, %v5096, %v5100
  %v5102 = vrot.slane %v3145, 4
  %v5103 = vsel %vm5067, %v5098, %v5102
  %v5104 = vrot.slane %v3146, 4
  %v5105 = vsel %vm5067, %v5100, %v5104
  %v5106 = vrot.slane %v3147, 4
  %v5107 = vsel %vm5067, %v5102, %v5106
  %v5108 = vrot.slane %v3148, 4
  %v5109 = vsel %vm5067, %v5104, %v5108
  %v5110 = vrot.slane %v3149, 4
  %v5111 = vsel %vm5067, %v5106, %v5110
  %v5112 = vrot.slane %v3150, 4
  %v5113 = vsel %vm5067, %v5108, %v5112
  %v5114 = vrot.slane %v3151, 4
  %v5115 = vsel %vm5067, %v5110, %v5114
  %v5116 = vrot.slane %v3152, 4
  %v5117 = vsel %vm5067, %v5112, %v5116
  %v5118 = vrot.slane %v3153, 4
  %v5119 = vsel %vm5067, %v5114, %v5118
  %v5120 = vrot.slane %v3154, 4
  %v5121 = vsel %vm5067, %v5116, %v5120
  %v5122 = vrot.slane %v3155, 4
  %v5123 = vsel %vm5067, %v5118, %v5122
  %v5124 = vrot.slane %v3156, 4
  %v5125 = vsel %vm5067, %v5120, %v5124
  %v5126 = vrot.slane %v3157, 4
  %v5127 = vsel %vm5067, %v5122, %v5126
  %v5128 = vrot.slane %v3158, 4
  %v5129 = vsel %vm5067, %v5124, %v5128
  %v5147 = vsel %vm3471, %v5126, %v5068
  %v5151 = vsel %vm3471, %v5128, %v5071
  %s5152 = scalar_lea.vmem %s3, 672
  %v5153 = vld [vmem:[%s5152] sm:$0xff]
  %v5154 = vld [vmem:[%s5152 + $0x8] sm:$0xff]
  %v5155 = vld [vmem:[%s5152 + $0x10] sm:$0xff]
  %v5156 = vld [vmem:[%s5152 + $0x18] sm:$0xff]
  %v5157 = vld [vmem:[%s5152 + $0x20] sm:$0xff]
  %v5158 = vld [vmem:[%s5152 + $0x28] sm:$0xff]
  %v5159 = vld [vmem:[%s5152 + $0x30] sm:$0xff]
  %v5160 = vld [vmem:[%s5152 + $0x38] sm:$0xff]
  %v5161 = vld [vmem:[%s5152 + $0x40] sm:$0xff]
  %v5162 = vld [vmem:[%s5152 + $0x48] sm:$0xff]
  %v5163 = vld [vmem:[%s5152 + $0x50] sm:$0xff]
  %v5164 = vld [vmem:[%s5152 + $0x58] sm:$0xff]
  %v5165 = vld [vmem:[%s5152 + $0x60] sm:$0xff]
  %v5166 = vld [vmem:[%s5152 + $0x68] sm:$0xff]
  %v5167 = vld [vmem:[%s5152 + $0x70] sm:$0xff]
  %v5168 = vld [vmem:[%s5152 + $0x78] sm:$0xff]
  %v5169 = vld [vmem:[%s5152 + $0x80] sm:$0xff]
  %v5170 = vld [vmem:[%s5152 + $0x88] sm:$0xff]
  %v5171 = vld [vmem:[%s5152 + $0x90] sm:$0xff]
  %v5172 = vld [vmem:[%s5152 + $0x98] sm:$0xff]
  %v5173 = vld [vmem:[%s5152 + $0xa0] sm:$0xff]
  %v5195 = vunpack.c.l.b16 %v5153
  %v5196 = vunpack.c.h.b16 %v5153
  %v5197 = vunpack.c.l.b16 %v5154
  %v5198 = vunpack.c.h.b16 %v5154
  %v5199 = vunpack.c.l.b16 %v5155
  %v5200 = vunpack.c.h.b16 %v5155
  %v5201 = vunpack.c.l.b16 %v5156
  %v5202 = vunpack.c.h.b16 %v5156
  %v5203 = vunpack.c.l.b16 %v5157
  %v5204 = vunpack.c.h.b16 %v5157
  %v5205 = vunpack.c.l.b16 %v5158
  %v5206 = vunpack.c.h.b16 %v5158
  %v5207 = vunpack.c.l.b16 %v5159
  %v5208 = vunpack.c.h.b16 %v5159
  %v5209 = vunpack.c.l.b16 %v5160
  %v5210 = vunpack.c.h.b16 %v5160
  %v5211 = vunpack.c.l.b16 %v5161
  %v5212 = vunpack.c.h.b16 %v5161
  %v5213 = vunpack.c.l.b16 %v5162
  %v5214 = vunpack.c.h.b16 %v5162
  %v5215 = vunpack.c.l.b16 %v5163
  %v5216 = vunpack.c.h.b16 %v5163
  %v5217 = vunpack.c.l.b16 %v5164
  %v5218 = vunpack.c.h.b16 %v5164
  %v5219 = vunpack.c.l.b16 %v5165
  %v5220 = vunpack.c.h.b16 %v5165
  %v5221 = vunpack.c.l.b16 %v5166
  %v5222 = vunpack.c.h.b16 %v5166
  %v5223 = vunpack.c.l.b16 %v5167
  %v5224 = vunpack.c.h.b16 %v5167
  %v5225 = vunpack.c.l.b16 %v5168
  %v5226 = vunpack.c.h.b16 %v5168
  %v5227 = vunpack.c.l.b16 %v5169
  %v5228 = vunpack.c.h.b16 %v5169
  %v5229 = vunpack.c.l.b16 %v5170
  %v5230 = vunpack.c.h.b16 %v5170
  %v5231 = vunpack.c.l.b16 %v5171
  %v5232 = vunpack.c.h.b16 %v5171
  %v5233 = vunpack.c.l.b16 %v5172
  %v5234 = vunpack.c.h.b16 %v5172
  %v5235 = vunpack.c.l.b16 %v5173
  %v5236 = vunpack.c.h.b16 %v5173
  %v5237 = vpack.c.b16 %v5197, %v5195
  %v5238 = vpack.c.b16 %v5198, %v5196
  %v5239 = vpack.c.b16 %v5201, %v5199
  %v5240 = vpack.c.b16 %v5202, %v5200
  %v5241 = vpack.c.b16 %v5205, %v5203
  %v5242 = vpack.c.b16 %v5206, %v5204
  %v5243 = vpack.c.b16 %v5209, %v5207
  %v5244 = vpack.c.b16 %v5210, %v5208
  %v5245 = vpack.c.b16 %v5213, %v5211
  %v5246 = vpack.c.b16 %v5214, %v5212
  %v5247 = vpack.c.b16 %v5217, %v5215
  %v5248 = vpack.c.b16 %v5218, %v5216
  %v5249 = vpack.c.b16 %v5221, %v5219
  %v5250 = vpack.c.b16 %v5222, %v5220
  %v5251 = vpack.c.b16 %v5225, %v5223
  %v5252 = vpack.c.b16 %v5226, %v5224
  %v5253 = vpack.c.b16 %v5229, %v5227
  %v5254 = vpack.c.b16 %v5230, %v5228
  %v5255 = vpack.c.b16 %v5233, %v5231
  %v5256 = vpack.c.b16 %v5234, %v5232
  %v5257 = vpack.c.b16 %v5235, %v5235
  %v5258 = vpack.c.b16 %v5236, %v5236
  %v5280 = vsel %vm3423, %v5073, 0
  %v5283 = vsel %vm3423, %v5077, 0
  %v5286 = vsel %vm3423, %v5081, 0
  %v5289 = vsel %vm3423, %v5085, 0
  %v5292 = vsel %vm3423, %v5089, 0
  %v5295 = vsel %vm3423, %v5093, 0
  %v5298 = vsel %vm3423, %v5097, 0
  %v5301 = vsel %vm3423, %v5101, 0
  %v5304 = vsel %vm3423, %v5105, 0
  %v5307 = vsel %vm3423, %v5109, 0
  %v5310 = vsel %vm3423, %v5113, 0
  %v5313 = vsel %vm3423, %v5117, 0
  %v5316 = vsel %vm3423, %v5121, 0
  %v5319 = vsel %vm3423, %v5125, 0
  %v5322 = vsel %vm3423, %v5129, 0
  %v5324 = vsel %vm3423, %v5151, 0
  %v5327 = vsel %vm3471, %v5257, 0
  %v5330 = vsel %vm3471, %v5258, 0
  %5332 = vmatprep.subr.bf16.mxu0 %v5238
  %5333 = vmatpush1.bf16.msra.mxu0 %v5237
  %5334 = vmatprep.subr.bf16.mxu0 %v5240
  %5335 = vmatpush1.bf16.msra.mxu0 %v5239
  %5336 = vmatprep.subr.bf16.mxu0 %v5242
  %5337 = vmatpush1.bf16.msra.mxu0 %v5241
  %5338 = vmatprep.subr.bf16.mxu0 %v5244
  %5339 = vmatpush1.bf16.msra.mxu0 %v5243
  %5340 = vmatprep.subr.bf16.mxu0 %v5246
  %5341 = vmatpush1.bf16.msra.mxu0 %v5245
  %5342 = vmatprep.subr.bf16.mxu0 %v5248
  %5343 = vmatpush1.bf16.msra.mxu0 %v5247
  %5344 = vmatprep.subr.bf16.mxu0 %v5250
  %5345 = vmatpush1.bf16.msra.mxu0 %v5249
  %5346 = vmatprep.subr.bf16.mxu0 %v5252
  %5347 = vmatpush1.bf16.msra.mxu0 %v5251
  %5348 = vmatprep.subr.bf16.mxu0 %v5254
  %5349 = vmatpush1.bf16.msra.mxu0 %v5253
  %5350 = vmatprep.subr.bf16.mxu0 %v5256
  %5351 = vmatpush1.bf16.msra.mxu0 %v5255
  %5352 = vmatprep.subr.bf16.mxu0 %v5330
  %5353 = vmatpush1.bf16.msra.mxu0 %v5327
  %5354 = vmatprep.subr.bf16.mxu0 0
  %5355 = vmatpush1.bf16.msra.mxu0 0
  %5356 = vmatprep.subr.bf16.mxu0 0
  %5357 = vmatpush1.bf16.msra.mxu0 0
  %5358 = vmatprep.subr.bf16.mxu0 0
  %5359 = vmatpush1.bf16.msra.mxu0 0
  %5360 = vmatprep.subr.bf16.mxu0 0
  %5361 = vmatpush1.bf16.msra.mxu0 0
  %5362 = vmatprep.subr.bf16.mxu0 0
  %5363 = vmatpush1.bf16.msra.mxu0 0
  %5364 = vmatprep.mubr.bf16.mxu0 %v5280
  %5365 = vmatmul.mubr.bf16.gmra.mrb[0].mxu0 %v5070
  %v5366 = vpop.f32.mrb[0].mxu0
  %v5367 = vadd.f32 0.0, %v5366
  %v5368 = vpop.f32.mrb[0].mxu0
  %v5369 = vadd.f32 0.0, %v5368
  %v5370 = vpop.f32.mrb[0].mxu0
  %v5371 = vadd.f32 0.0, %v5370
  %v5372 = vpop.f32.mrb[0].mxu0
  %v5373 = vadd.f32 0.0, %v5372
  %5374 = vmatprep.mubr.bf16.mxu0 %v5283
  %5375 = vmatmul.mubr.bf16.gmra.mrb[0].mxu0 %v5075
  %v5376 = vpop.f32.mrb[0].mxu0
  %v5377 = vadd.f32 0.0, %v5376
  %v5378 = vpop.f32.mrb[0].mxu0
  %v5379 = vadd.f32 0.0, %v5378
  %v5380 = vpop.f32.mrb[0].mxu0
  %v5381 = vadd.f32 0.0, %v5380
  %v5382 = vpop.f32.mrb[0].mxu0
  %v5383 = vadd.f32 0.0, %v5382
  %5384 = vmatprep.mubr.bf16.mxu0 %v5286
  %5385 = vmatmul.mubr.bf16.gmra.mrb[0].mxu0 %v5079
  %v5386 = vpop.f32.mrb[0].mxu0
  %v5387 = vadd.f32 0.0, %v5386
  %v5388 = vpop.f32.mrb[0].mxu0
  %v5389 = vadd.f32 0.0, %v5388
  %v5390 = vpop.f32.mrb[0].mxu0
  %v5391 = vadd.f32 0.0, %v5390
  %v5392 = vpop.f32.mrb[0].mxu0
  %v5393 = vadd.f32 0.0, %v5392
  %5394 = vmatprep.mubr.bf16.mxu0 %v5289
  %5395 = vmatmul.mubr.bf16.gmra.mrb[0].mxu0 %v5083
  %v5396 = vpop.f32.mrb[0].mxu0
  %v5397 = vadd.f32 0.0, %v5396
  %v5398 = vpop.f32.mrb[0].mxu0
  %v5399 = vadd.f32 0.0, %v5398
  %v5400 = vpop.f32.mrb[0].mxu0
  %v5401 = vadd.f32 0.0, %v5400
  %v5402 = vpop.f32.mrb[0].mxu0
  %v5403 = vadd.f32 0.0, %v5402
  %5404 = vmatprep.mubr.bf16.mxu0 %v5292
  %5405 = vmatmul.mubr.bf16.gmra.mrb[0].mxu0 %v5087
  %v5406 = vpop.f32.mrb[0].mxu0
  %v5407 = vadd.f32 0.0, %v5406
  %v5408 = vpop.f32.mrb[0].mxu0
  %v5409 = vadd.f32 0.0, %v5408
  %v5410 = vpop.f32.mrb[0].mxu0
  %v5411 = vadd.f32 0.0, %v5410
  %v5412 = vpop.f32.mrb[0].mxu0
  %v5413 = vadd.f32 0.0, %v5412
  %5414 = vmatprep.mubr.bf16.mxu0 %v5295
  %5415 = vmatmul.mubr.bf16.gmra.mrb[0].mxu0 %v5091
  %v5416 = vpop.f32.mrb[0].mxu0
  %v5417 = vadd.f32 0.0, %v5416
  %v5418 = vpop.f32.mrb[0].mxu0
  %v5419 = vadd.f32 0.0, %v5418
  %v5420 = vpop.f32.mrb[0].mxu0
  %v5421 = vadd.f32 0.0, %v5420
  %v5422 = vpop.f32.mrb[0].mxu0
  %v5423 = vadd.f32 0.0, %v5422
  %5424 = vmatprep.mubr.bf16.mxu0 %v5298
  %5425 = vmatmul.mubr.bf16.gmra.mrb[0].mxu0 %v5095
  %v5426 = vpop.f32.mrb[0].mxu0
  %v5427 = vadd.f32 0.0, %v5426
  %v5428 = vpop.f32.mrb[0].mxu0
  %v5429 = vadd.f32 0.0, %v5428
  %v5430 = vpop.f32.mrb[0].mxu0
  %v5431 = vadd.f32 0.0, %v5430
  %v5432 = vpop.f32.mrb[0].mxu0
  %v5433 = vadd.f32 0.0, %v5432
  %5434 = vmatprep.mubr.bf16.mxu0 %v5301
  %5435 = vmatmul.mubr.bf16.gmra.mrb[0].mxu0 %v5099
  %v5436 = vpop.f32.mrb[0].mxu0
  %v5437 = vadd.f32 0.0, %v5436
  %v5438 = vpop.f32.mrb[0].mxu0
  %v5439 = vadd.f32 0.0, %v5438
  %v5440 = vpop.f32.mrb[0].mxu0
  %v5441 = vadd.f32 0.0, %v5440
  %v5442 = vpop.f32.mrb[0].mxu0
  %v5443 = vadd.f32 0.0, %v5442
  %5444 = vmatprep.mubr.bf16.mxu0 %v5304
  %5445 = vmatmul.mubr.bf16.gmra.mrb[0].mxu0 %v5103
  %v5446 = vpop.f32.mrb[0].mxu0
  %v5447 = vadd.f32 0.0, %v5446
  %v5448 = vpop.f32.mrb[0].mxu0
  %v5449 = vadd.f32 0.0, %v5448
  %v5450 = vpop.f32.mrb[0].mxu0
  %v5451 = vadd.f32 0.0, %v5450
  %v5452 = vpop.f32.mrb[0].mxu0
  %v5453 = vadd.f32 0.0, %v5452
  %5454 = vmatprep.mubr.bf16.mxu0 %v5307
  %5455 = vmatmul.mubr.bf16.gmra.mrb[0].mxu0 %v5107
  %v5456 = vpop.f32.mrb[0].mxu0
  %v5457 = vadd.f32 0.0, %v5456
  %v5458 = vpop.f32.mrb[0].mxu0
  %v5459 = vadd.f32 0.0, %v5458
  %v5460 = vpop.f32.mrb[0].mxu0
  %v5461 = vadd.f32 0.0, %v5460
  %v5462 = vpop.f32.mrb[0].mxu0
  %v5463 = vadd.f32 0.0, %v5462
  %5464 = vmatprep.mubr.bf16.mxu0 %v5310
  %5465 = vmatmul.mubr.bf16.gmra.mrb[0].mxu0 %v5111
  %v5466 = vpop.f32.mrb[0].mxu0
  %v5467 = vadd.f32 0.0, %v5466
  %v5468 = vpop.f32.mrb[0].mxu0
  %v5469 = vadd.f32 0.0, %v5468
  %v5470 = vpop.f32.mrb[0].mxu0
  %v5471 = vadd.f32 0.0, %v5470
  %v5472 = vpop.f32.mrb[0].mxu0
  %v5473 = vadd.f32 0.0, %v5472
  %5474 = vmatprep.mubr.bf16.mxu0 %v5313
  %5475 = vmatmul.mubr.bf16.gmra.mrb[0].mxu0 %v5115
  %v5476 = vpop.f32.mrb[0].mxu0
  %v5477 = vadd.f32 0.0, %v5476
  %v5478 = vpop.f32.mrb[0].mxu0
  %v5479 = vadd.f32 0.0, %v5478
  %v5480 = vpop.f32.mrb[0].mxu0
  %v5481 = vadd.f32 0.0, %v5480
  %v5482 = vpop.f32.mrb[0].mxu0
  %v5483 = vadd.f32 0.0, %v5482
  %5484 = vmatprep.mubr.bf16.mxu0 %v5316
  %5485 = vmatmul.mubr.bf16.gmra.mrb[0].mxu0 %v5119
  %v5486 = vpop.f32.mrb[0].mxu0
  %v5487 = vadd.f32 0.0, %v5486
  %v5488 = vpop.f32.mrb[0].mxu0
  %v5489 = vadd.f32 0.0, %v5488
  %v5490 = vpop.f32.mrb[0].mxu0
  %v5491 = vadd.f32 0.0, %v5490
  %v5492 = vpop.f32.mrb[0].mxu0
  %v5493 = vadd.f32 0.0, %v5492
  %5494 = vmatprep.mubr.bf16.mxu0 %v5319
  %5495 = vmatmul.mubr.bf16.gmra.mrb[0].mxu0 %v5123
  %v5496 = vpop.f32.mrb[0].mxu0
  %v5497 = vadd.f32 0.0, %v5496
  %v5498 = vpop.f32.mrb[0].mxu0
  %v5499 = vadd.f32 0.0, %v5498
  %v5500 = vpop.f32.mrb[0].mxu0
  %v5501 = vadd.f32 0.0, %v5500
  %v5502 = vpop.f32.mrb[0].mxu0
  %v5503 = vadd.f32 0.0, %v5502
  %5504 = vmatprep.mubr.bf16.mxu0 %v5322
  %5505 = vmatmul.mubr.bf16.gmra.mrb[0].mxu0 %v5127
  %v5506 = vpop.f32.mrb[0].mxu0
  %v5507 = vadd.f32 0.0, %v5506
  %v5508 = vpop.f32.mrb[0].mxu0
  %v5509 = vadd.f32 0.0, %v5508
  %v5510 = vpop.f32.mrb[0].mxu0
  %v5511 = vadd.f32 0.0, %v5510
  %v5512 = vpop.f32.mrb[0].mxu0
  %v5513 = vadd.f32 0.0, %v5512
  %5514 = vmatprep.mubr.bf16.mxu0 %v5324
  %5515 = vmatmul.mubr.bf16.gmra.mrb[0].mxu0 %v5147
  %v5516 = vpop.f32.mrb[0].mxu0
  %v5517 = vadd.f32 0.0, %v5516
  %v5518 = vpop.f32.mrb[0].mxu0
  %v5519 = vadd.f32 0.0, %v5518
  %v5520 = vpop.f32.mrb[0].mxu0
  %v5521 = vadd.f32 0.0, %v5520
  %v5522 = vpop.f32.mrb[0].mxu0
  %v5523 = vadd.f32 0.0, %v5522
  %5524 = vdwg.mxu0
  %v5525 = vadd.f32 %v5003, %v5367
  %v5526 = vadd.f32 %v5004, %v5369
  %v5527 = vadd.f32 %v5005, %v5371
  %v5528 = vadd.f32 %v5006, %v5373
  %v5529 = vadd.f32 %v5007, %v5377
  %v5530 = vadd.f32 %v5008, %v5379
  %v5531 = vadd.f32 %v5009, %v5381
  %v5532 = vadd.f32 %v5010, %v5383
  %v5533 = vadd.f32 %v5011, %v5387
  %v5534 = vadd.f32 %v5012, %v5389
  %v5535 = vadd.f32 %v5013, %v5391
  %v5536 = vadd.f32 %v5014, %v5393
  %v5537 = vadd.f32 %v5015, %v5397
  %v5538 = vadd.f32 %v5016, %v5399
  %v5539 = vadd.f32 %v5017, %v5401
  %v5540 = vadd.f32 %v5018, %v5403
  %v5541 = vadd.f32 %v5019, %v5407
  %v5542 = vadd.f32 %v5020, %v5409
  %v5543 = vadd.f32 %v5021, %v5411
  %v5544 = vadd.f32 %v5022, %v5413
  %v5545 = vadd.f32 %v5023, %v5417
  %v5546 = vadd.f32 %v5024, %v5419
  %v5547 = vadd.f32 %v5025, %v5421
  %v5548 = vadd.f32 %v5026, %v5423
  %v5549 = vadd.f32 %v5027, %v5427
  %v5550 = vadd.f32 %v5028, %v5429
  %v5551 = vadd.f32 %v5029, %v5431
  %v5552 = vadd.f32 %v5030, %v5433
  %v5553 = vadd.f32 %v5031, %v5437
  %v5554 = vadd.f32 %v5032, %v5439
  %v5555 = vadd.f32 %v5033, %v5441
  %v5556 = vadd.f32 %v5034, %v5443
  %v5557 = vadd.f32 %v5035, %v5447
  %v5558 = vadd.f32 %v5036, %v5449
  %v5559 = vadd.f32 %v5037, %v5451
  %v5560 = vadd.f32 %v5038, %v5453
  %v5561 = vadd.f32 %v5039, %v5457
  %v5562 = vadd.f32 %v5040, %v5459
  %v5563 = vadd.f32 %v5041, %v5461
  %v5564 = vadd.f32 %v5042, %v5463
  %v5565 = vadd.f32 %v5043, %v5467
  %v5566 = vadd.f32 %v5044, %v5469
  %v5567 = vadd.f32 %v5045, %v5471
  %v5568 = vadd.f32 %v5046, %v5473
  %v5569 = vadd.f32 %v5047, %v5477
  %v5570 = vadd.f32 %v5048, %v5479
  %v5571 = vadd.f32 %v5049, %v5481
  %v5572 = vadd.f32 %v5050, %v5483
  %v5573 = vadd.f32 %v5051, %v5487
  %v5574 = vadd.f32 %v5052, %v5489
  %v5575 = vadd.f32 %v5053, %v5491
  %v5576 = vadd.f32 %v5054, %v5493
  %v5577 = vadd.f32 %v5055, %v5497
  %v5578 = vadd.f32 %v5056, %v5499
  %v5579 = vadd.f32 %v5057, %v5501
  %v5580 = vadd.f32 %v5058, %v5503
  %v5581 = vadd.f32 %v5059, %v5507
  %v5582 = vadd.f32 %v5060, %v5509
  %v5583 = vadd.f32 %v5061, %v5511
  %v5584 = vadd.f32 %v5062, %v5513
  %v5585 = vadd.f32 %v5063, %v5517
  %v5586 = vadd.f32 %v5064, %v5519
  %v5587 = vadd.f32 %v5065, %v5521
  %v5588 = vadd.f32 %v5066, %v5523
  %v5589 = vld [vmem:[%s4] sm:$0x3]
  %v5591 = vlaneseq
  %v5592 = vshrl.u32 %v5591, 7
  %v5593 = vsub.s32 0, %v5592
  %v5594 = vrot.slane %v5589, %v5593
  %v5595 = vlaneseq
  %v5596 = vshrl.u32 %v5595, 7
  %v5597 = vsub.s32 1, %v5596
  %v5598 = vrot.slane %v5589, %v5597
  %v5601 = vadd.f32 %v5525, %v5594
  %v5602 = vadd.f32 %v5526, %v5598
  %v5603 = vadd.f32 %v5527, %v5594
  %v5604 = vadd.f32 %v5528, %v5598
  %v5605 = vadd.f32 %v5529, %v5594
  %v5606 = vadd.f32 %v5530, %v5598
  %v5607 = vadd.f32 %v5531, %v5594
  %v5608 = vadd.f32 %v5532, %v5598
  %v5609 = vadd.f32 %v5533, %v5594
  %v5610 = vadd.f32 %v5534, %v5598
  %v5611 = vadd.f32 %v5535, %v5594
  %v5612 = vadd.f32 %v5536, %v5598
  %v5613 = vadd.f32 %v5537, %v5594
  %v5614 = vadd.f32 %v5538, %v5598
  %v5615 = vadd.f32 %v5539, %v5594
  %v5616 = vadd.f32 %v5540, %v5598
  %v5617 = vadd.f32 %v5541, %v5594
  %v5618 = vadd.f32 %v5542, %v5598
  %v5619 = vadd.f32 %v5543, %v5594
  %v5620 = vadd.f32 %v5544, %v5598
  %v5621 = vadd.f32 %v5545, %v5594
  %v5622 = vadd.f32 %v5546, %v5598
  %v5623 = vadd.f32 %v5547, %v5594
  %v5624 = vadd.f32 %v5548, %v5598
  %v5625 = vadd.f32 %v5549, %v5594
  %v5626 = vadd.f32 %v5550, %v5598
  %v5627 = vadd.f32 %v5551, %v5594
  %v5628 = vadd.f32 %v5552, %v5598
  %v5629 = vadd.f32 %v5553, %v5594
  %v5630 = vadd.f32 %v5554, %v5598
  %v5631 = vadd.f32 %v5555, %v5594
  %v5632 = vadd.f32 %v5556, %v5598
  %v5633 = vadd.f32 %v5557, %v5594
  %v5634 = vadd.f32 %v5558, %v5598
  %v5635 = vadd.f32 %v5559, %v5594
  %v5636 = vadd.f32 %v5560, %v5598
  %v5637 = vadd.f32 %v5561, %v5594
  %v5638 = vadd.f32 %v5562, %v5598
  %v5639 = vadd.f32 %v5563, %v5594
  %v5640 = vadd.f32 %v5564, %v5598
  %v5641 = vadd.f32 %v5565, %v5594
  %v5642 = vadd.f32 %v5566, %v5598
  %v5643 = vadd.f32 %v5567, %v5594
  %v5644 = vadd.f32 %v5568, %v5598
  %v5645 = vadd.f32 %v5569, %v5594
  %v5646 = vadd.f32 %v5570, %v5598
  %v5647 = vadd.f32 %v5571, %v5594
  %v5648 = vadd.f32 %v5572, %v5598
  %v5649 = vadd.f32 %v5573, %v5594
  %v5650 = vadd.f32 %v5574, %v5598
  %v5651 = vadd.f32 %v5575, %v5594
  %v5652 = vadd.f32 %v5576, %v5598
  %v5653 = vadd.f32 %v5577, %v5594
  %v5654 = vadd.f32 %v5578, %v5598
  %v5655 = vadd.f32 %v5579, %v5594
  %v5656 = vadd.f32 %v5580, %v5598
  %v5657 = vadd.f32 %v5581, %v5594
  %v5658 = vadd.f32 %v5582, %v5598
  %v5659 = vadd.f32 %v5583, %v5594
  %v5660 = vadd.f32 %v5584, %v5598
  %v5661 = vadd.f32 %v5585, %v5594
  %v5662 = vadd.f32 %v5586, %v5598
  %v5663 = vadd.f32 %v5587, %v5594
  %v5664 = vadd.f32 %v5588, %v5598
  %v5665 = vmax.f32 %v5601, 0.0
  %v5666 = vmax.f32 %v5602, 0.0
  %v5667 = vmax.f32 %v5603, 0.0
  %v5668 = vmax.f32 %v5604, 0.0
  %v5669 = vmax.f32 %v5605, 0.0
  %v5670 = vmax.f32 %v5606, 0.0
  %v5671 = vmax.f32 %v5607, 0.0
  %v5672 = vmax.f32 %v5608, 0.0
  %v5673 = vmax.f32 %v5609, 0.0
  %v5674 = vmax.f32 %v5610, 0.0
  %v5675 = vmax.f32 %v5611, 0.0
  %v5676 = vmax.f32 %v5612, 0.0
  %v5677 = vmax.f32 %v5613, 0.0
  %v5678 = vmax.f32 %v5614, 0.0
  %v5679 = vmax.f32 %v5615, 0.0
  %v5680 = vmax.f32 %v5616, 0.0
  %v5681 = vmax.f32 %v5617, 0.0
  %v5682 = vmax.f32 %v5618, 0.0
  %v5683 = vmax.f32 %v5619, 0.0
  %v5684 = vmax.f32 %v5620, 0.0
  %v5685 = vmax.f32 %v5621, 0.0
  %v5686 = vmax.f32 %v5622, 0.0
  %v5687 = vmax.f32 %v5623, 0.0
  %v5688 = vmax.f32 %v5624, 0.0
  %v5689 = vmax.f32 %v5625, 0.0
  %v5690 = vmax.f32 %v5626, 0.0
  %v5691 = vmax.f32 %v5627, 0.0
  %v5692 = vmax.f32 %v5628, 0.0
  %v5693 = vmax.f32 %v5629, 0.0
  %v5694 = vmax.f32 %v5630, 0.0
  %v5695 = vmax.f32 %v5631, 0.0
  %v5696 = vmax.f32 %v5632, 0.0
  %v5697 = vmax.f32 %v5633, 0.0
  %v5698 = vmax.f32 %v5634, 0.0
  %v5699 = vmax.f32 %v5635, 0.0
  %v5700 = vmax.f32 %v5636, 0.0
  %v5701 = vmax.f32 %v5637, 0.0
  %v5702 = vmax.f32 %v5638, 0.0
  %v5703 = vmax.f32 %v5639, 0.0
  %v5704 = vmax.f32 %v5640, 0.0
  %v5705 = vmax.f32 %v5641, 0.0
  %v5706 = vmax.f32 %v5642, 0.0
  %v5707 = vmax.f32 %v5643, 0.0
  %v5708 = vmax.f32 %v5644, 0.0
  %v5709 = vmax.f32 %v5645, 0.0
  %v5710 = vmax.f32 %v5646, 0.0
  %v5711 = vmax.f32 %v5647, 0.0
  %v5712 = vmax.f32 %v5648, 0.0
  %v5713 = vmax.f32 %v5649, 0.0
  %v5714 = vmax.f32 %v5650, 0.0
  %v5715 = vmax.f32 %v5651, 0.0
  %v5716 = vmax.f32 %v5652, 0.0
  %v5717 = vmax.f32 %v5653, 0.0
  %v5718 = vmax.f32 %v5654, 0.0
  %v5719 = vmax.f32 %v5655, 0.0
  %v5720 = vmax.f32 %v5656, 0.0
  %v5721 = vmax.f32 %v5657, 0.0
  %v5722 = vmax.f32 %v5658, 0.0
  %v5723 = vmax.f32 %v5659, 0.0
  %v5724 = vmax.f32 %v5660, 0.0
  %v5725 = vmax.f32 %v5661, 0.0
  %v5726 = vmax.f32 %v5662, 0.0
  %v5727 = vmax.f32 %v5663, 0.0
  %v5728 = vmax.f32 %v5664, 0.0
  %v5793 = vrot.slane %v5665, 2
  %v5794 = vrot.slane %v5667, 2
  %v5795 = vsel %vm1802, %v5793, %v5794
  %v5796 = vrot.slane %v5666, 2
  %v5797 = vrot.slane %v5668, 2
  %v5798 = vsel %vm1802, %v5796, %v5797
  %v5799 = vrot.slane %v5669, 2
  %v5800 = vsel %vm1802, %v5794, %v5799
  %v5801 = vrot.slane %v5670, 2
  %v5802 = vsel %vm1802, %v5797, %v5801
  %v5803 = vrot.slane %v5671, 2
  %v5804 = vsel %vm1802, %v5799, %v5803
  %v5805 = vrot.slane %v5672, 2
  %v5806 = vsel %vm1802, %v5801, %v5805
  %v5807 = vrot.slane %v5673, 2
  %v5808 = vsel %vm1802, %v5803, %v5807
  %v5809 = vrot.slane %v5674, 2
  %v5810 = vsel %vm1802, %v5805, %v5809
  %v5811 = vrot.slane %v5675, 2
  %v5812 = vsel %vm1802, %v5807, %v5811
  %v5813 = vrot.slane %v5676, 2
  %v5814 = vsel %vm1802, %v5809, %v5813
  %v5815 = vrot.slane %v5677, 2
  %v5816 = vsel %vm1802, %v5811, %v5815
  %v5817 = vrot.slane %v5678, 2
  %v5818 = vsel %vm1802, %v5813, %v5817
  %v5819 = vrot.slane %v5679, 2
  %v5820 = vsel %vm1802, %v5815, %v5819
  %v5821 = vrot.slane %v5680, 2
  %v5822 = vsel %vm1802, %v5817, %v5821
  %v5823 = vrot.slane %v5681, 2
  %v5824 = vsel %vm1802, %v5819, %v5823
  %v5825 = vrot.slane %v5682, 2
  %v5826 = vsel %vm1802, %v5821, %v5825
  %v5827 = vrot.slane %v5683, 2
  %v5828 = vsel %vm1802, %v5823, %v5827
  %v5829 = vrot.slane %v5684, 2
  %v5830 = vsel %vm1802, %v5825, %v5829
  %v5831 = vrot.slane %v5685, 2
  %v5832 = vsel %vm1802, %v5827, %v5831
  %v5833 = vrot.slane %v5686, 2
  %v5834 = vsel %vm1802, %v5829, %v5833
  %v5835 = vrot.slane %v5687, 2
  %v5836 = vsel %vm1802, %v5831, %v5835
  %v5837 = vrot.slane %v5688, 2
  %v5838 = vsel %vm1802, %v5833, %v5837
  %v5839 = vrot.slane %v5689, 2
  %v5840 = vsel %vm1802, %v5835, %v5839
  %v5841 = vrot.slane %v5690, 2
  %v5842 = vsel %vm1802, %v5837, %v5841
  %v5843 = vrot.slane %v5691, 2
  %v5844 = vsel %vm1802, %v5839, %v5843
  %v5845 = vrot.slane %v5692, 2
  %v5846 = vsel %vm1802, %v5841, %v5845
  %v5847 = vrot.slane %v5693, 2
  %v5848 = vsel %vm1802, %v5843, %v5847
  %v5849 = vrot.slane %v5694, 2
  %v5850 = vsel %vm1802, %v5845, %v5849
  %v5851 = vrot.slane %v5695, 2
  %v5852 = vsel %vm1802, %v5847, %v5851
  %v5853 = vrot.slane %v5696, 2
  %v5854 = vsel %vm1802, %v5849, %v5853
  %v5855 = vrot.slane %v5697, 2
  %v5856 = vsel %vm1802, %v5851, %v5855
  %v5857 = vrot.slane %v5698, 2
  %v5858 = vsel %vm1802, %v5853, %v5857
  %v5859 = vrot.slane %v5699, 2
  %v5860 = vsel %vm1802, %v5855, %v5859
  %v5861 = vrot.slane %v5700, 2
  %v5862 = vsel %vm1802, %v5857, %v5861
  %v5863 = vrot.slane %v5701, 2
  %v5864 = vsel %vm1802, %v5859, %v5863
  %v5865 = vrot.slane %v5702, 2
  %v5866 = vsel %vm1802, %v5861, %v5865
  %v5867 = vrot.slane %v5703, 2
  %v5868 = vsel %vm1802, %v5863, %v5867
  %v5869 = vrot.slane %v5704, 2
  %v5870 = vsel %vm1802, %v5865, %v5869
  %v5871 = vrot.slane %v5705, 2
  %v5872 = vsel %vm1802, %v5867, %v5871
  %v5873 = vrot.slane %v5706, 2
  %v5874 = vsel %vm1802, %v5869, %v5873
  %v5875 = vrot.slane %v5707, 2
  %v5876 = vsel %vm1802, %v5871, %v5875
  %v5877 = vrot.slane %v5708, 2
  %v5878 = vsel %vm1802, %v5873, %v5877
  %v5879 = vrot.slane %v5709, 2
  %v5880 = vsel %vm1802, %v5875, %v5879
  %v5881 = vrot.slane %v5710, 2
  %v5882 = vsel %vm1802, %v5877, %v5881
  %v5883 = vrot.slane %v5711, 2
  %v5884 = vsel %vm1802, %v5879, %v5883
  %v5885 = vrot.slane %v5712, 2
  %v5886 = vsel %vm1802, %v5881, %v5885
  %v5887 = vrot.slane %v5713, 2
  %v5888 = vsel %vm1802, %v5883, %v5887
  %v5889 = vrot.slane %v5714, 2
  %v5890 = vsel %vm1802, %v5885, %v5889
  %v5891 = vrot.slane %v5715, 2
  %v5892 = vsel %vm1802, %v5887, %v5891
  %v5893 = vrot.slane %v5716, 2
  %v5894 = vsel %vm1802, %v5889, %v5893
  %v5895 = vrot.slane %v5717, 2
  %v5896 = vsel %vm1802, %v5891, %v5895
  %v5897 = vrot.slane %v5718, 2
  %v5898 = vsel %vm1802, %v5893, %v5897
  %v5899 = vrot.slane %v5719, 2
  %v5900 = vsel %vm1802, %v5895, %v5899
  %v5901 = vrot.slane %v5720, 2
  %v5902 = vsel %vm1802, %v5897, %v5901
  %v5903 = vrot.slane %v5721, 2
  %v5904 = vsel %vm1802, %v5899, %v5903
  %v5905 = vrot.slane %v5722, 2
  %v5906 = vsel %vm1802, %v5901, %v5905
  %v5907 = vrot.slane %v5723, 2
  %v5908 = vsel %vm1802, %v5903, %v5907
  %v5909 = vrot.slane %v5724, 2
  %v5910 = vsel %vm1802, %v5905, %v5909
  %v5911 = vrot.slane %v5725, 2
  %v5912 = vsel %vm1802, %v5907, %v5911
  %v5913 = vrot.slane %v5726, 2
  %v5914 = vsel %vm1802, %v5909, %v5913
  %v5915 = vrot.slane %v5727, 2
  %v5916 = vsel %vm1802, %v5911, %v5915
  %v5917 = vrot.slane %v5728, 2
  %v5918 = vsel %vm1802, %v5913, %v5917
  %v5985 = vsel %vm1802, %v5915, %v5793
  %v5986 = vsel %vm1802, %v5917, %v5796
  %v5987 = vmax.f32 %v5665, %v5795
  %v5988 = vmax.f32 %v5666, %v5798
  %v5989 = vmax.f32 %v5667, %v5800
  %v5990 = vmax.f32 %v5668, %v5802
  %v5991 = vmax.f32 %v5669, %v5804
  %v5992 = vmax.f32 %v5670, %v5806
  %v5993 = vmax.f32 %v5671, %v5808
  %v5994 = vmax.f32 %v5672, %v5810
  %v5995 = vmax.f32 %v5673, %v5812
  %v5996 = vmax.f32 %v5674, %v5814
  %v5997 = vmax.f32 %v5675, %v5816
  %v5998 = vmax.f32 %v5676, %v5818
  %v5999 = vmax.f32 %v5677, %v5820
  %v6000 = vmax.f32 %v5678, %v5822
  %v6001 = vmax.f32 %v5679, %v5824
  %v6002 = vmax.f32 %v5680, %v5826
  %v6003 = vmax.f32 %v5681, %v5828
  %v6004 = vmax.f32 %v5682, %v5830
  %v6005 = vmax.f32 %v5683, %v5832
  %v6006 = vmax.f32 %v5684, %v5834
  %v6007 = vmax.f32 %v5685, %v5836
  %v6008 = vmax.f32 %v5686, %v5838
  %v6009 = vmax.f32 %v5687, %v5840
  %v6010 = vmax.f32 %v5688, %v5842
  %v6011 = vmax.f32 %v5689, %v5844
  %v6012 = vmax.f32 %v5690, %v5846
  %v6013 = vmax.f32 %v5691, %v5848
  %v6014 = vmax.f32 %v5692, %v5850
  %v6015 = vmax.f32 %v5693, %v5852
  %v6016 = vmax.f32 %v5694, %v5854
  %v6017 = vmax.f32 %v5695, %v5856
  %v6018 = vmax.f32 %v5696, %v5858
  %v6019 = vmax.f32 %v5697, %v5860
  %v6020 = vmax.f32 %v5698, %v5862
  %v6021 = vmax.f32 %v5699, %v5864
  %v6022 = vmax.f32 %v5700, %v5866
  %v6023 = vmax.f32 %v5701, %v5868
  %v6024 = vmax.f32 %v5702, %v5870
  %v6025 = vmax.f32 %v5703, %v5872
  %v6026 = vmax.f32 %v5704, %v5874
  %v6027 = vmax.f32 %v5705, %v5876
  %v6028 = vmax.f32 %v5706, %v5878
  %v6029 = vmax.f32 %v5707, %v5880
  %v6030 = vmax.f32 %v5708, %v5882
  %v6031 = vmax.f32 %v5709, %v5884
  %v6032 = vmax.f32 %v5710, %v5886
  %v6033 = vmax.f32 %v5711, %v5888
  %v6034 = vmax.f32 %v5712, %v5890
  %v6035 = vmax.f32 %v5713, %v5892
  %v6036 = vmax.f32 %v5714, %v5894
  %v6037 = vmax.f32 %v5715, %v5896
  %v6038 = vmax.f32 %v5716, %v5898
  %v6039 = vmax.f32 %v5717, %v5900
  %v6040 = vmax.f32 %v5718, %v5902
  %v6041 = vmax.f32 %v5719, %v5904
  %v6042 = vmax.f32 %v5720, %v5906
  %v6043 = vmax.f32 %v5721, %v5908
  %v6044 = vmax.f32 %v5722, %v5910
  %v6045 = vmax.f32 %v5723, %v5912
  %v6046 = vmax.f32 %v5724, %v5914
  %v6047 = vmax.f32 %v5725, %v5916
  %v6048 = vmax.f32 %v5726, %v5918
  %v6049 = vmax.f32 %v5727, %v5985
  %v6050 = vmax.f32 %v5728, %v5986
  %6115 = vrot.lane.b32.xlu0 %v5987, 112
  %v6116 = vpop.permute.xlu0 %6115
  %6117 = vrot.lane.b32.xlu0 %v5988, 112
  %v6118 = vpop.permute.xlu0 %6117
  %6119 = vrot.lane.b32.xlu0 %v5989, 112
  %v6120 = vpop.permute.xlu0 %6119
  %6121 = vrot.lane.b32.xlu0 %v5990, 112
  %v6122 = vpop.permute.xlu0 %6121
  %6123 = vrot.lane.b32.xlu0 %v5991, 112
  %v6124 = vpop.permute.xlu0 %6123
  %6125 = vrot.lane.b32.xlu0 %v5992, 112
  %v6126 = vpop.permute.xlu0 %6125
  %6127 = vrot.lane.b32.xlu0 %v5993, 112
  %v6128 = vpop.permute.xlu0 %6127
  %6129 = vrot.lane.b32.xlu0 %v5994, 112
  %v6130 = vpop.permute.xlu0 %6129
  %6131 = vrot.lane.b32.xlu0 %v5995, 112
  %v6132 = vpop.permute.xlu0 %6131
  %6133 = vrot.lane.b32.xlu0 %v5996, 112
  %v6134 = vpop.permute.xlu0 %6133
  %6135 = vrot.lane.b32.xlu0 %v5997, 112
  %v6136 = vpop.permute.xlu0 %6135
  %6137 = vrot.lane.b32.xlu0 %v5998, 112
  %v6138 = vpop.permute.xlu0 %6137
  %6139 = vrot.lane.b32.xlu0 %v5999, 112
  %v6140 = vpop.permute.xlu0 %6139
  %6141 = vrot.lane.b32.xlu0 %v6000, 112
  %v6142 = vpop.permute.xlu0 %6141
  %6143 = vrot.lane.b32.xlu0 %v6001, 112
  %v6144 = vpop.permute.xlu0 %6143
  %6145 = vrot.lane.b32.xlu0 %v6002, 112
  %v6146 = vpop.permute.xlu0 %6145
  %6147 = vrot.lane.b32.xlu0 %v6003, 112
  %v6148 = vpop.permute.xlu0 %6147
  %6149 = vrot.lane.b32.xlu0 %v6004, 112
  %v6150 = vpop.permute.xlu0 %6149
  %6151 = vrot.lane.b32.xlu0 %v6005, 112
  %v6152 = vpop.permute.xlu0 %6151
  %6153 = vrot.lane.b32.xlu0 %v6006, 112
  %v6154 = vpop.permute.xlu0 %6153
  %6155 = vrot.lane.b32.xlu0 %v6007, 112
  %v6156 = vpop.permute.xlu0 %6155
  %6157 = vrot.lane.b32.xlu0 %v6008, 112
  %v6158 = vpop.permute.xlu0 %6157
  %6159 = vrot.lane.b32.xlu0 %v6009, 112
  %v6160 = vpop.permute.xlu0 %6159
  %6161 = vrot.lane.b32.xlu0 %v6010, 112
  %v6162 = vpop.permute.xlu0 %6161
  %6163 = vrot.lane.b32.xlu0 %v6011, 112
  %v6164 = vpop.permute.xlu0 %6163
  %6165 = vrot.lane.b32.xlu0 %v6012, 112
  %v6166 = vpop.permute.xlu0 %6165
  %6167 = vrot.lane.b32.xlu0 %v6013, 112
  %v6168 = vpop.permute.xlu0 %6167
  %6169 = vrot.lane.b32.xlu0 %v6014, 112
  %v6170 = vpop.permute.xlu0 %6169
  %6171 = vrot.lane.b32.xlu0 %v6015, 112
  %v6172 = vpop.permute.xlu0 %6171
  %6173 = vrot.lane.b32.xlu0 %v6016, 112
  %v6174 = vpop.permute.xlu0 %6173
  %6175 = vrot.lane.b32.xlu0 %v6017, 112
  %v6176 = vpop.permute.xlu0 %6175
  %6177 = vrot.lane.b32.xlu0 %v6018, 112
  %v6178 = vpop.permute.xlu0 %6177
  %6179 = vrot.lane.b32.xlu0 %v6019, 112
  %v6180 = vpop.permute.xlu0 %6179
  %6181 = vrot.lane.b32.xlu0 %v6020, 112
  %v6182 = vpop.permute.xlu0 %6181
  %6183 = vrot.lane.b32.xlu0 %v6021, 112
  %v6184 = vpop.permute.xlu0 %6183
  %6185 = vrot.lane.b32.xlu0 %v6022, 112
  %v6186 = vpop.permute.xlu0 %6185
  %6187 = vrot.lane.b32.xlu0 %v6023, 112
  %v6188 = vpop.permute.xlu0 %6187
  %6189 = vrot.lane.b32.xlu0 %v6024, 112
  %v6190 = vpop.permute.xlu0 %6189
  %6191 = vrot.lane.b32.xlu0 %v6025, 112
  %v6192 = vpop.permute.xlu0 %6191
  %6193 = vrot.lane.b32.xlu0 %v6026, 112
  %v6194 = vpop.permute.xlu0 %6193
  %6195 = vrot.lane.b32.xlu0 %v6027, 112
  %v6196 = vpop.permute.xlu0 %6195
  %6197 = vrot.lane.b32.xlu0 %v6028, 112
  %v6198 = vpop.permute.xlu0 %6197
  %6199 = vrot.lane.b32.xlu0 %v6029, 112
  %v6200 = vpop.permute.xlu0 %6199
  %6201 = vrot.lane.b32.xlu0 %v6030, 112
  %v6202 = vpop.permute.xlu0 %6201
  %6203 = vrot.lane.b32.xlu0 %v6031, 112
  %v6204 = vpop.permute.xlu0 %6203
  %6205 = vrot.lane.b32.xlu0 %v6032, 112
  %v6206 = vpop.permute.xlu0 %6205
  %6207 = vrot.lane.b32.xlu0 %v6033, 112
  %v6208 = vpop.permute.xlu0 %6207
  %6209 = vrot.lane.b32.xlu0 %v6034, 112
  %v6210 = vpop.permute.xlu0 %6209
  %6211 = vrot.lane.b32.xlu0 %v6035, 112
  %v6212 = vpop.permute.xlu0 %6211
  %6213 = vrot.lane.b32.xlu0 %v6036, 112
  %v6214 = vpop.permute.xlu0 %6213
  %6215 = vrot.lane.b32.xlu0 %v6037, 112
  %v6216 = vpop.permute.xlu0 %6215
  %6217 = vrot.lane.b32.xlu0 %v6038, 112
  %v6218 = vpop.permute.xlu0 %6217
  %6219 = vrot.lane.b32.xlu0 %v6039, 112
  %v6220 = vpop.permute.xlu0 %6219
  %6221 = vrot.lane.b32.xlu0 %v6040, 112
  %v6222 = vpop.permute.xlu0 %6221
  %6223 = vrot.lane.b32.xlu0 %v6041, 112
  %v6224 = vpop.permute.xlu0 %6223
  %6225 = vrot.lane.b32.xlu0 %v6042, 112
  %v6226 = vpop.permute.xlu0 %6225
  %6227 = vrot.lane.b32.xlu0 %v6043, 112
  %v6228 = vpop.permute.xlu0 %6227
  %6229 = vrot.lane.b32.xlu0 %v6044, 112
  %v6230 = vpop.permute.xlu0 %6229
  %6231 = vrot.lane.b32.xlu0 %v6045, 112
  %v6232 = vpop.permute.xlu0 %6231
  %6233 = vrot.lane.b32.xlu0 %v6046, 112
  %v6234 = vpop.permute.xlu0 %6233
  %6235 = vrot.lane.b32.xlu0 %v6047, 112
  %v6236 = vpop.permute.xlu0 %6235
  %6237 = vrot.lane.b32.xlu0 %v6048, 112
  %v6238 = vpop.permute.xlu0 %6237
  %6239 = vrot.lane.b32.xlu0 %v6049, 112
  %v6240 = vpop.permute.xlu0 %6239
  %6241 = vrot.lane.b32.xlu0 %v6050, 112
  %v6242 = vpop.permute.xlu0 %6241
  %vm6243 = vcmask 916480
  %v6244 = vsel %vm6243, %v6116, %v6118
  %v6245 = vsel %vm6243, %v6120, %v6122
  %v6246 = vsel %vm6243, %v6124, %v6126
  %v6247 = vsel %vm6243, %v6128, %v6130
  %v6248 = vsel %vm6243, %v6132, %v6134
  %v6249 = vsel %vm6243, %v6136, %v6138
  %v6250 = vsel %vm6243, %v6140, %v6142
  %v6251 = vsel %vm6243, %v6144, %v6146
  %v6252 = vsel %vm6243, %v6148, %v6150
  %v6253 = vsel %vm6243, %v6152, %v6154
  %v6254 = vsel %vm6243, %v6156, %v6158
  %v6255 = vsel %vm6243, %v6160, %v6162
  %v6256 = vsel %vm6243, %v6164, %v6166
  %v6257 = vsel %vm6243, %v6168, %v6170
  %v6258 = vsel %vm6243, %v6172, %v6174
  %v6259 = vsel %vm6243, %v6176, %v6178
  %v6260 = vsel %vm6243, %v6180, %v6182
  %v6261 = vsel %vm6243, %v6184, %v6186
  %v6262 = vsel %vm6243, %v6188, %v6190
  %v6263 = vsel %vm6243, %v6192, %v6194
  %v6264 = vsel %vm6243, %v6196, %v6198
  %v6265 = vsel %vm6243, %v6200, %v6202
  %v6266 = vsel %vm6243, %v6204, %v6206
  %v6267 = vsel %vm6243, %v6208, %v6210
  %v6268 = vsel %vm6243, %v6212, %v6214
  %v6269 = vsel %vm6243, %v6216, %v6218
  %v6270 = vsel %vm6243, %v6220, %v6222
  %v6271 = vsel %vm6243, %v6224, %v6226
  %v6272 = vsel %vm6243, %v6228, %v6230
  %v6273 = vsel %vm6243, %v6232, %v6234
  %v6274 = vsel %vm6243, %v6236, %v6238
  %v6275 = vsel %vm6243, %v6240, %v6242
  %6340 = vrot.lane.b32.xlu0 %v5987, 16
  %v6341 = vpop.permute.xlu0 %6340
  %6342 = vrot.lane.b32.xlu0 %v5989, 16
  %v6343 = vpop.permute.xlu0 %6342
  %6344 = vrot.lane.b32.xlu0 %v5991, 16
  %v6345 = vpop.permute.xlu0 %6344
  %6346 = vrot.lane.b32.xlu0 %v5993, 16
  %v6347 = vpop.permute.xlu0 %6346
  %6348 = vrot.lane.b32.xlu0 %v5995, 16
  %v6349 = vpop.permute.xlu0 %6348
  %6350 = vrot.lane.b32.xlu0 %v5997, 16
  %v6351 = vpop.permute.xlu0 %6350
  %6352 = vrot.lane.b32.xlu0 %v5999, 16
  %v6353 = vpop.permute.xlu0 %6352
  %6354 = vrot.lane.b32.xlu0 %v6001, 16
  %v6355 = vpop.permute.xlu0 %6354
  %6356 = vrot.lane.b32.xlu0 %v6003, 16
  %v6357 = vpop.permute.xlu0 %6356
  %6358 = vrot.lane.b32.xlu0 %v6005, 16
  %v6359 = vpop.permute.xlu0 %6358
  %6360 = vrot.lane.b32.xlu0 %v6007, 16
  %v6361 = vpop.permute.xlu0 %6360
  %6362 = vrot.lane.b32.xlu0 %v6009, 16
  %v6363 = vpop.permute.xlu0 %6362
  %6364 = vrot.lane.b32.xlu0 %v6011, 16
  %v6365 = vpop.permute.xlu0 %6364
  %6366 = vrot.lane.b32.xlu0 %v6013, 16
  %v6367 = vpop.permute.xlu0 %6366
  %6368 = vrot.lane.b32.xlu0 %v6015, 16
  %v6369 = vpop.permute.xlu0 %6368
  %6370 = vrot.lane.b32.xlu0 %v6017, 16
  %v6371 = vpop.permute.xlu0 %6370
  %6372 = vrot.lane.b32.xlu0 %v6019, 16
  %v6373 = vpop.permute.xlu0 %6372
  %6374 = vrot.lane.b32.xlu0 %v6021, 16
  %v6375 = vpop.permute.xlu0 %6374
  %6376 = vrot.lane.b32.xlu0 %v6023, 16
  %v6377 = vpop.permute.xlu0 %6376
  %6378 = vrot.lane.b32.xlu0 %v6025, 16
  %v6379 = vpop.permute.xlu0 %6378
  %6380 = vrot.lane.b32.xlu0 %v6027, 16
  %v6381 = vpop.permute.xlu0 %6380
  %6382 = vrot.lane.b32.xlu0 %v6029, 16
  %v6383 = vpop.permute.xlu0 %6382
  %6384 = vrot.lane.b32.xlu0 %v6031, 16
  %v6385 = vpop.permute.xlu0 %6384
  %6386 = vrot.lane.b32.xlu0 %v6033, 16
  %v6387 = vpop.permute.xlu0 %6386
  %6388 = vrot.lane.b32.xlu0 %v6035, 16
  %v6389 = vpop.permute.xlu0 %6388
  %6390 = vrot.lane.b32.xlu0 %v6037, 16
  %v6391 = vpop.permute.xlu0 %6390
  %6392 = vrot.lane.b32.xlu0 %v6039, 16
  %v6393 = vpop.permute.xlu0 %6392
  %6394 = vrot.lane.b32.xlu0 %v6041, 16
  %v6395 = vpop.permute.xlu0 %6394
  %6396 = vrot.lane.b32.xlu0 %v6043, 16
  %v6397 = vpop.permute.xlu0 %6396
  %6398 = vrot.lane.b32.xlu0 %v6045, 16
  %v6399 = vpop.permute.xlu0 %6398
  %6400 = vrot.lane.b32.xlu0 %v6047, 16
  %v6401 = vpop.permute.xlu0 %6400
  %6402 = vrot.lane.b32.xlu0 %v6049, 16
  %v6403 = vpop.permute.xlu0 %6402
  %vm6436 = vcmask 130048
  %v6437 = vsel %vm6436, %v6118, %v6341
  %v6438 = vsel %vm6436, %v6122, %v6343
  %v6439 = vsel %vm6436, %v6126, %v6345
  %v6440 = vsel %vm6436, %v6130, %v6347
  %v6441 = vsel %vm6436, %v6134, %v6349
  %v6442 = vsel %vm6436, %v6138, %v6351
  %v6443 = vsel %vm6436, %v6142, %v6353
  %v6444 = vsel %vm6436, %v6146, %v6355
  %v6445 = vsel %vm6436, %v6150, %v6357
  %v6446 = vsel %vm6436, %v6154, %v6359
  %v6447 = vsel %vm6436, %v6158, %v6361
  %v6448 = vsel %vm6436, %v6162, %v6363
  %v6449 = vsel %vm6436, %v6166, %v6365
  %v6450 = vsel %vm6436, %v6170, %v6367
  %v6451 = vsel %vm6436, %v6174, %v6369
  %v6452 = vsel %vm6436, %v6178, %v6371
  %v6453 = vsel %vm6436, %v6182, %v6373
  %v6454 = vsel %vm6436, %v6186, %v6375
  %v6455 = vsel %vm6436, %v6190, %v6377
  %v6456 = vsel %vm6436, %v6194, %v6379
  %v6457 = vsel %vm6436, %v6198, %v6381
  %v6458 = vsel %vm6436, %v6202, %v6383
  %v6459 = vsel %vm6436, %v6206, %v6385
  %v6460 = vsel %vm6436, %v6210, %v6387
  %v6461 = vsel %vm6436, %v6214, %v6389
  %v6462 = vsel %vm6436, %v6218, %v6391
  %v6463 = vsel %vm6436, %v6222, %v6393
  %v6464 = vsel %vm6436, %v6226, %v6395
  %v6465 = vsel %vm6436, %v6230, %v6397
  %v6466 = vsel %vm6436, %v6234, %v6399
  %v6467 = vsel %vm6436, %v6238, %v6401
  %v6468 = vsel %vm6436, %v6242, %v6403
  %v6469 = vmax.f32 %v5987, %v6244
  %v6470 = vmax.f32 %v5988, %v6437
  %v6471 = vmax.f32 %v5989, %v6245
  %v6472 = vmax.f32 %v5990, %v6438
  %v6473 = vmax.f32 %v5991, %v6246
  %v6474 = vmax.f32 %v5992, %v6439
  %v6475 = vmax.f32 %v5993, %v6247
  %v6476 = vmax.f32 %v5994, %v6440
  %v6477 = vmax.f32 %v5995, %v6248
  %v6478 = vmax.f32 %v5996, %v6441
  %v6479 = vmax.f32 %v5997, %v6249
  %v6480 = vmax.f32 %v5998, %v6442
  %v6481 = vmax.f32 %v5999, %v6250
  %v6482 = vmax.f32 %v6000, %v6443
  %v6483 = vmax.f32 %v6001, %v6251
  %v6484 = vmax.f32 %v6002, %v6444
  %v6485 = vmax.f32 %v6003, %v6252
  %v6486 = vmax.f32 %v6004, %v6445
  %v6487 = vmax.f32 %v6005, %v6253
  %v6488 = vmax.f32 %v6006, %v6446
  %v6489 = vmax.f32 %v6007, %v6254
  %v6490 = vmax.f32 %v6008, %v6447
  %v6491 = vmax.f32 %v6009, %v6255
  %v6492 = vmax.f32 %v6010, %v6448
  %v6493 = vmax.f32 %v6011, %v6256
  %v6494 = vmax.f32 %v6012, %v6449
  %v6495 = vmax.f32 %v6013, %v6257
  %v6496 = vmax.f32 %v6014, %v6450
  %v6497 = vmax.f32 %v6015, %v6258
  %v6498 = vmax.f32 %v6016, %v6451
  %v6499 = vmax.f32 %v6017, %v6259
  %v6500 = vmax.f32 %v6018, %v6452
  %v6501 = vmax.f32 %v6019, %v6260
  %v6502 = vmax.f32 %v6020, %v6453
  %v6503 = vmax.f32 %v6021, %v6261
  %v6504 = vmax.f32 %v6022, %v6454
  %v6505 = vmax.f32 %v6023, %v6262
  %v6506 = vmax.f32 %v6024, %v6455
  %v6507 = vmax.f32 %v6025, %v6263
  %v6508 = vmax.f32 %v6026, %v6456
  %v6509 = vmax.f32 %v6027, %v6264
  %v6510 = vmax.f32 %v6028, %v6457
  %v6511 = vmax.f32 %v6029, %v6265
  %v6512 = vmax.f32 %v6030, %v6458
  %v6513 = vmax.f32 %v6031, %v6266
  %v6514 = vmax.f32 %v6032, %v6459
  %v6515 = vmax.f32 %v6033, %v6267
  %v6516 = vmax.f32 %v6034, %v6460
  %v6517 = vmax.f32 %v6035, %v6268
  %v6518 = vmax.f32 %v6036, %v6461
  %v6519 = vmax.f32 %v6037, %v6269
  %v6520 = vmax.f32 %v6038, %v6462
  %v6521 = vmax.f32 %v6039, %v6270
  %v6522 = vmax.f32 %v6040, %v6463
  %v6523 = vmax.f32 %v6041, %v6271
  %v6524 = vmax.f32 %v6042, %v6464
  %v6525 = vmax.f32 %v6043, %v6272
  %v6526 = vmax.f32 %v6044, %v6465
  %v6527 = vmax.f32 %v6045, %v6273
  %v6528 = vmax.f32 %v6046, %v6466
  %v6529 = vmax.f32 %v6047, %v6274
  %v6530 = vmax.f32 %v6048, %v6467
  %v6531 = vmax.f32 %v6049, %v6275
  %v6532 = vmax.f32 %v6050, %v6468
  %v6533 = vpack.c.bf16 %v6471, %v6469
  %v6534 = vpack.c.bf16 %v6472, %v6470
  %v6535 = vpack.c.bf16 %v6475, %v6473
  %v6536 = vpack.c.bf16 %v6476, %v6474
  %v6537 = vpack.c.bf16 %v6479, %v6477
  %v6538 = vpack.c.bf16 %v6480, %v6478
  %v6539 = vpack.c.bf16 %v6483, %v6481
  %v6540 = vpack.c.bf16 %v6484, %v6482
  %v6541 = vpack.c.bf16 %v6487, %v6485
  %v6542 = vpack.c.bf16 %v6488, %v6486
  %v6543 = vpack.c.bf16 %v6491, %v6489
  %v6544 = vpack.c.bf16 %v6492, %v6490
  %v6545 = vpack.c.bf16 %v6495, %v6493
  %v6546 = vpack.c.bf16 %v6496, %v6494
  %v6547 = vpack.c.bf16 %v6499, %v6497
  %v6548 = vpack.c.bf16 %v6500, %v6498
  %v6549 = vpack.c.bf16 %v6503, %v6501
  %v6550 = vpack.c.bf16 %v6504, %v6502
  %v6551 = vpack.c.bf16 %v6507, %v6505
  %v6552 = vpack.c.bf16 %v6508, %v6506
  %v6553 = vpack.c.bf16 %v6511, %v6509
  %v6554 = vpack.c.bf16 %v6512, %v6510
  %v6555 = vpack.c.bf16 %v6515, %v6513
  %v6556 = vpack.c.bf16 %v6516, %v6514
  %v6557 = vpack.c.bf16 %v6519, %v6517
  %v6558 = vpack.c.bf16 %v6520, %v6518
  %v6559 = vpack.c.bf16 %v6523, %v6521
  %v6560 = vpack.c.bf16 %v6524, %v6522
  %v6561 = vpack.c.bf16 %v6527, %v6525
  %v6562 = vpack.c.bf16 %v6528, %v6526
  %v6563 = vpack.c.bf16 %v6531, %v6529
  %v6564 = vpack.c.bf16 %v6532, %v6530
  %v6565 = vld [vmem:[%s5] sm:$0xff]
  %v6567 = vunpack.c.l.b16 %v6565
  %v6568 = vunpack.c.h.b16 %v6565
  %v6569 = vpack.c.b16 %v6567, %v6567
  %v6570 = vpack.c.b16 %v6568, %v6568
  %6573 = vmatprep.subr.bf16.mxu0 %v6534
  %6574 = vmatpush1.bf16.msra.mxu0 %v6533
  %6575 = vmatprep.subr.bf16.mxu0 %v6536
  %6576 = vmatpush1.bf16.msra.mxu0 %v6535
  %6577 = vmatprep.subr.bf16.mxu0 %v6538
  %6578 = vmatpush1.bf16.msra.mxu0 %v6537
  %6579 = vmatprep.subr.bf16.mxu0 %v6540
  %6580 = vmatpush1.bf16.msra.mxu0 %v6539
  %6581 = vmatprep.subr.bf16.mxu0 %v6542
  %6582 = vmatpush1.bf16.msra.mxu0 %v6541
  %6583 = vmatprep.subr.bf16.mxu0 %v6544
  %6584 = vmatpush1.bf16.msra.mxu0 %v6543
  %6585 = vmatprep.subr.bf16.mxu0 %v6546
  %6586 = vmatpush1.bf16.msra.mxu0 %v6545
  %6587 = vmatprep.subr.bf16.mxu0 %v6548
  %6588 = vmatpush1.bf16.msra.mxu0 %v6547
  %6589 = vmatprep.subr.bf16.mxu0 %v6550
  %6590 = vmatpush1.bf16.msra.mxu0 %v6549
  %6591 = vmatprep.subr.bf16.mxu0 %v6552
  %6592 = vmatpush1.bf16.msra.mxu0 %v6551
  %6593 = vmatprep.subr.bf16.mxu0 %v6554
  %6594 = vmatpush1.bf16.msra.mxu0 %v6553
  %6595 = vmatprep.subr.bf16.mxu0 %v6556
  %6596 = vmatpush1.bf16.msra.mxu0 %v6555
  %6597 = vmatprep.subr.bf16.mxu0 %v6558
  %6598 = vmatpush1.bf16.msra.mxu0 %v6557
  %6599 = vmatprep.subr.bf16.mxu0 %v6560
  %6600 = vmatpush1.bf16.msra.mxu0 %v6559
  %6601 = vmatprep.subr.bf16.mxu0 %v6562
  %6602 = vmatpush1.bf16.msra.mxu0 %v6561
  %6603 = vmatprep.subr.bf16.mxu0 %v6564
  %6604 = vmatpush1.bf16.msra.mxu0 %v6563
  %6605 = vmatprep.mubr.bf16.mxu0 %v6570
  %6606 = vmatmul.mubr.bf16.gmra.mrb[0].mxu0 %v6569
  %v6607 = vpop.f32.mrb[0].mxu0
  %v6608 = vadd.f32 0.0, %v6607
  %v6609 = vpop.f32.mrb[0].mxu0
  %v6610 = vadd.f32 0.0, %v6609
  %v6611 = vpop.f32.mrb[0].mxu0
  %v6612 = vpop.f32.mrb[0].mxu0
  %6613 = vdwg.mxu0
  %v6614 = vpack.c.bf16 %v6608, %v6608
  %v6615 = vpack.c.bf16 %v6610, %v6610
  %v6616 = vld [vmem:[%s6] sm:$0xf]
  %v6617 = vld [vmem:[%s6 + $0x4] sm:$0xf]
  %v6618 = vld [vmem:[%s6 + $0x8] sm:$0xf]
  %v6619 = vld [vmem:[%s6 + $0xc] sm:$0xf]
  %v6620 = vld [vmem:[%s6 + $0x10] sm:$0xf]
  %v6621 = vld [vmem:[%s6 + $0x14] sm:$0xf]
  %v6622 = vld [vmem:[%s6 + $0x18] sm:$0xf]
  %v6623 = vld [vmem:[%s6 + $0x1c] sm:$0xf]
  %v6624 = vld [vmem:[%s6 + $0x20] sm:$0xf]
  %v6625 = vld [vmem:[%s6 + $0x24] sm:$0xf]
  %v6626 = vld [vmem:[%s6 + $0x28] sm:$0xf]
  %v6627 = vld [vmem:[%s6 + $0x2c] sm:$0xf]
  %v6628 = vld [vmem:[%s6 + $0x30] sm:$0xf]
  %v6629 = vld [vmem:[%s6 + $0x34] sm:$0xf]
  %v6630 = vld [vmem:[%s6 + $0x38] sm:$0xf]
  %v6631 = vld [vmem:[%s6 + $0x3c] sm:$0xf]
  %v6632 = vld [vmem:[%s6 + $0x40] sm:$0xf]
  %v6633 = vld [vmem:[%s6 + $0x44] sm:$0xf]
  %v6634 = vld [vmem:[%s6 + $0x48] sm:$0xf]
  %v6635 = vld [vmem:[%s6 + $0x4c] sm:$0xf]
  %s6636 = scalar_lea.vmem %s5, 8
  %v6637 = vld [vmem:[%s6636] sm:$0xff]
  %v6639 = vunpack.c.l.b16 %v6637
  %v6640 = vunpack.c.h.b16 %v6637
  %v6641 = vpack.c.b16 %v6639, %v6639
  %v6642 = vpack.c.b16 %v6640, %v6640
  %6645 = vmatprep.subr.bf16.mxu0 %v6534
  %6646 = vmatpush1.bf16.msra.mxu0 %v6533
  %6647 = vmatprep.subr.bf16.mxu0 %v6536
  %6648 = vmatpush1.bf16.msra.mxu0 %v6535
  %6649 = vmatprep.subr.bf16.mxu0 %v6538
  %6650 = vmatpush1.bf16.msra.mxu0 %v6537
  %6651 = vmatprep.subr.bf16.mxu0 %v6540
  %6652 = vmatpush1.bf16.msra.mxu0 %v6539
  %6653 = vmatprep.subr.bf16.mxu0 %v6542
  %6654 = vmatpush1.bf16.msra.mxu0 %v6541
  %6655 = vmatprep.subr.bf16.mxu0 %v6544
  %6656 = vmatpush1.bf16.msra.mxu0 %v6543
  %6657 = vmatprep.subr.bf16.mxu0 %v6546
  %6658 = vmatpush1.bf16.msra.mxu0 %v6545
  %6659 = vmatprep.subr.bf16.mxu0 %v6548
  %6660 = vmatpush1.bf16.msra.mxu0 %v6547
  %6661 = vmatprep.subr.bf16.mxu0 %v6550
  %6662 = vmatpush1.bf16.msra.mxu0 %v6549
  %6663 = vmatprep.subr.bf16.mxu0 %v6552
  %6664 = vmatpush1.bf16.msra.mxu0 %v6551
  %6665 = vmatprep.subr.bf16.mxu0 %v6554
  %6666 = vmatpush1.bf16.msra.mxu0 %v6553
  %6667 = vmatprep.subr.bf16.mxu0 %v6556
  %6668 = vmatpush1.bf16.msra.mxu0 %v6555
  %6669 = vmatprep.subr.bf16.mxu0 %v6558
  %6670 = vmatpush1.bf16.msra.mxu0 %v6557
  %6671 = vmatprep.subr.bf16.mxu0 %v6560
  %6672 = vmatpush1.bf16.msra.mxu0 %v6559
  %6673 = vmatprep.subr.bf16.mxu0 %v6562
  %6674 = vmatpush1.bf16.msra.mxu0 %v6561
  %6675 = vmatprep.subr.bf16.mxu0 %v6564
  %6676 = vmatpush1.bf16.msra.mxu0 %v6563
  %6677 = vmatprep.mubr.bf16.mxu0 %v6642
  %6678 = vmatmul.mubr.bf16.gmra.mrb[0].mxu0 %v6641
  %v6679 = vpop.f32.mrb[0].mxu0
  %v6680 = vadd.f32 0.0, %v6679
  %v6681 = vpop.f32.mrb[0].mxu0
  %v6682 = vadd.f32 0.0, %v6681
  %v6683 = vpop.f32.mrb[0].mxu0
  %v6684 = vpop.f32.mrb[0].mxu0
  %6685 = vdwg.mxu0
  %v6686 = vpack.c.bf16 %v6680, %v6680
  %v6687 = vpack.c.bf16 %v6682, %v6682
  %s6688 = scalar_lea.vmem %s6, 80
  %v6689 = vld [vmem:[%s6688] sm:$0xf]
  %v6690 = vld [vmem:[%s6688 + $0x4] sm:$0xf]
  %v6691 = vld [vmem:[%s6688 + $0x8] sm:$0xf]
  %v6692 = vld [vmem:[%s6688 + $0xc] sm:$0xf]
  %v6693 = vld [vmem:[%s6688 + $0x10] sm:$0xf]
  %v6694 = vld [vmem:[%s6688 + $0x14] sm:$0xf]
  %v6695 = vld [vmem:[%s6688 + $0x18] sm:$0xf]
  %v6696 = vld [vmem:[%s6688 + $0x1c] sm:$0xf]
  %v6697 = vld [vmem:[%s6688 + $0x20] sm:$0xf]
  %v6698 = vld [vmem:[%s6688 + $0x24] sm:$0xf]
  %v6699 = vld [vmem:[%s6688 + $0x28] sm:$0xf]
  %v6700 = vld [vmem:[%s6688 + $0x2c] sm:$0xf]
  %v6701 = vld [vmem:[%s6688 + $0x30] sm:$0xf]
  %v6702 = vld [vmem:[%s6688 + $0x34] sm:$0xf]
  %v6703 = vld [vmem:[%s6688 + $0x38] sm:$0xf]
  %v6704 = vld [vmem:[%s6688 + $0x3c] sm:$0xf]
  %v6705 = vld [vmem:[%s6688 + $0x40] sm:$0xf]
  %v6706 = vld [vmem:[%s6688 + $0x44] sm:$0xf]
  %v6707 = vld [vmem:[%s6688 + $0x48] sm:$0xf]
  %v6708 = vld [vmem:[%s6688 + $0x4c] sm:$0xf]
  %v6729 = vunpack.c.l.b16 %v6689
  %v6730 = vunpack.c.l.b16 %v6690
  %v6731 = vunpack.c.l.b16 %v6691
  %v6732 = vunpack.c.l.b16 %v6692
  %v6733 = vunpack.c.l.b16 %v6693
  %v6734 = vunpack.c.l.b16 %v6694
  %v6735 = vunpack.c.l.b16 %v6695
  %v6736 = vunpack.c.l.b16 %v6696
  %v6737 = vunpack.c.l.b16 %v6697
  %v6738 = vunpack.c.l.b16 %v6698
  %v6739 = vunpack.c.l.b16 %v6699
  %v6740 = vunpack.c.l.b16 %v6700
  %v6741 = vunpack.c.l.b16 %v6701
  %v6742 = vunpack.c.l.b16 %v6702
  %v6743 = vunpack.c.l.b16 %v6703
  %v6744 = vunpack.c.l.b16 %v6704
  %v6745 = vunpack.c.l.b16 %v6705
  %v6746 = vunpack.c.l.b16 %v6706
  %v6747 = vunpack.c.l.b16 %v6707
  %v6748 = vunpack.c.l.b16 %v6708
  %v6749 = vpack.c.b16 %v6730, %v6729
  %v6750 = vpack.c.b16 %v6732, %v6731
  %v6751 = vpack.c.b16 %v6734, %v6733
  %v6752 = vpack.c.b16 %v6736, %v6735
  %v6753 = vpack.c.b16 %v6738, %v6737
  %v6754 = vpack.c.b16 %v6740, %v6739
  %v6755 = vpack.c.b16 %v6742, %v6741
  %v6756 = vpack.c.b16 %v6744, %v6743
  %v6757 = vpack.c.b16 %v6746, %v6745
  %v6758 = vpack.c.b16 %v6748, %v6747
  %vm6769 = vcmask 261120
  %v6771 = vsel %vm6769, %v6687, 0
  %6773 = vmatprep.subr.bf16.mxu0 0
  %6774 = vmatpush1.bf16.msra.mxu0 %v6749
  %6775 = vmatprep.subr.bf16.mxu0 0
  %6776 = vmatpush1.bf16.msra.mxu0 %v6750
  %6777 = vmatprep.subr.bf16.mxu0 0
  %6778 = vmatpush1.bf16.msra.mxu0 %v6751
  %6779 = vmatprep.subr.bf16.mxu0 0
  %6780 = vmatpush1.bf16.msra.mxu0 %v6752
  %6781 = vmatprep.subr.bf16.mxu0 0
  %6782 = vmatpush1.bf16.msra.mxu0 %v6753
  %6783 = vmatprep.subr.bf16.mxu0 0
  %6784 = vmatpush1.bf16.msra.mxu0 %v6754
  %6785 = vmatprep.subr.bf16.mxu0 0
  %6786 = vmatpush1.bf16.msra.mxu0 %v6755
  %6787 = vmatprep.subr.bf16.mxu0 0
  %6788 = vmatpush1.bf16.msra.mxu0 %v6756
  %6789 = vmatprep.subr.bf16.mxu0 0
  %6790 = vmatpush1.bf16.msra.mxu0 %v6757
  %6791 = vmatprep.subr.bf16.mxu0 0
  %6792 = vmatpush1.bf16.msra.mxu0 %v6758
  %6793 = vmatprep.subr.bf16.mxu0 0
  %6794 = vmatpush1.bf16.msra.mxu0 0
  %6795 = vmatprep.subr.bf16.mxu0 0
  %6796 = vmatpush1.bf16.msra.mxu0 0
  %6797 = vmatprep.subr.bf16.mxu0 0
  %6798 = vmatpush1.bf16.msra.mxu0 0
  %6799 = vmatprep.subr.bf16.mxu0 0
  %6800 = vmatpush1.bf16.msra.mxu0 0
  %6801 = vmatprep.subr.bf16.mxu0 0
  %6802 = vmatpush1.bf16.msra.mxu0 0
  %6803 = vmatprep.subr.bf16.mxu0 0
  %6804 = vmatpush1.bf16.msra.mxu0 0
  %6805 = vmatprep.mubr.bf16.mxu0 %v6771
  %6806 = vmatmul.mubr.bf16.gmra.mrb[0].mxu0 %v6686
  %v6807 = vpop.f32.mrb[0].mxu0
  %v6808 = vadd.f32 0.0, %v6807
  %v6809 = vpop.f32.mrb[0].mxu0
  %v6810 = vpop.f32.mrb[0].mxu0
  %v6811 = vpop.f32.mrb[0].mxu0
  %6812 = vdwg.mxu0
  %v6833 = vunpack.c.l.b16 %v6616
  %v6834 = vunpack.c.l.b16 %v6617
  %v6835 = vunpack.c.l.b16 %v6618
  %v6836 = vunpack.c.l.b16 %v6619
  %v6837 = vunpack.c.l.b16 %v6620
  %v6838 = vunpack.c.l.b16 %v6621
  %v6839 = vunpack.c.l.b16 %v6622
  %v6840 = vunpack.c.l.b16 %v6623
  %v6841 = vunpack.c.l.b16 %v6624
  %v6842 = vunpack.c.l.b16 %v6625
  %v6843 = vunpack.c.l.b16 %v6626
  %v6844 = vunpack.c.l.b16 %v6627
  %v6845 = vunpack.c.l.b16 %v6628
  %v6846 = vunpack.c.l.b16 %v6629
  %v6847 = vunpack.c.l.b16 %v6630
  %v6848 = vunpack.c.l.b16 %v6631
  %v6849 = vunpack.c.l.b16 %v6632
  %v6850 = vunpack.c.l.b16 %v6633
  %v6851 = vunpack.c.l.b16 %v6634
  %v6852 = vunpack.c.l.b16 %v6635
  %v6853 = vpack.c.b16 %v6834, %v6833
  %v6854 = vpack.c.b16 %v6836, %v6835
  %v6855 = vpack.c.b16 %v6838, %v6837
  %v6856 = vpack.c.b16 %v6840, %v6839
  %v6857 = vpack.c.b16 %v6842, %v6841
  %v6858 = vpack.c.b16 %v6844, %v6843
  %v6859 = vpack.c.b16 %v6846, %v6845
  %v6860 = vpack.c.b16 %v6848, %v6847
  %v6861 = vpack.c.b16 %v6850, %v6849
  %v6862 = vpack.c.b16 %v6852, %v6851
  %v6874 = vsel %vm6769, %v6615, 0
  %6876 = vmatprep.subr.bf16.mxu0 0
  %6877 = vmatpush1.bf16.msra.mxu0 %v6853
  %6878 = vmatprep.subr.bf16.mxu0 0
  %6879 = vmatpush1.bf16.msra.mxu0 %v6854
  %6880 = vmatprep.subr.bf16.mxu0 0
  %6881 = vmatpush1.bf16.msra.mxu0 %v6855
  %6882 = vmatprep.subr.bf16.mxu0 0
  %6883 = vmatpush1.bf16.msra.mxu0 %v6856
  %6884 = vmatprep.subr.bf16.mxu0 0
  %6885 = vmatpush1.bf16.msra.mxu0 %v6857
  %6886 = vmatprep.subr.bf16.mxu0 0
  %6887 = vmatpush1.bf16.msra.mxu0 %v6858
  %6888 = vmatprep.subr.bf16.mxu0 0
  %6889 = vmatpush1.bf16.msra.mxu0 %v6859
  %6890 = vmatprep.subr.bf16.mxu0 0
  %6891 = vmatpush1.bf16.msra.mxu0 %v6860
  %6892 = vmatprep.subr.bf16.mxu0 0
  %6893 = vmatpush1.bf16.msra.mxu0 %v6861
  %6894 = vmatprep.subr.bf16.mxu0 0
  %6895 = vmatpush1.bf16.msra.mxu0 %v6862
  %6896 = vmatprep.subr.bf16.mxu0 0
  %6897 = vmatpush1.bf16.msra.mxu0 0
  %6898 = vmatprep.subr.bf16.mxu0 0
  %6899 = vmatpush1.bf16.msra.mxu0 0
  %6900 = vmatprep.subr.bf16.mxu0 0
  %6901 = vmatpush1.bf16.msra.mxu0 0
  %6902 = vmatprep.subr.bf16.mxu0 0
  %6903 = vmatpush1.bf16.msra.mxu0 0
  %6904 = vmatprep.subr.bf16.mxu0 0
  %6905 = vmatpush1.bf16.msra.mxu0 0
  %6906 = vmatprep.subr.bf16.mxu0 0
  %6907 = vmatpush1.bf16.msra.mxu0 0
  %6908 = vmatprep.mubr.bf16.mxu0 %v6874
  %6909 = vmatmul.mubr.bf16.gmra.mrb[0].mxu0 %v6614
  %v6910 = vpop.f32.mrb[0].mxu0
  %v6911 = vadd.f32 %v6808, %v6910
  %v6912 = vpop.f32.mrb[0].mxu0
  %v6913 = vpop.f32.mrb[0].mxu0
  %v6914 = vpop.f32.mrb[0].mxu0
  %6915 = vdwg.mxu0
  %s6916 = scalar_lea.vmem %s5, 16
  %v6917 = vld [vmem:[%s6916] sm:$0xff]
  %v6919 = vunpack.c.l.b16 %v6917
  %v6920 = vunpack.c.h.b16 %v6917
  %v6921 = vpack.c.b16 %v6919, %v6919
  %v6922 = vpack.c.b16 %v6920, %v6920
  %6925 = vmatprep.subr.bf16.mxu0 %v6534
  %6926 = vmatpush1.bf16.msra.mxu0 %v6533
  %6927 = vmatprep.subr.bf16.mxu0 %v6536
  %6928 = vmatpush1.bf16.msra.mxu0 %v6535
  %6929 = vmatprep.subr.bf16.mxu0 %v6538
  %6930 = vmatpush1.bf16.msra.mxu0 %v6537
  %6931 = vmatprep.subr.bf16.mxu0 %v6540
  %6932 = vmatpush1.bf16.msra.mxu0 %v6539
  %6933 = vmatprep.subr.bf16.mxu0 %v6542
  %6934 = vmatpush1.bf16.msra.mxu0 %v6541
  %6935 = vmatprep.subr.bf16.mxu0 %v6544
  %6936 = vmatpush1.bf16.msra.mxu0 %v6543
  %6937 = vmatprep.subr.bf16.mxu0 %v6546
  %6938 = vmatpush1.bf16.msra.mxu0 %v6545
  %6939 = vmatprep.subr.bf16.mxu0 %v6548
  %6940 = vmatpush1.bf16.msra.mxu0 %v6547
  %6941 = vmatprep.subr.bf16.mxu0 %v6550
  %6942 = vmatpush1.bf16.msra.mxu0 %v6549
  %6943 = vmatprep.subr.bf16.mxu0 %v6552
  %6944 = vmatpush1.bf16.msra.mxu0 %v6551
  %6945 = vmatprep.subr.bf16.mxu0 %v6554
  %6946 = vmatpush1.bf16.msra.mxu0 %v6553
  %6947 = vmatprep.subr.bf16.mxu0 %v6556
  %6948 = vmatpush1.bf16.msra.mxu0 %v6555
  %6949 = vmatprep.subr.bf16.mxu0 %v6558
  %6950 = vmatpush1.bf16.msra.mxu0 %v6557
  %6951 = vmatprep.subr.bf16.mxu0 %v6560
  %6952 = vmatpush1.bf16.msra.mxu0 %v6559
  %6953 = vmatprep.subr.bf16.mxu0 %v6562
  %6954 = vmatpush1.bf16.msra.mxu0 %v6561
  %6955 = vmatprep.subr.bf16.mxu0 %v6564
  %6956 = vmatpush1.bf16.msra.mxu0 %v6563
  %6957 = vmatprep.mubr.bf16.mxu0 %v6922
  %6958 = vmatmul.mubr.bf16.gmra.mrb[0].mxu0 %v6921
  %v6959 = vpop.f32.mrb[0].mxu0
  %v6960 = vadd.f32 0.0, %v6959
  %v6961 = vpop.f32.mrb[0].mxu0
  %v6962 = vadd.f32 0.0, %v6961
  %v6963 = vpop.f32.mrb[0].mxu0
  %v6964 = vpop.f32.mrb[0].mxu0
  %6965 = vdwg.mxu0
  %v6966 = vpack.c.bf16 %v6960, %v6960
  %v6967 = vpack.c.bf16 %v6962, %v6962
  %s6968 = scalar_lea.vmem %s6, 160
  %v6969 = vld [vmem:[%s6968] sm:$0xf]
  %v6970 = vld [vmem:[%s6968 + $0x4] sm:$0xf]
  %v6971 = vld [vmem:[%s6968 + $0x8] sm:$0xf]
  %v6972 = vld [vmem:[%s6968 + $0xc] sm:$0xf]
  %v6973 = vld [vmem:[%s6968 + $0x10] sm:$0xf]
  %v6974 = vld [vmem:[%s6968 + $0x14] sm:$0xf]
  %v6975 = vld [vmem:[%s6968 + $0x18] sm:$0xf]
  %v6976 = vld [vmem:[%s6968 + $0x1c] sm:$0xf]
  %v6977 = vld [vmem:[%s6968 + $0x20] sm:$0xf]
  %v6978 = vld [vmem:[%s6968 + $0x24] sm:$0xf]
  %v6979 = vld [vmem:[%s6968 + $0x28] sm:$0xf]
  %v6980 = vld [vmem:[%s6968 + $0x2c] sm:$0xf]
  %v6981 = vld [vmem:[%s6968 + $0x30] sm:$0xf]
  %v6982 = vld [vmem:[%s6968 + $0x34] sm:$0xf]
  %v6983 = vld [vmem:[%s6968 + $0x38] sm:$0xf]
  %v6984 = vld [vmem:[%s6968 + $0x3c] sm:$0xf]
  %v6985 = vld [vmem:[%s6968 + $0x40] sm:$0xf]
  %v6986 = vld [vmem:[%s6968 + $0x44] sm:$0xf]
  %v6987 = vld [vmem:[%s6968 + $0x48] sm:$0xf]
  %v6988 = vld [vmem:[%s6968 + $0x4c] sm:$0xf]
  %v7009 = vunpack.c.l.b16 %v6969
  %v7010 = vunpack.c.l.b16 %v6970
  %v7011 = vunpack.c.l.b16 %v6971
  %v7012 = vunpack.c.l.b16 %v6972
  %v7013 = vunpack.c.l.b16 %v6973
  %v7014 = vunpack.c.l.b16 %v6974
  %v7015 = vunpack.c.l.b16 %v6975
  %v7016 = vunpack.c.l.b16 %v6976
  %v7017 = vunpack.c.l.b16 %v6977
  %v7018 = vunpack.c.l.b16 %v6978
  %v7019 = vunpack.c.l.b16 %v6979
  %v7020 = vunpack.c.l.b16 %v6980
  %v7021 = vunpack.c.l.b16 %v6981
  %v7022 = vunpack.c.l.b16 %v6982
  %v7023 = vunpack.c.l.b16 %v6983
  %v7024 = vunpack.c.l.b16 %v6984
  %v7025 = vunpack.c.l.b16 %v6985
  %v7026 = vunpack.c.l.b16 %v6986
  %v7027 = vunpack.c.l.b16 %v6987
  %v7028 = vunpack.c.l.b16 %v6988
  %v7029 = vpack.c.b16 %v7010, %v7009
  %v7030 = vpack.c.b16 %v7012, %v7011
  %v7031 = vpack.c.b16 %v7014, %v7013
  %v7032 = vpack.c.b16 %v7016, %v7015
  %v7033 = vpack.c.b16 %v7018, %v7017
  %v7034 = vpack.c.b16 %v7020, %v7019
  %v7035 = vpack.c.b16 %v7022, %v7021
  %v7036 = vpack.c.b16 %v7024, %v7023
  %v7037 = vpack.c.b16 %v7026, %v7025
  %v7038 = vpack.c.b16 %v7028, %v7027
  %v7050 = vsel %vm6769, %v6967, 0
  %7052 = vmatprep.subr.bf16.mxu0 0
  %7053 = vmatpush1.bf16.msra.mxu0 %v7029
  %7054 = vmatprep.subr.bf16.mxu0 0
  %7055 = vmatpush1.bf16.msra.mxu0 %v7030
  %7056 = vmatprep.subr.bf16.mxu0 0
  %7057 = vmatpush1.bf16.msra.mxu0 %v7031
  %7058 = vmatprep.subr.bf16.mxu0 0
  %7059 = vmatpush1.bf16.msra.mxu0 %v7032
  %7060 = vmatprep.subr.bf16.mxu0 0
  %7061 = vmatpush1.bf16.msra.mxu0 %v7033
  %7062 = vmatprep.subr.bf16.mxu0 0
  %7063 = vmatpush1.bf16.msra.mxu0 %v7034
  %7064 = vmatprep.subr.bf16.mxu0 0
  %7065 = vmatpush1.bf16.msra.mxu0 %v7035
  %7066 = vmatprep.subr.bf16.mxu0 0
  %7067 = vmatpush1.bf16.msra.mxu0 %v7036
  %7068 = vmatprep.subr.bf16.mxu0 0
  %7069 = vmatpush1.bf16.msra.mxu0 %v7037
  %7070 = vmatprep.subr.bf16.mxu0 0
  %7071 = vmatpush1.bf16.msra.mxu0 %v7038
  %7072 = vmatprep.subr.bf16.mxu0 0
  %7073 = vmatpush1.bf16.msra.mxu0 0
  %7074 = vmatprep.subr.bf16.mxu0 0
  %7075 = vmatpush1.bf16.msra.mxu0 0
  %7076 = vmatprep.subr.bf16.mxu0 0
  %7077 = vmatpush1.bf16.msra.mxu0 0
  %7078 = vmatprep.subr.bf16.mxu0 0
  %7079 = vmatpush1.bf16.msra.mxu0 0
  %7080 = vmatprep.subr.bf16.mxu0 0
  %7081 = vmatpush1.bf16.msra.mxu0 0
  %7082 = vmatprep.subr.bf16.mxu0 0
  %7083 = vmatpush1.bf16.msra.mxu0 0
  %7084 = vmatprep.mubr.bf16.mxu0 %v7050
  %7085 = vmatmul.mubr.bf16.gmra.mrb[0].mxu0 %v6966
  %v7086 = vpop.f32.mrb[0].mxu0
  %v7087 = vadd.f32 0.0, %v7086
  %v7088 = vpop.f32.mrb[0].mxu0
  %v7089 = vpop.f32.mrb[0].mxu0
  %v7090 = vpop.f32.mrb[0].mxu0
  %7091 = vdwg.mxu0
  %v7092 = vadd.f32 %v6911, %v7087
  %s7093 = scalar_lea.vmem %s5, 24
  %v7094 = vld [vmem:[%s7093] sm:$0xff]
  %v7096 = vunpack.c.l.b16 %v7094
  %v7097 = vunpack.c.h.b16 %v7094
  %v7098 = vpack.c.b16 %v7096, %v7096
  %v7099 = vpack.c.b16 %v7097, %v7097
  %7102 = vmatprep.subr.bf16.mxu0 %v6534
  %7103 = vmatpush1.bf16.msra.mxu0 %v6533
  %7104 = vmatprep.subr.bf16.mxu0 %v6536
  %7105 = vmatpush1.bf16.msra.mxu0 %v6535
  %7106 = vmatprep.subr.bf16.mxu0 %v6538
  %7107 = vmatpush1.bf16.msra.mxu0 %v6537
  %7108 = vmatprep.subr.bf16.mxu0 %v6540
  %7109 = vmatpush1.bf16.msra.mxu0 %v6539
  %7110 = vmatprep.subr.bf16.mxu0 %v6542
  %7111 = vmatpush1.bf16.msra.mxu0 %v6541
  %7112 = vmatprep.subr.bf16.mxu0 %v6544
  %7113 = vmatpush1.bf16.msra.mxu0 %v6543
  %7114 = vmatprep.subr.bf16.mxu0 %v6546
  %7115 = vmatpush1.bf16.msra.mxu0 %v6545
  %7116 = vmatprep.subr.bf16.mxu0 %v6548
  %7117 = vmatpush1.bf16.msra.mxu0 %v6547
  %7118 = vmatprep.subr.bf16.mxu0 %v6550
  %7119 = vmatpush1.bf16.msra.mxu0 %v6549
  %7120 = vmatprep.subr.bf16.mxu0 %v6552
  %7121 = vmatpush1.bf16.msra.mxu0 %v6551
  %7122 = vmatprep.subr.bf16.mxu0 %v6554
  %7123 = vmatpush1.bf16.msra.mxu0 %v6553
  %7124 = vmatprep.subr.bf16.mxu0 %v6556
  %7125 = vmatpush1.bf16.msra.mxu0 %v6555
  %7126 = vmatprep.subr.bf16.mxu0 %v6558
  %7127 = vmatpush1.bf16.msra.mxu0 %v6557
  %7128 = vmatprep.subr.bf16.mxu0 %v6560
  %7129 = vmatpush1.bf16.msra.mxu0 %v6559
  %7130 = vmatprep.subr.bf16.mxu0 %v6562
  %7131 = vmatpush1.bf16.msra.mxu0 %v6561
  %7132 = vmatprep.subr.bf16.mxu0 %v6564
  %7133 = vmatpush1.bf16.msra.mxu0 %v6563
  %7134 = vmatprep.mubr.bf16.mxu0 %v7099
  %7135 = vmatmul.mubr.bf16.gmra.mrb[0].mxu0 %v7098
  %v7136 = vpop.f32.mrb[0].mxu0
  %v7137 = vadd.f32 0.0, %v7136
  %v7138 = vpop.f32.mrb[0].mxu0
  %v7139 = vadd.f32 0.0, %v7138
  %v7140 = vpop.f32.mrb[0].mxu0
  %v7141 = vpop.f32.mrb[0].mxu0
  %7142 = vdwg.mxu0
  %v7143 = vpack.c.bf16 %v7137, %v7137
  %v7144 = vpack.c.bf16 %v7139, %v7139
  %s7145 = scalar_lea.vmem %s6, 240
  %v7146 = vld [vmem:[%s7145] sm:$0xf]
  %v7147 = vld [vmem:[%s7145 + $0x4] sm:$0xf]
  %v7148 = vld [vmem:[%s7145 + $0x8] sm:$0xf]
  %v7149 = vld [vmem:[%s7145 + $0xc] sm:$0xf]
  %v7150 = vld [vmem:[%s7145 + $0x10] sm:$0xf]
  %v7151 = vld [vmem:[%s7145 + $0x14] sm:$0xf]
  %v7152 = vld [vmem:[%s7145 + $0x18] sm:$0xf]
  %v7153 = vld [vmem:[%s7145 + $0x1c] sm:$0xf]
  %v7154 = vld [vmem:[%s7145 + $0x20] sm:$0xf]
  %v7155 = vld [vmem:[%s7145 + $0x24] sm:$0xf]
  %v7156 = vld [vmem:[%s7145 + $0x28] sm:$0xf]
  %v7157 = vld [vmem:[%s7145 + $0x2c] sm:$0xf]
  %v7158 = vld [vmem:[%s7145 + $0x30] sm:$0xf]
  %v7159 = vld [vmem:[%s7145 + $0x34] sm:$0xf]
  %v7160 = vld [vmem:[%s7145 + $0x38] sm:$0xf]
  %v7161 = vld [vmem:[%s7145 + $0x3c] sm:$0xf]
  %v7162 = vld [vmem:[%s7145 + $0x40] sm:$0xf]
  %v7163 = vld [vmem:[%s7145 + $0x44] sm:$0xf]
  %v7164 = vld [vmem:[%s7145 + $0x48] sm:$0xf]
  %v7165 = vld [vmem:[%s7145 + $0x4c] sm:$0xf]
  %v7186 = vunpack.c.l.b16 %v7146
  %v7187 = vunpack.c.l.b16 %v7147
  %v7188 = vunpack.c.l.b16 %v7148
  %v7189 = vunpack.c.l.b16 %v7149
  %v7190 = vunpack.c.l.b16 %v7150
  %v7191 = vunpack.c.l.b16 %v7151
  %v7192 = vunpack.c.l.b16 %v7152
  %v7193 = vunpack.c.l.b16 %v7153
  %v7194 = vunpack.c.l.b16 %v7154
  %v7195 = vunpack.c.l.b16 %v7155
  %v7196 = vunpack.c.l.b16 %v7156
  %v7197 = vunpack.c.l.b16 %v7157
  %v7198 = vunpack.c.l.b16 %v7158
  %v7199 = vunpack.c.l.b16 %v7159
  %v7200 = vunpack.c.l.b16 %v7160
  %v7201 = vunpack.c.l.b16 %v7161
  %v7202 = vunpack.c.l.b16 %v7162
  %v7203 = vunpack.c.l.b16 %v7163
  %v7204 = vunpack.c.l.b16 %v7164
  %v7205 = vunpack.c.l.b16 %v7165
  %v7206 = vpack.c.b16 %v7187, %v7186
  %v7207 = vpack.c.b16 %v7189, %v7188
  %v7208 = vpack.c.b16 %v7191, %v7190
  %v7209 = vpack.c.b16 %v7193, %v7192
  %v7210 = vpack.c.b16 %v7195, %v7194
  %v7211 = vpack.c.b16 %v7197, %v7196
  %v7212 = vpack.c.b16 %v7199, %v7198
  %v7213 = vpack.c.b16 %v7201, %v7200
  %v7214 = vpack.c.b16 %v7203, %v7202
  %v7215 = vpack.c.b16 %v7205, %v7204
  %v7227 = vsel %vm6769, %v7144, 0
  %7229 = vmatprep.subr.bf16.mxu0 0
  %7230 = vmatpush1.bf16.msra.mxu0 %v7206
  %7231 = vmatprep.subr.bf16.mxu0 0
  %7232 = vmatpush1.bf16.msra.mxu0 %v7207
  %7233 = vmatprep.subr.bf16.mxu0 0
  %7234 = vmatpush1.bf16.msra.mxu0 %v7208
  %7235 = vmatprep.subr.bf16.mxu0 0
  %7236 = vmatpush1.bf16.msra.mxu0 %v7209
  %7237 = vmatprep.subr.bf16.mxu0 0
  %7238 = vmatpush1.bf16.msra.mxu0 %v7210
  %7239 = vmatprep.subr.bf16.mxu0 0
  %7240 = vmatpush1.bf16.msra.mxu0 %v7211
  %7241 = vmatprep.subr.bf16.mxu0 0
  %7242 = vmatpush1.bf16.msra.mxu0 %v7212
  %7243 = vmatprep.subr.bf16.mxu0 0
  %7244 = vmatpush1.bf16.msra.mxu0 %v7213
  %7245 = vmatprep.subr.bf16.mxu0 0
  %7246 = vmatpush1.bf16.msra.mxu0 %v7214
  %7247 = vmatprep.subr.bf16.mxu0 0
  %7248 = vmatpush1.bf16.msra.mxu0 %v7215
  %7249 = vmatprep.subr.bf16.mxu0 0
  %7250 = vmatpush1.bf16.msra.mxu0 0
  %7251 = vmatprep.subr.bf16.mxu0 0
  %7252 = vmatpush1.bf16.msra.mxu0 0
  %7253 = vmatprep.subr.bf16.mxu0 0
  %7254 = vmatpush1.bf16.msra.mxu0 0
  %7255 = vmatprep.subr.bf16.mxu0 0
  %7256 = vmatpush1.bf16.msra.mxu0 0
  %7257 = vmatprep.subr.bf16.mxu0 0
  %7258 = vmatpush1.bf16.msra.mxu0 0
  %7259 = vmatprep.subr.bf16.mxu0 0
  %7260 = vmatpush1.bf16.msra.mxu0 0
  %7261 = vmatprep.mubr.bf16.mxu0 %v7227
  %7262 = vmatmul.mubr.bf16.gmra.mrb[0].mxu0 %v7143
  %v7263 = vpop.f32.mrb[0].mxu0
  %v7264 = vadd.f32 0.0, %v7263
  %v7265 = vpop.f32.mrb[0].mxu0
  %v7266 = vpop.f32.mrb[0].mxu0
  %v7267 = vpop.f32.mrb[0].mxu0
  %7268 = vdwg.mxu0
  %v7269 = vadd.f32 %v7092, %v7264
  %s7270 = scalar_lea.vmem %s5, 32
  %v7271 = vld [vmem:[%s7270] sm:$0xff]
  %v7273 = vunpack.c.l.b16 %v7271
  %v7274 = vunpack.c.h.b16 %v7271
  %v7275 = vpack.c.b16 %v7273, %v7273
  %v7276 = vpack.c.b16 %v7274, %v7274
  %7279 = vmatprep.subr.bf16.mxu0 %v6534
  %7280 = vmatpush1.bf16.msra.mxu0 %v6533
  %7281 = vmatprep.subr.bf16.mxu0 %v6536
  %7282 = vmatpush1.bf16.msra.mxu0 %v6535
  %7283 = vmatprep.subr.bf16.mxu0 %v6538
  %7284 = vmatpush1.bf16.msra.mxu0 %v6537
  %7285 = vmatprep.subr.bf16.mxu0 %v6540
  %7286 = vmatpush1.bf16.msra.mxu0 %v6539
  %7287 = vmatprep.subr.bf16.mxu0 %v6542
  %7288 = vmatpush1.bf16.msra.mxu0 %v6541
  %7289 = vmatprep.subr.bf16.mxu0 %v6544
  %7290 = vmatpush1.bf16.msra.mxu0 %v6543
  %7291 = vmatprep.subr.bf16.mxu0 %v6546
  %7292 = vmatpush1.bf16.msra.mxu0 %v6545
  %7293 = vmatprep.subr.bf16.mxu0 %v6548
  %7294 = vmatpush1.bf16.msra.mxu0 %v6547
  %7295 = vmatprep.subr.bf16.mxu0 %v6550
  %7296 = vmatpush1.bf16.msra.mxu0 %v6549
  %7297 = vmatprep.subr.bf16.mxu0 %v6552
  %7298 = vmatpush1.bf16.msra.mxu0 %v6551
  %7299 = vmatprep.subr.bf16.mxu0 %v6554
  %7300 = vmatpush1.bf16.msra.mxu0 %v6553
  %7301 = vmatprep.subr.bf16.mxu0 %v6556
  %7302 = vmatpush1.bf16.msra.mxu0 %v6555
  %7303 = vmatprep.subr.bf16.mxu0 %v6558
  %7304 = vmatpush1.bf16.msra.mxu0 %v6557
  %7305 = vmatprep.subr.bf16.mxu0 %v6560
  %7306 = vmatpush1.bf16.msra.mxu0 %v6559
  %7307 = vmatprep.subr.bf16.mxu0 %v6562
  %7308 = vmatpush1.bf16.msra.mxu0 %v6561
  %7309 = vmatprep.subr.bf16.mxu0 %v6564
  %7310 = vmatpush1.bf16.msra.mxu0 %v6563
  %7311 = vmatprep.mubr.bf16.mxu0 %v7276
  %7312 = vmatmul.mubr.bf16.gmra.mrb[0].mxu0 %v7275
  %v7313 = vpop.f32.mrb[0].mxu0
  %v7314 = vadd.f32 0.0, %v7313
  %v7315 = vpop.f32.mrb[0].mxu0
  %v7316 = vadd.f32 0.0, %v7315
  %v7317 = vpop.f32.mrb[0].mxu0
  %v7318 = vpop.f32.mrb[0].mxu0
  %7319 = vdwg.mxu0
  %v7320 = vpack.c.bf16 %v7314, %v7314
  %v7321 = vpack.c.bf16 %v7316, %v7316
  %s7322 = scalar_lea.vmem %s6, 320
  %v7323 = vld [vmem:[%s7322] sm:$0xf]
  %v7324 = vld [vmem:[%s7322 + $0x4] sm:$0xf]
  %v7325 = vld [vmem:[%s7322 + $0x8] sm:$0xf]
  %v7326 = vld [vmem:[%s7322 + $0xc] sm:$0xf]
  %v7327 = vld [vmem:[%s7322 + $0x10] sm:$0xf]
  %v7328 = vld [vmem:[%s7322 + $0x14] sm:$0xf]
  %v7329 = vld [vmem:[%s7322 + $0x18] sm:$0xf]
  %v7330 = vld [vmem:[%s7322 + $0x1c] sm:$0xf]
  %v7331 = vld [vmem:[%s7322 + $0x20] sm:$0xf]
  %v7332 = vld [vmem:[%s7322 + $0x24] sm:$0xf]
  %v7333 = vld [vmem:[%s7322 + $0x28] sm:$0xf]
  %v7334 = vld [vmem:[%s7322 + $0x2c] sm:$0xf]
  %v7335 = vld [vmem:[%s7322 + $0x30] sm:$0xf]
  %v7336 = vld [vmem:[%s7322 + $0x34] sm:$0xf]
  %v7337 = vld [vmem:[%s7322 + $0x38] sm:$0xf]
  %v7338 = vld [vmem:[%s7322 + $0x3c] sm:$0xf]
  %v7339 = vld [vmem:[%s7322 + $0x40] sm:$0xf]
  %v7340 = vld [vmem:[%s7322 + $0x44] sm:$0xf]
  %v7341 = vld [vmem:[%s7322 + $0x48] sm:$0xf]
  %v7342 = vld [vmem:[%s7322 + $0x4c] sm:$0xf]
  %v7363 = vunpack.c.l.b16 %v7323
  %v7364 = vunpack.c.l.b16 %v7324
  %v7365 = vunpack.c.l.b16 %v7325
  %v7366 = vunpack.c.l.b16 %v7326
  %v7367 = vunpack.c.l.b16 %v7327
  %v7368 = vunpack.c.l.b16 %v7328
  %v7369 = vunpack.c.l.b16 %v7329
  %v7370 = vunpack.c.l.b16 %v7330
  %v7371 = vunpack.c.l.b16 %v7331
  %v7372 = vunpack.c.l.b16 %v7332
  %v7373 = vunpack.c.l.b16 %v7333
  %v7374 = vunpack.c.l.b16 %v7334
  %v7375 = vunpack.c.l.b16 %v7335
  %v7376 = vunpack.c.l.b16 %v7336
  %v7377 = vunpack.c.l.b16 %v7337
  %v7378 = vunpack.c.l.b16 %v7338
  %v7379 = vunpack.c.l.b16 %v7339
  %v7380 = vunpack.c.l.b16 %v7340
  %v7381 = vunpack.c.l.b16 %v7341
  %v7382 = vunpack.c.l.b16 %v7342
  %v7383 = vpack.c.b16 %v7364, %v7363
  %v7384 = vpack.c.b16 %v7366, %v7365
  %v7385 = vpack.c.b16 %v7368, %v7367
  %v7386 = vpack.c.b16 %v7370, %v7369
  %v7387 = vpack.c.b16 %v7372, %v7371
  %v7388 = vpack.c.b16 %v7374, %v7373
  %v7389 = vpack.c.b16 %v7376, %v7375
  %v7390 = vpack.c.b16 %v7378, %v7377
  %v7391 = vpack.c.b16 %v7380, %v7379
  %v7392 = vpack.c.b16 %v7382, %v7381
  %v7404 = vsel %vm6769, %v7321, 0
  %7406 = vmatprep.subr.bf16.mxu0 0
  %7407 = vmatpush1.bf16.msra.mxu0 %v7383
  %7408 = vmatprep.subr.bf16.mxu0 0
  %7409 = vmatpush1.bf16.msra.mxu0 %v7384
  %7410 = vmatprep.subr.bf16.mxu0 0
  %7411 = vmatpush1.bf16.msra.mxu0 %v7385
  %7412 = vmatprep.subr.bf16.mxu0 0
  %7413 = vmatpush1.bf16.msra.mxu0 %v7386
  %7414 = vmatprep.subr.bf16.mxu0 0
  %7415 = vmatpush1.bf16.msra.mxu0 %v7387
  %7416 = vmatprep.subr.bf16.mxu0 0
  %7417 = vmatpush1.bf16.msra.mxu0 %v7388
  %7418 = vmatprep.subr.bf16.mxu0 0
  %7419 = vmatpush1.bf16.msra.mxu0 %v7389
  %7420 = vmatprep.subr.bf16.mxu0 0
  %7421 = vmatpush1.bf16.msra.mxu0 %v7390
  %7422 = vmatprep.subr.bf16.mxu0 0
  %7423 = vmatpush1.bf16.msra.mxu0 %v7391
  %7424 = vmatprep.subr.bf16.mxu0 0
  %7425 = vmatpush1.bf16.msra.mxu0 %v7392
  %7426 = vmatprep.subr.bf16.mxu0 0
  %7427 = vmatpush1.bf16.msra.mxu0 0
  %7428 = vmatprep.subr.bf16.mxu0 0
  %7429 = vmatpush1.bf16.msra.mxu0 0
  %7430 = vmatprep.subr.bf16.mxu0 0
  %7431 = vmatpush1.bf16.msra.mxu0 0
  %7432 = vmatprep.subr.bf16.mxu0 0
  %7433 = vmatpush1.bf16.msra.mxu0 0
  %7434 = vmatprep.subr.bf16.mxu0 0
  %7435 = vmatpush1.bf16.msra.mxu0 0
  %7436 = vmatprep.subr.bf16.mxu0 0
  %7437 = vmatpush1.bf16.msra.mxu0 0
  %7438 = vmatprep.mubr.bf16.mxu0 %v7404
  %7439 = vmatmul.mubr.bf16.gmra.mrb[0].mxu0 %v7320
  %v7440 = vpop.f32.mrb[0].mxu0
  %v7441 = vadd.f32 0.0, %v7440
  %v7442 = vpop.f32.mrb[0].mxu0
  %v7443 = vpop.f32.mrb[0].mxu0
  %v7444 = vpop.f32.mrb[0].mxu0
  %7445 = vdwg.mxu0
  %v7446 = vadd.f32 %v7269, %v7441
  %v7447 = vld [vmem:[%s7] sm:$0x1]
  %v7449 = vlaneseq
  %v7450 = vshrl.u32 %v7449, 7
  %v7451 = vsub.s32 0, %v7450
  %v7452 = vrot.slane %v7447, %v7451
  %v7454 = vadd.f32 %v7446, %v7452
  %v7455 = vmax.f32 %v7454, 0.0
  %v7456 = vpack.c.bf16 %v7455, %v7455
  %v7457 = vld [vmem:[%s8] sm:$0xf]
  %v7458 = vld [vmem:[%s8 + $0x4] sm:$0xf]
  %v7459 = vld [vmem:[%s8 + $0x8] sm:$0xf]
  %v7460 = vld [vmem:[%s8 + $0xc] sm:$0xf]
  %v7461 = vld [vmem:[%s8 + $0x10] sm:$0xf]
  %v7462 = vld [vmem:[%s8 + $0x14] sm:$0xf]
  %v7463 = vld [vmem:[%s8 + $0x18] sm:$0xf]
  %v7464 = vld [vmem:[%s8 + $0x1c] sm:$0xf]
  %v7465 = vld [vmem:[%s8 + $0x20] sm:$0xf]
  %v7466 = vld [vmem:[%s8 + $0x24] sm:$0xf]
  %v7467 = vld [vmem:[%s8 + $0x28] sm:$0xf]
  %v7468 = vld [vmem:[%s8 + $0x2c] sm:$0xf]
  %v7469 = vld [vmem:[%s8 + $0x30] sm:$0xf]
  %v7470 = vld [vmem:[%s8 + $0x34] sm:$0xf]
  %v7471 = vld [vmem:[%s8 + $0x38] sm:$0xf]
  %v7472 = vld [vmem:[%s8 + $0x3c] sm:$0xf]
  %v7473 = vld [vmem:[%s9] sm:$0x1]
  %v7475 = vlaneseq
  %v7476 = vshrl.u32 %v7475, 7
  %v7477 = vsub.s32 0, %v7476
  %v7478 = vrot.slane %v7473, %v7477
  %v7496 = vunpack.c.l.b16 %v7457
  %v7497 = vunpack.c.l.b16 %v7458
  %v7498 = vunpack.c.l.b16 %v7459
  %v7499 = vunpack.c.l.b16 %v7460
  %v7500 = vunpack.c.l.b16 %v7461
  %v7501 = vunpack.c.l.b16 %v7462
  %v7502 = vunpack.c.l.b16 %v7463
  %v7503 = vunpack.c.l.b16 %v7464
  %v7504 = vunpack.c.l.b16 %v7465
  %v7505 = vunpack.c.l.b16 %v7466
  %v7506 = vunpack.c.l.b16 %v7467
  %v7507 = vunpack.c.l.b16 %v7468
  %v7508 = vunpack.c.l.b16 %v7469
  %v7509 = vunpack.c.l.b16 %v7470
  %v7510 = vunpack.c.l.b16 %v7471
  %v7511 = vunpack.c.l.b16 %v7472
  %v7512 = vpack.c.b16 %v7497, %v7496
  %v7513 = vpack.c.b16 %v7499, %v7498
  %v7514 = vpack.c.b16 %v7501, %v7500
  %v7515 = vpack.c.b16 %v7503, %v7502
  %v7516 = vpack.c.b16 %v7505, %v7504
  %v7517 = vpack.c.b16 %v7507, %v7506
  %v7518 = vpack.c.b16 %v7509, %v7508
  %v7519 = vpack.c.b16 %v7511, %v7510
  %7528 = vmatprep.subr.bf16.mxu0 0
  %7529 = vmatpush1.bf16.msra.mxu0 %v7512
  %7530 = vmatprep.subr.bf16.mxu0 0
  %7531 = vmatpush1.bf16.msra.mxu0 %v7513
  %7532 = vmatprep.subr.bf16.mxu0 0
  %7533 = vmatpush1.bf16.msra.mxu0 %v7514
  %7534 = vmatprep.subr.bf16.mxu0 0
  %7535 = vmatpush1.bf16.msra.mxu0 %v7515
  %7536 = vmatprep.subr.bf16.mxu0 0
  %7537 = vmatpush1.bf16.msra.mxu0 %v7516
  %7538 = vmatprep.subr.bf16.mxu0 0
  %7539 = vmatpush1.bf16.msra.mxu0 %v7517
  %7540 = vmatprep.subr.bf16.mxu0 0
  %7541 = vmatpush1.bf16.msra.mxu0 %v7518
  %7542 = vmatprep.subr.bf16.mxu0 0
  %7543 = vmatpush1.bf16.msra.mxu0 %v7519
  %7544 = vmatprep.subr.bf16.mxu0 0
  %7545 = vmatpush1.bf16.msra.mxu0 0
  %7546 = vmatprep.subr.bf16.mxu0 0
  %7547 = vmatpush1.bf16.msra.mxu0 0
  %7548 = vmatprep.subr.bf16.mxu0 0
  %7549 = vmatpush1.bf16.msra.mxu0 0
  %7550 = vmatprep.subr.bf16.mxu0 0
  %7551 = vmatpush1.bf16.msra.mxu0 0
  %7552 = vmatprep.subr.bf16.mxu0 0
  %7553 = vmatpush1.bf16.msra.mxu0 0
  %7554 = vmatprep.subr.bf16.mxu0 0
  %7555 = vmatpush1.bf16.msra.mxu0 0
  %7556 = vmatprep.subr.bf16.mxu0 0
  %7557 = vmatpush1.bf16.msra.mxu0 0
  %7558 = vmatprep.subr.bf16.mxu0 0
  %7559 = vmatpush1.bf16.msra.mxu0 0
  %7560 = vmatprep.mubr.bf16.mxu0 0
  %7561 = vmatmul.mubr.bf16.gmra.mrb[0].mxu0 %v7456
  %v7562 = vpop.f32.mrb[0].mxu0
  %v7563 = vadd.f32 %v7478, %v7562
  %v7564 = vpop.f32.mrb[0].mxu0
  %v7565 = vpop.f32.mrb[0].mxu0
  %v7566 = vpop.f32.mrb[0].mxu0
  %7567 = vdwg.mxu0
  %v7568 = vmax.f32 %v7563, 0.0
  %v7569 = vpack.c.bf16 %v7568, %v7568
  %v7570 = vld [vmem:[%s10] sm:$0xf]
  %v7571 = vld [vmem:[%s10 + $0x4] sm:$0xf]
  %v7572 = vld [vmem:[%s10 + $0x8] sm:$0xf]
  %v7573 = vld [vmem:[%s10 + $0xc] sm:$0xf]
  %v7574 = vld [vmem:[%s10 + $0x10] sm:$0xf]
  %v7575 = vld [vmem:[%s10 + $0x14] sm:$0xf]
  %v7576 = vld [vmem:[%s10 + $0x18] sm:$0xf]
  %v7577 = vld [vmem:[%s10 + $0x1c] sm:$0xf]
  %v7578 = vld [vmem:[%s10 + $0x20] sm:$0xf]
  %v7579 = vld [vmem:[%s10 + $0x24] sm:$0xf]
  %v7580 = vld [vmem:[%s10 + $0x28] sm:$0xf]
  %v7581 = vld [vmem:[%s10 + $0x2c] sm:$0xf]
  %v7582 = vld [vmem:[%s10 + $0x30] sm:$0xf]
  %v7583 = vld [vmem:[%s10 + $0x34] sm:$0xf]
  %v7584 = vld [vmem:[%s10 + $0x38] sm:$0xf]
  %v7585 = vld [vmem:[%s10 + $0x3c] sm:$0xf]
  %v7586 = vld [vmem:[%s11] sm:$0x1]
  %v7588 = vlaneseq
  %v7589 = vshrl.u32 %v7588, 7
  %v7590 = vsub.s32 0, %v7589
  %v7591 = vrot.slane %v7586, %v7590
  %v7609 = vunpack.c.l.b16 %v7570
  %v7610 = vunpack.c.l.b16 %v7571
  %v7611 = vunpack.c.l.b16 %v7572
  %v7612 = vunpack.c.l.b16 %v7573
  %v7613 = vunpack.c.l.b16 %v7574
  %v7614 = vunpack.c.l.b16 %v7575
  %v7615 = vunpack.c.l.b16 %v7576
  %v7616 = vunpack.c.l.b16 %v7577
  %v7617 = vunpack.c.l.b16 %v7578
  %v7618 = vunpack.c.l.b16 %v7579
  %v7619 = vunpack.c.l.b16 %v7580
  %v7620 = vunpack.c.l.b16 %v7581
  %v7621 = vunpack.c.l.b16 %v7582
  %v7622 = vunpack.c.l.b16 %v7583
  %v7623 = vunpack.c.l.b16 %v7584
  %v7624 = vunpack.c.l.b16 %v7585
  %v7625 = vpack.c.b16 %v7610, %v7609
  %v7626 = vpack.c.b16 %v7612, %v7611
  %v7627 = vpack.c.b16 %v7614, %v7613
  %v7628 = vpack.c.b16 %v7616, %v7615
  %v7629 = vpack.c.b16 %v7618, %v7617
  %v7630 = vpack.c.b16 %v7620, %v7619
  %v7631 = vpack.c.b16 %v7622, %v7621
  %v7632 = vpack.c.b16 %v7624, %v7623
  %7641 = vmatprep.subr.bf16.mxu0 0
  %7642 = vmatpush1.bf16.msra.mxu0 %v7625
  %7643 = vmatprep.subr.bf16.mxu0 0
  %7644 = vmatpush1.bf16.msra.mxu0 %v7626
  %7645 = vmatprep.subr.bf16.mxu0 0
  %7646 = vmatpush1.bf16.msra.mxu0 %v7627
  %7647 = vmatprep.subr.bf16.mxu0 0
  %7648 = vmatpush1.bf16.msra.mxu0 %v7628
  %7649 = vmatprep.subr.bf16.mxu0 0
  %7650 = vmatpush1.bf16.msra.mxu0 %v7629
  %7651 = vmatprep.subr.bf16.mxu0 0
  %7652 = vmatpush1.bf16.msra.mxu0 %v7630
  %7653 = vmatprep.subr.bf16.mxu0 0
  %7654 = vmatpush1.bf16.msra.mxu0 %v7631
  %7655 = vmatprep.subr.bf16.mxu0 0
  %7656 = vmatpush1.bf16.msra.mxu0 %v7632
  %7657 = vmatprep.subr.bf16.mxu0 0
  %7658 = vmatpush1.bf16.msra.mxu0 0
  %7659 = vmatprep.subr.bf16.mxu0 0
  %7660 = vmatpush1.bf16.msra.mxu0 0
  %7661 = vmatprep.subr.bf16.mxu0 0
  %7662 = vmatpush1.bf16.msra.mxu0 0
  %7663 = vmatprep.subr.bf16.mxu0 0
  %7664 = vmatpush1.bf16.msra.mxu0 0
  %7665 = vmatprep.subr.bf16.mxu0 0
  %7666 = vmatpush1.bf16.msra.mxu0 0
  %7667 = vmatprep.subr.bf16.mxu0 0
  %7668 = vmatpush1.bf16.msra.mxu0 0
  %7669 = vmatprep.subr.bf16.mxu0 0
  %7670 = vmatpush1.bf16.msra.mxu0 0
  %7671 = vmatprep.subr.bf16.mxu0 0
  %7672 = vmatpush1.bf16.msra.mxu0 0
  %7673 = vmatprep.mubr.bf16.mxu0 0
  %7674 = vmatmul.mubr.bf16.gmra.mrb[0].mxu0 %v7569
  %v7675 = vpop.f32.mrb[0].mxu0
  %v7676 = vadd.f32 %v7591, %v7675
  %v7677 = vpop.f32.mrb[0].mxu0
  %v7678 = vpop.f32.mrb[0].mxu0
  %v7679 = vpop.f32.mrb[0].mxu0
  %7680 = vdwg.mxu0
  %7681 = vst [vmem:[%s12] sm:$0xff] %v7676
  // Predicated region
  $region50: #{net_forward.1} parent=0 // pred_check
    _
  $region51: #{net_forward.1} parent=0 // pred_check_branch
    %7683 = sbr.rel (0) target = $region53
  $region52: #{net_forward.1} parent=0 // pred_region
    _
  $region53: #{net_forward.1} parent=0 // pred_fallthru
    _
  // Predicated region
  $region54: #{net_forward.1} parent=0 // pred_check
    _
  $region55: #{net_forward.1} parent=0 // pred_check_branch
    %7685 = sbr.rel (0) target = $region57
  $region56: #{net_forward.1} parent=0 // pred_region
    _
  $region57: #{net_forward.1} parent=0 // pred_fallthru
    _

</llo_original>
